<compile_context>
chip_gen: v7x
topology: tpu7x:2x2x1
jax: 0.10.0
libtpu: 0.0.40
codegen_flags: <defaults>
</compile_context>

<pallas_src>
import functools

import jax
import jax.numpy as jnp
from jax.experimental import pallas as pl
from jax.experimental.pallas import tpu as pltpu

_CIN_PAD = 8  # stem input channels [pan(1), ms(4)] zero-padded to 8


# ----------------------------------------------------------------------------
# Fused kernel: entire HFeatureProcess forward for one sample per grid step.
# ----------------------------------------------------------------------------
def _stp_kernel(x_ref, mask_ref, sw_ref, sb_ref, iw_ref,
                w1_ref, b1_ref, g_ref, bt_ref, w2_ref, b2_ref,
                fw_ref, fb_ref, o_ref, *, H, W, C, clamp, eps):
    HW = H * W
    Ch = C // 2
    PAD = ((W + 1 + 127) // 128) * 128      # lane pad >= W+1, 128-aligned concat

    mlo = mask_ref[0:1, :]                  # (1, HW): 0.0 where w == 0
    mhi = mask_ref[1:2, :]                  # (1, HW): 0.0 where w == W-1

    def conv3x3(a, w9, b):
        # a: (Cin, HW)  w9: (Cout, 9*Cin)  b: (Cout, 1)  ->  (Cout, HW)
        cin = a.shape[0]
        z = jnp.zeros((cin, PAD), jnp.float32)
        apad = jnp.concatenate([z, a, z], axis=1)       # 128-aligned lane concat
        taps = []
        for dy in range(3):
            for dx in range(3):
                off = (dy - 1) * W + (dx - 1)
                t = apad[:, PAD + off:PAD + off + HW]   # shifted tap (Cin, HW)
                if dx == 0:
                    t = t * mlo                         # kill left-column wrap
                elif dx == 2:
                    t = t * mhi                         # kill right-column wrap
                taps.append(t)
        patches = jnp.concatenate(taps, axis=0)         # (9*Cin, HW), sublane-aligned
        y = jnp.dot(w9, patches, preferred_element_type=jnp.float32)
        return y + b

    chan = jax.lax.broadcasted_iota(jnp.int32, (C, 1), 0)
    hin_f = (chan < Ch).astype(jnp.float32)             # 1.0 on first C/2 channels

    def hin_res(x, w1, b1, g, bt, w2, b2):
        # LeakyReLU slope here is 1.0 (InvBlock passes d=1) => identity; elided.
        r = conv3x3(x, w1, b1)
        m = jnp.mean(r, axis=1, keepdims=True)                        # (C, 1)
        v = jnp.mean(r * r, axis=1, keepdims=True) - m * m            # biased var
        v = jnp.maximum(v, 0.0)
        rn = (r - m) * jax.lax.rsqrt(v + eps) * g + bt
        r = rn * hin_f + r * (1.0 - hin_f)   # IN on first half, passthrough rest
        return x + conv3x3(r, w2, b2)

    # fused pan/ms stem conv: (CIN_PAD, HW) -> (2C, HW) == cat([panf, msf])
    x = conv3x3(x_ref[0], sw_ref[...], sb_ref[...])

    for blk in range(5):                                 # 5 InvBlocks, unrolled
        x = jnp.dot(iw_ref[blk], x, preferred_element_type=jnp.float32)  # inv 1x1
        x1 = x[:C, :]
        x2 = x[C:, :]
        i = 3 * blk
        y1 = x1 + hin_res(x2, w1_ref[i], b1_ref[i], g_ref[i],
                          bt_ref[i], w2_ref[i], b2_ref[i])               # F
        h = hin_res(y1, w1_ref[i + 1], b1_ref[i + 1], g_ref[i + 1],
                    bt_ref[i + 1], w2_ref[i + 1], b2_ref[i + 1])         # H
        gg = hin_res(y1, w1_ref[i + 2], b1_ref[i + 2], g_ref[i + 2],
                     bt_ref[i + 2], w2_ref[i + 2], b2_ref[i + 2])        # G
        s = clamp * jnp.tanh(0.5 * h)        # == clamp * (2*sigmoid(h) - 1)
        y2 = x2 * jnp.exp(s) + gg
        x = jnp.concatenate([y1, y2], axis=0)

    o_ref[0] = (jnp.dot(fw_ref[...], x, preferred_element_type=jnp.float32)
                + fb_ref[...])


# ----------------------------------------------------------------------------
# Weight packing (torch OIHW -> im2col / (C, HW)-layout matrices), pure JAX.
# ----------------------------------------------------------------------------
def _pack_w3(w):
    # torch OIHW (Cout, Cin, 3, 3) -> (Cout, 9*Cin); columns ordered (dy, dx, ci)
    co, ci = w.shape[0], w.shape[1]
    return jnp.transpose(w, (0, 2, 3, 1)).reshape(co, 9 * ci)


def _pack_params(p, c):
    # fused stem: rows [0:c] = panconv (reads input chan 0), rows [c:2c] = msconv.
    stem = jnp.zeros((2 * c, _CIN_PAD, 3, 3), jnp.float32)
    stem = stem.at[:c, 0:1].set(p['pan_w'])
    stem = stem.at[c:, 1:5].set(p['ms_w'])
    stem_w = _pack_w3(stem)                                         # (2c, 72)
    stem_b = jnp.concatenate([p['pan_b'], p['ms_b']]).reshape(2 * c, 1)

    inv_w = jnp.stack([b['invW'] for b in p['blocks']])             # (5, 2c, 2c)

    subs = [b[name] for b in p['blocks'] for name in ('F', 'H', 'G')]
    n = len(subs)
    one = jnp.ones((c - c // 2,), jnp.float32)      # upper half is masked out
    zero = jnp.zeros((c - c // 2,), jnp.float32)
    w1 = jnp.stack([_pack_w3(s['w1']) for s in subs])               # (15, c, 9c)
    w2 = jnp.stack([_pack_w3(s['w2']) for s in subs])
    b1 = jnp.stack([s['b1'] for s in subs]).reshape(n, c, 1)
    b2 = jnp.stack([s['b2'] for s in subs]).reshape(n, c, 1)
    g = jnp.stack([jnp.concatenate([s['gamma'], one]) for s in subs]).reshape(n, c, 1)
    bt = jnp.stack([jnp.concatenate([s['beta'], zero]) for s in subs]).reshape(n, c, 1)

    fuse_w = p['fuse_w']                                            # (c, 2c)
    fuse_b = p['fuse_b'].reshape(c, 1)
    return (stem_w, stem_b, inv_w, w1, b1, g, bt, w2, b2, fuse_w, fuse_b)


def h_feature_process(msh, panh, params, c):
    """msh: (N,4,H,W), panh: (N,1,H,W) -> (N,c,H,W). NCHW, like the torch module."""
    N, _, H, W = msh.shape
    HW = H * W

    # channel-concat [pan, ms, 0-pad] and flatten spatial dims (no transposes needed).
    x = jnp.concatenate(
        [panh, msh, jnp.zeros((N, _CIN_PAD - 5, H, W), msh.dtype)], axis=1)
    x = x.reshape(N, _CIN_PAD, HW).astype(jnp.float32)

    col = jnp.arange(HW, dtype=jnp.int32) % W
    border = jnp.stack([col != 0, col != W - 1]).astype(jnp.float32)    # (2, HW)

    packed = _pack_params(params, c)
    kernel = functools.partial(_stp_kernel, H=H, W=W, C=c, clamp=0.8, eps=1e-5)

    def whole(shape):
        return pl.BlockSpec(shape, lambda n_, _nd=len(shape): (0,) * _nd)

    out = pl.pallas_call(
        kernel,
        out_shape=jax.ShapeDtypeStruct((N, c, HW), jnp.float32),
        grid=(N,),
        in_specs=[pl.BlockSpec((1, _CIN_PAD, HW), lambda n_: (n_, 0, 0)),
                  whole((2, HW))] + [whole(t.shape) for t in packed],
        out_specs=pl.BlockSpec((1, c, HW), lambda n_: (n_, 0, 0)),
        compiler_params=pltpu.CompilerParams(
            dimension_semantics=("parallel",),
            vmem_limit_bytes=32 * 1024 * 1024),
    )(x, border, *packed)
    return out.reshape(N, c, H, W)


# ----------------------------------------------------------------------------
# Deterministic synthetic parameters (torch-layout shapes).
# ----------------------------------------------------------------------------
def _init_hinres(key, c):
    k = jax.random.split(key, 4)
    return dict(
        w1=0.1 * jax.random.normal(k[0], (c, c, 3, 3), jnp.float32),
        b1=0.01 * jax.random.normal(k[1], (c,), jnp.float32),
        w2=0.1 * jax.random.normal(k[2], (c, c, 3, 3), jnp.float32),
        b2=0.01 * jax.random.normal(k[3], (c,), jnp.float32),
        gamma=jnp.ones((c // 2,), jnp.float32),    # InstanceNorm2d affine defaults
        beta=jnp.zeros((c // 2,), jnp.float32),
    )


def _init_invblock(key, c):
    k = jax.random.split(key, 4)
    w = jax.random.normal(k[0], (2 * c, 2 * c), jnp.float32)
    q, _ = jnp.linalg.qr(w)            # orthogonal 1x1-conv weight (Glow-style init)
    return dict(invW=q.astype(jnp.float32),
                F=_init_hinres(k[1], c),
                H=_init_hinres(k[2], c),
                G=_init_hinres(k[3], c))


def init_params(key, c):
    keys = jax.random.split(key, 10)
    return dict(
        blocks=[_init_invblock(keys[i], c) for i in range(5)],
        pan_w=0.1 * jax.random.normal(keys[5], (c, 1, 3, 3), jnp.float32),
        pan_b=0.01 * jax.random.normal(keys[6], (c,), jnp.float32),
        ms_w=0.1 * jax.random.normal(keys[7], (c, 4, 3, 3), jnp.float32),
        ms_b=0.01 * jax.random.normal(keys[8], (c,), jnp.float32),
        fuse_w=0.1 * jax.random.normal(keys[9], (c, 2 * c), jnp.float32),
        fuse_b=jnp.zeros((c,), jnp.float32),
    )


if __name__ == "__main__":
    C = 8
    N, H, W = 2, 16, 16
    key = jax.random.PRNGKey(0)
    kp, km, kpn = jax.random.split(key, 3)
    params = init_params(kp, C)
    msh = jax.random.normal(km, (N, 4, H, W), jnp.float32)    # NCHW like torch
    panh = jax.random.normal(kpn, (N, 1, H, W), jnp.float32)

    fwd = jax.jit(functools.partial(h_feature_process, c=C))
    out = fwd(msh, panh, params)
    jax.block_until_ready(out)
    assert out.shape == (N, C, H, W), out.shape
    assert bool(jnp.all(jnp.isfinite(out)))
    print("KERNEL_OK")
</pallas_src>

<mosaic_0001>
module attributes {stable_mosaic.version = 11 : i64} {
  func.func @_stp_kernel(%arg0: i32, %arg1: memref<1x8x256xf32, #tpu.memory_space<vmem>>, %arg2: memref<2x256xf32, #tpu.memory_space<vmem>>, %arg3: memref<16x72xf32, #tpu.memory_space<vmem>>, %arg4: memref<16x1xf32, #tpu.memory_space<vmem>>, %arg5: memref<5x16x16xf32, #tpu.memory_space<vmem>>, %arg6: memref<15x8x72xf32, #tpu.memory_space<vmem>>, %arg7: memref<15x8x1xf32, #tpu.memory_space<vmem>>, %arg8: memref<15x8x1xf32, #tpu.memory_space<vmem>>, %arg9: memref<15x8x1xf32, #tpu.memory_space<vmem>>, %arg10: memref<15x8x72xf32, #tpu.memory_space<vmem>>, %arg11: memref<15x8x1xf32, #tpu.memory_space<vmem>>, %arg12: memref<8x16xf32, #tpu.memory_space<vmem>>, %arg13: memref<8x1xf32, #tpu.memory_space<vmem>>, %arg14: memref<1x8x256xf32, #tpu.memory_space<vmem>>) attributes {dimension_semantics = [#tpu.dimension_semantics<parallel>], iteration_bounds = array<i64: 2>, scalar_prefetch = 0 : i64, scratch_operands = 0 : i64, tpu.core_type = #tpu.core_type<tc>, window_params = [{transform_indices = @transform_0, window_bounds = array<i64: 1, 8, 256>}, {pipeline_mode = #tpu.pipeline_mode<synchronous>, transform_indices = @transform_1, window_bounds = array<i64: 2, 256>}, {pipeline_mode = #tpu.pipeline_mode<synchronous>, transform_indices = @transform_2, window_bounds = array<i64: 16, 72>}, {pipeline_mode = #tpu.pipeline_mode<synchronous>, transform_indices = @transform_3, window_bounds = array<i64: 16, 1>}, {pipeline_mode = #tpu.pipeline_mode<synchronous>, transform_indices = @transform_4, window_bounds = array<i64: 5, 16, 16>}, {pipeline_mode = #tpu.pipeline_mode<synchronous>, transform_indices = @transform_5, window_bounds = array<i64: 15, 8, 72>}, {pipeline_mode = #tpu.pipeline_mode<synchronous>, transform_indices = @transform_6, window_bounds = array<i64: 15, 8, 1>}, {pipeline_mode = #tpu.pipeline_mode<synchronous>, transform_indices = @transform_7, window_bounds = array<i64: 15, 8, 1>}, {pipeline_mode = #tpu.pipeline_mode<synchronous>, transform_indices = @transform_8, window_bounds = array<i64: 15, 8, 1>}, {pipeline_mode = #tpu.pipeline_mode<synchronous>, transform_indices = @transform_9, window_bounds = array<i64: 15, 8, 72>}, {pipeline_mode = #tpu.pipeline_mode<synchronous>, transform_indices = @transform_10, window_bounds = array<i64: 15, 8, 1>}, {pipeline_mode = #tpu.pipeline_mode<synchronous>, transform_indices = @transform_11, window_bounds = array<i64: 8, 16>}, {pipeline_mode = #tpu.pipeline_mode<synchronous>, transform_indices = @transform_12, window_bounds = array<i64: 8, 1>}, {transform_indices = @transform_13, window_bounds = array<i64: 1, 8, 256>}]} {
    %c0 = arith.constant 0 : index
    %c0_0 = arith.constant 0 : index
    %0 = vector.load %arg2[%c0, %c0_0] : memref<2x256xf32, #tpu.memory_space<vmem>>, vector<1x256xf32>
    %c1 = arith.constant 1 : index
    %c0_1 = arith.constant 0 : index
    %1 = vector.load %arg2[%c1, %c0_1] : memref<2x256xf32, #tpu.memory_space<vmem>>, vector<1x256xf32>
    %2 = tpu.iota {dimensions = array<i32: 0>} : vector<8x1xi32>
    %c4_i32 = arith.constant 4 : i32
    %3 = vector.broadcast %c4_i32 : i32 to vector<8x1xi32>
    %4 = arith.cmpi slt, %2, %3 : vector<8x1xi32>
    %5 = arith.extui %4 : vector<8x1xi1> to vector<8x1xi32>
    %6 = arith.sitofp %5 : vector<8x1xi32> to vector<8x1xf32>
    %c0_2 = arith.constant 0 : index
    %c0_3 = arith.constant 0 : index
    %c0_4 = arith.constant 0 : index
    %7 = vector.load %arg1[%c0_2, %c0_3, %c0_4] : memref<1x8x256xf32, #tpu.memory_space<vmem>>, vector<1x8x256xf32>
    %8 = vector.shape_cast %7 : vector<1x8x256xf32> to vector<8x256xf32>
    %c0_5 = arith.constant 0 : index
    %c0_6 = arith.constant 0 : index
    %9 = vector.load %arg3[%c0_5, %c0_6] : memref<16x72xf32, #tpu.memory_space<vmem>>, vector<16x72xf32>
    %c0_7 = arith.constant 0 : index
    %c0_8 = arith.constant 0 : index
    %10 = vector.load %arg4[%c0_7, %c0_8] : memref<16x1xf32, #tpu.memory_space<vmem>>, vector<16x1xf32>
    %cst = arith.constant 0.000000e+00 : f32
    %11 = vector.broadcast %cst : f32 to vector<8x128xf32>
    %12 = tpu.concatenate %11, %8, %11 in 1 : vector<8x128xf32>, vector<8x256xf32>, vector<8x128xf32> -> vector<8x512xf32>
    %13 = vector.extract_strided_slice %12 {offsets = [0, 111], sizes = [8, 256], strides = [1, 1]} : vector<8x512xf32> to vector<8x256xf32>
    %14 = vector.broadcast %0 : vector<1x256xf32> to vector<8x256xf32>
    %15 = arith.mulf %13, %14 : vector<8x256xf32>
    %16 = vector.extract_strided_slice %12 {offsets = [0, 112], sizes = [8, 256], strides = [1, 1]} : vector<8x512xf32> to vector<8x256xf32>
    %17 = vector.extract_strided_slice %12 {offsets = [0, 113], sizes = [8, 256], strides = [1, 1]} : vector<8x512xf32> to vector<8x256xf32>
    %18 = vector.broadcast %1 : vector<1x256xf32> to vector<8x256xf32>
    %19 = arith.mulf %17, %18 : vector<8x256xf32>
    %20 = vector.extract_strided_slice %12 {offsets = [0, 127], sizes = [8, 256], strides = [1, 1]} : vector<8x512xf32> to vector<8x256xf32>
    %21 = vector.broadcast %0 : vector<1x256xf32> to vector<8x256xf32>
    %22 = arith.mulf %20, %21 : vector<8x256xf32>
    %23 = vector.extract_strided_slice %12 {offsets = [0, 128], sizes = [8, 256], strides = [1, 1]} : vector<8x512xf32> to vector<8x256xf32>
    %24 = vector.extract_strided_slice %12 {offsets = [0, 129], sizes = [8, 256], strides = [1, 1]} : vector<8x512xf32> to vector<8x256xf32>
    %25 = vector.broadcast %1 : vector<1x256xf32> to vector<8x256xf32>
    %26 = arith.mulf %24, %25 : vector<8x256xf32>
    %27 = vector.extract_strided_slice %12 {offsets = [0, 143], sizes = [8, 256], strides = [1, 1]} : vector<8x512xf32> to vector<8x256xf32>
    %28 = vector.broadcast %0 : vector<1x256xf32> to vector<8x256xf32>
    %29 = arith.mulf %27, %28 : vector<8x256xf32>
    %30 = vector.extract_strided_slice %12 {offsets = [0, 144], sizes = [8, 256], strides = [1, 1]} : vector<8x512xf32> to vector<8x256xf32>
    %31 = vector.extract_strided_slice %12 {offsets = [0, 145], sizes = [8, 256], strides = [1, 1]} : vector<8x512xf32> to vector<8x256xf32>
    %32 = vector.broadcast %1 : vector<1x256xf32> to vector<8x256xf32>
    %33 = arith.mulf %31, %32 : vector<8x256xf32>
    %34 = tpu.concatenate %15, %16, %19, %22, %23, %26, %29, %30, %33 in 0 : vector<8x256xf32>, vector<8x256xf32>, vector<8x256xf32>, vector<8x256xf32>, vector<8x256xf32>, vector<8x256xf32>, vector<8x256xf32>, vector<8x256xf32>, vector<8x256xf32> -> vector<72x256xf32>
    %cst_9 = arith.constant dense<0.000000e+00> : vector<16x256xf32>
    %35 = tpu.matmul %9, %34, %cst_9 {dimension_numbers = #tpu.dot_dimension_numbers<[1], [0], [0], [1], [0, 0, 1, 1], [], []>} : vector<16x72xf32>, vector<72x256xf32>, vector<16x256xf32> -> vector<16x256xf32>
    %36 = vector.broadcast %10 : vector<16x1xf32> to vector<16x256xf32>
    %37 = arith.addf %35, %36 : vector<16x256xf32>
    %c0_10 = arith.constant 0 : index
    %c0_11 = arith.constant 0 : index
    %c0_12 = arith.constant 0 : index
    %38 = vector.load %arg5[%c0_10, %c0_11, %c0_12] : memref<5x16x16xf32, #tpu.memory_space<vmem>>, vector<1x16x16xf32>
    %39 = vector.shape_cast %38 : vector<1x16x16xf32> to vector<16x16xf32>
    %cst_13 = arith.constant dense<0.000000e+00> : vector<16x256xf32>
    %40 = tpu.matmul %39, %37, %cst_13 {dimension_numbers = #tpu.dot_dimension_numbers<[1], [0], [0], [1], [0, 0, 1, 1], [], []>} : vector<16x16xf32>, vector<16x256xf32>, vector<16x256xf32> -> vector<16x256xf32>
    %41 = vector.extract_strided_slice %40 {offsets = [0, 0], sizes = [8, 256], strides = [1, 1]} : vector<16x256xf32> to vector<8x256xf32>
    %42 = vector.extract_strided_slice %40 {offsets = [8, 0], sizes = [8, 256], strides = [1, 1]} : vector<16x256xf32> to vector<8x256xf32>
    %c0_14 = arith.constant 0 : index
    %c0_15 = arith.constant 0 : index
    %c0_16 = arith.constant 0 : index
    %43 = vector.load %arg6[%c0_14, %c0_15, %c0_16] : memref<15x8x72xf32, #tpu.memory_space<vmem>>, vector<1x8x72xf32>
    %44 = vector.shape_cast %43 : vector<1x8x72xf32> to vector<8x72xf32>
    %c0_17 = arith.constant 0 : index
    %c0_18 = arith.constant 0 : index
    %c0_19 = arith.constant 0 : index
    %45 = vector.load %arg7[%c0_17, %c0_18, %c0_19] : memref<15x8x1xf32, #tpu.memory_space<vmem>>, vector<1x8x1xf32>
    %46 = vector.shape_cast %45 : vector<1x8x1xf32> to vector<8x1xf32>
    %c0_20 = arith.constant 0 : index
    %c0_21 = arith.constant 0 : index
    %c0_22 = arith.constant 0 : index
    %47 = vector.load %arg8[%c0_20, %c0_21, %c0_22] : memref<15x8x1xf32, #tpu.memory_space<vmem>>, vector<1x8x1xf32>
    %48 = vector.shape_cast %47 : vector<1x8x1xf32> to vector<8x1xf32>
    %c0_23 = arith.constant 0 : index
    %c0_24 = arith.constant 0 : index
    %c0_25 = arith.constant 0 : index
    %49 = vector.load %arg9[%c0_23, %c0_24, %c0_25] : memref<15x8x1xf32, #tpu.memory_space<vmem>>, vector<1x8x1xf32>
    %50 = vector.shape_cast %49 : vector<1x8x1xf32> to vector<8x1xf32>
    %c0_26 = arith.constant 0 : index
    %c0_27 = arith.constant 0 : index
    %c0_28 = arith.constant 0 : index
    %51 = vector.load %arg10[%c0_26, %c0_27, %c0_28] : memref<15x8x72xf32, #tpu.memory_space<vmem>>, vector<1x8x72xf32>
    %52 = vector.shape_cast %51 : vector<1x8x72xf32> to vector<8x72xf32>
    %c0_29 = arith.constant 0 : index
    %c0_30 = arith.constant 0 : index
    %c0_31 = arith.constant 0 : index
    %53 = vector.load %arg11[%c0_29, %c0_30, %c0_31] : memref<15x8x1xf32, #tpu.memory_space<vmem>>, vector<1x8x1xf32>
    %54 = vector.shape_cast %53 : vector<1x8x1xf32> to vector<8x1xf32>
    %cst_32 = arith.constant 0.000000e+00 : f32
    %55 = vector.broadcast %cst_32 : f32 to vector<8x128xf32>
    %56 = tpu.concatenate %55, %42, %55 in 1 : vector<8x128xf32>, vector<8x256xf32>, vector<8x128xf32> -> vector<8x512xf32>
    %57 = vector.extract_strided_slice %56 {offsets = [0, 111], sizes = [8, 256], strides = [1, 1]} : vector<8x512xf32> to vector<8x256xf32>
    %58 = vector.broadcast %0 : vector<1x256xf32> to vector<8x256xf32>
    %59 = arith.mulf %57, %58 : vector<8x256xf32>
    %60 = vector.extract_strided_slice %56 {offsets = [0, 112], sizes = [8, 256], strides = [1, 1]} : vector<8x512xf32> to vector<8x256xf32>
    %61 = vector.extract_strided_slice %56 {offsets = [0, 113], sizes = [8, 256], strides = [1, 1]} : vector<8x512xf32> to vector<8x256xf32>
    %62 = vector.broadcast %1 : vector<1x256xf32> to vector<8x256xf32>
    %63 = arith.mulf %61, %62 : vector<8x256xf32>
    %64 = vector.extract_strided_slice %56 {offsets = [0, 127], sizes = [8, 256], strides = [1, 1]} : vector<8x512xf32> to vector<8x256xf32>
    %65 = vector.broadcast %0 : vector<1x256xf32> to vector<8x256xf32>
    %66 = arith.mulf %64, %65 : vector<8x256xf32>
    %67 = vector.extract_strided_slice %56 {offsets = [0, 128], sizes = [8, 256], strides = [1, 1]} : vector<8x512xf32> to vector<8x256xf32>
    %68 = vector.extract_strided_slice %56 {offsets = [0, 129], sizes = [8, 256], strides = [1, 1]} : vector<8x512xf32> to vector<8x256xf32>
    %69 = vector.broadcast %1 : vector<1x256xf32> to vector<8x256xf32>
    %70 = arith.mulf %68, %69 : vector<8x256xf32>
    %71 = vector.extract_strided_slice %56 {offsets = [0, 143], sizes = [8, 256], strides = [1, 1]} : vector<8x512xf32> to vector<8x256xf32>
    %72 = vector.broadcast %0 : vector<1x256xf32> to vector<8x256xf32>
    %73 = arith.mulf %71, %72 : vector<8x256xf32>
    %74 = vector.extract_strided_slice %56 {offsets = [0, 144], sizes = [8, 256], strides = [1, 1]} : vector<8x512xf32> to vector<8x256xf32>
    %75 = vector.extract_strided_slice %56 {offsets = [0, 145], sizes = [8, 256], strides = [1, 1]} : vector<8x512xf32> to vector<8x256xf32>
    %76 = vector.broadcast %1 : vector<1x256xf32> to vector<8x256xf32>
    %77 = arith.mulf %75, %76 : vector<8x256xf32>
    %78 = tpu.concatenate %59, %60, %63, %66, %67, %70, %73, %74, %77 in 0 : vector<8x256xf32>, vector<8x256xf32>, vector<8x256xf32>, vector<8x256xf32>, vector<8x256xf32>, vector<8x256xf32>, vector<8x256xf32>, vector<8x256xf32>, vector<8x256xf32> -> vector<72x256xf32>
    %cst_33 = arith.constant dense<0.000000e+00> : vector<8x256xf32>
    %79 = tpu.matmul %44, %78, %cst_33 {dimension_numbers = #tpu.dot_dimension_numbers<[1], [0], [0], [1], [0, 0, 1, 1], [], []>} : vector<8x72xf32>, vector<72x256xf32>, vector<8x256xf32> -> vector<8x256xf32>
    %80 = vector.broadcast %46 : vector<8x1xf32> to vector<8x256xf32>
    %81 = arith.addf %79, %80 : vector<8x256xf32>
    %cst_34 = arith.constant dense<0.000000e+00> : vector<8xf32>
    %82 = vector.multi_reduction <add>, %81, %cst_34 [1] : vector<8x256xf32> to vector<8xf32>
    %83 = vector.shape_cast %82 : vector<8xf32> to vector<8x1xf32>
    %cst_35 = arith.constant 2.560000e+02 : f32
    %84 = vector.broadcast %cst_35 : f32 to vector<8x1xf32>
    %85 = arith.divf %83, %84 : vector<8x1xf32>
    %86 = arith.mulf %81, %81 : vector<8x256xf32>
    %cst_36 = arith.constant dense<0.000000e+00> : vector<8xf32>
    %87 = vector.multi_reduction <add>, %86, %cst_36 [1] : vector<8x256xf32> to vector<8xf32>
    %88 = vector.shape_cast %87 : vector<8xf32> to vector<8x1xf32>
    %cst_37 = arith.constant 2.560000e+02 : f32
    %89 = vector.broadcast %cst_37 : f32 to vector<8x1xf32>
    %90 = arith.divf %88, %89 : vector<8x1xf32>
    %91 = arith.mulf %85, %85 : vector<8x1xf32>
    %92 = arith.subf %90, %91 : vector<8x1xf32>
    %cst_38 = arith.constant 0.000000e+00 : f32
    %93 = vector.broadcast %cst_38 : f32 to vector<8x1xf32>
    %94 = arith.maximumf %92, %93 : vector<8x1xf32>
    %95 = vector.broadcast %85 : vector<8x1xf32> to vector<8x256xf32>
    %96 = arith.subf %81, %95 : vector<8x256xf32>
    %cst_39 = arith.constant 9.99999974E-6 : f32
    %97 = vector.broadcast %cst_39 : f32 to vector<8x1xf32>
    %98 = arith.addf %94, %97 : vector<8x1xf32>
    %99 = math.rsqrt %98 : vector<8x1xf32>
    %100 = vector.broadcast %99 : vector<8x1xf32> to vector<8x256xf32>
    %101 = arith.mulf %96, %100 : vector<8x256xf32>
    %102 = vector.broadcast %48 : vector<8x1xf32> to vector<8x256xf32>
    %103 = arith.mulf %101, %102 : vector<8x256xf32>
    %104 = vector.broadcast %50 : vector<8x1xf32> to vector<8x256xf32>
    %105 = arith.addf %103, %104 : vector<8x256xf32>
    %106 = vector.broadcast %6 : vector<8x1xf32> to vector<8x256xf32>
    %107 = arith.mulf %105, %106 : vector<8x256xf32>
    %cst_40 = arith.constant 1.000000e+00 : f32
    %108 = vector.broadcast %cst_40 : f32 to vector<8x1xf32>
    %109 = arith.subf %108, %6 : vector<8x1xf32>
    %110 = vector.broadcast %109 : vector<8x1xf32> to vector<8x256xf32>
    %111 = arith.mulf %81, %110 : vector<8x256xf32>
    %112 = arith.addf %107, %111 : vector<8x256xf32>
    %cst_41 = arith.constant 0.000000e+00 : f32
    %113 = vector.broadcast %cst_41 : f32 to vector<8x128xf32>
    %114 = tpu.concatenate %113, %112, %113 in 1 : vector<8x128xf32>, vector<8x256xf32>, vector<8x128xf32> -> vector<8x512xf32>
    %115 = vector.extract_strided_slice %114 {offsets = [0, 111], sizes = [8, 256], strides = [1, 1]} : vector<8x512xf32> to vector<8x256xf32>
    %116 = vector.broadcast %0 : vector<1x256xf32> to vector<8x256xf32>
    %117 = arith.mulf %115, %116 : vector<8x256xf32>
    %118 = vector.extract_strided_slice %114 {offsets = [0, 112], sizes = [8, 256], strides = [1, 1]} : vector<8x512xf32> to vector<8x256xf32>
    %119 = vector.extract_strided_slice %114 {offsets = [0, 113], sizes = [8, 256], strides = [1, 1]} : vector<8x512xf32> to vector<8x256xf32>
    %120 = vector.broadcast %1 : vector<1x256xf32> to vector<8x256xf32>
    %121 = arith.mulf %119, %120 : vector<8x256xf32>
    %122 = vector.extract_strided_slice %114 {offsets = [0, 127], sizes = [8, 256], strides = [1, 1]} : vector<8x512xf32> to vector<8x256xf32>
    %123 = vector.broadcast %0 : vector<1x256xf32> to vector<8x256xf32>
    %124 = arith.mulf %122, %123 : vector<8x256xf32>
    %125 = vector.extract_strided_slice %114 {offsets = [0, 128], sizes = [8, 256], strides = [1, 1]} : vector<8x512xf32> to vector<8x256xf32>
    %126 = vector.extract_strided_slice %114 {offsets = [0, 129], sizes = [8, 256], strides = [1, 1]} : vector<8x512xf32> to vector<8x256xf32>
    %127 = vector.broadcast %1 : vector<1x256xf32> to vector<8x256xf32>
    %128 = arith.mulf %126, %127 : vector<8x256xf32>
    %129 = vector.extract_strided_slice %114 {offsets = [0, 143], sizes = [8, 256], strides = [1, 1]} : vector<8x512xf32> to vector<8x256xf32>
    %130 = vector.broadcast %0 : vector<1x256xf32> to vector<8x256xf32>
    %131 = arith.mulf %129, %130 : vector<8x256xf32>
    %132 = vector.extract_strided_slice %114 {offsets = [0, 144], sizes = [8, 256], strides = [1, 1]} : vector<8x512xf32> to vector<8x256xf32>
    %133 = vector.extract_strided_slice %114 {offsets = [0, 145], sizes = [8, 256], strides = [1, 1]} : vector<8x512xf32> to vector<8x256xf32>
    %134 = vector.broadcast %1 : vector<1x256xf32> to vector<8x256xf32>
    %135 = arith.mulf %133, %134 : vector<8x256xf32>
    %136 = tpu.concatenate %117, %118, %121, %124, %125, %128, %131, %132, %135 in 0 : vector<8x256xf32>, vector<8x256xf32>, vector<8x256xf32>, vector<8x256xf32>, vector<8x256xf32>, vector<8x256xf32>, vector<8x256xf32>, vector<8x256xf32>, vector<8x256xf32> -> vector<72x256xf32>
    %cst_42 = arith.constant dense<0.000000e+00> : vector<8x256xf32>
    %137 = tpu.matmul %52, %136, %cst_42 {dimension_numbers = #tpu.dot_dimension_numbers<[1], [0], [0], [1], [0, 0, 1, 1], [], []>} : vector<8x72xf32>, vector<72x256xf32>, vector<8x256xf32> -> vector<8x256xf32>
    %138 = vector.broadcast %54 : vector<8x1xf32> to vector<8x256xf32>
    %139 = arith.addf %137, %138 : vector<8x256xf32>
    %140 = arith.addf %42, %139 : vector<8x256xf32>
    %141 = arith.addf %41, %140 : vector<8x256xf32>
    %c1_43 = arith.constant 1 : index
    %c0_44 = arith.constant 0 : index
    %c0_45 = arith.constant 0 : index
    %142 = vector.load %arg6[%c1_43, %c0_44, %c0_45] : memref<15x8x72xf32, #tpu.memory_space<vmem>>, vector<1x8x72xf32>
    %143 = vector.shape_cast %142 : vector<1x8x72xf32> to vector<8x72xf32>
    %c1_46 = arith.constant 1 : index
    %c0_47 = arith.constant 0 : index
    %c0_48 = arith.constant 0 : index
    %144 = vector.load %arg7[%c1_46, %c0_47, %c0_48] : memref<15x8x1xf32, #tpu.memory_space<vmem>>, vector<1x8x1xf32>
    %145 = vector.shape_cast %144 : vector<1x8x1xf32> to vector<8x1xf32>
    %c1_49 = arith.constant 1 : index
    %c0_50 = arith.constant 0 : index
    %c0_51 = arith.constant 0 : index
    %146 = vector.load %arg8[%c1_49, %c0_50, %c0_51] : memref<15x8x1xf32, #tpu.memory_space<vmem>>, vector<1x8x1xf32>
    %147 = vector.shape_cast %146 : vector<1x8x1xf32> to vector<8x1xf32>
    %c1_52 = arith.constant 1 : index
    %c0_53 = arith.constant 0 : index
    %c0_54 = arith.constant 0 : index
    %148 = vector.load %arg9[%c1_52, %c0_53, %c0_54] : memref<15x8x1xf32, #tpu.memory_space<vmem>>, vector<1x8x1xf32>
    %149 = vector.shape_cast %148 : vector<1x8x1xf32> to vector<8x1xf32>
    %c1_55 = arith.constant 1 : index
    %c0_56 = arith.constant 0 : index
    %c0_57 = arith.constant 0 : index
    %150 = vector.load %arg10[%c1_55, %c0_56, %c0_57] : memref<15x8x72xf32, #tpu.memory_space<vmem>>, vector<1x8x72xf32>
    %151 = vector.shape_cast %150 : vector<1x8x72xf32> to vector<8x72xf32>
    %c1_58 = arith.constant 1 : index
    %c0_59 = arith.constant 0 : index
    %c0_60 = arith.constant 0 : index
    %152 = vector.load %arg11[%c1_58, %c0_59, %c0_60] : memref<15x8x1xf32, #tpu.memory_space<vmem>>, vector<1x8x1xf32>
    %153 = vector.shape_cast %152 : vector<1x8x1xf32> to vector<8x1xf32>
    %cst_61 = arith.constant 0.000000e+00 : f32
    %154 = vector.broadcast %cst_61 : f32 to vector<8x128xf32>
    %155 = tpu.concatenate %154, %141, %154 in 1 : vector<8x128xf32>, vector<8x256xf32>, vector<8x128xf32> -> vector<8x512xf32>
    %156 = vector.extract_strided_slice %155 {offsets = [0, 111], sizes = [8, 256], strides = [1, 1]} : vector<8x512xf32> to vector<8x256xf32>
    %157 = vector.broadcast %0 : vector<1x256xf32> to vector<8x256xf32>
    %158 = arith.mulf %156, %157 : vector<8x256xf32>
    %159 = vector.extract_strided_slice %155 {offsets = [0, 112], sizes = [8, 256], strides = [1, 1]} : vector<8x512xf32> to vector<8x256xf32>
    %160 = vector.extract_strided_slice %155 {offsets = [0, 113], sizes = [8, 256], strides = [1, 1]} : vector<8x512xf32> to vector<8x256xf32>
    %161 = vector.broadcast %1 : vector<1x256xf32> to vector<8x256xf32>
    %162 = arith.mulf %160, %161 : vector<8x256xf32>
    %163 = vector.extract_strided_slice %155 {offsets = [0, 127], sizes = [8, 256], strides = [1, 1]} : vector<8x512xf32> to vector<8x256xf32>
    %164 = vector.broadcast %0 : vector<1x256xf32> to vector<8x256xf32>
    %165 = arith.mulf %163, %164 : vector<8x256xf32>
    %166 = vector.extract_strided_slice %155 {offsets = [0, 128], sizes = [8, 256], strides = [1, 1]} : vector<8x512xf32> to vector<8x256xf32>
    %167 = vector.extract_strided_slice %155 {offsets = [0, 129], sizes = [8, 256], strides = [1, 1]} : vector<8x512xf32> to vector<8x256xf32>
    %168 = vector.broadcast %1 : vector<1x256xf32> to vector<8x256xf32>
    %169 = arith.mulf %167, %168 : vector<8x256xf32>
    %170 = vector.extract_strided_slice %155 {offsets = [0, 143], sizes = [8, 256], strides = [1, 1]} : vector<8x512xf32> to vector<8x256xf32>
    %171 = vector.broadcast %0 : vector<1x256xf32> to vector<8x256xf32>
    %172 = arith.mulf %170, %171 : vector<8x256xf32>
    %173 = vector.extract_strided_slice %155 {offsets = [0, 144], sizes = [8, 256], strides = [1, 1]} : vector<8x512xf32> to vector<8x256xf32>
    %174 = vector.extract_strided_slice %155 {offsets = [0, 145], sizes = [8, 256], strides = [1, 1]} : vector<8x512xf32> to vector<8x256xf32>
    %175 = vector.broadcast %1 : vector<1x256xf32> to vector<8x256xf32>
    %176 = arith.mulf %174, %175 : vector<8x256xf32>
    %177 = tpu.concatenate %158, %159, %162, %165, %166, %169, %172, %173, %176 in 0 : vector<8x256xf32>, vector<8x256xf32>, vector<8x256xf32>, vector<8x256xf32>, vector<8x256xf32>, vector<8x256xf32>, vector<8x256xf32>, vector<8x256xf32>, vector<8x256xf32> -> vector<72x256xf32>
    %cst_62 = arith.constant dense<0.000000e+00> : vector<8x256xf32>
    %178 = tpu.matmul %143, %177, %cst_62 {dimension_numbers = #tpu.dot_dimension_numbers<[1], [0], [0], [1], [0, 0, 1, 1], [], []>} : vector<8x72xf32>, vector<72x256xf32>, vector<8x256xf32> -> vector<8x256xf32>
    %179 = vector.broadcast %145 : vector<8x1xf32> to vector<8x256xf32>
    %180 = arith.addf %178, %179 : vector<8x256xf32>
    %cst_63 = arith.constant dense<0.000000e+00> : vector<8xf32>
    %181 = vector.multi_reduction <add>, %180, %cst_63 [1] : vector<8x256xf32> to vector<8xf32>
    %182 = vector.shape_cast %181 : vector<8xf32> to vector<8x1xf32>
    %cst_64 = arith.constant 2.560000e+02 : f32
    %183 = vector.broadcast %cst_64 : f32 to vector<8x1xf32>
    %184 = arith.divf %182, %183 : vector<8x1xf32>
    %185 = arith.mulf %180, %180 : vector<8x256xf32>
    %cst_65 = arith.constant dense<0.000000e+00> : vector<8xf32>
    %186 = vector.multi_reduction <add>, %185, %cst_65 [1] : vector<8x256xf32> to vector<8xf32>
    %187 = vector.shape_cast %186 : vector<8xf32> to vector<8x1xf32>
    %cst_66 = arith.constant 2.560000e+02 : f32
    %188 = vector.broadcast %cst_66 : f32 to vector<8x1xf32>
    %189 = arith.divf %187, %188 : vector<8x1xf32>
    %190 = arith.mulf %184, %184 : vector<8x1xf32>
    %191 = arith.subf %189, %190 : vector<8x1xf32>
    %cst_67 = arith.constant 0.000000e+00 : f32
    %192 = vector.broadcast %cst_67 : f32 to vector<8x1xf32>
    %193 = arith.maximumf %191, %192 : vector<8x1xf32>
    %194 = vector.broadcast %184 : vector<8x1xf32> to vector<8x256xf32>
    %195 = arith.subf %180, %194 : vector<8x256xf32>
    %cst_68 = arith.constant 9.99999974E-6 : f32
    %196 = vector.broadcast %cst_68 : f32 to vector<8x1xf32>
    %197 = arith.addf %193, %196 : vector<8x1xf32>
    %198 = math.rsqrt %197 : vector<8x1xf32>
    %199 = vector.broadcast %198 : vector<8x1xf32> to vector<8x256xf32>
    %200 = arith.mulf %195, %199 : vector<8x256xf32>
    %201 = vector.broadcast %147 : vector<8x1xf32> to vector<8x256xf32>
    %202 = arith.mulf %200, %201 : vector<8x256xf32>
    %203 = vector.broadcast %149 : vector<8x1xf32> to vector<8x256xf32>
    %204 = arith.addf %202, %203 : vector<8x256xf32>
    %205 = vector.broadcast %6 : vector<8x1xf32> to vector<8x256xf32>
    %206 = arith.mulf %204, %205 : vector<8x256xf32>
    %cst_69 = arith.constant 1.000000e+00 : f32
    %207 = vector.broadcast %cst_69 : f32 to vector<8x1xf32>
    %208 = arith.subf %207, %6 : vector<8x1xf32>
    %209 = vector.broadcast %208 : vector<8x1xf32> to vector<8x256xf32>
    %210 = arith.mulf %180, %209 : vector<8x256xf32>
    %211 = arith.addf %206, %210 : vector<8x256xf32>
    %cst_70 = arith.constant 0.000000e+00 : f32
    %212 = vector.broadcast %cst_70 : f32 to vector<8x128xf32>
    %213 = tpu.concatenate %212, %211, %212 in 1 : vector<8x128xf32>, vector<8x256xf32>, vector<8x128xf32> -> vector<8x512xf32>
    %214 = vector.extract_strided_slice %213 {offsets = [0, 111], sizes = [8, 256], strides = [1, 1]} : vector<8x512xf32> to vector<8x256xf32>
    %215 = vector.broadcast %0 : vector<1x256xf32> to vector<8x256xf32>
    %216 = arith.mulf %214, %215 : vector<8x256xf32>
    %217 = vector.extract_strided_slice %213 {offsets = [0, 112], sizes = [8, 256], strides = [1, 1]} : vector<8x512xf32> to vector<8x256xf32>
    %218 = vector.extract_strided_slice %213 {offsets = [0, 113], sizes = [8, 256], strides = [1, 1]} : vector<8x512xf32> to vector<8x256xf32>
    %219 = vector.broadcast %1 : vector<1x256xf32> to vector<8x256xf32>
    %220 = arith.mulf %218, %219 : vector<8x256xf32>
    %221 = vector.extract_strided_slice %213 {offsets = [0, 127], sizes = [8, 256], strides = [1, 1]} : vector<8x512xf32> to vector<8x256xf32>
    %222 = vector.broadcast %0 : vector<1x256xf32> to vector<8x256xf32>
    %223 = arith.mulf %221, %222 : vector<8x256xf32>
    %224 = vector.extract_strided_slice %213 {offsets = [0, 128], sizes = [8, 256], strides = [1, 1]} : vector<8x512xf32> to vector<8x256xf32>
    %225 = vector.extract_strided_slice %213 {offsets = [0, 129], sizes = [8, 256], strides = [1, 1]} : vector<8x512xf32> to vector<8x256xf32>
    %226 = vector.broadcast %1 : vector<1x256xf32> to vector<8x256xf32>
    %227 = arith.mulf %225, %226 : vector<8x256xf32>
    %228 = vector.extract_strided_slice %213 {offsets = [0, 143], sizes = [8, 256], strides = [1, 1]} : vector<8x512xf32> to vector<8x256xf32>
    %229 = vector.broadcast %0 : vector<1x256xf32> to vector<8x256xf32>
    %230 = arith.mulf %228, %229 : vector<8x256xf32>
    %231 = vector.extract_strided_slice %213 {offsets = [0, 144], sizes = [8, 256], strides = [1, 1]} : vector<8x512xf32> to vector<8x256xf32>
    %232 = vector.extract_strided_slice %213 {offsets = [0, 145], sizes = [8, 256], strides = [1, 1]} : vector<8x512xf32> to vector<8x256xf32>
    %233 = vector.broadcast %1 : vector<1x256xf32> to vector<8x256xf32>
    %234 = arith.mulf %232, %233 : vector<8x256xf32>
    %235 = tpu.concatenate %216, %217, %220, %223, %224, %227, %230, %231, %234 in 0 : vector<8x256xf32>, vector<8x256xf32>, vector<8x256xf32>, vector<8x256xf32>, vector<8x256xf32>, vector<8x256xf32>, vector<8x256xf32>, vector<8x256xf32>, vector<8x256xf32> -> vector<72x256xf32>
    %cst_71 = arith.constant dense<0.000000e+00> : vector<8x256xf32>
    %236 = tpu.matmul %151, %235, %cst_71 {dimension_numbers = #tpu.dot_dimension_numbers<[1], [0], [0], [1], [0, 0, 1, 1], [], []>} : vector<8x72xf32>, vector<72x256xf32>, vector<8x256xf32> -> vector<8x256xf32>
    %237 = vector.broadcast %153 : vector<8x1xf32> to vector<8x256xf32>
    %238 = arith.addf %236, %237 : vector<8x256xf32>
    %239 = arith.addf %141, %238 : vector<8x256xf32>
    %c2 = arith.constant 2 : index
    %c0_72 = arith.constant 0 : index
    %c0_73 = arith.constant 0 : index
    %240 = vector.load %arg6[%c2, %c0_72, %c0_73] : memref<15x8x72xf32, #tpu.memory_space<vmem>>, vector<1x8x72xf32>
    %241 = vector.shape_cast %240 : vector<1x8x72xf32> to vector<8x72xf32>
    %c2_74 = arith.constant 2 : index
    %c0_75 = arith.constant 0 : index
    %c0_76 = arith.constant 0 : index
    %242 = vector.load %arg7[%c2_74, %c0_75, %c0_76] : memref<15x8x1xf32, #tpu.memory_space<vmem>>, vector<1x8x1xf32>
    %243 = vector.shape_cast %242 : vector<1x8x1xf32> to vector<8x1xf32>
    %c2_77 = arith.constant 2 : index
    %c0_78 = arith.constant 0 : index
    %c0_79 = arith.constant 0 : index
    %244 = vector.load %arg8[%c2_77, %c0_78, %c0_79] : memref<15x8x1xf32, #tpu.memory_space<vmem>>, vector<1x8x1xf32>
    %245 = vector.shape_cast %244 : vector<1x8x1xf32> to vector<8x1xf32>
    %c2_80 = arith.constant 2 : index
    %c0_81 = arith.constant 0 : index
    %c0_82 = arith.constant 0 : index
    %246 = vector.load %arg9[%c2_80, %c0_81, %c0_82] : memref<15x8x1xf32, #tpu.memory_space<vmem>>, vector<1x8x1xf32>
    %247 = vector.shape_cast %246 : vector<1x8x1xf32> to vector<8x1xf32>
    %c2_83 = arith.constant 2 : index
    %c0_84 = arith.constant 0 : index
    %c0_85 = arith.constant 0 : index
    %248 = vector.load %arg10[%c2_83, %c0_84, %c0_85] : memref<15x8x72xf32, #tpu.memory_space<vmem>>, vector<1x8x72xf32>
    %249 = vector.shape_cast %248 : vector<1x8x72xf32> to vector<8x72xf32>
    %c2_86 = arith.constant 2 : index
    %c0_87 = arith.constant 0 : index
    %c0_88 = arith.constant 0 : index
    %250 = vector.load %arg11[%c2_86, %c0_87, %c0_88] : memref<15x8x1xf32, #tpu.memory_space<vmem>>, vector<1x8x1xf32>
    %251 = vector.shape_cast %250 : vector<1x8x1xf32> to vector<8x1xf32>
    %cst_89 = arith.constant 0.000000e+00 : f32
    %252 = vector.broadcast %cst_89 : f32 to vector<8x128xf32>
    %253 = tpu.concatenate %252, %141, %252 in 1 : vector<8x128xf32>, vector<8x256xf32>, vector<8x128xf32> -> vector<8x512xf32>
    %254 = vector.extract_strided_slice %253 {offsets = [0, 111], sizes = [8, 256], strides = [1, 1]} : vector<8x512xf32> to vector<8x256xf32>
    %255 = vector.broadcast %0 : vector<1x256xf32> to vector<8x256xf32>
    %256 = arith.mulf %254, %255 : vector<8x256xf32>
    %257 = vector.extract_strided_slice %253 {offsets = [0, 112], sizes = [8, 256], strides = [1, 1]} : vector<8x512xf32> to vector<8x256xf32>
    %258 = vector.extract_strided_slice %253 {offsets = [0, 113], sizes = [8, 256], strides = [1, 1]} : vector<8x512xf32> to vector<8x256xf32>
    %259 = vector.broadcast %1 : vector<1x256xf32> to vector<8x256xf32>
    %260 = arith.mulf %258, %259 : vector<8x256xf32>
    %261 = vector.extract_strided_slice %253 {offsets = [0, 127], sizes = [8, 256], strides = [1, 1]} : vector<8x512xf32> to vector<8x256xf32>
    %262 = vector.broadcast %0 : vector<1x256xf32> to vector<8x256xf32>
    %263 = arith.mulf %261, %262 : vector<8x256xf32>
    %264 = vector.extract_strided_slice %253 {offsets = [0, 128], sizes = [8, 256], strides = [1, 1]} : vector<8x512xf32> to vector<8x256xf32>
    %265 = vector.extract_strided_slice %253 {offsets = [0, 129], sizes = [8, 256], strides = [1, 1]} : vector<8x512xf32> to vector<8x256xf32>
    %266 = vector.broadcast %1 : vector<1x256xf32> to vector<8x256xf32>
    %267 = arith.mulf %265, %266 : vector<8x256xf32>
    %268 = vector.extract_strided_slice %253 {offsets = [0, 143], sizes = [8, 256], strides = [1, 1]} : vector<8x512xf32> to vector<8x256xf32>
    %269 = vector.broadcast %0 : vector<1x256xf32> to vector<8x256xf32>
    %270 = arith.mulf %268, %269 : vector<8x256xf32>
    %271 = vector.extract_strided_slice %253 {offsets = [0, 144], sizes = [8, 256], strides = [1, 1]} : vector<8x512xf32> to vector<8x256xf32>
    %272 = vector.extract_strided_slice %253 {offsets = [0, 145], sizes = [8, 256], strides = [1, 1]} : vector<8x512xf32> to vector<8x256xf32>
    %273 = vector.broadcast %1 : vector<1x256xf32> to vector<8x256xf32>
    %274 = arith.mulf %272, %273 : vector<8x256xf32>
    %275 = tpu.concatenate %256, %257, %260, %263, %264, %267, %270, %271, %274 in 0 : vector<8x256xf32>, vector<8x256xf32>, vector<8x256xf32>, vector<8x256xf32>, vector<8x256xf32>, vector<8x256xf32>, vector<8x256xf32>, vector<8x256xf32>, vector<8x256xf32> -> vector<72x256xf32>
    %cst_90 = arith.constant dense<0.000000e+00> : vector<8x256xf32>
    %276 = tpu.matmul %241, %275, %cst_90 {dimension_numbers = #tpu.dot_dimension_numbers<[1], [0], [0], [1], [0, 0, 1, 1], [], []>} : vector<8x72xf32>, vector<72x256xf32>, vector<8x256xf32> -> vector<8x256xf32>
    %277 = vector.broadcast %243 : vector<8x1xf32> to vector<8x256xf32>
    %278 = arith.addf %276, %277 : vector<8x256xf32>
    %cst_91 = arith.constant dense<0.000000e+00> : vector<8xf32>
    %279 = vector.multi_reduction <add>, %278, %cst_91 [1] : vector<8x256xf32> to vector<8xf32>
    %280 = vector.shape_cast %279 : vector<8xf32> to vector<8x1xf32>
    %cst_92 = arith.constant 2.560000e+02 : f32
    %281 = vector.broadcast %cst_92 : f32 to vector<8x1xf32>
    %282 = arith.divf %280, %281 : vector<8x1xf32>
    %283 = arith.mulf %278, %278 : vector<8x256xf32>
    %cst_93 = arith.constant dense<0.000000e+00> : vector<8xf32>
    %284 = vector.multi_reduction <add>, %283, %cst_93 [1] : vector<8x256xf32> to vector<8xf32>
    %285 = vector.shape_cast %284 : vector<8xf32> to vector<8x1xf32>
    %cst_94 = arith.constant 2.560000e+02 : f32
    %286 = vector.broadcast %cst_94 : f32 to vector<8x1xf32>
    %287 = arith.divf %285, %286 : vector<8x1xf32>
    %288 = arith.mulf %282, %282 : vector<8x1xf32>
    %289 = arith.subf %287, %288 : vector<8x1xf32>
    %cst_95 = arith.constant 0.000000e+00 : f32
    %290 = vector.broadcast %cst_95 : f32 to vector<8x1xf32>
    %291 = arith.maximumf %289, %290 : vector<8x1xf32>
    %292 = vector.broadcast %282 : vector<8x1xf32> to vector<8x256xf32>
    %293 = arith.subf %278, %292 : vector<8x256xf32>
    %cst_96 = arith.constant 9.99999974E-6 : f32
    %294 = vector.broadcast %cst_96 : f32 to vector<8x1xf32>
    %295 = arith.addf %291, %294 : vector<8x1xf32>
    %296 = math.rsqrt %295 : vector<8x1xf32>
    %297 = vector.broadcast %296 : vector<8x1xf32> to vector<8x256xf32>
    %298 = arith.mulf %293, %297 : vector<8x256xf32>
    %299 = vector.broadcast %245 : vector<8x1xf32> to vector<8x256xf32>
    %300 = arith.mulf %298, %299 : vector<8x256xf32>
    %301 = vector.broadcast %247 : vector<8x1xf32> to vector<8x256xf32>
    %302 = arith.addf %300, %301 : vector<8x256xf32>
    %303 = vector.broadcast %6 : vector<8x1xf32> to vector<8x256xf32>
    %304 = arith.mulf %302, %303 : vector<8x256xf32>
    %cst_97 = arith.constant 1.000000e+00 : f32
    %305 = vector.broadcast %cst_97 : f32 to vector<8x1xf32>
    %306 = arith.subf %305, %6 : vector<8x1xf32>
    %307 = vector.broadcast %306 : vector<8x1xf32> to vector<8x256xf32>
    %308 = arith.mulf %278, %307 : vector<8x256xf32>
    %309 = arith.addf %304, %308 : vector<8x256xf32>
    %cst_98 = arith.constant 0.000000e+00 : f32
    %310 = vector.broadcast %cst_98 : f32 to vector<8x128xf32>
    %311 = tpu.concatenate %310, %309, %310 in 1 : vector<8x128xf32>, vector<8x256xf32>, vector<8x128xf32> -> vector<8x512xf32>
    %312 = vector.extract_strided_slice %311 {offsets = [0, 111], sizes = [8, 256], strides = [1, 1]} : vector<8x512xf32> to vector<8x256xf32>
    %313 = vector.broadcast %0 : vector<1x256xf32> to vector<8x256xf32>
    %314 = arith.mulf %312, %313 : vector<8x256xf32>
    %315 = vector.extract_strided_slice %311 {offsets = [0, 112], sizes = [8, 256], strides = [1, 1]} : vector<8x512xf32> to vector<8x256xf32>
    %316 = vector.extract_strided_slice %311 {offsets = [0, 113], sizes = [8, 256], strides = [1, 1]} : vector<8x512xf32> to vector<8x256xf32>
    %317 = vector.broadcast %1 : vector<1x256xf32> to vector<8x256xf32>
    %318 = arith.mulf %316, %317 : vector<8x256xf32>
    %319 = vector.extract_strided_slice %311 {offsets = [0, 127], sizes = [8, 256], strides = [1, 1]} : vector<8x512xf32> to vector<8x256xf32>
    %320 = vector.broadcast %0 : vector<1x256xf32> to vector<8x256xf32>
    %321 = arith.mulf %319, %320 : vector<8x256xf32>
    %322 = vector.extract_strided_slice %311 {offsets = [0, 128], sizes = [8, 256], strides = [1, 1]} : vector<8x512xf32> to vector<8x256xf32>
    %323 = vector.extract_strided_slice %311 {offsets = [0, 129], sizes = [8, 256], strides = [1, 1]} : vector<8x512xf32> to vector<8x256xf32>
    %324 = vector.broadcast %1 : vector<1x256xf32> to vector<8x256xf32>
    %325 = arith.mulf %323, %324 : vector<8x256xf32>
    %326 = vector.extract_strided_slice %311 {offsets = [0, 143], sizes = [8, 256], strides = [1, 1]} : vector<8x512xf32> to vector<8x256xf32>
    %327 = vector.broadcast %0 : vector<1x256xf32> to vector<8x256xf32>
    %328 = arith.mulf %326, %327 : vector<8x256xf32>
    %329 = vector.extract_strided_slice %311 {offsets = [0, 144], sizes = [8, 256], strides = [1, 1]} : vector<8x512xf32> to vector<8x256xf32>
    %330 = vector.extract_strided_slice %311 {offsets = [0, 145], sizes = [8, 256], strides = [1, 1]} : vector<8x512xf32> to vector<8x256xf32>
    %331 = vector.broadcast %1 : vector<1x256xf32> to vector<8x256xf32>
    %332 = arith.mulf %330, %331 : vector<8x256xf32>
    %333 = tpu.concatenate %314, %315, %318, %321, %322, %325, %328, %329, %332 in 0 : vector<8x256xf32>, vector<8x256xf32>, vector<8x256xf32>, vector<8x256xf32>, vector<8x256xf32>, vector<8x256xf32>, vector<8x256xf32>, vector<8x256xf32>, vector<8x256xf32> -> vector<72x256xf32>
    %cst_99 = arith.constant dense<0.000000e+00> : vector<8x256xf32>
    %334 = tpu.matmul %249, %333, %cst_99 {dimension_numbers = #tpu.dot_dimension_numbers<[1], [0], [0], [1], [0, 0, 1, 1], [], []>} : vector<8x72xf32>, vector<72x256xf32>, vector<8x256xf32> -> vector<8x256xf32>
    %335 = vector.broadcast %251 : vector<8x1xf32> to vector<8x256xf32>
    %336 = arith.addf %334, %335 : vector<8x256xf32>
    %337 = arith.addf %141, %336 : vector<8x256xf32>
    %cst_100 = arith.constant 5.000000e-01 : f32
    %338 = vector.broadcast %cst_100 : f32 to vector<8x256xf32>
    %339 = arith.mulf %338, %239 : vector<8x256xf32>
    %340 = math.tanh %339 : vector<8x256xf32>
    %cst_101 = arith.constant 8.000000e-01 : f32
    %341 = vector.broadcast %cst_101 : f32 to vector<8x256xf32>
    %342 = arith.mulf %341, %340 : vector<8x256xf32>
    %343 = math.exp %342 : vector<8x256xf32>
    %344 = arith.mulf %42, %343 : vector<8x256xf32>
    %345 = arith.addf %344, %337 : vector<8x256xf32>
    %346 = tpu.concatenate %141, %345 in 0 : vector<8x256xf32>, vector<8x256xf32> -> vector<16x256xf32>
    %c1_102 = arith.constant 1 : index
    %c0_103 = arith.constant 0 : index
    %c0_104 = arith.constant 0 : index
    %347 = vector.load %arg5[%c1_102, %c0_103, %c0_104] : memref<5x16x16xf32, #tpu.memory_space<vmem>>, vector<1x16x16xf32>
    %348 = vector.shape_cast %347 : vector<1x16x16xf32> to vector<16x16xf32>
    %cst_105 = arith.constant dense<0.000000e+00> : vector<16x256xf32>
    %349 = tpu.matmul %348, %346, %cst_105 {dimension_numbers = #tpu.dot_dimension_numbers<[1], [0], [0], [1], [0, 0, 1, 1], [], []>} : vector<16x16xf32>, vector<16x256xf32>, vector<16x256xf32> -> vector<16x256xf32>
    %350 = vector.extract_strided_slice %349 {offsets = [0, 0], sizes = [8, 256], strides = [1, 1]} : vector<16x256xf32> to vector<8x256xf32>
    %351 = vector.extract_strided_slice %349 {offsets = [8, 0], sizes = [8, 256], strides = [1, 1]} : vector<16x256xf32> to vector<8x256xf32>
    %c3 = arith.constant 3 : index
    %c0_106 = arith.constant 0 : index
    %c0_107 = arith.constant 0 : index
    %352 = vector.load %arg6[%c3, %c0_106, %c0_107] : memref<15x8x72xf32, #tpu.memory_space<vmem>>, vector<1x8x72xf32>
    %353 = vector.shape_cast %352 : vector<1x8x72xf32> to vector<8x72xf32>
    %c3_108 = arith.constant 3 : index
    %c0_109 = arith.constant 0 : index
    %c0_110 = arith.constant 0 : index
    %354 = vector.load %arg7[%c3_108, %c0_109, %c0_110] : memref<15x8x1xf32, #tpu.memory_space<vmem>>, vector<1x8x1xf32>
    %355 = vector.shape_cast %354 : vector<1x8x1xf32> to vector<8x1xf32>
    %c3_111 = arith.constant 3 : index
    %c0_112 = arith.constant 0 : index
    %c0_113 = arith.constant 0 : index
    %356 = vector.load %arg8[%c3_111, %c0_112, %c0_113] : memref<15x8x1xf32, #tpu.memory_space<vmem>>, vector<1x8x1xf32>
    %357 = vector.shape_cast %356 : vector<1x8x1xf32> to vector<8x1xf32>
    %c3_114 = arith.constant 3 : index
    %c0_115 = arith.constant 0 : index
    %c0_116 = arith.constant 0 : index
    %358 = vector.load %arg9[%c3_114, %c0_115, %c0_116] : memref<15x8x1xf32, #tpu.memory_space<vmem>>, vector<1x8x1xf32>
    %359 = vector.shape_cast %358 : vector<1x8x1xf32> to vector<8x1xf32>
    %c3_117 = arith.constant 3 : index
    %c0_118 = arith.constant 0 : index
    %c0_119 = arith.constant 0 : index
    %360 = vector.load %arg10[%c3_117, %c0_118, %c0_119] : memref<15x8x72xf32, #tpu.memory_space<vmem>>, vector<1x8x72xf32>
    %361 = vector.shape_cast %360 : vector<1x8x72xf32> to vector<8x72xf32>
    %c3_120 = arith.constant 3 : index
    %c0_121 = arith.constant 0 : index
    %c0_122 = arith.constant 0 : index
    %362 = vector.load %arg11[%c3_120, %c0_121, %c0_122] : memref<15x8x1xf32, #tpu.memory_space<vmem>>, vector<1x8x1xf32>
    %363 = vector.shape_cast %362 : vector<1x8x1xf32> to vector<8x1xf32>
    %cst_123 = arith.constant 0.000000e+00 : f32
    %364 = vector.broadcast %cst_123 : f32 to vector<8x128xf32>
    %365 = tpu.concatenate %364, %351, %364 in 1 : vector<8x128xf32>, vector<8x256xf32>, vector<8x128xf32> -> vector<8x512xf32>
    %366 = vector.extract_strided_slice %365 {offsets = [0, 111], sizes = [8, 256], strides = [1, 1]} : vector<8x512xf32> to vector<8x256xf32>
    %367 = vector.broadcast %0 : vector<1x256xf32> to vector<8x256xf32>
    %368 = arith.mulf %366, %367 : vector<8x256xf32>
    %369 = vector.extract_strided_slice %365 {offsets = [0, 112], sizes = [8, 256], strides = [1, 1]} : vector<8x512xf32> to vector<8x256xf32>
    %370 = vector.extract_strided_slice %365 {offsets = [0, 113], sizes = [8, 256], strides = [1, 1]} : vector<8x512xf32> to vector<8x256xf32>
    %371 = vector.broadcast %1 : vector<1x256xf32> to vector<8x256xf32>
    %372 = arith.mulf %370, %371 : vector<8x256xf32>
    %373 = vector.extract_strided_slice %365 {offsets = [0, 127], sizes = [8, 256], strides = [1, 1]} : vector<8x512xf32> to vector<8x256xf32>
    %374 = vector.broadcast %0 : vector<1x256xf32> to vector<8x256xf32>
    %375 = arith.mulf %373, %374 : vector<8x256xf32>
    %376 = vector.extract_strided_slice %365 {offsets = [0, 128], sizes = [8, 256], strides = [1, 1]} : vector<8x512xf32> to vector<8x256xf32>
    %377 = vector.extract_strided_slice %365 {offsets = [0, 129], sizes = [8, 256], strides = [1, 1]} : vector<8x512xf32> to vector<8x256xf32>
    %378 = vector.broadcast %1 : vector<1x256xf32> to vector<8x256xf32>
    %379 = arith.mulf %377, %378 : vector<8x256xf32>
    %380 = vector.extract_strided_slice %365 {offsets = [0, 143], sizes = [8, 256], strides = [1, 1]} : vector<8x512xf32> to vector<8x256xf32>
    %381 = vector.broadcast %0 : vector<1x256xf32> to vector<8x256xf32>
    %382 = arith.mulf %380, %381 : vector<8x256xf32>
    %383 = vector.extract_strided_slice %365 {offsets = [0, 144], sizes = [8, 256], strides = [1, 1]} : vector<8x512xf32> to vector<8x256xf32>
    %384 = vector.extract_strided_slice %365 {offsets = [0, 145], sizes = [8, 256], strides = [1, 1]} : vector<8x512xf32> to vector<8x256xf32>
    %385 = vector.broadcast %1 : vector<1x256xf32> to vector<8x256xf32>
    %386 = arith.mulf %384, %385 : vector<8x256xf32>
    %387 = tpu.concatenate %368, %369, %372, %375, %376, %379, %382, %383, %386 in 0 : vector<8x256xf32>, vector<8x256xf32>, vector<8x256xf32>, vector<8x256xf32>, vector<8x256xf32>, vector<8x256xf32>, vector<8x256xf32>, vector<8x256xf32>, vector<8x256xf32> -> vector<72x256xf32>
    %cst_124 = arith.constant dense<0.000000e+00> : vector<8x256xf32>
    %388 = tpu.matmul %353, %387, %cst_124 {dimension_numbers = #tpu.dot_dimension_numbers<[1], [0], [0], [1], [0, 0, 1, 1], [], []>} : vector<8x72xf32>, vector<72x256xf32>, vector<8x256xf32> -> vector<8x256xf32>
    %389 = vector.broadcast %355 : vector<8x1xf32> to vector<8x256xf32>
    %390 = arith.addf %388, %389 : vector<8x256xf32>
    %cst_125 = arith.constant dense<0.000000e+00> : vector<8xf32>
    %391 = vector.multi_reduction <add>, %390, %cst_125 [1] : vector<8x256xf32> to vector<8xf32>
    %392 = vector.shape_cast %391 : vector<8xf32> to vector<8x1xf32>
    %cst_126 = arith.constant 2.560000e+02 : f32
    %393 = vector.broadcast %cst_126 : f32 to vector<8x1xf32>
    %394 = arith.divf %392, %393 : vector<8x1xf32>
    %395 = arith.mulf %390, %390 : vector<8x256xf32>
    %cst_127 = arith.constant dense<0.000000e+00> : vector<8xf32>
    %396 = vector.multi_reduction <add>, %395, %cst_127 [1] : vector<8x256xf32> to vector<8xf32>
    %397 = vector.shape_cast %396 : vector<8xf32> to vector<8x1xf32>
    %cst_128 = arith.constant 2.560000e+02 : f32
    %398 = vector.broadcast %cst_128 : f32 to vector<8x1xf32>
    %399 = arith.divf %397, %398 : vector<8x1xf32>
    %400 = arith.mulf %394, %394 : vector<8x1xf32>
    %401 = arith.subf %399, %400 : vector<8x1xf32>
    %cst_129 = arith.constant 0.000000e+00 : f32
    %402 = vector.broadcast %cst_129 : f32 to vector<8x1xf32>
    %403 = arith.maximumf %401, %402 : vector<8x1xf32>
    %404 = vector.broadcast %394 : vector<8x1xf32> to vector<8x256xf32>
    %405 = arith.subf %390, %404 : vector<8x256xf32>
    %cst_130 = arith.constant 9.99999974E-6 : f32
    %406 = vector.broadcast %cst_130 : f32 to vector<8x1xf32>
    %407 = arith.addf %403, %406 : vector<8x1xf32>
    %408 = math.rsqrt %407 : vector<8x1xf32>
    %409 = vector.broadcast %408 : vector<8x1xf32> to vector<8x256xf32>
    %410 = arith.mulf %405, %409 : vector<8x256xf32>
    %411 = vector.broadcast %357 : vector<8x1xf32> to vector<8x256xf32>
    %412 = arith.mulf %410, %411 : vector<8x256xf32>
    %413 = vector.broadcast %359 : vector<8x1xf32> to vector<8x256xf32>
    %414 = arith.addf %412, %413 : vector<8x256xf32>
    %415 = vector.broadcast %6 : vector<8x1xf32> to vector<8x256xf32>
    %416 = arith.mulf %414, %415 : vector<8x256xf32>
    %cst_131 = arith.constant 1.000000e+00 : f32
    %417 = vector.broadcast %cst_131 : f32 to vector<8x1xf32>
    %418 = arith.subf %417, %6 : vector<8x1xf32>
    %419 = vector.broadcast %418 : vector<8x1xf32> to vector<8x256xf32>
    %420 = arith.mulf %390, %419 : vector<8x256xf32>
    %421 = arith.addf %416, %420 : vector<8x256xf32>
    %cst_132 = arith.constant 0.000000e+00 : f32
    %422 = vector.broadcast %cst_132 : f32 to vector<8x128xf32>
    %423 = tpu.concatenate %422, %421, %422 in 1 : vector<8x128xf32>, vector<8x256xf32>, vector<8x128xf32> -> vector<8x512xf32>
    %424 = vector.extract_strided_slice %423 {offsets = [0, 111], sizes = [8, 256], strides = [1, 1]} : vector<8x512xf32> to vector<8x256xf32>
    %425 = vector.broadcast %0 : vector<1x256xf32> to vector<8x256xf32>
    %426 = arith.mulf %424, %425 : vector<8x256xf32>
    %427 = vector.extract_strided_slice %423 {offsets = [0, 112], sizes = [8, 256], strides = [1, 1]} : vector<8x512xf32> to vector<8x256xf32>
    %428 = vector.extract_strided_slice %423 {offsets = [0, 113], sizes = [8, 256], strides = [1, 1]} : vector<8x512xf32> to vector<8x256xf32>
    %429 = vector.broadcast %1 : vector<1x256xf32> to vector<8x256xf32>
    %430 = arith.mulf %428, %429 : vector<8x256xf32>
    %431 = vector.extract_strided_slice %423 {offsets = [0, 127], sizes = [8, 256], strides = [1, 1]} : vector<8x512xf32> to vector<8x256xf32>
    %432 = vector.broadcast %0 : vector<1x256xf32> to vector<8x256xf32>
    %433 = arith.mulf %431, %432 : vector<8x256xf32>
    %434 = vector.extract_strided_slice %423 {offsets = [0, 128], sizes = [8, 256], strides = [1, 1]} : vector<8x512xf32> to vector<8x256xf32>
    %435 = vector.extract_strided_slice %423 {offsets = [0, 129], sizes = [8, 256], strides = [1, 1]} : vector<8x512xf32> to vector<8x256xf32>
    %436 = vector.broadcast %1 : vector<1x256xf32> to vector<8x256xf32>
    %437 = arith.mulf %435, %436 : vector<8x256xf32>
    %438 = vector.extract_strided_slice %423 {offsets = [0, 143], sizes = [8, 256], strides = [1, 1]} : vector<8x512xf32> to vector<8x256xf32>
    %439 = vector.broadcast %0 : vector<1x256xf32> to vector<8x256xf32>
    %440 = arith.mulf %438, %439 : vector<8x256xf32>
    %441 = vector.extract_strided_slice %423 {offsets = [0, 144], sizes = [8, 256], strides = [1, 1]} : vector<8x512xf32> to vector<8x256xf32>
    %442 = vector.extract_strided_slice %423 {offsets = [0, 145], sizes = [8, 256], strides = [1, 1]} : vector<8x512xf32> to vector<8x256xf32>
    %443 = vector.broadcast %1 : vector<1x256xf32> to vector<8x256xf32>
    %444 = arith.mulf %442, %443 : vector<8x256xf32>
    %445 = tpu.concatenate %426, %427, %430, %433, %434, %437, %440, %441, %444 in 0 : vector<8x256xf32>, vector<8x256xf32>, vector<8x256xf32>, vector<8x256xf32>, vector<8x256xf32>, vector<8x256xf32>, vector<8x256xf32>, vector<8x256xf32>, vector<8x256xf32> -> vector<72x256xf32>
    %cst_133 = arith.constant dense<0.000000e+00> : vector<8x256xf32>
    %446 = tpu.matmul %361, %445, %cst_133 {dimension_numbers = #tpu.dot_dimension_numbers<[1], [0], [0], [1], [0, 0, 1, 1], [], []>} : vector<8x72xf32>, vector<72x256xf32>, vector<8x256xf32> -> vector<8x256xf32>
    %447 = vector.broadcast %363 : vector<8x1xf32> to vector<8x256xf32>
    %448 = arith.addf %446, %447 : vector<8x256xf32>
    %449 = arith.addf %351, %448 : vector<8x256xf32>
    %450 = arith.addf %350, %449 : vector<8x256xf32>
    %c4 = arith.constant 4 : index
    %c0_134 = arith.constant 0 : index
    %c0_135 = arith.constant 0 : index
    %451 = vector.load %arg6[%c4, %c0_134, %c0_135] : memref<15x8x72xf32, #tpu.memory_space<vmem>>, vector<1x8x72xf32>
    %452 = vector.shape_cast %451 : vector<1x8x72xf32> to vector<8x72xf32>
    %c4_136 = arith.constant 4 : index
    %c0_137 = arith.constant 0 : index
    %c0_138 = arith.constant 0 : index
    %453 = vector.load %arg7[%c4_136, %c0_137, %c0_138] : memref<15x8x1xf32, #tpu.memory_space<vmem>>, vector<1x8x1xf32>
    %454 = vector.shape_cast %453 : vector<1x8x1xf32> to vector<8x1xf32>
    %c4_139 = arith.constant 4 : index
    %c0_140 = arith.constant 0 : index
    %c0_141 = arith.constant 0 : index
    %455 = vector.load %arg8[%c4_139, %c0_140, %c0_141] : memref<15x8x1xf32, #tpu.memory_space<vmem>>, vector<1x8x1xf32>
    %456 = vector.shape_cast %455 : vector<1x8x1xf32> to vector<8x1xf32>
    %c4_142 = arith.constant 4 : index
    %c0_143 = arith.constant 0 : index
    %c0_144 = arith.constant 0 : index
    %457 = vector.load %arg9[%c4_142, %c0_143, %c0_144] : memref<15x8x1xf32, #tpu.memory_space<vmem>>, vector<1x8x1xf32>
    %458 = vector.shape_cast %457 : vector<1x8x1xf32> to vector<8x1xf32>
    %c4_145 = arith.constant 4 : index
    %c0_146 = arith.constant 0 : index
    %c0_147 = arith.constant 0 : index
    %459 = vector.load %arg10[%c4_145, %c0_146, %c0_147] : memref<15x8x72xf32, #tpu.memory_space<vmem>>, vector<1x8x72xf32>
    %460 = vector.shape_cast %459 : vector<1x8x72xf32> to vector<8x72xf32>
    %c4_148 = arith.constant 4 : index
    %c0_149 = arith.constant 0 : index
    %c0_150 = arith.constant 0 : index
    %461 = vector.load %arg11[%c4_148, %c0_149, %c0_150] : memref<15x8x1xf32, #tpu.memory_space<vmem>>, vector<1x8x1xf32>
    %462 = vector.shape_cast %461 : vector<1x8x1xf32> to vector<8x1xf32>
    %cst_151 = arith.constant 0.000000e+00 : f32
    %463 = vector.broadcast %cst_151 : f32 to vector<8x128xf32>
    %464 = tpu.concatenate %463, %450, %463 in 1 : vector<8x128xf32>, vector<8x256xf32>, vector<8x128xf32> -> vector<8x512xf32>
    %465 = vector.extract_strided_slice %464 {offsets = [0, 111], sizes = [8, 256], strides = [1, 1]} : vector<8x512xf32> to vector<8x256xf32>
    %466 = vector.broadcast %0 : vector<1x256xf32> to vector<8x256xf32>
    %467 = arith.mulf %465, %466 : vector<8x256xf32>
    %468 = vector.extract_strided_slice %464 {offsets = [0, 112], sizes = [8, 256], strides = [1, 1]} : vector<8x512xf32> to vector<8x256xf32>
    %469 = vector.extract_strided_slice %464 {offsets = [0, 113], sizes = [8, 256], strides = [1, 1]} : vector<8x512xf32> to vector<8x256xf32>
    %470 = vector.broadcast %1 : vector<1x256xf32> to vector<8x256xf32>
    %471 = arith.mulf %469, %470 : vector<8x256xf32>
    %472 = vector.extract_strided_slice %464 {offsets = [0, 127], sizes = [8, 256], strides = [1, 1]} : vector<8x512xf32> to vector<8x256xf32>
    %473 = vector.broadcast %0 : vector<1x256xf32> to vector<8x256xf32>
    %474 = arith.mulf %472, %473 : vector<8x256xf32>
    %475 = vector.extract_strided_slice %464 {offsets = [0, 128], sizes = [8, 256], strides = [1, 1]} : vector<8x512xf32> to vector<8x256xf32>
    %476 = vector.extract_strided_slice %464 {offsets = [0, 129], sizes = [8, 256], strides = [1, 1]} : vector<8x512xf32> to vector<8x256xf32>
    %477 = vector.broadcast %1 : vector<1x256xf32> to vector<8x256xf32>
    %478 = arith.mulf %476, %477 : vector<8x256xf32>
    %479 = vector.extract_strided_slice %464 {offsets = [0, 143], sizes = [8, 256], strides = [1, 1]} : vector<8x512xf32> to vector<8x256xf32>
    %480 = vector.broadcast %0 : vector<1x256xf32> to vector<8x256xf32>
    %481 = arith.mulf %479, %480 : vector<8x256xf32>
    %482 = vector.extract_strided_slice %464 {offsets = [0, 144], sizes = [8, 256], strides = [1, 1]} : vector<8x512xf32> to vector<8x256xf32>
    %483 = vector.extract_strided_slice %464 {offsets = [0, 145], sizes = [8, 256], strides = [1, 1]} : vector<8x512xf32> to vector<8x256xf32>
    %484 = vector.broadcast %1 : vector<1x256xf32> to vector<8x256xf32>
    %485 = arith.mulf %483, %484 : vector<8x256xf32>
    %486 = tpu.concatenate %467, %468, %471, %474, %475, %478, %481, %482, %485 in 0 : vector<8x256xf32>, vector<8x256xf32>, vector<8x256xf32>, vector<8x256xf32>, vector<8x256xf32>, vector<8x256xf32>, vector<8x256xf32>, vector<8x256xf32>, vector<8x256xf32> -> vector<72x256xf32>
    %cst_152 = arith.constant dense<0.000000e+00> : vector<8x256xf32>
    %487 = tpu.matmul %452, %486, %cst_152 {dimension_numbers = #tpu.dot_dimension_numbers<[1], [0], [0], [1], [0, 0, 1, 1], [], []>} : vector<8x72xf32>, vector<72x256xf32>, vector<8x256xf32> -> vector<8x256xf32>
    %488 = vector.broadcast %454 : vector<8x1xf32> to vector<8x256xf32>
    %489 = arith.addf %487, %488 : vector<8x256xf32>
    %cst_153 = arith.constant dense<0.000000e+00> : vector<8xf32>
    %490 = vector.multi_reduction <add>, %489, %cst_153 [1] : vector<8x256xf32> to vector<8xf32>
    %491 = vector.shape_cast %490 : vector<8xf32> to vector<8x1xf32>
    %cst_154 = arith.constant 2.560000e+02 : f32
    %492 = vector.broadcast %cst_154 : f32 to vector<8x1xf32>
    %493 = arith.divf %491, %492 : vector<8x1xf32>
    %494 = arith.mulf %489, %489 : vector<8x256xf32>
    %cst_155 = arith.constant dense<0.000000e+00> : vector<8xf32>
    %495 = vector.multi_reduction <add>, %494, %cst_155 [1] : vector<8x256xf32> to vector<8xf32>
    %496 = vector.shape_cast %495 : vector<8xf32> to vector<8x1xf32>
    %cst_156 = arith.constant 2.560000e+02 : f32
    %497 = vector.broadcast %cst_156 : f32 to vector<8x1xf32>
    %498 = arith.divf %496, %497 : vector<8x1xf32>
    %499 = arith.mulf %493, %493 : vector<8x1xf32>
    %500 = arith.subf %498, %499 : vector<8x1xf32>
    %cst_157 = arith.constant 0.000000e+00 : f32
    %501 = vector.broadcast %cst_157 : f32 to vector<8x1xf32>
    %502 = arith.maximumf %500, %501 : vector<8x1xf32>
    %503 = vector.broadcast %493 : vector<8x1xf32> to vector<8x256xf32>
    %504 = arith.subf %489, %503 : vector<8x256xf32>
    %cst_158 = arith.constant 9.99999974E-6 : f32
    %505 = vector.broadcast %cst_158 : f32 to vector<8x1xf32>
    %506 = arith.addf %502, %505 : vector<8x1xf32>
    %507 = math.rsqrt %506 : vector<8x1xf32>
    %508 = vector.broadcast %507 : vector<8x1xf32> to vector<8x256xf32>
    %509 = arith.mulf %504, %508 : vector<8x256xf32>
    %510 = vector.broadcast %456 : vector<8x1xf32> to vector<8x256xf32>
    %511 = arith.mulf %509, %510 : vector<8x256xf32>
    %512 = vector.broadcast %458 : vector<8x1xf32> to vector<8x256xf32>
    %513 = arith.addf %511, %512 : vector<8x256xf32>
    %514 = vector.broadcast %6 : vector<8x1xf32> to vector<8x256xf32>
    %515 = arith.mulf %513, %514 : vector<8x256xf32>
    %cst_159 = arith.constant 1.000000e+00 : f32
    %516 = vector.broadcast %cst_159 : f32 to vector<8x1xf32>
    %517 = arith.subf %516, %6 : vector<8x1xf32>
    %518 = vector.broadcast %517 : vector<8x1xf32> to vector<8x256xf32>
    %519 = arith.mulf %489, %518 : vector<8x256xf32>
    %520 = arith.addf %515, %519 : vector<8x256xf32>
    %cst_160 = arith.constant 0.000000e+00 : f32
    %521 = vector.broadcast %cst_160 : f32 to vector<8x128xf32>
    %522 = tpu.concatenate %521, %520, %521 in 1 : vector<8x128xf32>, vector<8x256xf32>, vector<8x128xf32> -> vector<8x512xf32>
    %523 = vector.extract_strided_slice %522 {offsets = [0, 111], sizes = [8, 256], strides = [1, 1]} : vector<8x512xf32> to vector<8x256xf32>
    %524 = vector.broadcast %0 : vector<1x256xf32> to vector<8x256xf32>
    %525 = arith.mulf %523, %524 : vector<8x256xf32>
    %526 = vector.extract_strided_slice %522 {offsets = [0, 112], sizes = [8, 256], strides = [1, 1]} : vector<8x512xf32> to vector<8x256xf32>
    %527 = vector.extract_strided_slice %522 {offsets = [0, 113], sizes = [8, 256], strides = [1, 1]} : vector<8x512xf32> to vector<8x256xf32>
    %528 = vector.broadcast %1 : vector<1x256xf32> to vector<8x256xf32>
    %529 = arith.mulf %527, %528 : vector<8x256xf32>
    %530 = vector.extract_strided_slice %522 {offsets = [0, 127], sizes = [8, 256], strides = [1, 1]} : vector<8x512xf32> to vector<8x256xf32>
    %531 = vector.broadcast %0 : vector<1x256xf32> to vector<8x256xf32>
    %532 = arith.mulf %530, %531 : vector<8x256xf32>
    %533 = vector.extract_strided_slice %522 {offsets = [0, 128], sizes = [8, 256], strides = [1, 1]} : vector<8x512xf32> to vector<8x256xf32>
    %534 = vector.extract_strided_slice %522 {offsets = [0, 129], sizes = [8, 256], strides = [1, 1]} : vector<8x512xf32> to vector<8x256xf32>
    %535 = vector.broadcast %1 : vector<1x256xf32> to vector<8x256xf32>
    %536 = arith.mulf %534, %535 : vector<8x256xf32>
    %537 = vector.extract_strided_slice %522 {offsets = [0, 143], sizes = [8, 256], strides = [1, 1]} : vector<8x512xf32> to vector<8x256xf32>
    %538 = vector.broadcast %0 : vector<1x256xf32> to vector<8x256xf32>
    %539 = arith.mulf %537, %538 : vector<8x256xf32>
    %540 = vector.extract_strided_slice %522 {offsets = [0, 144], sizes = [8, 256], strides = [1, 1]} : vector<8x512xf32> to vector<8x256xf32>
    %541 = vector.extract_strided_slice %522 {offsets = [0, 145], sizes = [8, 256], strides = [1, 1]} : vector<8x512xf32> to vector<8x256xf32>
    %542 = vector.broadcast %1 : vector<1x256xf32> to vector<8x256xf32>
    %543 = arith.mulf %541, %542 : vector<8x256xf32>
    %544 = tpu.concatenate %525, %526, %529, %532, %533, %536, %539, %540, %543 in 0 : vector<8x256xf32>, vector<8x256xf32>, vector<8x256xf32>, vector<8x256xf32>, vector<8x256xf32>, vector<8x256xf32>, vector<8x256xf32>, vector<8x256xf32>, vector<8x256xf32> -> vector<72x256xf32>
    %cst_161 = arith.constant dense<0.000000e+00> : vector<8x256xf32>
    %545 = tpu.matmul %460, %544, %cst_161 {dimension_numbers = #tpu.dot_dimension_numbers<[1], [0], [0], [1], [0, 0, 1, 1], [], []>} : vector<8x72xf32>, vector<72x256xf32>, vector<8x256xf32> -> vector<8x256xf32>
    %546 = vector.broadcast %462 : vector<8x1xf32> to vector<8x256xf32>
    %547 = arith.addf %545, %546 : vector<8x256xf32>
    %548 = arith.addf %450, %547 : vector<8x256xf32>
    %c5 = arith.constant 5 : index
    %c0_162 = arith.constant 0 : index
    %c0_163 = arith.constant 0 : index
    %549 = vector.load %arg6[%c5, %c0_162, %c0_163] : memref<15x8x72xf32, #tpu.memory_space<vmem>>, vector<1x8x72xf32>
    %550 = vector.shape_cast %549 : vector<1x8x72xf32> to vector<8x72xf32>
    %c5_164 = arith.constant 5 : index
    %c0_165 = arith.constant 0 : index
    %c0_166 = arith.constant 0 : index
    %551 = vector.load %arg7[%c5_164, %c0_165, %c0_166] : memref<15x8x1xf32, #tpu.memory_space<vmem>>, vector<1x8x1xf32>
    %552 = vector.shape_cast %551 : vector<1x8x1xf32> to vector<8x1xf32>
    %c5_167 = arith.constant 5 : index
    %c0_168 = arith.constant 0 : index
    %c0_169 = arith.constant 0 : index
    %553 = vector.load %arg8[%c5_167, %c0_168, %c0_169] : memref<15x8x1xf32, #tpu.memory_space<vmem>>, vector<1x8x1xf32>
    %554 = vector.shape_cast %553 : vector<1x8x1xf32> to vector<8x1xf32>
    %c5_170 = arith.constant 5 : index
    %c0_171 = arith.constant 0 : index
    %c0_172 = arith.constant 0 : index
    %555 = vector.load %arg9[%c5_170, %c0_171, %c0_172] : memref<15x8x1xf32, #tpu.memory_space<vmem>>, vector<1x8x1xf32>
    %556 = vector.shape_cast %555 : vector<1x8x1xf32> to vector<8x1xf32>
    %c5_173 = arith.constant 5 : index
    %c0_174 = arith.constant 0 : index
    %c0_175 = arith.constant 0 : index
    %557 = vector.load %arg10[%c5_173, %c0_174, %c0_175] : memref<15x8x72xf32, #tpu.memory_space<vmem>>, vector<1x8x72xf32>
    %558 = vector.shape_cast %557 : vector<1x8x72xf32> to vector<8x72xf32>
    %c5_176 = arith.constant 5 : index
    %c0_177 = arith.constant 0 : index
    %c0_178 = arith.constant 0 : index
    %559 = vector.load %arg11[%c5_176, %c0_177, %c0_178] : memref<15x8x1xf32, #tpu.memory_space<vmem>>, vector<1x8x1xf32>
    %560 = vector.shape_cast %559 : vector<1x8x1xf32> to vector<8x1xf32>
    %cst_179 = arith.constant 0.000000e+00 : f32
    %561 = vector.broadcast %cst_179 : f32 to vector<8x128xf32>
    %562 = tpu.concatenate %561, %450, %561 in 1 : vector<8x128xf32>, vector<8x256xf32>, vector<8x128xf32> -> vector<8x512xf32>
    %563 = vector.extract_strided_slice %562 {offsets = [0, 111], sizes = [8, 256], strides = [1, 1]} : vector<8x512xf32> to vector<8x256xf32>
    %564 = vector.broadcast %0 : vector<1x256xf32> to vector<8x256xf32>
    %565 = arith.mulf %563, %564 : vector<8x256xf32>
    %566 = vector.extract_strided_slice %562 {offsets = [0, 112], sizes = [8, 256], strides = [1, 1]} : vector<8x512xf32> to vector<8x256xf32>
    %567 = vector.extract_strided_slice %562 {offsets = [0, 113], sizes = [8, 256], strides = [1, 1]} : vector<8x512xf32> to vector<8x256xf32>
    %568 = vector.broadcast %1 : vector<1x256xf32> to vector<8x256xf32>
    %569 = arith.mulf %567, %568 : vector<8x256xf32>
    %570 = vector.extract_strided_slice %562 {offsets = [0, 127], sizes = [8, 256], strides = [1, 1]} : vector<8x512xf32> to vector<8x256xf32>
    %571 = vector.broadcast %0 : vector<1x256xf32> to vector<8x256xf32>
    %572 = arith.mulf %570, %571 : vector<8x256xf32>
    %573 = vector.extract_strided_slice %562 {offsets = [0, 128], sizes = [8, 256], strides = [1, 1]} : vector<8x512xf32> to vector<8x256xf32>
    %574 = vector.extract_strided_slice %562 {offsets = [0, 129], sizes = [8, 256], strides = [1, 1]} : vector<8x512xf32> to vector<8x256xf32>
    %575 = vector.broadcast %1 : vector<1x256xf32> to vector<8x256xf32>
    %576 = arith.mulf %574, %575 : vector<8x256xf32>
    %577 = vector.extract_strided_slice %562 {offsets = [0, 143], sizes = [8, 256], strides = [1, 1]} : vector<8x512xf32> to vector<8x256xf32>
    %578 = vector.broadcast %0 : vector<1x256xf32> to vector<8x256xf32>
    %579 = arith.mulf %577, %578 : vector<8x256xf32>
    %580 = vector.extract_strided_slice %562 {offsets = [0, 144], sizes = [8, 256], strides = [1, 1]} : vector<8x512xf32> to vector<8x256xf32>
    %581 = vector.extract_strided_slice %562 {offsets = [0, 145], sizes = [8, 256], strides = [1, 1]} : vector<8x512xf32> to vector<8x256xf32>
    %582 = vector.broadcast %1 : vector<1x256xf32> to vector<8x256xf32>
    %583 = arith.mulf %581, %582 : vector<8x256xf32>
    %584 = tpu.concatenate %565, %566, %569, %572, %573, %576, %579, %580, %583 in 0 : vector<8x256xf32>, vector<8x256xf32>, vector<8x256xf32>, vector<8x256xf32>, vector<8x256xf32>, vector<8x256xf32>, vector<8x256xf32>, vector<8x256xf32>, vector<8x256xf32> -> vector<72x256xf32>
    %cst_180 = arith.constant dense<0.000000e+00> : vector<8x256xf32>
    %585 = tpu.matmul %550, %584, %cst_180 {dimension_numbers = #tpu.dot_dimension_numbers<[1], [0], [0], [1], [0, 0, 1, 1], [], []>} : vector<8x72xf32>, vector<72x256xf32>, vector<8x256xf32> -> vector<8x256xf32>
    %586 = vector.broadcast %552 : vector<8x1xf32> to vector<8x256xf32>
    %587 = arith.addf %585, %586 : vector<8x256xf32>
    %cst_181 = arith.constant dense<0.000000e+00> : vector<8xf32>
    %588 = vector.multi_reduction <add>, %587, %cst_181 [1] : vector<8x256xf32> to vector<8xf32>
    %589 = vector.shape_cast %588 : vector<8xf32> to vector<8x1xf32>
    %cst_182 = arith.constant 2.560000e+02 : f32
    %590 = vector.broadcast %cst_182 : f32 to vector<8x1xf32>
    %591 = arith.divf %589, %590 : vector<8x1xf32>
    %592 = arith.mulf %587, %587 : vector<8x256xf32>
    %cst_183 = arith.constant dense<0.000000e+00> : vector<8xf32>
    %593 = vector.multi_reduction <add>, %592, %cst_183 [1] : vector<8x256xf32> to vector<8xf32>
    %594 = vector.shape_cast %593 : vector<8xf32> to vector<8x1xf32>
    %cst_184 = arith.constant 2.560000e+02 : f32
    %595 = vector.broadcast %cst_184 : f32 to vector<8x1xf32>
    %596 = arith.divf %594, %595 : vector<8x1xf32>
    %597 = arith.mulf %591, %591 : vector<8x1xf32>
    %598 = arith.subf %596, %597 : vector<8x1xf32>
    %cst_185 = arith.constant 0.000000e+00 : f32
    %599 = vector.broadcast %cst_185 : f32 to vector<8x1xf32>
    %600 = arith.maximumf %598, %599 : vector<8x1xf32>
    %601 = vector.broadcast %591 : vector<8x1xf32> to vector<8x256xf32>
    %602 = arith.subf %587, %601 : vector<8x256xf32>
    %cst_186 = arith.constant 9.99999974E-6 : f32
    %603 = vector.broadcast %cst_186 : f32 to vector<8x1xf32>
    %604 = arith.addf %600, %603 : vector<8x1xf32>
    %605 = math.rsqrt %604 : vector<8x1xf32>
    %606 = vector.broadcast %605 : vector<8x1xf32> to vector<8x256xf32>
    %607 = arith.mulf %602, %606 : vector<8x256xf32>
    %608 = vector.broadcast %554 : vector<8x1xf32> to vector<8x256xf32>
    %609 = arith.mulf %607, %608 : vector<8x256xf32>
    %610 = vector.broadcast %556 : vector<8x1xf32> to vector<8x256xf32>
    %611 = arith.addf %609, %610 : vector<8x256xf32>
    %612 = vector.broadcast %6 : vector<8x1xf32> to vector<8x256xf32>
    %613 = arith.mulf %611, %612 : vector<8x256xf32>
    %cst_187 = arith.constant 1.000000e+00 : f32
    %614 = vector.broadcast %cst_187 : f32 to vector<8x1xf32>
    %615 = arith.subf %614, %6 : vector<8x1xf32>
    %616 = vector.broadcast %615 : vector<8x1xf32> to vector<8x256xf32>
    %617 = arith.mulf %587, %616 : vector<8x256xf32>
    %618 = arith.addf %613, %617 : vector<8x256xf32>
    %cst_188 = arith.constant 0.000000e+00 : f32
    %619 = vector.broadcast %cst_188 : f32 to vector<8x128xf32>
    %620 = tpu.concatenate %619, %618, %619 in 1 : vector<8x128xf32>, vector<8x256xf32>, vector<8x128xf32> -> vector<8x512xf32>
    %621 = vector.extract_strided_slice %620 {offsets = [0, 111], sizes = [8, 256], strides = [1, 1]} : vector<8x512xf32> to vector<8x256xf32>
    %622 = vector.broadcast %0 : vector<1x256xf32> to vector<8x256xf32>
    %623 = arith.mulf %621, %622 : vector<8x256xf32>
    %624 = vector.extract_strided_slice %620 {offsets = [0, 112], sizes = [8, 256], strides = [1, 1]} : vector<8x512xf32> to vector<8x256xf32>
    %625 = vector.extract_strided_slice %620 {offsets = [0, 113], sizes = [8, 256], strides = [1, 1]} : vector<8x512xf32> to vector<8x256xf32>
    %626 = vector.broadcast %1 : vector<1x256xf32> to vector<8x256xf32>
    %627 = arith.mulf %625, %626 : vector<8x256xf32>
    %628 = vector.extract_strided_slice %620 {offsets = [0, 127], sizes = [8, 256], strides = [1, 1]} : vector<8x512xf32> to vector<8x256xf32>
    %629 = vector.broadcast %0 : vector<1x256xf32> to vector<8x256xf32>
    %630 = arith.mulf %628, %629 : vector<8x256xf32>
    %631 = vector.extract_strided_slice %620 {offsets = [0, 128], sizes = [8, 256], strides = [1, 1]} : vector<8x512xf32> to vector<8x256xf32>
    %632 = vector.extract_strided_slice %620 {offsets = [0, 129], sizes = [8, 256], strides = [1, 1]} : vector<8x512xf32> to vector<8x256xf32>
    %633 = vector.broadcast %1 : vector<1x256xf32> to vector<8x256xf32>
    %634 = arith.mulf %632, %633 : vector<8x256xf32>
    %635 = vector.extract_strided_slice %620 {offsets = [0, 143], sizes = [8, 256], strides = [1, 1]} : vector<8x512xf32> to vector<8x256xf32>
    %636 = vector.broadcast %0 : vector<1x256xf32> to vector<8x256xf32>
    %637 = arith.mulf %635, %636 : vector<8x256xf32>
    %638 = vector.extract_strided_slice %620 {offsets = [0, 144], sizes = [8, 256], strides = [1, 1]} : vector<8x512xf32> to vector<8x256xf32>
    %639 = vector.extract_strided_slice %620 {offsets = [0, 145], sizes = [8, 256], strides = [1, 1]} : vector<8x512xf32> to vector<8x256xf32>
    %640 = vector.broadcast %1 : vector<1x256xf32> to vector<8x256xf32>
    %641 = arith.mulf %639, %640 : vector<8x256xf32>
    %642 = tpu.concatenate %623, %624, %627, %630, %631, %634, %637, %638, %641 in 0 : vector<8x256xf32>, vector<8x256xf32>, vector<8x256xf32>, vector<8x256xf32>, vector<8x256xf32>, vector<8x256xf32>, vector<8x256xf32>, vector<8x256xf32>, vector<8x256xf32> -> vector<72x256xf32>
    %cst_189 = arith.constant dense<0.000000e+00> : vector<8x256xf32>
    %643 = tpu.matmul %558, %642, %cst_189 {dimension_numbers = #tpu.dot_dimension_numbers<[1], [0], [0], [1], [0, 0, 1, 1], [], []>} : vector<8x72xf32>, vector<72x256xf32>, vector<8x256xf32> -> vector<8x256xf32>
    %644 = vector.broadcast %560 : vector<8x1xf32> to vector<8x256xf32>
    %645 = arith.addf %643, %644 : vector<8x256xf32>
    %646 = arith.addf %450, %645 : vector<8x256xf32>
    %cst_190 = arith.constant 5.000000e-01 : f32
    %647 = vector.broadcast %cst_190 : f32 to vector<8x256xf32>
    %648 = arith.mulf %647, %548 : vector<8x256xf32>
    %649 = math.tanh %648 : vector<8x256xf32>
    %cst_191 = arith.constant 8.000000e-01 : f32
    %650 = vector.broadcast %cst_191 : f32 to vector<8x256xf32>
    %651 = arith.mulf %650, %649 : vector<8x256xf32>
    %652 = math.exp %651 : vector<8x256xf32>
    %653 = arith.mulf %351, %652 : vector<8x256xf32>
    %654 = arith.addf %653, %646 : vector<8x256xf32>
    %655 = tpu.concatenate %450, %654 in 0 : vector<8x256xf32>, vector<8x256xf32> -> vector<16x256xf32>
    %c2_192 = arith.constant 2 : index
    %c0_193 = arith.constant 0 : index
    %c0_194 = arith.constant 0 : index
    %656 = vector.load %arg5[%c2_192, %c0_193, %c0_194] : memref<5x16x16xf32, #tpu.memory_space<vmem>>, vector<1x16x16xf32>
    %657 = vector.shape_cast %656 : vector<1x16x16xf32> to vector<16x16xf32>
    %cst_195 = arith.constant dense<0.000000e+00> : vector<16x256xf32>
    %658 = tpu.matmul %657, %655, %cst_195 {dimension_numbers = #tpu.dot_dimension_numbers<[1], [0], [0], [1], [0, 0, 1, 1], [], []>} : vector<16x16xf32>, vector<16x256xf32>, vector<16x256xf32> -> vector<16x256xf32>
    %659 = vector.extract_strided_slice %658 {offsets = [0, 0], sizes = [8, 256], strides = [1, 1]} : vector<16x256xf32> to vector<8x256xf32>
    %660 = vector.extract_strided_slice %658 {offsets = [8, 0], sizes = [8, 256], strides = [1, 1]} : vector<16x256xf32> to vector<8x256xf32>
    %c6 = arith.constant 6 : index
    %c0_196 = arith.constant 0 : index
    %c0_197 = arith.constant 0 : index
    %661 = vector.load %arg6[%c6, %c0_196, %c0_197] : memref<15x8x72xf32, #tpu.memory_space<vmem>>, vector<1x8x72xf32>
    %662 = vector.shape_cast %661 : vector<1x8x72xf32> to vector<8x72xf32>
    %c6_198 = arith.constant 6 : index
    %c0_199 = arith.constant 0 : index
    %c0_200 = arith.constant 0 : index
    %663 = vector.load %arg7[%c6_198, %c0_199, %c0_200] : memref<15x8x1xf32, #tpu.memory_space<vmem>>, vector<1x8x1xf32>
    %664 = vector.shape_cast %663 : vector<1x8x1xf32> to vector<8x1xf32>
    %c6_201 = arith.constant 6 : index
    %c0_202 = arith.constant 0 : index
    %c0_203 = arith.constant 0 : index
    %665 = vector.load %arg8[%c6_201, %c0_202, %c0_203] : memref<15x8x1xf32, #tpu.memory_space<vmem>>, vector<1x8x1xf32>
    %666 = vector.shape_cast %665 : vector<1x8x1xf32> to vector<8x1xf32>
    %c6_204 = arith.constant 6 : index
    %c0_205 = arith.constant 0 : index
    %c0_206 = arith.constant 0 : index
    %667 = vector.load %arg9[%c6_204, %c0_205, %c0_206] : memref<15x8x1xf32, #tpu.memory_space<vmem>>, vector<1x8x1xf32>
    %668 = vector.shape_cast %667 : vector<1x8x1xf32> to vector<8x1xf32>
    %c6_207 = arith.constant 6 : index
    %c0_208 = arith.constant 0 : index
    %c0_209 = arith.constant 0 : index
    %669 = vector.load %arg10[%c6_207, %c0_208, %c0_209] : memref<15x8x72xf32, #tpu.memory_space<vmem>>, vector<1x8x72xf32>
    %670 = vector.shape_cast %669 : vector<1x8x72xf32> to vector<8x72xf32>
    %c6_210 = arith.constant 6 : index
    %c0_211 = arith.constant 0 : index
    %c0_212 = arith.constant 0 : index
    %671 = vector.load %arg11[%c6_210, %c0_211, %c0_212] : memref<15x8x1xf32, #tpu.memory_space<vmem>>, vector<1x8x1xf32>
    %672 = vector.shape_cast %671 : vector<1x8x1xf32> to vector<8x1xf32>
    %cst_213 = arith.constant 0.000000e+00 : f32
    %673 = vector.broadcast %cst_213 : f32 to vector<8x128xf32>
    %674 = tpu.concatenate %673, %660, %673 in 1 : vector<8x128xf32>, vector<8x256xf32>, vector<8x128xf32> -> vector<8x512xf32>
    %675 = vector.extract_strided_slice %674 {offsets = [0, 111], sizes = [8, 256], strides = [1, 1]} : vector<8x512xf32> to vector<8x256xf32>
    %676 = vector.broadcast %0 : vector<1x256xf32> to vector<8x256xf32>
    %677 = arith.mulf %675, %676 : vector<8x256xf32>
    %678 = vector.extract_strided_slice %674 {offsets = [0, 112], sizes = [8, 256], strides = [1, 1]} : vector<8x512xf32> to vector<8x256xf32>
    %679 = vector.extract_strided_slice %674 {offsets = [0, 113], sizes = [8, 256], strides = [1, 1]} : vector<8x512xf32> to vector<8x256xf32>
    %680 = vector.broadcast %1 : vector<1x256xf32> to vector<8x256xf32>
    %681 = arith.mulf %679, %680 : vector<8x256xf32>
    %682 = vector.extract_strided_slice %674 {offsets = [0, 127], sizes = [8, 256], strides = [1, 1]} : vector<8x512xf32> to vector<8x256xf32>
    %683 = vector.broadcast %0 : vector<1x256xf32> to vector<8x256xf32>
    %684 = arith.mulf %682, %683 : vector<8x256xf32>
    %685 = vector.extract_strided_slice %674 {offsets = [0, 128], sizes = [8, 256], strides = [1, 1]} : vector<8x512xf32> to vector<8x256xf32>
    %686 = vector.extract_strided_slice %674 {offsets = [0, 129], sizes = [8, 256], strides = [1, 1]} : vector<8x512xf32> to vector<8x256xf32>
    %687 = vector.broadcast %1 : vector<1x256xf32> to vector<8x256xf32>
    %688 = arith.mulf %686, %687 : vector<8x256xf32>
    %689 = vector.extract_strided_slice %674 {offsets = [0, 143], sizes = [8, 256], strides = [1, 1]} : vector<8x512xf32> to vector<8x256xf32>
    %690 = vector.broadcast %0 : vector<1x256xf32> to vector<8x256xf32>
    %691 = arith.mulf %689, %690 : vector<8x256xf32>
    %692 = vector.extract_strided_slice %674 {offsets = [0, 144], sizes = [8, 256], strides = [1, 1]} : vector<8x512xf32> to vector<8x256xf32>
    %693 = vector.extract_strided_slice %674 {offsets = [0, 145], sizes = [8, 256], strides = [1, 1]} : vector<8x512xf32> to vector<8x256xf32>
    %694 = vector.broadcast %1 : vector<1x256xf32> to vector<8x256xf32>
    %695 = arith.mulf %693, %694 : vector<8x256xf32>
    %696 = tpu.concatenate %677, %678, %681, %684, %685, %688, %691, %692, %695 in 0 : vector<8x256xf32>, vector<8x256xf32>, vector<8x256xf32>, vector<8x256xf32>, vector<8x256xf32>, vector<8x256xf32>, vector<8x256xf32>, vector<8x256xf32>, vector<8x256xf32> -> vector<72x256xf32>
    %cst_214 = arith.constant dense<0.000000e+00> : vector<8x256xf32>
    %697 = tpu.matmul %662, %696, %cst_214 {dimension_numbers = #tpu.dot_dimension_numbers<[1], [0], [0], [1], [0, 0, 1, 1], [], []>} : vector<8x72xf32>, vector<72x256xf32>, vector<8x256xf32> -> vector<8x256xf32>
    %698 = vector.broadcast %664 : vector<8x1xf32> to vector<8x256xf32>
    %699 = arith.addf %697, %698 : vector<8x256xf32>
    %cst_215 = arith.constant dense<0.000000e+00> : vector<8xf32>
    %700 = vector.multi_reduction <add>, %699, %cst_215 [1] : vector<8x256xf32> to vector<8xf32>
    %701 = vector.shape_cast %700 : vector<8xf32> to vector<8x1xf32>
    %cst_216 = arith.constant 2.560000e+02 : f32
    %702 = vector.broadcast %cst_216 : f32 to vector<8x1xf32>
    %703 = arith.divf %701, %702 : vector<8x1xf32>
    %704 = arith.mulf %699, %699 : vector<8x256xf32>
    %cst_217 = arith.constant dense<0.000000e+00> : vector<8xf32>
    %705 = vector.multi_reduction <add>, %704, %cst_217 [1] : vector<8x256xf32> to vector<8xf32>
    %706 = vector.shape_cast %705 : vector<8xf32> to vector<8x1xf32>
    %cst_218 = arith.constant 2.560000e+02 : f32
    %707 = vector.broadcast %cst_218 : f32 to vector<8x1xf32>
    %708 = arith.divf %706, %707 : vector<8x1xf32>
    %709 = arith.mulf %703, %703 : vector<8x1xf32>
    %710 = arith.subf %708, %709 : vector<8x1xf32>
    %cst_219 = arith.constant 0.000000e+00 : f32
    %711 = vector.broadcast %cst_219 : f32 to vector<8x1xf32>
    %712 = arith.maximumf %710, %711 : vector<8x1xf32>
    %713 = vector.broadcast %703 : vector<8x1xf32> to vector<8x256xf32>
    %714 = arith.subf %699, %713 : vector<8x256xf32>
    %cst_220 = arith.constant 9.99999974E-6 : f32
    %715 = vector.broadcast %cst_220 : f32 to vector<8x1xf32>
    %716 = arith.addf %712, %715 : vector<8x1xf32>
    %717 = math.rsqrt %716 : vector<8x1xf32>
    %718 = vector.broadcast %717 : vector<8x1xf32> to vector<8x256xf32>
    %719 = arith.mulf %714, %718 : vector<8x256xf32>
    %720 = vector.broadcast %666 : vector<8x1xf32> to vector<8x256xf32>
    %721 = arith.mulf %719, %720 : vector<8x256xf32>
    %722 = vector.broadcast %668 : vector<8x1xf32> to vector<8x256xf32>
    %723 = arith.addf %721, %722 : vector<8x256xf32>
    %724 = vector.broadcast %6 : vector<8x1xf32> to vector<8x256xf32>
    %725 = arith.mulf %723, %724 : vector<8x256xf32>
    %cst_221 = arith.constant 1.000000e+00 : f32
    %726 = vector.broadcast %cst_221 : f32 to vector<8x1xf32>
    %727 = arith.subf %726, %6 : vector<8x1xf32>
    %728 = vector.broadcast %727 : vector<8x1xf32> to vector<8x256xf32>
    %729 = arith.mulf %699, %728 : vector<8x256xf32>
    %730 = arith.addf %725, %729 : vector<8x256xf32>
    %cst_222 = arith.constant 0.000000e+00 : f32
    %731 = vector.broadcast %cst_222 : f32 to vector<8x128xf32>
    %732 = tpu.concatenate %731, %730, %731 in 1 : vector<8x128xf32>, vector<8x256xf32>, vector<8x128xf32> -> vector<8x512xf32>
    %733 = vector.extract_strided_slice %732 {offsets = [0, 111], sizes = [8, 256], strides = [1, 1]} : vector<8x512xf32> to vector<8x256xf32>
    %734 = vector.broadcast %0 : vector<1x256xf32> to vector<8x256xf32>
    %735 = arith.mulf %733, %734 : vector<8x256xf32>
    %736 = vector.extract_strided_slice %732 {offsets = [0, 112], sizes = [8, 256], strides = [1, 1]} : vector<8x512xf32> to vector<8x256xf32>
    %737 = vector.extract_strided_slice %732 {offsets = [0, 113], sizes = [8, 256], strides = [1, 1]} : vector<8x512xf32> to vector<8x256xf32>
    %738 = vector.broadcast %1 : vector<1x256xf32> to vector<8x256xf32>
    %739 = arith.mulf %737, %738 : vector<8x256xf32>
    %740 = vector.extract_strided_slice %732 {offsets = [0, 127], sizes = [8, 256], strides = [1, 1]} : vector<8x512xf32> to vector<8x256xf32>
    %741 = vector.broadcast %0 : vector<1x256xf32> to vector<8x256xf32>
    %742 = arith.mulf %740, %741 : vector<8x256xf32>
    %743 = vector.extract_strided_slice %732 {offsets = [0, 128], sizes = [8, 256], strides = [1, 1]} : vector<8x512xf32> to vector<8x256xf32>
    %744 = vector.extract_strided_slice %732 {offsets = [0, 129], sizes = [8, 256], strides = [1, 1]} : vector<8x512xf32> to vector<8x256xf32>
    %745 = vector.broadcast %1 : vector<1x256xf32> to vector<8x256xf32>
    %746 = arith.mulf %744, %745 : vector<8x256xf32>
    %747 = vector.extract_strided_slice %732 {offsets = [0, 143], sizes = [8, 256], strides = [1, 1]} : vector<8x512xf32> to vector<8x256xf32>
    %748 = vector.broadcast %0 : vector<1x256xf32> to vector<8x256xf32>
    %749 = arith.mulf %747, %748 : vector<8x256xf32>
    %750 = vector.extract_strided_slice %732 {offsets = [0, 144], sizes = [8, 256], strides = [1, 1]} : vector<8x512xf32> to vector<8x256xf32>
    %751 = vector.extract_strided_slice %732 {offsets = [0, 145], sizes = [8, 256], strides = [1, 1]} : vector<8x512xf32> to vector<8x256xf32>
    %752 = vector.broadcast %1 : vector<1x256xf32> to vector<8x256xf32>
    %753 = arith.mulf %751, %752 : vector<8x256xf32>
    %754 = tpu.concatenate %735, %736, %739, %742, %743, %746, %749, %750, %753 in 0 : vector<8x256xf32>, vector<8x256xf32>, vector<8x256xf32>, vector<8x256xf32>, vector<8x256xf32>, vector<8x256xf32>, vector<8x256xf32>, vector<8x256xf32>, vector<8x256xf32> -> vector<72x256xf32>
    %cst_223 = arith.constant dense<0.000000e+00> : vector<8x256xf32>
    %755 = tpu.matmul %670, %754, %cst_223 {dimension_numbers = #tpu.dot_dimension_numbers<[1], [0], [0], [1], [0, 0, 1, 1], [], []>} : vector<8x72xf32>, vector<72x256xf32>, vector<8x256xf32> -> vector<8x256xf32>
    %756 = vector.broadcast %672 : vector<8x1xf32> to vector<8x256xf32>
    %757 = arith.addf %755, %756 : vector<8x256xf32>
    %758 = arith.addf %660, %757 : vector<8x256xf32>
    %759 = arith.addf %659, %758 : vector<8x256xf32>
    %c7 = arith.constant 7 : index
    %c0_224 = arith.constant 0 : index
    %c0_225 = arith.constant 0 : index
    %760 = vector.load %arg6[%c7, %c0_224, %c0_225] : memref<15x8x72xf32, #tpu.memory_space<vmem>>, vector<1x8x72xf32>
    %761 = vector.shape_cast %760 : vector<1x8x72xf32> to vector<8x72xf32>
    %c7_226 = arith.constant 7 : index
    %c0_227 = arith.constant 0 : index
    %c0_228 = arith.constant 0 : index
    %762 = vector.load %arg7[%c7_226, %c0_227, %c0_228] : memref<15x8x1xf32, #tpu.memory_space<vmem>>, vector<1x8x1xf32>
    %763 = vector.shape_cast %762 : vector<1x8x1xf32> to vector<8x1xf32>
    %c7_229 = arith.constant 7 : index
    %c0_230 = arith.constant 0 : index
    %c0_231 = arith.constant 0 : index
    %764 = vector.load %arg8[%c7_229, %c0_230, %c0_231] : memref<15x8x1xf32, #tpu.memory_space<vmem>>, vector<1x8x1xf32>
    %765 = vector.shape_cast %764 : vector<1x8x1xf32> to vector<8x1xf32>
    %c7_232 = arith.constant 7 : index
    %c0_233 = arith.constant 0 : index
    %c0_234 = arith.constant 0 : index
    %766 = vector.load %arg9[%c7_232, %c0_233, %c0_234] : memref<15x8x1xf32, #tpu.memory_space<vmem>>, vector<1x8x1xf32>
    %767 = vector.shape_cast %766 : vector<1x8x1xf32> to vector<8x1xf32>
    %c7_235 = arith.constant 7 : index
    %c0_236 = arith.constant 0 : index
    %c0_237 = arith.constant 0 : index
    %768 = vector.load %arg10[%c7_235, %c0_236, %c0_237] : memref<15x8x72xf32, #tpu.memory_space<vmem>>, vector<1x8x72xf32>
    %769 = vector.shape_cast %768 : vector<1x8x72xf32> to vector<8x72xf32>
    %c7_238 = arith.constant 7 : index
    %c0_239 = arith.constant 0 : index
    %c0_240 = arith.constant 0 : index
    %770 = vector.load %arg11[%c7_238, %c0_239, %c0_240] : memref<15x8x1xf32, #tpu.memory_space<vmem>>, vector<1x8x1xf32>
    %771 = vector.shape_cast %770 : vector<1x8x1xf32> to vector<8x1xf32>
    %cst_241 = arith.constant 0.000000e+00 : f32
    %772 = vector.broadcast %cst_241 : f32 to vector<8x128xf32>
    %773 = tpu.concatenate %772, %759, %772 in 1 : vector<8x128xf32>, vector<8x256xf32>, vector<8x128xf32> -> vector<8x512xf32>
    %774 = vector.extract_strided_slice %773 {offsets = [0, 111], sizes = [8, 256], strides = [1, 1]} : vector<8x512xf32> to vector<8x256xf32>
    %775 = vector.broadcast %0 : vector<1x256xf32> to vector<8x256xf32>
    %776 = arith.mulf %774, %775 : vector<8x256xf32>
    %777 = vector.extract_strided_slice %773 {offsets = [0, 112], sizes = [8, 256], strides = [1, 1]} : vector<8x512xf32> to vector<8x256xf32>
    %778 = vector.extract_strided_slice %773 {offsets = [0, 113], sizes = [8, 256], strides = [1, 1]} : vector<8x512xf32> to vector<8x256xf32>
    %779 = vector.broadcast %1 : vector<1x256xf32> to vector<8x256xf32>
    %780 = arith.mulf %778, %779 : vector<8x256xf32>
    %781 = vector.extract_strided_slice %773 {offsets = [0, 127], sizes = [8, 256], strides = [1, 1]} : vector<8x512xf32> to vector<8x256xf32>
    %782 = vector.broadcast %0 : vector<1x256xf32> to vector<8x256xf32>
    %783 = arith.mulf %781, %782 : vector<8x256xf32>
    %784 = vector.extract_strided_slice %773 {offsets = [0, 128], sizes = [8, 256], strides = [1, 1]} : vector<8x512xf32> to vector<8x256xf32>
    %785 = vector.extract_strided_slice %773 {offsets = [0, 129], sizes = [8, 256], strides = [1, 1]} : vector<8x512xf32> to vector<8x256xf32>
    %786 = vector.broadcast %1 : vector<1x256xf32> to vector<8x256xf32>
    %787 = arith.mulf %785, %786 : vector<8x256xf32>
    %788 = vector.extract_strided_slice %773 {offsets = [0, 143], sizes = [8, 256], strides = [1, 1]} : vector<8x512xf32> to vector<8x256xf32>
    %789 = vector.broadcast %0 : vector<1x256xf32> to vector<8x256xf32>
    %790 = arith.mulf %788, %789 : vector<8x256xf32>
    %791 = vector.extract_strided_slice %773 {offsets = [0, 144], sizes = [8, 256], strides = [1, 1]} : vector<8x512xf32> to vector<8x256xf32>
    %792 = vector.extract_strided_slice %773 {offsets = [0, 145], sizes = [8, 256], strides = [1, 1]} : vector<8x512xf32> to vector<8x256xf32>
    %793 = vector.broadcast %1 : vector<1x256xf32> to vector<8x256xf32>
    %794 = arith.mulf %792, %793 : vector<8x256xf32>
    %795 = tpu.concatenate %776, %777, %780, %783, %784, %787, %790, %791, %794 in 0 : vector<8x256xf32>, vector<8x256xf32>, vector<8x256xf32>, vector<8x256xf32>, vector<8x256xf32>, vector<8x256xf32>, vector<8x256xf32>, vector<8x256xf32>, vector<8x256xf32> -> vector<72x256xf32>
    %cst_242 = arith.constant dense<0.000000e+00> : vector<8x256xf32>
    %796 = tpu.matmul %761, %795, %cst_242 {dimension_numbers = #tpu.dot_dimension_numbers<[1], [0], [0], [1], [0, 0, 1, 1], [], []>} : vector<8x72xf32>, vector<72x256xf32>, vector<8x256xf32> -> vector<8x256xf32>
    %797 = vector.broadcast %763 : vector<8x1xf32> to vector<8x256xf32>
    %798 = arith.addf %796, %797 : vector<8x256xf32>
    %cst_243 = arith.constant dense<0.000000e+00> : vector<8xf32>
    %799 = vector.multi_reduction <add>, %798, %cst_243 [1] : vector<8x256xf32> to vector<8xf32>
    %800 = vector.shape_cast %799 : vector<8xf32> to vector<8x1xf32>
    %cst_244 = arith.constant 2.560000e+02 : f32
    %801 = vector.broadcast %cst_244 : f32 to vector<8x1xf32>
    %802 = arith.divf %800, %801 : vector<8x1xf32>
    %803 = arith.mulf %798, %798 : vector<8x256xf32>
    %cst_245 = arith.constant dense<0.000000e+00> : vector<8xf32>
    %804 = vector.multi_reduction <add>, %803, %cst_245 [1] : vector<8x256xf32> to vector<8xf32>
    %805 = vector.shape_cast %804 : vector<8xf32> to vector<8x1xf32>
    %cst_246 = arith.constant 2.560000e+02 : f32
    %806 = vector.broadcast %cst_246 : f32 to vector<8x1xf32>
    %807 = arith.divf %805, %806 : vector<8x1xf32>
    %808 = arith.mulf %802, %802 : vector<8x1xf32>
    %809 = arith.subf %807, %808 : vector<8x1xf32>
    %cst_247 = arith.constant 0.000000e+00 : f32
    %810 = vector.broadcast %cst_247 : f32 to vector<8x1xf32>
    %811 = arith.maximumf %809, %810 : vector<8x1xf32>
    %812 = vector.broadcast %802 : vector<8x1xf32> to vector<8x256xf32>
    %813 = arith.subf %798, %812 : vector<8x256xf32>
    %cst_248 = arith.constant 9.99999974E-6 : f32
    %814 = vector.broadcast %cst_248 : f32 to vector<8x1xf32>
    %815 = arith.addf %811, %814 : vector<8x1xf32>
    %816 = math.rsqrt %815 : vector<8x1xf32>
    %817 = vector.broadcast %816 : vector<8x1xf32> to vector<8x256xf32>
    %818 = arith.mulf %813, %817 : vector<8x256xf32>
    %819 = vector.broadcast %765 : vector<8x1xf32> to vector<8x256xf32>
    %820 = arith.mulf %818, %819 : vector<8x256xf32>
    %821 = vector.broadcast %767 : vector<8x1xf32> to vector<8x256xf32>
    %822 = arith.addf %820, %821 : vector<8x256xf32>
    %823 = vector.broadcast %6 : vector<8x1xf32> to vector<8x256xf32>
    %824 = arith.mulf %822, %823 : vector<8x256xf32>
    %cst_249 = arith.constant 1.000000e+00 : f32
    %825 = vector.broadcast %cst_249 : f32 to vector<8x1xf32>
    %826 = arith.subf %825, %6 : vector<8x1xf32>
    %827 = vector.broadcast %826 : vector<8x1xf32> to vector<8x256xf32>
    %828 = arith.mulf %798, %827 : vector<8x256xf32>
    %829 = arith.addf %824, %828 : vector<8x256xf32>
    %cst_250 = arith.constant 0.000000e+00 : f32
    %830 = vector.broadcast %cst_250 : f32 to vector<8x128xf32>
    %831 = tpu.concatenate %830, %829, %830 in 1 : vector<8x128xf32>, vector<8x256xf32>, vector<8x128xf32> -> vector<8x512xf32>
    %832 = vector.extract_strided_slice %831 {offsets = [0, 111], sizes = [8, 256], strides = [1, 1]} : vector<8x512xf32> to vector<8x256xf32>
    %833 = vector.broadcast %0 : vector<1x256xf32> to vector<8x256xf32>
    %834 = arith.mulf %832, %833 : vector<8x256xf32>
    %835 = vector.extract_strided_slice %831 {offsets = [0, 112], sizes = [8, 256], strides = [1, 1]} : vector<8x512xf32> to vector<8x256xf32>
    %836 = vector.extract_strided_slice %831 {offsets = [0, 113], sizes = [8, 256], strides = [1, 1]} : vector<8x512xf32> to vector<8x256xf32>
    %837 = vector.broadcast %1 : vector<1x256xf32> to vector<8x256xf32>
    %838 = arith.mulf %836, %837 : vector<8x256xf32>
    %839 = vector.extract_strided_slice %831 {offsets = [0, 127], sizes = [8, 256], strides = [1, 1]} : vector<8x512xf32> to vector<8x256xf32>
    %840 = vector.broadcast %0 : vector<1x256xf32> to vector<8x256xf32>
    %841 = arith.mulf %839, %840 : vector<8x256xf32>
    %842 = vector.extract_strided_slice %831 {offsets = [0, 128], sizes = [8, 256], strides = [1, 1]} : vector<8x512xf32> to vector<8x256xf32>
    %843 = vector.extract_strided_slice %831 {offsets = [0, 129], sizes = [8, 256], strides = [1, 1]} : vector<8x512xf32> to vector<8x256xf32>
    %844 = vector.broadcast %1 : vector<1x256xf32> to vector<8x256xf32>
    %845 = arith.mulf %843, %844 : vector<8x256xf32>
    %846 = vector.extract_strided_slice %831 {offsets = [0, 143], sizes = [8, 256], strides = [1, 1]} : vector<8x512xf32> to vector<8x256xf32>
    %847 = vector.broadcast %0 : vector<1x256xf32> to vector<8x256xf32>
    %848 = arith.mulf %846, %847 : vector<8x256xf32>
    %849 = vector.extract_strided_slice %831 {offsets = [0, 144], sizes = [8, 256], strides = [1, 1]} : vector<8x512xf32> to vector<8x256xf32>
    %850 = vector.extract_strided_slice %831 {offsets = [0, 145], sizes = [8, 256], strides = [1, 1]} : vector<8x512xf32> to vector<8x256xf32>
    %851 = vector.broadcast %1 : vector<1x256xf32> to vector<8x256xf32>
    %852 = arith.mulf %850, %851 : vector<8x256xf32>
    %853 = tpu.concatenate %834, %835, %838, %841, %842, %845, %848, %849, %852 in 0 : vector<8x256xf32>, vector<8x256xf32>, vector<8x256xf32>, vector<8x256xf32>, vector<8x256xf32>, vector<8x256xf32>, vector<8x256xf32>, vector<8x256xf32>, vector<8x256xf32> -> vector<72x256xf32>
    %cst_251 = arith.constant dense<0.000000e+00> : vector<8x256xf32>
    %854 = tpu.matmul %769, %853, %cst_251 {dimension_numbers = #tpu.dot_dimension_numbers<[1], [0], [0], [1], [0, 0, 1, 1], [], []>} : vector<8x72xf32>, vector<72x256xf32>, vector<8x256xf32> -> vector<8x256xf32>
    %855 = vector.broadcast %771 : vector<8x1xf32> to vector<8x256xf32>
    %856 = arith.addf %854, %855 : vector<8x256xf32>
    %857 = arith.addf %759, %856 : vector<8x256xf32>
    %c8 = arith.constant 8 : index
    %c0_252 = arith.constant 0 : index
    %c0_253 = arith.constant 0 : index
    %858 = vector.load %arg6[%c8, %c0_252, %c0_253] : memref<15x8x72xf32, #tpu.memory_space<vmem>>, vector<1x8x72xf32>
    %859 = vector.shape_cast %858 : vector<1x8x72xf32> to vector<8x72xf32>
    %c8_254 = arith.constant 8 : index
    %c0_255 = arith.constant 0 : index
    %c0_256 = arith.constant 0 : index
    %860 = vector.load %arg7[%c8_254, %c0_255, %c0_256] : memref<15x8x1xf32, #tpu.memory_space<vmem>>, vector<1x8x1xf32>
    %861 = vector.shape_cast %860 : vector<1x8x1xf32> to vector<8x1xf32>
    %c8_257 = arith.constant 8 : index
    %c0_258 = arith.constant 0 : index
    %c0_259 = arith.constant 0 : index
    %862 = vector.load %arg8[%c8_257, %c0_258, %c0_259] : memref<15x8x1xf32, #tpu.memory_space<vmem>>, vector<1x8x1xf32>
    %863 = vector.shape_cast %862 : vector<1x8x1xf32> to vector<8x1xf32>
    %c8_260 = arith.constant 8 : index
    %c0_261 = arith.constant 0 : index
    %c0_262 = arith.constant 0 : index
    %864 = vector.load %arg9[%c8_260, %c0_261, %c0_262] : memref<15x8x1xf32, #tpu.memory_space<vmem>>, vector<1x8x1xf32>
    %865 = vector.shape_cast %864 : vector<1x8x1xf32> to vector<8x1xf32>
    %c8_263 = arith.constant 8 : index
    %c0_264 = arith.constant 0 : index
    %c0_265 = arith.constant 0 : index
    %866 = vector.load %arg10[%c8_263, %c0_264, %c0_265] : memref<15x8x72xf32, #tpu.memory_space<vmem>>, vector<1x8x72xf32>
    %867 = vector.shape_cast %866 : vector<1x8x72xf32> to vector<8x72xf32>
    %c8_266 = arith.constant 8 : index
    %c0_267 = arith.constant 0 : index
    %c0_268 = arith.constant 0 : index
    %868 = vector.load %arg11[%c8_266, %c0_267, %c0_268] : memref<15x8x1xf32, #tpu.memory_space<vmem>>, vector<1x8x1xf32>
    %869 = vector.shape_cast %868 : vector<1x8x1xf32> to vector<8x1xf32>
    %cst_269 = arith.constant 0.000000e+00 : f32
    %870 = vector.broadcast %cst_269 : f32 to vector<8x128xf32>
    %871 = tpu.concatenate %870, %759, %870 in 1 : vector<8x128xf32>, vector<8x256xf32>, vector<8x128xf32> -> vector<8x512xf32>
    %872 = vector.extract_strided_slice %871 {offsets = [0, 111], sizes = [8, 256], strides = [1, 1]} : vector<8x512xf32> to vector<8x256xf32>
    %873 = vector.broadcast %0 : vector<1x256xf32> to vector<8x256xf32>
    %874 = arith.mulf %872, %873 : vector<8x256xf32>
    %875 = vector.extract_strided_slice %871 {offsets = [0, 112], sizes = [8, 256], strides = [1, 1]} : vector<8x512xf32> to vector<8x256xf32>
    %876 = vector.extract_strided_slice %871 {offsets = [0, 113], sizes = [8, 256], strides = [1, 1]} : vector<8x512xf32> to vector<8x256xf32>
    %877 = vector.broadcast %1 : vector<1x256xf32> to vector<8x256xf32>
    %878 = arith.mulf %876, %877 : vector<8x256xf32>
    %879 = vector.extract_strided_slice %871 {offsets = [0, 127], sizes = [8, 256], strides = [1, 1]} : vector<8x512xf32> to vector<8x256xf32>
    %880 = vector.broadcast %0 : vector<1x256xf32> to vector<8x256xf32>
    %881 = arith.mulf %879, %880 : vector<8x256xf32>
    %882 = vector.extract_strided_slice %871 {offsets = [0, 128], sizes = [8, 256], strides = [1, 1]} : vector<8x512xf32> to vector<8x256xf32>
    %883 = vector.extract_strided_slice %871 {offsets = [0, 129], sizes = [8, 256], strides = [1, 1]} : vector<8x512xf32> to vector<8x256xf32>
    %884 = vector.broadcast %1 : vector<1x256xf32> to vector<8x256xf32>
    %885 = arith.mulf %883, %884 : vector<8x256xf32>
    %886 = vector.extract_strided_slice %871 {offsets = [0, 143], sizes = [8, 256], strides = [1, 1]} : vector<8x512xf32> to vector<8x256xf32>
    %887 = vector.broadcast %0 : vector<1x256xf32> to vector<8x256xf32>
    %888 = arith.mulf %886, %887 : vector<8x256xf32>
    %889 = vector.extract_strided_slice %871 {offsets = [0, 144], sizes = [8, 256], strides = [1, 1]} : vector<8x512xf32> to vector<8x256xf32>
    %890 = vector.extract_strided_slice %871 {offsets = [0, 145], sizes = [8, 256], strides = [1, 1]} : vector<8x512xf32> to vector<8x256xf32>
    %891 = vector.broadcast %1 : vector<1x256xf32> to vector<8x256xf32>
    %892 = arith.mulf %890, %891 : vector<8x256xf32>
    %893 = tpu.concatenate %874, %875, %878, %881, %882, %885, %888, %889, %892 in 0 : vector<8x256xf32>, vector<8x256xf32>, vector<8x256xf32>, vector<8x256xf32>, vector<8x256xf32>, vector<8x256xf32>, vector<8x256xf32>, vector<8x256xf32>, vector<8x256xf32> -> vector<72x256xf32>
    %cst_270 = arith.constant dense<0.000000e+00> : vector<8x256xf32>
    %894 = tpu.matmul %859, %893, %cst_270 {dimension_numbers = #tpu.dot_dimension_numbers<[1], [0], [0], [1], [0, 0, 1, 1], [], []>} : vector<8x72xf32>, vector<72x256xf32>, vector<8x256xf32> -> vector<8x256xf32>
    %895 = vector.broadcast %861 : vector<8x1xf32> to vector<8x256xf32>
    %896 = arith.addf %894, %895 : vector<8x256xf32>
    %cst_271 = arith.constant dense<0.000000e+00> : vector<8xf32>
    %897 = vector.multi_reduction <add>, %896, %cst_271 [1] : vector<8x256xf32> to vector<8xf32>
    %898 = vector.shape_cast %897 : vector<8xf32> to vector<8x1xf32>
    %cst_272 = arith.constant 2.560000e+02 : f32
    %899 = vector.broadcast %cst_272 : f32 to vector<8x1xf32>
    %900 = arith.divf %898, %899 : vector<8x1xf32>
    %901 = arith.mulf %896, %896 : vector<8x256xf32>
    %cst_273 = arith.constant dense<0.000000e+00> : vector<8xf32>
    %902 = vector.multi_reduction <add>, %901, %cst_273 [1] : vector<8x256xf32> to vector<8xf32>
    %903 = vector.shape_cast %902 : vector<8xf32> to vector<8x1xf32>
    %cst_274 = arith.constant 2.560000e+02 : f32
    %904 = vector.broadcast %cst_274 : f32 to vector<8x1xf32>
    %905 = arith.divf %903, %904 : vector<8x1xf32>
    %906 = arith.mulf %900, %900 : vector<8x1xf32>
    %907 = arith.subf %905, %906 : vector<8x1xf32>
    %cst_275 = arith.constant 0.000000e+00 : f32
    %908 = vector.broadcast %cst_275 : f32 to vector<8x1xf32>
    %909 = arith.maximumf %907, %908 : vector<8x1xf32>
    %910 = vector.broadcast %900 : vector<8x1xf32> to vector<8x256xf32>
    %911 = arith.subf %896, %910 : vector<8x256xf32>
    %cst_276 = arith.constant 9.99999974E-6 : f32
    %912 = vector.broadcast %cst_276 : f32 to vector<8x1xf32>
    %913 = arith.addf %909, %912 : vector<8x1xf32>
    %914 = math.rsqrt %913 : vector<8x1xf32>
    %915 = vector.broadcast %914 : vector<8x1xf32> to vector<8x256xf32>
    %916 = arith.mulf %911, %915 : vector<8x256xf32>
    %917 = vector.broadcast %863 : vector<8x1xf32> to vector<8x256xf32>
    %918 = arith.mulf %916, %917 : vector<8x256xf32>
    %919 = vector.broadcast %865 : vector<8x1xf32> to vector<8x256xf32>
    %920 = arith.addf %918, %919 : vector<8x256xf32>
    %921 = vector.broadcast %6 : vector<8x1xf32> to vector<8x256xf32>
    %922 = arith.mulf %920, %921 : vector<8x256xf32>
    %cst_277 = arith.constant 1.000000e+00 : f32
    %923 = vector.broadcast %cst_277 : f32 to vector<8x1xf32>
    %924 = arith.subf %923, %6 : vector<8x1xf32>
    %925 = vector.broadcast %924 : vector<8x1xf32> to vector<8x256xf32>
    %926 = arith.mulf %896, %925 : vector<8x256xf32>
    %927 = arith.addf %922, %926 : vector<8x256xf32>
    %cst_278 = arith.constant 0.000000e+00 : f32
    %928 = vector.broadcast %cst_278 : f32 to vector<8x128xf32>
    %929 = tpu.concatenate %928, %927, %928 in 1 : vector<8x128xf32>, vector<8x256xf32>, vector<8x128xf32> -> vector<8x512xf32>
    %930 = vector.extract_strided_slice %929 {offsets = [0, 111], sizes = [8, 256], strides = [1, 1]} : vector<8x512xf32> to vector<8x256xf32>
    %931 = vector.broadcast %0 : vector<1x256xf32> to vector<8x256xf32>
    %932 = arith.mulf %930, %931 : vector<8x256xf32>
    %933 = vector.extract_strided_slice %929 {offsets = [0, 112], sizes = [8, 256], strides = [1, 1]} : vector<8x512xf32> to vector<8x256xf32>
    %934 = vector.extract_strided_slice %929 {offsets = [0, 113], sizes = [8, 256], strides = [1, 1]} : vector<8x512xf32> to vector<8x256xf32>
    %935 = vector.broadcast %1 : vector<1x256xf32> to vector<8x256xf32>
    %936 = arith.mulf %934, %935 : vector<8x256xf32>
    %937 = vector.extract_strided_slice %929 {offsets = [0, 127], sizes = [8, 256], strides = [1, 1]} : vector<8x512xf32> to vector<8x256xf32>
    %938 = vector.broadcast %0 : vector<1x256xf32> to vector<8x256xf32>
    %939 = arith.mulf %937, %938 : vector<8x256xf32>
    %940 = vector.extract_strided_slice %929 {offsets = [0, 128], sizes = [8, 256], strides = [1, 1]} : vector<8x512xf32> to vector<8x256xf32>
    %941 = vector.extract_strided_slice %929 {offsets = [0, 129], sizes = [8, 256], strides = [1, 1]} : vector<8x512xf32> to vector<8x256xf32>
    %942 = vector.broadcast %1 : vector<1x256xf32> to vector<8x256xf32>
    %943 = arith.mulf %941, %942 : vector<8x256xf32>
    %944 = vector.extract_strided_slice %929 {offsets = [0, 143], sizes = [8, 256], strides = [1, 1]} : vector<8x512xf32> to vector<8x256xf32>
    %945 = vector.broadcast %0 : vector<1x256xf32> to vector<8x256xf32>
    %946 = arith.mulf %944, %945 : vector<8x256xf32>
    %947 = vector.extract_strided_slice %929 {offsets = [0, 144], sizes = [8, 256], strides = [1, 1]} : vector<8x512xf32> to vector<8x256xf32>
    %948 = vector.extract_strided_slice %929 {offsets = [0, 145], sizes = [8, 256], strides = [1, 1]} : vector<8x512xf32> to vector<8x256xf32>
    %949 = vector.broadcast %1 : vector<1x256xf32> to vector<8x256xf32>
    %950 = arith.mulf %948, %949 : vector<8x256xf32>
    %951 = tpu.concatenate %932, %933, %936, %939, %940, %943, %946, %947, %950 in 0 : vector<8x256xf32>, vector<8x256xf32>, vector<8x256xf32>, vector<8x256xf32>, vector<8x256xf32>, vector<8x256xf32>, vector<8x256xf32>, vector<8x256xf32>, vector<8x256xf32> -> vector<72x256xf32>
    %cst_279 = arith.constant dense<0.000000e+00> : vector<8x256xf32>
    %952 = tpu.matmul %867, %951, %cst_279 {dimension_numbers = #tpu.dot_dimension_numbers<[1], [0], [0], [1], [0, 0, 1, 1], [], []>} : vector<8x72xf32>, vector<72x256xf32>, vector<8x256xf32> -> vector<8x256xf32>
    %953 = vector.broadcast %869 : vector<8x1xf32> to vector<8x256xf32>
    %954 = arith.addf %952, %953 : vector<8x256xf32>
    %955 = arith.addf %759, %954 : vector<8x256xf32>
    %cst_280 = arith.constant 5.000000e-01 : f32
    %956 = vector.broadcast %cst_280 : f32 to vector<8x256xf32>
    %957 = arith.mulf %956, %857 : vector<8x256xf32>
    %958 = math.tanh %957 : vector<8x256xf32>
    %cst_281 = arith.constant 8.000000e-01 : f32
    %959 = vector.broadcast %cst_281 : f32 to vector<8x256xf32>
    %960 = arith.mulf %959, %958 : vector<8x256xf32>
    %961 = math.exp %960 : vector<8x256xf32>
    %962 = arith.mulf %660, %961 : vector<8x256xf32>
    %963 = arith.addf %962, %955 : vector<8x256xf32>
    %964 = tpu.concatenate %759, %963 in 0 : vector<8x256xf32>, vector<8x256xf32> -> vector<16x256xf32>
    %c3_282 = arith.constant 3 : index
    %c0_283 = arith.constant 0 : index
    %c0_284 = arith.constant 0 : index
    %965 = vector.load %arg5[%c3_282, %c0_283, %c0_284] : memref<5x16x16xf32, #tpu.memory_space<vmem>>, vector<1x16x16xf32>
    %966 = vector.shape_cast %965 : vector<1x16x16xf32> to vector<16x16xf32>
    %cst_285 = arith.constant dense<0.000000e+00> : vector<16x256xf32>
    %967 = tpu.matmul %966, %964, %cst_285 {dimension_numbers = #tpu.dot_dimension_numbers<[1], [0], [0], [1], [0, 0, 1, 1], [], []>} : vector<16x16xf32>, vector<16x256xf32>, vector<16x256xf32> -> vector<16x256xf32>
    %968 = vector.extract_strided_slice %967 {offsets = [0, 0], sizes = [8, 256], strides = [1, 1]} : vector<16x256xf32> to vector<8x256xf32>
    %969 = vector.extract_strided_slice %967 {offsets = [8, 0], sizes = [8, 256], strides = [1, 1]} : vector<16x256xf32> to vector<8x256xf32>
    %c9 = arith.constant 9 : index
    %c0_286 = arith.constant 0 : index
    %c0_287 = arith.constant 0 : index
    %970 = vector.load %arg6[%c9, %c0_286, %c0_287] : memref<15x8x72xf32, #tpu.memory_space<vmem>>, vector<1x8x72xf32>
    %971 = vector.shape_cast %970 : vector<1x8x72xf32> to vector<8x72xf32>
    %c9_288 = arith.constant 9 : index
    %c0_289 = arith.constant 0 : index
    %c0_290 = arith.constant 0 : index
    %972 = vector.load %arg7[%c9_288, %c0_289, %c0_290] : memref<15x8x1xf32, #tpu.memory_space<vmem>>, vector<1x8x1xf32>
    %973 = vector.shape_cast %972 : vector<1x8x1xf32> to vector<8x1xf32>
    %c9_291 = arith.constant 9 : index
    %c0_292 = arith.constant 0 : index
    %c0_293 = arith.constant 0 : index
    %974 = vector.load %arg8[%c9_291, %c0_292, %c0_293] : memref<15x8x1xf32, #tpu.memory_space<vmem>>, vector<1x8x1xf32>
    %975 = vector.shape_cast %974 : vector<1x8x1xf32> to vector<8x1xf32>
    %c9_294 = arith.constant 9 : index
    %c0_295 = arith.constant 0 : index
    %c0_296 = arith.constant 0 : index
    %976 = vector.load %arg9[%c9_294, %c0_295, %c0_296] : memref<15x8x1xf32, #tpu.memory_space<vmem>>, vector<1x8x1xf32>
    %977 = vector.shape_cast %976 : vector<1x8x1xf32> to vector<8x1xf32>
    %c9_297 = arith.constant 9 : index
    %c0_298 = arith.constant 0 : index
    %c0_299 = arith.constant 0 : index
    %978 = vector.load %arg10[%c9_297, %c0_298, %c0_299] : memref<15x8x72xf32, #tpu.memory_space<vmem>>, vector<1x8x72xf32>
    %979 = vector.shape_cast %978 : vector<1x8x72xf32> to vector<8x72xf32>
    %c9_300 = arith.constant 9 : index
    %c0_301 = arith.constant 0 : index
    %c0_302 = arith.constant 0 : index
    %980 = vector.load %arg11[%c9_300, %c0_301, %c0_302] : memref<15x8x1xf32, #tpu.memory_space<vmem>>, vector<1x8x1xf32>
    %981 = vector.shape_cast %980 : vector<1x8x1xf32> to vector<8x1xf32>
    %cst_303 = arith.constant 0.000000e+00 : f32
    %982 = vector.broadcast %cst_303 : f32 to vector<8x128xf32>
    %983 = tpu.concatenate %982, %969, %982 in 1 : vector<8x128xf32>, vector<8x256xf32>, vector<8x128xf32> -> vector<8x512xf32>
    %984 = vector.extract_strided_slice %983 {offsets = [0, 111], sizes = [8, 256], strides = [1, 1]} : vector<8x512xf32> to vector<8x256xf32>
    %985 = vector.broadcast %0 : vector<1x256xf32> to vector<8x256xf32>
    %986 = arith.mulf %984, %985 : vector<8x256xf32>
    %987 = vector.extract_strided_slice %983 {offsets = [0, 112], sizes = [8, 256], strides = [1, 1]} : vector<8x512xf32> to vector<8x256xf32>
    %988 = vector.extract_strided_slice %983 {offsets = [0, 113], sizes = [8, 256], strides = [1, 1]} : vector<8x512xf32> to vector<8x256xf32>
    %989 = vector.broadcast %1 : vector<1x256xf32> to vector<8x256xf32>
    %990 = arith.mulf %988, %989 : vector<8x256xf32>
    %991 = vector.extract_strided_slice %983 {offsets = [0, 127], sizes = [8, 256], strides = [1, 1]} : vector<8x512xf32> to vector<8x256xf32>
    %992 = vector.broadcast %0 : vector<1x256xf32> to vector<8x256xf32>
    %993 = arith.mulf %991, %992 : vector<8x256xf32>
    %994 = vector.extract_strided_slice %983 {offsets = [0, 128], sizes = [8, 256], strides = [1, 1]} : vector<8x512xf32> to vector<8x256xf32>
    %995 = vector.extract_strided_slice %983 {offsets = [0, 129], sizes = [8, 256], strides = [1, 1]} : vector<8x512xf32> to vector<8x256xf32>
    %996 = vector.broadcast %1 : vector<1x256xf32> to vector<8x256xf32>
    %997 = arith.mulf %995, %996 : vector<8x256xf32>
    %998 = vector.extract_strided_slice %983 {offsets = [0, 143], sizes = [8, 256], strides = [1, 1]} : vector<8x512xf32> to vector<8x256xf32>
    %999 = vector.broadcast %0 : vector<1x256xf32> to vector<8x256xf32>
    %1000 = arith.mulf %998, %999 : vector<8x256xf32>
    %1001 = vector.extract_strided_slice %983 {offsets = [0, 144], sizes = [8, 256], strides = [1, 1]} : vector<8x512xf32> to vector<8x256xf32>
    %1002 = vector.extract_strided_slice %983 {offsets = [0, 145], sizes = [8, 256], strides = [1, 1]} : vector<8x512xf32> to vector<8x256xf32>
    %1003 = vector.broadcast %1 : vector<1x256xf32> to vector<8x256xf32>
    %1004 = arith.mulf %1002, %1003 : vector<8x256xf32>
    %1005 = tpu.concatenate %986, %987, %990, %993, %994, %997, %1000, %1001, %1004 in 0 : vector<8x256xf32>, vector<8x256xf32>, vector<8x256xf32>, vector<8x256xf32>, vector<8x256xf32>, vector<8x256xf32>, vector<8x256xf32>, vector<8x256xf32>, vector<8x256xf32> -> vector<72x256xf32>
    %cst_304 = arith.constant dense<0.000000e+00> : vector<8x256xf32>
    %1006 = tpu.matmul %971, %1005, %cst_304 {dimension_numbers = #tpu.dot_dimension_numbers<[1], [0], [0], [1], [0, 0, 1, 1], [], []>} : vector<8x72xf32>, vector<72x256xf32>, vector<8x256xf32> -> vector<8x256xf32>
    %1007 = vector.broadcast %973 : vector<8x1xf32> to vector<8x256xf32>
    %1008 = arith.addf %1006, %1007 : vector<8x256xf32>
    %cst_305 = arith.constant dense<0.000000e+00> : vector<8xf32>
    %1009 = vector.multi_reduction <add>, %1008, %cst_305 [1] : vector<8x256xf32> to vector<8xf32>
    %1010 = vector.shape_cast %1009 : vector<8xf32> to vector<8x1xf32>
    %cst_306 = arith.constant 2.560000e+02 : f32
    %1011 = vector.broadcast %cst_306 : f32 to vector<8x1xf32>
    %1012 = arith.divf %1010, %1011 : vector<8x1xf32>
    %1013 = arith.mulf %1008, %1008 : vector<8x256xf32>
    %cst_307 = arith.constant dense<0.000000e+00> : vector<8xf32>
    %1014 = vector.multi_reduction <add>, %1013, %cst_307 [1] : vector<8x256xf32> to vector<8xf32>
    %1015 = vector.shape_cast %1014 : vector<8xf32> to vector<8x1xf32>
    %cst_308 = arith.constant 2.560000e+02 : f32
    %1016 = vector.broadcast %cst_308 : f32 to vector<8x1xf32>
    %1017 = arith.divf %1015, %1016 : vector<8x1xf32>
    %1018 = arith.mulf %1012, %1012 : vector<8x1xf32>
    %1019 = arith.subf %1017, %1018 : vector<8x1xf32>
    %cst_309 = arith.constant 0.000000e+00 : f32
    %1020 = vector.broadcast %cst_309 : f32 to vector<8x1xf32>
    %1021 = arith.maximumf %1019, %1020 : vector<8x1xf32>
    %1022 = vector.broadcast %1012 : vector<8x1xf32> to vector<8x256xf32>
    %1023 = arith.subf %1008, %1022 : vector<8x256xf32>
    %cst_310 = arith.constant 9.99999974E-6 : f32
    %1024 = vector.broadcast %cst_310 : f32 to vector<8x1xf32>
    %1025 = arith.addf %1021, %1024 : vector<8x1xf32>
    %1026 = math.rsqrt %1025 : vector<8x1xf32>
    %1027 = vector.broadcast %1026 : vector<8x1xf32> to vector<8x256xf32>
    %1028 = arith.mulf %1023, %1027 : vector<8x256xf32>
    %1029 = vector.broadcast %975 : vector<8x1xf32> to vector<8x256xf32>
    %1030 = arith.mulf %1028, %1029 : vector<8x256xf32>
    %1031 = vector.broadcast %977 : vector<8x1xf32> to vector<8x256xf32>
    %1032 = arith.addf %1030, %1031 : vector<8x256xf32>
    %1033 = vector.broadcast %6 : vector<8x1xf32> to vector<8x256xf32>
    %1034 = arith.mulf %1032, %1033 : vector<8x256xf32>
    %cst_311 = arith.constant 1.000000e+00 : f32
    %1035 = vector.broadcast %cst_311 : f32 to vector<8x1xf32>
    %1036 = arith.subf %1035, %6 : vector<8x1xf32>
    %1037 = vector.broadcast %1036 : vector<8x1xf32> to vector<8x256xf32>
    %1038 = arith.mulf %1008, %1037 : vector<8x256xf32>
    %1039 = arith.addf %1034, %1038 : vector<8x256xf32>
    %cst_312 = arith.constant 0.000000e+00 : f32
    %1040 = vector.broadcast %cst_312 : f32 to vector<8x128xf32>
    %1041 = tpu.concatenate %1040, %1039, %1040 in 1 : vector<8x128xf32>, vector<8x256xf32>, vector<8x128xf32> -> vector<8x512xf32>
    %1042 = vector.extract_strided_slice %1041 {offsets = [0, 111], sizes = [8, 256], strides = [1, 1]} : vector<8x512xf32> to vector<8x256xf32>
    %1043 = vector.broadcast %0 : vector<1x256xf32> to vector<8x256xf32>
    %1044 = arith.mulf %1042, %1043 : vector<8x256xf32>
    %1045 = vector.extract_strided_slice %1041 {offsets = [0, 112], sizes = [8, 256], strides = [1, 1]} : vector<8x512xf32> to vector<8x256xf32>
    %1046 = vector.extract_strided_slice %1041 {offsets = [0, 113], sizes = [8, 256], strides = [1, 1]} : vector<8x512xf32> to vector<8x256xf32>
    %1047 = vector.broadcast %1 : vector<1x256xf32> to vector<8x256xf32>
    %1048 = arith.mulf %1046, %1047 : vector<8x256xf32>
    %1049 = vector.extract_strided_slice %1041 {offsets = [0, 127], sizes = [8, 256], strides = [1, 1]} : vector<8x512xf32> to vector<8x256xf32>
    %1050 = vector.broadcast %0 : vector<1x256xf32> to vector<8x256xf32>
    %1051 = arith.mulf %1049, %1050 : vector<8x256xf32>
    %1052 = vector.extract_strided_slice %1041 {offsets = [0, 128], sizes = [8, 256], strides = [1, 1]} : vector<8x512xf32> to vector<8x256xf32>
    %1053 = vector.extract_strided_slice %1041 {offsets = [0, 129], sizes = [8, 256], strides = [1, 1]} : vector<8x512xf32> to vector<8x256xf32>
    %1054 = vector.broadcast %1 : vector<1x256xf32> to vector<8x256xf32>
    %1055 = arith.mulf %1053, %1054 : vector<8x256xf32>
    %1056 = vector.extract_strided_slice %1041 {offsets = [0, 143], sizes = [8, 256], strides = [1, 1]} : vector<8x512xf32> to vector<8x256xf32>
    %1057 = vector.broadcast %0 : vector<1x256xf32> to vector<8x256xf32>
    %1058 = arith.mulf %1056, %1057 : vector<8x256xf32>
    %1059 = vector.extract_strided_slice %1041 {offsets = [0, 144], sizes = [8, 256], strides = [1, 1]} : vector<8x512xf32> to vector<8x256xf32>
    %1060 = vector.extract_strided_slice %1041 {offsets = [0, 145], sizes = [8, 256], strides = [1, 1]} : vector<8x512xf32> to vector<8x256xf32>
    %1061 = vector.broadcast %1 : vector<1x256xf32> to vector<8x256xf32>
    %1062 = arith.mulf %1060, %1061 : vector<8x256xf32>
    %1063 = tpu.concatenate %1044, %1045, %1048, %1051, %1052, %1055, %1058, %1059, %1062 in 0 : vector<8x256xf32>, vector<8x256xf32>, vector<8x256xf32>, vector<8x256xf32>, vector<8x256xf32>, vector<8x256xf32>, vector<8x256xf32>, vector<8x256xf32>, vector<8x256xf32> -> vector<72x256xf32>
    %cst_313 = arith.constant dense<0.000000e+00> : vector<8x256xf32>
    %1064 = tpu.matmul %979, %1063, %cst_313 {dimension_numbers = #tpu.dot_dimension_numbers<[1], [0], [0], [1], [0, 0, 1, 1], [], []>} : vector<8x72xf32>, vector<72x256xf32>, vector<8x256xf32> -> vector<8x256xf32>
    %1065 = vector.broadcast %981 : vector<8x1xf32> to vector<8x256xf32>
    %1066 = arith.addf %1064, %1065 : vector<8x256xf32>
    %1067 = arith.addf %969, %1066 : vector<8x256xf32>
    %1068 = arith.addf %968, %1067 : vector<8x256xf32>
    %c10 = arith.constant 10 : index
    %c0_314 = arith.constant 0 : index
    %c0_315 = arith.constant 0 : index
    %1069 = vector.load %arg6[%c10, %c0_314, %c0_315] : memref<15x8x72xf32, #tpu.memory_space<vmem>>, vector<1x8x72xf32>
    %1070 = vector.shape_cast %1069 : vector<1x8x72xf32> to vector<8x72xf32>
    %c10_316 = arith.constant 10 : index
    %c0_317 = arith.constant 0 : index
    %c0_318 = arith.constant 0 : index
    %1071 = vector.load %arg7[%c10_316, %c0_317, %c0_318] : memref<15x8x1xf32, #tpu.memory_space<vmem>>, vector<1x8x1xf32>
    %1072 = vector.shape_cast %1071 : vector<1x8x1xf32> to vector<8x1xf32>
    %c10_319 = arith.constant 10 : index
    %c0_320 = arith.constant 0 : index
    %c0_321 = arith.constant 0 : index
    %1073 = vector.load %arg8[%c10_319, %c0_320, %c0_321] : memref<15x8x1xf32, #tpu.memory_space<vmem>>, vector<1x8x1xf32>
    %1074 = vector.shape_cast %1073 : vector<1x8x1xf32> to vector<8x1xf32>
    %c10_322 = arith.constant 10 : index
    %c0_323 = arith.constant 0 : index
    %c0_324 = arith.constant 0 : index
    %1075 = vector.load %arg9[%c10_322, %c0_323, %c0_324] : memref<15x8x1xf32, #tpu.memory_space<vmem>>, vector<1x8x1xf32>
    %1076 = vector.shape_cast %1075 : vector<1x8x1xf32> to vector<8x1xf32>
    %c10_325 = arith.constant 10 : index
    %c0_326 = arith.constant 0 : index
    %c0_327 = arith.constant 0 : index
    %1077 = vector.load %arg10[%c10_325, %c0_326, %c0_327] : memref<15x8x72xf32, #tpu.memory_space<vmem>>, vector<1x8x72xf32>
    %1078 = vector.shape_cast %1077 : vector<1x8x72xf32> to vector<8x72xf32>
    %c10_328 = arith.constant 10 : index
    %c0_329 = arith.constant 0 : index
    %c0_330 = arith.constant 0 : index
    %1079 = vector.load %arg11[%c10_328, %c0_329, %c0_330] : memref<15x8x1xf32, #tpu.memory_space<vmem>>, vector<1x8x1xf32>
    %1080 = vector.shape_cast %1079 : vector<1x8x1xf32> to vector<8x1xf32>
    %cst_331 = arith.constant 0.000000e+00 : f32
    %1081 = vector.broadcast %cst_331 : f32 to vector<8x128xf32>
    %1082 = tpu.concatenate %1081, %1068, %1081 in 1 : vector<8x128xf32>, vector<8x256xf32>, vector<8x128xf32> -> vector<8x512xf32>
    %1083 = vector.extract_strided_slice %1082 {offsets = [0, 111], sizes = [8, 256], strides = [1, 1]} : vector<8x512xf32> to vector<8x256xf32>
    %1084 = vector.broadcast %0 : vector<1x256xf32> to vector<8x256xf32>
    %1085 = arith.mulf %1083, %1084 : vector<8x256xf32>
    %1086 = vector.extract_strided_slice %1082 {offsets = [0, 112], sizes = [8, 256], strides = [1, 1]} : vector<8x512xf32> to vector<8x256xf32>
    %1087 = vector.extract_strided_slice %1082 {offsets = [0, 113], sizes = [8, 256], strides = [1, 1]} : vector<8x512xf32> to vector<8x256xf32>
    %1088 = vector.broadcast %1 : vector<1x256xf32> to vector<8x256xf32>
    %1089 = arith.mulf %1087, %1088 : vector<8x256xf32>
    %1090 = vector.extract_strided_slice %1082 {offsets = [0, 127], sizes = [8, 256], strides = [1, 1]} : vector<8x512xf32> to vector<8x256xf32>
    %1091 = vector.broadcast %0 : vector<1x256xf32> to vector<8x256xf32>
    %1092 = arith.mulf %1090, %1091 : vector<8x256xf32>
    %1093 = vector.extract_strided_slice %1082 {offsets = [0, 128], sizes = [8, 256], strides = [1, 1]} : vector<8x512xf32> to vector<8x256xf32>
    %1094 = vector.extract_strided_slice %1082 {offsets = [0, 129], sizes = [8, 256], strides = [1, 1]} : vector<8x512xf32> to vector<8x256xf32>
    %1095 = vector.broadcast %1 : vector<1x256xf32> to vector<8x256xf32>
    %1096 = arith.mulf %1094, %1095 : vector<8x256xf32>
    %1097 = vector.extract_strided_slice %1082 {offsets = [0, 143], sizes = [8, 256], strides = [1, 1]} : vector<8x512xf32> to vector<8x256xf32>
    %1098 = vector.broadcast %0 : vector<1x256xf32> to vector<8x256xf32>
    %1099 = arith.mulf %1097, %1098 : vector<8x256xf32>
    %1100 = vector.extract_strided_slice %1082 {offsets = [0, 144], sizes = [8, 256], strides = [1, 1]} : vector<8x512xf32> to vector<8x256xf32>
    %1101 = vector.extract_strided_slice %1082 {offsets = [0, 145], sizes = [8, 256], strides = [1, 1]} : vector<8x512xf32> to vector<8x256xf32>
    %1102 = vector.broadcast %1 : vector<1x256xf32> to vector<8x256xf32>
    %1103 = arith.mulf %1101, %1102 : vector<8x256xf32>
    %1104 = tpu.concatenate %1085, %1086, %1089, %1092, %1093, %1096, %1099, %1100, %1103 in 0 : vector<8x256xf32>, vector<8x256xf32>, vector<8x256xf32>, vector<8x256xf32>, vector<8x256xf32>, vector<8x256xf32>, vector<8x256xf32>, vector<8x256xf32>, vector<8x256xf32> -> vector<72x256xf32>
    %cst_332 = arith.constant dense<0.000000e+00> : vector<8x256xf32>
    %1105 = tpu.matmul %1070, %1104, %cst_332 {dimension_numbers = #tpu.dot_dimension_numbers<[1], [0], [0], [1], [0, 0, 1, 1], [], []>} : vector<8x72xf32>, vector<72x256xf32>, vector<8x256xf32> -> vector<8x256xf32>
    %1106 = vector.broadcast %1072 : vector<8x1xf32> to vector<8x256xf32>
    %1107 = arith.addf %1105, %1106 : vector<8x256xf32>
    %cst_333 = arith.constant dense<0.000000e+00> : vector<8xf32>
    %1108 = vector.multi_reduction <add>, %1107, %cst_333 [1] : vector<8x256xf32> to vector<8xf32>
    %1109 = vector.shape_cast %1108 : vector<8xf32> to vector<8x1xf32>
    %cst_334 = arith.constant 2.560000e+02 : f32
    %1110 = vector.broadcast %cst_334 : f32 to vector<8x1xf32>
    %1111 = arith.divf %1109, %1110 : vector<8x1xf32>
    %1112 = arith.mulf %1107, %1107 : vector<8x256xf32>
    %cst_335 = arith.constant dense<0.000000e+00> : vector<8xf32>
    %1113 = vector.multi_reduction <add>, %1112, %cst_335 [1] : vector<8x256xf32> to vector<8xf32>
    %1114 = vector.shape_cast %1113 : vector<8xf32> to vector<8x1xf32>
    %cst_336 = arith.constant 2.560000e+02 : f32
    %1115 = vector.broadcast %cst_336 : f32 to vector<8x1xf32>
    %1116 = arith.divf %1114, %1115 : vector<8x1xf32>
    %1117 = arith.mulf %1111, %1111 : vector<8x1xf32>
    %1118 = arith.subf %1116, %1117 : vector<8x1xf32>
    %cst_337 = arith.constant 0.000000e+00 : f32
    %1119 = vector.broadcast %cst_337 : f32 to vector<8x1xf32>
    %1120 = arith.maximumf %1118, %1119 : vector<8x1xf32>
    %1121 = vector.broadcast %1111 : vector<8x1xf32> to vector<8x256xf32>
    %1122 = arith.subf %1107, %1121 : vector<8x256xf32>
    %cst_338 = arith.constant 9.99999974E-6 : f32
    %1123 = vector.broadcast %cst_338 : f32 to vector<8x1xf32>
    %1124 = arith.addf %1120, %1123 : vector<8x1xf32>
    %1125 = math.rsqrt %1124 : vector<8x1xf32>
    %1126 = vector.broadcast %1125 : vector<8x1xf32> to vector<8x256xf32>
    %1127 = arith.mulf %1122, %1126 : vector<8x256xf32>
    %1128 = vector.broadcast %1074 : vector<8x1xf32> to vector<8x256xf32>
    %1129 = arith.mulf %1127, %1128 : vector<8x256xf32>
    %1130 = vector.broadcast %1076 : vector<8x1xf32> to vector<8x256xf32>
    %1131 = arith.addf %1129, %1130 : vector<8x256xf32>
    %1132 = vector.broadcast %6 : vector<8x1xf32> to vector<8x256xf32>
    %1133 = arith.mulf %1131, %1132 : vector<8x256xf32>
    %cst_339 = arith.constant 1.000000e+00 : f32
    %1134 = vector.broadcast %cst_339 : f32 to vector<8x1xf32>
    %1135 = arith.subf %1134, %6 : vector<8x1xf32>
    %1136 = vector.broadcast %1135 : vector<8x1xf32> to vector<8x256xf32>
    %1137 = arith.mulf %1107, %1136 : vector<8x256xf32>
    %1138 = arith.addf %1133, %1137 : vector<8x256xf32>
    %cst_340 = arith.constant 0.000000e+00 : f32
    %1139 = vector.broadcast %cst_340 : f32 to vector<8x128xf32>
    %1140 = tpu.concatenate %1139, %1138, %1139 in 1 : vector<8x128xf32>, vector<8x256xf32>, vector<8x128xf32> -> vector<8x512xf32>
    %1141 = vector.extract_strided_slice %1140 {offsets = [0, 111], sizes = [8, 256], strides = [1, 1]} : vector<8x512xf32> to vector<8x256xf32>
    %1142 = vector.broadcast %0 : vector<1x256xf32> to vector<8x256xf32>
    %1143 = arith.mulf %1141, %1142 : vector<8x256xf32>
    %1144 = vector.extract_strided_slice %1140 {offsets = [0, 112], sizes = [8, 256], strides = [1, 1]} : vector<8x512xf32> to vector<8x256xf32>
    %1145 = vector.extract_strided_slice %1140 {offsets = [0, 113], sizes = [8, 256], strides = [1, 1]} : vector<8x512xf32> to vector<8x256xf32>
    %1146 = vector.broadcast %1 : vector<1x256xf32> to vector<8x256xf32>
    %1147 = arith.mulf %1145, %1146 : vector<8x256xf32>
    %1148 = vector.extract_strided_slice %1140 {offsets = [0, 127], sizes = [8, 256], strides = [1, 1]} : vector<8x512xf32> to vector<8x256xf32>
    %1149 = vector.broadcast %0 : vector<1x256xf32> to vector<8x256xf32>
    %1150 = arith.mulf %1148, %1149 : vector<8x256xf32>
    %1151 = vector.extract_strided_slice %1140 {offsets = [0, 128], sizes = [8, 256], strides = [1, 1]} : vector<8x512xf32> to vector<8x256xf32>
    %1152 = vector.extract_strided_slice %1140 {offsets = [0, 129], sizes = [8, 256], strides = [1, 1]} : vector<8x512xf32> to vector<8x256xf32>
    %1153 = vector.broadcast %1 : vector<1x256xf32> to vector<8x256xf32>
    %1154 = arith.mulf %1152, %1153 : vector<8x256xf32>
    %1155 = vector.extract_strided_slice %1140 {offsets = [0, 143], sizes = [8, 256], strides = [1, 1]} : vector<8x512xf32> to vector<8x256xf32>
    %1156 = vector.broadcast %0 : vector<1x256xf32> to vector<8x256xf32>
    %1157 = arith.mulf %1155, %1156 : vector<8x256xf32>
    %1158 = vector.extract_strided_slice %1140 {offsets = [0, 144], sizes = [8, 256], strides = [1, 1]} : vector<8x512xf32> to vector<8x256xf32>
    %1159 = vector.extract_strided_slice %1140 {offsets = [0, 145], sizes = [8, 256], strides = [1, 1]} : vector<8x512xf32> to vector<8x256xf32>
    %1160 = vector.broadcast %1 : vector<1x256xf32> to vector<8x256xf32>
    %1161 = arith.mulf %1159, %1160 : vector<8x256xf32>
    %1162 = tpu.concatenate %1143, %1144, %1147, %1150, %1151, %1154, %1157, %1158, %1161 in 0 : vector<8x256xf32>, vector<8x256xf32>, vector<8x256xf32>, vector<8x256xf32>, vector<8x256xf32>, vector<8x256xf32>, vector<8x256xf32>, vector<8x256xf32>, vector<8x256xf32> -> vector<72x256xf32>
    %cst_341 = arith.constant dense<0.000000e+00> : vector<8x256xf32>
    %1163 = tpu.matmul %1078, %1162, %cst_341 {dimension_numbers = #tpu.dot_dimension_numbers<[1], [0], [0], [1], [0, 0, 1, 1], [], []>} : vector<8x72xf32>, vector<72x256xf32>, vector<8x256xf32> -> vector<8x256xf32>
    %1164 = vector.broadcast %1080 : vector<8x1xf32> to vector<8x256xf32>
    %1165 = arith.addf %1163, %1164 : vector<8x256xf32>
    %1166 = arith.addf %1068, %1165 : vector<8x256xf32>
    %c11 = arith.constant 11 : index
    %c0_342 = arith.constant 0 : index
    %c0_343 = arith.constant 0 : index
    %1167 = vector.load %arg6[%c11, %c0_342, %c0_343] : memref<15x8x72xf32, #tpu.memory_space<vmem>>, vector<1x8x72xf32>
    %1168 = vector.shape_cast %1167 : vector<1x8x72xf32> to vector<8x72xf32>
    %c11_344 = arith.constant 11 : index
    %c0_345 = arith.constant 0 : index
    %c0_346 = arith.constant 0 : index
    %1169 = vector.load %arg7[%c11_344, %c0_345, %c0_346] : memref<15x8x1xf32, #tpu.memory_space<vmem>>, vector<1x8x1xf32>
    %1170 = vector.shape_cast %1169 : vector<1x8x1xf32> to vector<8x1xf32>
    %c11_347 = arith.constant 11 : index
    %c0_348 = arith.constant 0 : index
    %c0_349 = arith.constant 0 : index
    %1171 = vector.load %arg8[%c11_347, %c0_348, %c0_349] : memref<15x8x1xf32, #tpu.memory_space<vmem>>, vector<1x8x1xf32>
    %1172 = vector.shape_cast %1171 : vector<1x8x1xf32> to vector<8x1xf32>
    %c11_350 = arith.constant 11 : index
    %c0_351 = arith.constant 0 : index
    %c0_352 = arith.constant 0 : index
    %1173 = vector.load %arg9[%c11_350, %c0_351, %c0_352] : memref<15x8x1xf32, #tpu.memory_space<vmem>>, vector<1x8x1xf32>
    %1174 = vector.shape_cast %1173 : vector<1x8x1xf32> to vector<8x1xf32>
    %c11_353 = arith.constant 11 : index
    %c0_354 = arith.constant 0 : index
    %c0_355 = arith.constant 0 : index
    %1175 = vector.load %arg10[%c11_353, %c0_354, %c0_355] : memref<15x8x72xf32, #tpu.memory_space<vmem>>, vector<1x8x72xf32>
    %1176 = vector.shape_cast %1175 : vector<1x8x72xf32> to vector<8x72xf32>
    %c11_356 = arith.constant 11 : index
    %c0_357 = arith.constant 0 : index
    %c0_358 = arith.constant 0 : index
    %1177 = vector.load %arg11[%c11_356, %c0_357, %c0_358] : memref<15x8x1xf32, #tpu.memory_space<vmem>>, vector<1x8x1xf32>
    %1178 = vector.shape_cast %1177 : vector<1x8x1xf32> to vector<8x1xf32>
    %cst_359 = arith.constant 0.000000e+00 : f32
    %1179 = vector.broadcast %cst_359 : f32 to vector<8x128xf32>
    %1180 = tpu.concatenate %1179, %1068, %1179 in 1 : vector<8x128xf32>, vector<8x256xf32>, vector<8x128xf32> -> vector<8x512xf32>
    %1181 = vector.extract_strided_slice %1180 {offsets = [0, 111], sizes = [8, 256], strides = [1, 1]} : vector<8x512xf32> to vector<8x256xf32>
    %1182 = vector.broadcast %0 : vector<1x256xf32> to vector<8x256xf32>
    %1183 = arith.mulf %1181, %1182 : vector<8x256xf32>
    %1184 = vector.extract_strided_slice %1180 {offsets = [0, 112], sizes = [8, 256], strides = [1, 1]} : vector<8x512xf32> to vector<8x256xf32>
    %1185 = vector.extract_strided_slice %1180 {offsets = [0, 113], sizes = [8, 256], strides = [1, 1]} : vector<8x512xf32> to vector<8x256xf32>
    %1186 = vector.broadcast %1 : vector<1x256xf32> to vector<8x256xf32>
    %1187 = arith.mulf %1185, %1186 : vector<8x256xf32>
    %1188 = vector.extract_strided_slice %1180 {offsets = [0, 127], sizes = [8, 256], strides = [1, 1]} : vector<8x512xf32> to vector<8x256xf32>
    %1189 = vector.broadcast %0 : vector<1x256xf32> to vector<8x256xf32>
    %1190 = arith.mulf %1188, %1189 : vector<8x256xf32>
    %1191 = vector.extract_strided_slice %1180 {offsets = [0, 128], sizes = [8, 256], strides = [1, 1]} : vector<8x512xf32> to vector<8x256xf32>
    %1192 = vector.extract_strided_slice %1180 {offsets = [0, 129], sizes = [8, 256], strides = [1, 1]} : vector<8x512xf32> to vector<8x256xf32>
    %1193 = vector.broadcast %1 : vector<1x256xf32> to vector<8x256xf32>
    %1194 = arith.mulf %1192, %1193 : vector<8x256xf32>
    %1195 = vector.extract_strided_slice %1180 {offsets = [0, 143], sizes = [8, 256], strides = [1, 1]} : vector<8x512xf32> to vector<8x256xf32>
    %1196 = vector.broadcast %0 : vector<1x256xf32> to vector<8x256xf32>
    %1197 = arith.mulf %1195, %1196 : vector<8x256xf32>
    %1198 = vector.extract_strided_slice %1180 {offsets = [0, 144], sizes = [8, 256], strides = [1, 1]} : vector<8x512xf32> to vector<8x256xf32>
    %1199 = vector.extract_strided_slice %1180 {offsets = [0, 145], sizes = [8, 256], strides = [1, 1]} : vector<8x512xf32> to vector<8x256xf32>
    %1200 = vector.broadcast %1 : vector<1x256xf32> to vector<8x256xf32>
    %1201 = arith.mulf %1199, %1200 : vector<8x256xf32>
    %1202 = tpu.concatenate %1183, %1184, %1187, %1190, %1191, %1194, %1197, %1198, %1201 in 0 : vector<8x256xf32>, vector<8x256xf32>, vector<8x256xf32>, vector<8x256xf32>, vector<8x256xf32>, vector<8x256xf32>, vector<8x256xf32>, vector<8x256xf32>, vector<8x256xf32> -> vector<72x256xf32>
    %cst_360 = arith.constant dense<0.000000e+00> : vector<8x256xf32>
    %1203 = tpu.matmul %1168, %1202, %cst_360 {dimension_numbers = #tpu.dot_dimension_numbers<[1], [0], [0], [1], [0, 0, 1, 1], [], []>} : vector<8x72xf32>, vector<72x256xf32>, vector<8x256xf32> -> vector<8x256xf32>
    %1204 = vector.broadcast %1170 : vector<8x1xf32> to vector<8x256xf32>
    %1205 = arith.addf %1203, %1204 : vector<8x256xf32>
    %cst_361 = arith.constant dense<0.000000e+00> : vector<8xf32>
    %1206 = vector.multi_reduction <add>, %1205, %cst_361 [1] : vector<8x256xf32> to vector<8xf32>
    %1207 = vector.shape_cast %1206 : vector<8xf32> to vector<8x1xf32>
    %cst_362 = arith.constant 2.560000e+02 : f32
    %1208 = vector.broadcast %cst_362 : f32 to vector<8x1xf32>
    %1209 = arith.divf %1207, %1208 : vector<8x1xf32>
    %1210 = arith.mulf %1205, %1205 : vector<8x256xf32>
    %cst_363 = arith.constant dense<0.000000e+00> : vector<8xf32>
    %1211 = vector.multi_reduction <add>, %1210, %cst_363 [1] : vector<8x256xf32> to vector<8xf32>
    %1212 = vector.shape_cast %1211 : vector<8xf32> to vector<8x1xf32>
    %cst_364 = arith.constant 2.560000e+02 : f32
    %1213 = vector.broadcast %cst_364 : f32 to vector<8x1xf32>
    %1214 = arith.divf %1212, %1213 : vector<8x1xf32>
    %1215 = arith.mulf %1209, %1209 : vector<8x1xf32>
    %1216 = arith.subf %1214, %1215 : vector<8x1xf32>
    %cst_365 = arith.constant 0.000000e+00 : f32
    %1217 = vector.broadcast %cst_365 : f32 to vector<8x1xf32>
    %1218 = arith.maximumf %1216, %1217 : vector<8x1xf32>
    %1219 = vector.broadcast %1209 : vector<8x1xf32> to vector<8x256xf32>
    %1220 = arith.subf %1205, %1219 : vector<8x256xf32>
    %cst_366 = arith.constant 9.99999974E-6 : f32
    %1221 = vector.broadcast %cst_366 : f32 to vector<8x1xf32>
    %1222 = arith.addf %1218, %1221 : vector<8x1xf32>
    %1223 = math.rsqrt %1222 : vector<8x1xf32>
    %1224 = vector.broadcast %1223 : vector<8x1xf32> to vector<8x256xf32>
    %1225 = arith.mulf %1220, %1224 : vector<8x256xf32>
    %1226 = vector.broadcast %1172 : vector<8x1xf32> to vector<8x256xf32>
    %1227 = arith.mulf %1225, %1226 : vector<8x256xf32>
    %1228 = vector.broadcast %1174 : vector<8x1xf32> to vector<8x256xf32>
    %1229 = arith.addf %1227, %1228 : vector<8x256xf32>
    %1230 = vector.broadcast %6 : vector<8x1xf32> to vector<8x256xf32>
    %1231 = arith.mulf %1229, %1230 : vector<8x256xf32>
    %cst_367 = arith.constant 1.000000e+00 : f32
    %1232 = vector.broadcast %cst_367 : f32 to vector<8x1xf32>
    %1233 = arith.subf %1232, %6 : vector<8x1xf32>
    %1234 = vector.broadcast %1233 : vector<8x1xf32> to vector<8x256xf32>
    %1235 = arith.mulf %1205, %1234 : vector<8x256xf32>
    %1236 = arith.addf %1231, %1235 : vector<8x256xf32>
    %cst_368 = arith.constant 0.000000e+00 : f32
    %1237 = vector.broadcast %cst_368 : f32 to vector<8x128xf32>
    %1238 = tpu.concatenate %1237, %1236, %1237 in 1 : vector<8x128xf32>, vector<8x256xf32>, vector<8x128xf32> -> vector<8x512xf32>
    %1239 = vector.extract_strided_slice %1238 {offsets = [0, 111], sizes = [8, 256], strides = [1, 1]} : vector<8x512xf32> to vector<8x256xf32>
    %1240 = vector.broadcast %0 : vector<1x256xf32> to vector<8x256xf32>
    %1241 = arith.mulf %1239, %1240 : vector<8x256xf32>
    %1242 = vector.extract_strided_slice %1238 {offsets = [0, 112], sizes = [8, 256], strides = [1, 1]} : vector<8x512xf32> to vector<8x256xf32>
    %1243 = vector.extract_strided_slice %1238 {offsets = [0, 113], sizes = [8, 256], strides = [1, 1]} : vector<8x512xf32> to vector<8x256xf32>
    %1244 = vector.broadcast %1 : vector<1x256xf32> to vector<8x256xf32>
    %1245 = arith.mulf %1243, %1244 : vector<8x256xf32>
    %1246 = vector.extract_strided_slice %1238 {offsets = [0, 127], sizes = [8, 256], strides = [1, 1]} : vector<8x512xf32> to vector<8x256xf32>
    %1247 = vector.broadcast %0 : vector<1x256xf32> to vector<8x256xf32>
    %1248 = arith.mulf %1246, %1247 : vector<8x256xf32>
    %1249 = vector.extract_strided_slice %1238 {offsets = [0, 128], sizes = [8, 256], strides = [1, 1]} : vector<8x512xf32> to vector<8x256xf32>
    %1250 = vector.extract_strided_slice %1238 {offsets = [0, 129], sizes = [8, 256], strides = [1, 1]} : vector<8x512xf32> to vector<8x256xf32>
    %1251 = vector.broadcast %1 : vector<1x256xf32> to vector<8x256xf32>
    %1252 = arith.mulf %1250, %1251 : vector<8x256xf32>
    %1253 = vector.extract_strided_slice %1238 {offsets = [0, 143], sizes = [8, 256], strides = [1, 1]} : vector<8x512xf32> to vector<8x256xf32>
    %1254 = vector.broadcast %0 : vector<1x256xf32> to vector<8x256xf32>
    %1255 = arith.mulf %1253, %1254 : vector<8x256xf32>
    %1256 = vector.extract_strided_slice %1238 {offsets = [0, 144], sizes = [8, 256], strides = [1, 1]} : vector<8x512xf32> to vector<8x256xf32>
    %1257 = vector.extract_strided_slice %1238 {offsets = [0, 145], sizes = [8, 256], strides = [1, 1]} : vector<8x512xf32> to vector<8x256xf32>
    %1258 = vector.broadcast %1 : vector<1x256xf32> to vector<8x256xf32>
    %1259 = arith.mulf %1257, %1258 : vector<8x256xf32>
    %1260 = tpu.concatenate %1241, %1242, %1245, %1248, %1249, %1252, %1255, %1256, %1259 in 0 : vector<8x256xf32>, vector<8x256xf32>, vector<8x256xf32>, vector<8x256xf32>, vector<8x256xf32>, vector<8x256xf32>, vector<8x256xf32>, vector<8x256xf32>, vector<8x256xf32> -> vector<72x256xf32>
    %cst_369 = arith.constant dense<0.000000e+00> : vector<8x256xf32>
    %1261 = tpu.matmul %1176, %1260, %cst_369 {dimension_numbers = #tpu.dot_dimension_numbers<[1], [0], [0], [1], [0, 0, 1, 1], [], []>} : vector<8x72xf32>, vector<72x256xf32>, vector<8x256xf32> -> vector<8x256xf32>
    %1262 = vector.broadcast %1178 : vector<8x1xf32> to vector<8x256xf32>
    %1263 = arith.addf %1261, %1262 : vector<8x256xf32>
    %1264 = arith.addf %1068, %1263 : vector<8x256xf32>
    %cst_370 = arith.constant 5.000000e-01 : f32
    %1265 = vector.broadcast %cst_370 : f32 to vector<8x256xf32>
    %1266 = arith.mulf %1265, %1166 : vector<8x256xf32>
    %1267 = math.tanh %1266 : vector<8x256xf32>
    %cst_371 = arith.constant 8.000000e-01 : f32
    %1268 = vector.broadcast %cst_371 : f32 to vector<8x256xf32>
    %1269 = arith.mulf %1268, %1267 : vector<8x256xf32>
    %1270 = math.exp %1269 : vector<8x256xf32>
    %1271 = arith.mulf %969, %1270 : vector<8x256xf32>
    %1272 = arith.addf %1271, %1264 : vector<8x256xf32>
    %1273 = tpu.concatenate %1068, %1272 in 0 : vector<8x256xf32>, vector<8x256xf32> -> vector<16x256xf32>
    %c4_372 = arith.constant 4 : index
    %c0_373 = arith.constant 0 : index
    %c0_374 = arith.constant 0 : index
    %1274 = vector.load %arg5[%c4_372, %c0_373, %c0_374] : memref<5x16x16xf32, #tpu.memory_space<vmem>>, vector<1x16x16xf32>
    %1275 = vector.shape_cast %1274 : vector<1x16x16xf32> to vector<16x16xf32>
    %cst_375 = arith.constant dense<0.000000e+00> : vector<16x256xf32>
    %1276 = tpu.matmul %1275, %1273, %cst_375 {dimension_numbers = #tpu.dot_dimension_numbers<[1], [0], [0], [1], [0, 0, 1, 1], [], []>} : vector<16x16xf32>, vector<16x256xf32>, vector<16x256xf32> -> vector<16x256xf32>
    %1277 = vector.extract_strided_slice %1276 {offsets = [0, 0], sizes = [8, 256], strides = [1, 1]} : vector<16x256xf32> to vector<8x256xf32>
    %1278 = vector.extract_strided_slice %1276 {offsets = [8, 0], sizes = [8, 256], strides = [1, 1]} : vector<16x256xf32> to vector<8x256xf32>
    %c12 = arith.constant 12 : index
    %c0_376 = arith.constant 0 : index
    %c0_377 = arith.constant 0 : index
    %1279 = vector.load %arg6[%c12, %c0_376, %c0_377] : memref<15x8x72xf32, #tpu.memory_space<vmem>>, vector<1x8x72xf32>
    %1280 = vector.shape_cast %1279 : vector<1x8x72xf32> to vector<8x72xf32>
    %c12_378 = arith.constant 12 : index
    %c0_379 = arith.constant 0 : index
    %c0_380 = arith.constant 0 : index
    %1281 = vector.load %arg7[%c12_378, %c0_379, %c0_380] : memref<15x8x1xf32, #tpu.memory_space<vmem>>, vector<1x8x1xf32>
    %1282 = vector.shape_cast %1281 : vector<1x8x1xf32> to vector<8x1xf32>
    %c12_381 = arith.constant 12 : index
    %c0_382 = arith.constant 0 : index
    %c0_383 = arith.constant 0 : index
    %1283 = vector.load %arg8[%c12_381, %c0_382, %c0_383] : memref<15x8x1xf32, #tpu.memory_space<vmem>>, vector<1x8x1xf32>
    %1284 = vector.shape_cast %1283 : vector<1x8x1xf32> to vector<8x1xf32>
    %c12_384 = arith.constant 12 : index
    %c0_385 = arith.constant 0 : index
    %c0_386 = arith.constant 0 : index
    %1285 = vector.load %arg9[%c12_384, %c0_385, %c0_386] : memref<15x8x1xf32, #tpu.memory_space<vmem>>, vector<1x8x1xf32>
    %1286 = vector.shape_cast %1285 : vector<1x8x1xf32> to vector<8x1xf32>
    %c12_387 = arith.constant 12 : index
    %c0_388 = arith.constant 0 : index
    %c0_389 = arith.constant 0 : index
    %1287 = vector.load %arg10[%c12_387, %c0_388, %c0_389] : memref<15x8x72xf32, #tpu.memory_space<vmem>>, vector<1x8x72xf32>
    %1288 = vector.shape_cast %1287 : vector<1x8x72xf32> to vector<8x72xf32>
    %c12_390 = arith.constant 12 : index
    %c0_391 = arith.constant 0 : index
    %c0_392 = arith.constant 0 : index
    %1289 = vector.load %arg11[%c12_390, %c0_391, %c0_392] : memref<15x8x1xf32, #tpu.memory_space<vmem>>, vector<1x8x1xf32>
    %1290 = vector.shape_cast %1289 : vector<1x8x1xf32> to vector<8x1xf32>
    %cst_393 = arith.constant 0.000000e+00 : f32
    %1291 = vector.broadcast %cst_393 : f32 to vector<8x128xf32>
    %1292 = tpu.concatenate %1291, %1278, %1291 in 1 : vector<8x128xf32>, vector<8x256xf32>, vector<8x128xf32> -> vector<8x512xf32>
    %1293 = vector.extract_strided_slice %1292 {offsets = [0, 111], sizes = [8, 256], strides = [1, 1]} : vector<8x512xf32> to vector<8x256xf32>
    %1294 = vector.broadcast %0 : vector<1x256xf32> to vector<8x256xf32>
    %1295 = arith.mulf %1293, %1294 : vector<8x256xf32>
    %1296 = vector.extract_strided_slice %1292 {offsets = [0, 112], sizes = [8, 256], strides = [1, 1]} : vector<8x512xf32> to vector<8x256xf32>
    %1297 = vector.extract_strided_slice %1292 {offsets = [0, 113], sizes = [8, 256], strides = [1, 1]} : vector<8x512xf32> to vector<8x256xf32>
    %1298 = vector.broadcast %1 : vector<1x256xf32> to vector<8x256xf32>
    %1299 = arith.mulf %1297, %1298 : vector<8x256xf32>
    %1300 = vector.extract_strided_slice %1292 {offsets = [0, 127], sizes = [8, 256], strides = [1, 1]} : vector<8x512xf32> to vector<8x256xf32>
    %1301 = vector.broadcast %0 : vector<1x256xf32> to vector<8x256xf32>
    %1302 = arith.mulf %1300, %1301 : vector<8x256xf32>
    %1303 = vector.extract_strided_slice %1292 {offsets = [0, 128], sizes = [8, 256], strides = [1, 1]} : vector<8x512xf32> to vector<8x256xf32>
    %1304 = vector.extract_strided_slice %1292 {offsets = [0, 129], sizes = [8, 256], strides = [1, 1]} : vector<8x512xf32> to vector<8x256xf32>
    %1305 = vector.broadcast %1 : vector<1x256xf32> to vector<8x256xf32>
    %1306 = arith.mulf %1304, %1305 : vector<8x256xf32>
    %1307 = vector.extract_strided_slice %1292 {offsets = [0, 143], sizes = [8, 256], strides = [1, 1]} : vector<8x512xf32> to vector<8x256xf32>
    %1308 = vector.broadcast %0 : vector<1x256xf32> to vector<8x256xf32>
    %1309 = arith.mulf %1307, %1308 : vector<8x256xf32>
    %1310 = vector.extract_strided_slice %1292 {offsets = [0, 144], sizes = [8, 256], strides = [1, 1]} : vector<8x512xf32> to vector<8x256xf32>
    %1311 = vector.extract_strided_slice %1292 {offsets = [0, 145], sizes = [8, 256], strides = [1, 1]} : vector<8x512xf32> to vector<8x256xf32>
    %1312 = vector.broadcast %1 : vector<1x256xf32> to vector<8x256xf32>
    %1313 = arith.mulf %1311, %1312 : vector<8x256xf32>
    %1314 = tpu.concatenate %1295, %1296, %1299, %1302, %1303, %1306, %1309, %1310, %1313 in 0 : vector<8x256xf32>, vector<8x256xf32>, vector<8x256xf32>, vector<8x256xf32>, vector<8x256xf32>, vector<8x256xf32>, vector<8x256xf32>, vector<8x256xf32>, vector<8x256xf32> -> vector<72x256xf32>
    %cst_394 = arith.constant dense<0.000000e+00> : vector<8x256xf32>
    %1315 = tpu.matmul %1280, %1314, %cst_394 {dimension_numbers = #tpu.dot_dimension_numbers<[1], [0], [0], [1], [0, 0, 1, 1], [], []>} : vector<8x72xf32>, vector<72x256xf32>, vector<8x256xf32> -> vector<8x256xf32>
    %1316 = vector.broadcast %1282 : vector<8x1xf32> to vector<8x256xf32>
    %1317 = arith.addf %1315, %1316 : vector<8x256xf32>
    %cst_395 = arith.constant dense<0.000000e+00> : vector<8xf32>
    %1318 = vector.multi_reduction <add>, %1317, %cst_395 [1] : vector<8x256xf32> to vector<8xf32>
    %1319 = vector.shape_cast %1318 : vector<8xf32> to vector<8x1xf32>
    %cst_396 = arith.constant 2.560000e+02 : f32
    %1320 = vector.broadcast %cst_396 : f32 to vector<8x1xf32>
    %1321 = arith.divf %1319, %1320 : vector<8x1xf32>
    %1322 = arith.mulf %1317, %1317 : vector<8x256xf32>
    %cst_397 = arith.constant dense<0.000000e+00> : vector<8xf32>
    %1323 = vector.multi_reduction <add>, %1322, %cst_397 [1] : vector<8x256xf32> to vector<8xf32>
    %1324 = vector.shape_cast %1323 : vector<8xf32> to vector<8x1xf32>
    %cst_398 = arith.constant 2.560000e+02 : f32
    %1325 = vector.broadcast %cst_398 : f32 to vector<8x1xf32>
    %1326 = arith.divf %1324, %1325 : vector<8x1xf32>
    %1327 = arith.mulf %1321, %1321 : vector<8x1xf32>
    %1328 = arith.subf %1326, %1327 : vector<8x1xf32>
    %cst_399 = arith.constant 0.000000e+00 : f32
    %1329 = vector.broadcast %cst_399 : f32 to vector<8x1xf32>
    %1330 = arith.maximumf %1328, %1329 : vector<8x1xf32>
    %1331 = vector.broadcast %1321 : vector<8x1xf32> to vector<8x256xf32>
    %1332 = arith.subf %1317, %1331 : vector<8x256xf32>
    %cst_400 = arith.constant 9.99999974E-6 : f32
    %1333 = vector.broadcast %cst_400 : f32 to vector<8x1xf32>
    %1334 = arith.addf %1330, %1333 : vector<8x1xf32>
    %1335 = math.rsqrt %1334 : vector<8x1xf32>
    %1336 = vector.broadcast %1335 : vector<8x1xf32> to vector<8x256xf32>
    %1337 = arith.mulf %1332, %1336 : vector<8x256xf32>
    %1338 = vector.broadcast %1284 : vector<8x1xf32> to vector<8x256xf32>
    %1339 = arith.mulf %1337, %1338 : vector<8x256xf32>
    %1340 = vector.broadcast %1286 : vector<8x1xf32> to vector<8x256xf32>
    %1341 = arith.addf %1339, %1340 : vector<8x256xf32>
    %1342 = vector.broadcast %6 : vector<8x1xf32> to vector<8x256xf32>
    %1343 = arith.mulf %1341, %1342 : vector<8x256xf32>
    %cst_401 = arith.constant 1.000000e+00 : f32
    %1344 = vector.broadcast %cst_401 : f32 to vector<8x1xf32>
    %1345 = arith.subf %1344, %6 : vector<8x1xf32>
    %1346 = vector.broadcast %1345 : vector<8x1xf32> to vector<8x256xf32>
    %1347 = arith.mulf %1317, %1346 : vector<8x256xf32>
    %1348 = arith.addf %1343, %1347 : vector<8x256xf32>
    %cst_402 = arith.constant 0.000000e+00 : f32
    %1349 = vector.broadcast %cst_402 : f32 to vector<8x128xf32>
    %1350 = tpu.concatenate %1349, %1348, %1349 in 1 : vector<8x128xf32>, vector<8x256xf32>, vector<8x128xf32> -> vector<8x512xf32>
    %1351 = vector.extract_strided_slice %1350 {offsets = [0, 111], sizes = [8, 256], strides = [1, 1]} : vector<8x512xf32> to vector<8x256xf32>
    %1352 = vector.broadcast %0 : vector<1x256xf32> to vector<8x256xf32>
    %1353 = arith.mulf %1351, %1352 : vector<8x256xf32>
    %1354 = vector.extract_strided_slice %1350 {offsets = [0, 112], sizes = [8, 256], strides = [1, 1]} : vector<8x512xf32> to vector<8x256xf32>
    %1355 = vector.extract_strided_slice %1350 {offsets = [0, 113], sizes = [8, 256], strides = [1, 1]} : vector<8x512xf32> to vector<8x256xf32>
    %1356 = vector.broadcast %1 : vector<1x256xf32> to vector<8x256xf32>
    %1357 = arith.mulf %1355, %1356 : vector<8x256xf32>
    %1358 = vector.extract_strided_slice %1350 {offsets = [0, 127], sizes = [8, 256], strides = [1, 1]} : vector<8x512xf32> to vector<8x256xf32>
    %1359 = vector.broadcast %0 : vector<1x256xf32> to vector<8x256xf32>
    %1360 = arith.mulf %1358, %1359 : vector<8x256xf32>
    %1361 = vector.extract_strided_slice %1350 {offsets = [0, 128], sizes = [8, 256], strides = [1, 1]} : vector<8x512xf32> to vector<8x256xf32>
    %1362 = vector.extract_strided_slice %1350 {offsets = [0, 129], sizes = [8, 256], strides = [1, 1]} : vector<8x512xf32> to vector<8x256xf32>
    %1363 = vector.broadcast %1 : vector<1x256xf32> to vector<8x256xf32>
    %1364 = arith.mulf %1362, %1363 : vector<8x256xf32>
    %1365 = vector.extract_strided_slice %1350 {offsets = [0, 143], sizes = [8, 256], strides = [1, 1]} : vector<8x512xf32> to vector<8x256xf32>
    %1366 = vector.broadcast %0 : vector<1x256xf32> to vector<8x256xf32>
    %1367 = arith.mulf %1365, %1366 : vector<8x256xf32>
    %1368 = vector.extract_strided_slice %1350 {offsets = [0, 144], sizes = [8, 256], strides = [1, 1]} : vector<8x512xf32> to vector<8x256xf32>
    %1369 = vector.extract_strided_slice %1350 {offsets = [0, 145], sizes = [8, 256], strides = [1, 1]} : vector<8x512xf32> to vector<8x256xf32>
    %1370 = vector.broadcast %1 : vector<1x256xf32> to vector<8x256xf32>
    %1371 = arith.mulf %1369, %1370 : vector<8x256xf32>
    %1372 = tpu.concatenate %1353, %1354, %1357, %1360, %1361, %1364, %1367, %1368, %1371 in 0 : vector<8x256xf32>, vector<8x256xf32>, vector<8x256xf32>, vector<8x256xf32>, vector<8x256xf32>, vector<8x256xf32>, vector<8x256xf32>, vector<8x256xf32>, vector<8x256xf32> -> vector<72x256xf32>
    %cst_403 = arith.constant dense<0.000000e+00> : vector<8x256xf32>
    %1373 = tpu.matmul %1288, %1372, %cst_403 {dimension_numbers = #tpu.dot_dimension_numbers<[1], [0], [0], [1], [0, 0, 1, 1], [], []>} : vector<8x72xf32>, vector<72x256xf32>, vector<8x256xf32> -> vector<8x256xf32>
    %1374 = vector.broadcast %1290 : vector<8x1xf32> to vector<8x256xf32>
    %1375 = arith.addf %1373, %1374 : vector<8x256xf32>
    %1376 = arith.addf %1278, %1375 : vector<8x256xf32>
    %1377 = arith.addf %1277, %1376 : vector<8x256xf32>
    %c13 = arith.constant 13 : index
    %c0_404 = arith.constant 0 : index
    %c0_405 = arith.constant 0 : index
    %1378 = vector.load %arg6[%c13, %c0_404, %c0_405] : memref<15x8x72xf32, #tpu.memory_space<vmem>>, vector<1x8x72xf32>
    %1379 = vector.shape_cast %1378 : vector<1x8x72xf32> to vector<8x72xf32>
    %c13_406 = arith.constant 13 : index
    %c0_407 = arith.constant 0 : index
    %c0_408 = arith.constant 0 : index
    %1380 = vector.load %arg7[%c13_406, %c0_407, %c0_408] : memref<15x8x1xf32, #tpu.memory_space<vmem>>, vector<1x8x1xf32>
    %1381 = vector.shape_cast %1380 : vector<1x8x1xf32> to vector<8x1xf32>
    %c13_409 = arith.constant 13 : index
    %c0_410 = arith.constant 0 : index
    %c0_411 = arith.constant 0 : index
    %1382 = vector.load %arg8[%c13_409, %c0_410, %c0_411] : memref<15x8x1xf32, #tpu.memory_space<vmem>>, vector<1x8x1xf32>
    %1383 = vector.shape_cast %1382 : vector<1x8x1xf32> to vector<8x1xf32>
    %c13_412 = arith.constant 13 : index
    %c0_413 = arith.constant 0 : index
    %c0_414 = arith.constant 0 : index
    %1384 = vector.load %arg9[%c13_412, %c0_413, %c0_414] : memref<15x8x1xf32, #tpu.memory_space<vmem>>, vector<1x8x1xf32>
    %1385 = vector.shape_cast %1384 : vector<1x8x1xf32> to vector<8x1xf32>
    %c13_415 = arith.constant 13 : index
    %c0_416 = arith.constant 0 : index
    %c0_417 = arith.constant 0 : index
    %1386 = vector.load %arg10[%c13_415, %c0_416, %c0_417] : memref<15x8x72xf32, #tpu.memory_space<vmem>>, vector<1x8x72xf32>
    %1387 = vector.shape_cast %1386 : vector<1x8x72xf32> to vector<8x72xf32>
    %c13_418 = arith.constant 13 : index
    %c0_419 = arith.constant 0 : index
    %c0_420 = arith.constant 0 : index
    %1388 = vector.load %arg11[%c13_418, %c0_419, %c0_420] : memref<15x8x1xf32, #tpu.memory_space<vmem>>, vector<1x8x1xf32>
    %1389 = vector.shape_cast %1388 : vector<1x8x1xf32> to vector<8x1xf32>
    %cst_421 = arith.constant 0.000000e+00 : f32
    %1390 = vector.broadcast %cst_421 : f32 to vector<8x128xf32>
    %1391 = tpu.concatenate %1390, %1377, %1390 in 1 : vector<8x128xf32>, vector<8x256xf32>, vector<8x128xf32> -> vector<8x512xf32>
    %1392 = vector.extract_strided_slice %1391 {offsets = [0, 111], sizes = [8, 256], strides = [1, 1]} : vector<8x512xf32> to vector<8x256xf32>
    %1393 = vector.broadcast %0 : vector<1x256xf32> to vector<8x256xf32>
    %1394 = arith.mulf %1392, %1393 : vector<8x256xf32>
    %1395 = vector.extract_strided_slice %1391 {offsets = [0, 112], sizes = [8, 256], strides = [1, 1]} : vector<8x512xf32> to vector<8x256xf32>
    %1396 = vector.extract_strided_slice %1391 {offsets = [0, 113], sizes = [8, 256], strides = [1, 1]} : vector<8x512xf32> to vector<8x256xf32>
    %1397 = vector.broadcast %1 : vector<1x256xf32> to vector<8x256xf32>
    %1398 = arith.mulf %1396, %1397 : vector<8x256xf32>
    %1399 = vector.extract_strided_slice %1391 {offsets = [0, 127], sizes = [8, 256], strides = [1, 1]} : vector<8x512xf32> to vector<8x256xf32>
    %1400 = vector.broadcast %0 : vector<1x256xf32> to vector<8x256xf32>
    %1401 = arith.mulf %1399, %1400 : vector<8x256xf32>
    %1402 = vector.extract_strided_slice %1391 {offsets = [0, 128], sizes = [8, 256], strides = [1, 1]} : vector<8x512xf32> to vector<8x256xf32>
    %1403 = vector.extract_strided_slice %1391 {offsets = [0, 129], sizes = [8, 256], strides = [1, 1]} : vector<8x512xf32> to vector<8x256xf32>
    %1404 = vector.broadcast %1 : vector<1x256xf32> to vector<8x256xf32>
    %1405 = arith.mulf %1403, %1404 : vector<8x256xf32>
    %1406 = vector.extract_strided_slice %1391 {offsets = [0, 143], sizes = [8, 256], strides = [1, 1]} : vector<8x512xf32> to vector<8x256xf32>
    %1407 = vector.broadcast %0 : vector<1x256xf32> to vector<8x256xf32>
    %1408 = arith.mulf %1406, %1407 : vector<8x256xf32>
    %1409 = vector.extract_strided_slice %1391 {offsets = [0, 144], sizes = [8, 256], strides = [1, 1]} : vector<8x512xf32> to vector<8x256xf32>
    %1410 = vector.extract_strided_slice %1391 {offsets = [0, 145], sizes = [8, 256], strides = [1, 1]} : vector<8x512xf32> to vector<8x256xf32>
    %1411 = vector.broadcast %1 : vector<1x256xf32> to vector<8x256xf32>
    %1412 = arith.mulf %1410, %1411 : vector<8x256xf32>
    %1413 = tpu.concatenate %1394, %1395, %1398, %1401, %1402, %1405, %1408, %1409, %1412 in 0 : vector<8x256xf32>, vector<8x256xf32>, vector<8x256xf32>, vector<8x256xf32>, vector<8x256xf32>, vector<8x256xf32>, vector<8x256xf32>, vector<8x256xf32>, vector<8x256xf32> -> vector<72x256xf32>
    %cst_422 = arith.constant dense<0.000000e+00> : vector<8x256xf32>
    %1414 = tpu.matmul %1379, %1413, %cst_422 {dimension_numbers = #tpu.dot_dimension_numbers<[1], [0], [0], [1], [0, 0, 1, 1], [], []>} : vector<8x72xf32>, vector<72x256xf32>, vector<8x256xf32> -> vector<8x256xf32>
    %1415 = vector.broadcast %1381 : vector<8x1xf32> to vector<8x256xf32>
    %1416 = arith.addf %1414, %1415 : vector<8x256xf32>
    %cst_423 = arith.constant dense<0.000000e+00> : vector<8xf32>
    %1417 = vector.multi_reduction <add>, %1416, %cst_423 [1] : vector<8x256xf32> to vector<8xf32>
    %1418 = vector.shape_cast %1417 : vector<8xf32> to vector<8x1xf32>
    %cst_424 = arith.constant 2.560000e+02 : f32
    %1419 = vector.broadcast %cst_424 : f32 to vector<8x1xf32>
    %1420 = arith.divf %1418, %1419 : vector<8x1xf32>
    %1421 = arith.mulf %1416, %1416 : vector<8x256xf32>
    %cst_425 = arith.constant dense<0.000000e+00> : vector<8xf32>
    %1422 = vector.multi_reduction <add>, %1421, %cst_425 [1] : vector<8x256xf32> to vector<8xf32>
    %1423 = vector.shape_cast %1422 : vector<8xf32> to vector<8x1xf32>
    %cst_426 = arith.constant 2.560000e+02 : f32
    %1424 = vector.broadcast %cst_426 : f32 to vector<8x1xf32>
    %1425 = arith.divf %1423, %1424 : vector<8x1xf32>
    %1426 = arith.mulf %1420, %1420 : vector<8x1xf32>
    %1427 = arith.subf %1425, %1426 : vector<8x1xf32>
    %cst_427 = arith.constant 0.000000e+00 : f32
    %1428 = vector.broadcast %cst_427 : f32 to vector<8x1xf32>
    %1429 = arith.maximumf %1427, %1428 : vector<8x1xf32>
    %1430 = vector.broadcast %1420 : vector<8x1xf32> to vector<8x256xf32>
    %1431 = arith.subf %1416, %1430 : vector<8x256xf32>
    %cst_428 = arith.constant 9.99999974E-6 : f32
    %1432 = vector.broadcast %cst_428 : f32 to vector<8x1xf32>
    %1433 = arith.addf %1429, %1432 : vector<8x1xf32>
    %1434 = math.rsqrt %1433 : vector<8x1xf32>
    %1435 = vector.broadcast %1434 : vector<8x1xf32> to vector<8x256xf32>
    %1436 = arith.mulf %1431, %1435 : vector<8x256xf32>
    %1437 = vector.broadcast %1383 : vector<8x1xf32> to vector<8x256xf32>
    %1438 = arith.mulf %1436, %1437 : vector<8x256xf32>
    %1439 = vector.broadcast %1385 : vector<8x1xf32> to vector<8x256xf32>
    %1440 = arith.addf %1438, %1439 : vector<8x256xf32>
    %1441 = vector.broadcast %6 : vector<8x1xf32> to vector<8x256xf32>
    %1442 = arith.mulf %1440, %1441 : vector<8x256xf32>
    %cst_429 = arith.constant 1.000000e+00 : f32
    %1443 = vector.broadcast %cst_429 : f32 to vector<8x1xf32>
    %1444 = arith.subf %1443, %6 : vector<8x1xf32>
    %1445 = vector.broadcast %1444 : vector<8x1xf32> to vector<8x256xf32>
    %1446 = arith.mulf %1416, %1445 : vector<8x256xf32>
    %1447 = arith.addf %1442, %1446 : vector<8x256xf32>
    %cst_430 = arith.constant 0.000000e+00 : f32
    %1448 = vector.broadcast %cst_430 : f32 to vector<8x128xf32>
    %1449 = tpu.concatenate %1448, %1447, %1448 in 1 : vector<8x128xf32>, vector<8x256xf32>, vector<8x128xf32> -> vector<8x512xf32>
    %1450 = vector.extract_strided_slice %1449 {offsets = [0, 111], sizes = [8, 256], strides = [1, 1]} : vector<8x512xf32> to vector<8x256xf32>
    %1451 = vector.broadcast %0 : vector<1x256xf32> to vector<8x256xf32>
    %1452 = arith.mulf %1450, %1451 : vector<8x256xf32>
    %1453 = vector.extract_strided_slice %1449 {offsets = [0, 112], sizes = [8, 256], strides = [1, 1]} : vector<8x512xf32> to vector<8x256xf32>
    %1454 = vector.extract_strided_slice %1449 {offsets = [0, 113], sizes = [8, 256], strides = [1, 1]} : vector<8x512xf32> to vector<8x256xf32>
    %1455 = vector.broadcast %1 : vector<1x256xf32> to vector<8x256xf32>
    %1456 = arith.mulf %1454, %1455 : vector<8x256xf32>
    %1457 = vector.extract_strided_slice %1449 {offsets = [0, 127], sizes = [8, 256], strides = [1, 1]} : vector<8x512xf32> to vector<8x256xf32>
    %1458 = vector.broadcast %0 : vector<1x256xf32> to vector<8x256xf32>
    %1459 = arith.mulf %1457, %1458 : vector<8x256xf32>
    %1460 = vector.extract_strided_slice %1449 {offsets = [0, 128], sizes = [8, 256], strides = [1, 1]} : vector<8x512xf32> to vector<8x256xf32>
    %1461 = vector.extract_strided_slice %1449 {offsets = [0, 129], sizes = [8, 256], strides = [1, 1]} : vector<8x512xf32> to vector<8x256xf32>
    %1462 = vector.broadcast %1 : vector<1x256xf32> to vector<8x256xf32>
    %1463 = arith.mulf %1461, %1462 : vector<8x256xf32>
    %1464 = vector.extract_strided_slice %1449 {offsets = [0, 143], sizes = [8, 256], strides = [1, 1]} : vector<8x512xf32> to vector<8x256xf32>
    %1465 = vector.broadcast %0 : vector<1x256xf32> to vector<8x256xf32>
    %1466 = arith.mulf %1464, %1465 : vector<8x256xf32>
    %1467 = vector.extract_strided_slice %1449 {offsets = [0, 144], sizes = [8, 256], strides = [1, 1]} : vector<8x512xf32> to vector<8x256xf32>
    %1468 = vector.extract_strided_slice %1449 {offsets = [0, 145], sizes = [8, 256], strides = [1, 1]} : vector<8x512xf32> to vector<8x256xf32>
    %1469 = vector.broadcast %1 : vector<1x256xf32> to vector<8x256xf32>
    %1470 = arith.mulf %1468, %1469 : vector<8x256xf32>
    %1471 = tpu.concatenate %1452, %1453, %1456, %1459, %1460, %1463, %1466, %1467, %1470 in 0 : vector<8x256xf32>, vector<8x256xf32>, vector<8x256xf32>, vector<8x256xf32>, vector<8x256xf32>, vector<8x256xf32>, vector<8x256xf32>, vector<8x256xf32>, vector<8x256xf32> -> vector<72x256xf32>
    %cst_431 = arith.constant dense<0.000000e+00> : vector<8x256xf32>
    %1472 = tpu.matmul %1387, %1471, %cst_431 {dimension_numbers = #tpu.dot_dimension_numbers<[1], [0], [0], [1], [0, 0, 1, 1], [], []>} : vector<8x72xf32>, vector<72x256xf32>, vector<8x256xf32> -> vector<8x256xf32>
    %1473 = vector.broadcast %1389 : vector<8x1xf32> to vector<8x256xf32>
    %1474 = arith.addf %1472, %1473 : vector<8x256xf32>
    %1475 = arith.addf %1377, %1474 : vector<8x256xf32>
    %c14 = arith.constant 14 : index
    %c0_432 = arith.constant 0 : index
    %c0_433 = arith.constant 0 : index
    %1476 = vector.load %arg6[%c14, %c0_432, %c0_433] : memref<15x8x72xf32, #tpu.memory_space<vmem>>, vector<1x8x72xf32>
    %1477 = vector.shape_cast %1476 : vector<1x8x72xf32> to vector<8x72xf32>
    %c14_434 = arith.constant 14 : index
    %c0_435 = arith.constant 0 : index
    %c0_436 = arith.constant 0 : index
    %1478 = vector.load %arg7[%c14_434, %c0_435, %c0_436] : memref<15x8x1xf32, #tpu.memory_space<vmem>>, vector<1x8x1xf32>
    %1479 = vector.shape_cast %1478 : vector<1x8x1xf32> to vector<8x1xf32>
    %c14_437 = arith.constant 14 : index
    %c0_438 = arith.constant 0 : index
    %c0_439 = arith.constant 0 : index
    %1480 = vector.load %arg8[%c14_437, %c0_438, %c0_439] : memref<15x8x1xf32, #tpu.memory_space<vmem>>, vector<1x8x1xf32>
    %1481 = vector.shape_cast %1480 : vector<1x8x1xf32> to vector<8x1xf32>
    %c14_440 = arith.constant 14 : index
    %c0_441 = arith.constant 0 : index
    %c0_442 = arith.constant 0 : index
    %1482 = vector.load %arg9[%c14_440, %c0_441, %c0_442] : memref<15x8x1xf32, #tpu.memory_space<vmem>>, vector<1x8x1xf32>
    %1483 = vector.shape_cast %1482 : vector<1x8x1xf32> to vector<8x1xf32>
    %c14_443 = arith.constant 14 : index
    %c0_444 = arith.constant 0 : index
    %c0_445 = arith.constant 0 : index
    %1484 = vector.load %arg10[%c14_443, %c0_444, %c0_445] : memref<15x8x72xf32, #tpu.memory_space<vmem>>, vector<1x8x72xf32>
    %1485 = vector.shape_cast %1484 : vector<1x8x72xf32> to vector<8x72xf32>
    %c14_446 = arith.constant 14 : index
    %c0_447 = arith.constant 0 : index
    %c0_448 = arith.constant 0 : index
    %1486 = vector.load %arg11[%c14_446, %c0_447, %c0_448] : memref<15x8x1xf32, #tpu.memory_space<vmem>>, vector<1x8x1xf32>
    %1487 = vector.shape_cast %1486 : vector<1x8x1xf32> to vector<8x1xf32>
    %cst_449 = arith.constant 0.000000e+00 : f32
    %1488 = vector.broadcast %cst_449 : f32 to vector<8x128xf32>
    %1489 = tpu.concatenate %1488, %1377, %1488 in 1 : vector<8x128xf32>, vector<8x256xf32>, vector<8x128xf32> -> vector<8x512xf32>
    %1490 = vector.extract_strided_slice %1489 {offsets = [0, 111], sizes = [8, 256], strides = [1, 1]} : vector<8x512xf32> to vector<8x256xf32>
    %1491 = vector.broadcast %0 : vector<1x256xf32> to vector<8x256xf32>
    %1492 = arith.mulf %1490, %1491 : vector<8x256xf32>
    %1493 = vector.extract_strided_slice %1489 {offsets = [0, 112], sizes = [8, 256], strides = [1, 1]} : vector<8x512xf32> to vector<8x256xf32>
    %1494 = vector.extract_strided_slice %1489 {offsets = [0, 113], sizes = [8, 256], strides = [1, 1]} : vector<8x512xf32> to vector<8x256xf32>
    %1495 = vector.broadcast %1 : vector<1x256xf32> to vector<8x256xf32>
    %1496 = arith.mulf %1494, %1495 : vector<8x256xf32>
    %1497 = vector.extract_strided_slice %1489 {offsets = [0, 127], sizes = [8, 256], strides = [1, 1]} : vector<8x512xf32> to vector<8x256xf32>
    %1498 = vector.broadcast %0 : vector<1x256xf32> to vector<8x256xf32>
    %1499 = arith.mulf %1497, %1498 : vector<8x256xf32>
    %1500 = vector.extract_strided_slice %1489 {offsets = [0, 128], sizes = [8, 256], strides = [1, 1]} : vector<8x512xf32> to vector<8x256xf32>
    %1501 = vector.extract_strided_slice %1489 {offsets = [0, 129], sizes = [8, 256], strides = [1, 1]} : vector<8x512xf32> to vector<8x256xf32>
    %1502 = vector.broadcast %1 : vector<1x256xf32> to vector<8x256xf32>
    %1503 = arith.mulf %1501, %1502 : vector<8x256xf32>
    %1504 = vector.extract_strided_slice %1489 {offsets = [0, 143], sizes = [8, 256], strides = [1, 1]} : vector<8x512xf32> to vector<8x256xf32>
    %1505 = vector.broadcast %0 : vector<1x256xf32> to vector<8x256xf32>
    %1506 = arith.mulf %1504, %1505 : vector<8x256xf32>
    %1507 = vector.extract_strided_slice %1489 {offsets = [0, 144], sizes = [8, 256], strides = [1, 1]} : vector<8x512xf32> to vector<8x256xf32>
    %1508 = vector.extract_strided_slice %1489 {offsets = [0, 145], sizes = [8, 256], strides = [1, 1]} : vector<8x512xf32> to vector<8x256xf32>
    %1509 = vector.broadcast %1 : vector<1x256xf32> to vector<8x256xf32>
    %1510 = arith.mulf %1508, %1509 : vector<8x256xf32>
    %1511 = tpu.concatenate %1492, %1493, %1496, %1499, %1500, %1503, %1506, %1507, %1510 in 0 : vector<8x256xf32>, vector<8x256xf32>, vector<8x256xf32>, vector<8x256xf32>, vector<8x256xf32>, vector<8x256xf32>, vector<8x256xf32>, vector<8x256xf32>, vector<8x256xf32> -> vector<72x256xf32>
    %cst_450 = arith.constant dense<0.000000e+00> : vector<8x256xf32>
    %1512 = tpu.matmul %1477, %1511, %cst_450 {dimension_numbers = #tpu.dot_dimension_numbers<[1], [0], [0], [1], [0, 0, 1, 1], [], []>} : vector<8x72xf32>, vector<72x256xf32>, vector<8x256xf32> -> vector<8x256xf32>
    %1513 = vector.broadcast %1479 : vector<8x1xf32> to vector<8x256xf32>
    %1514 = arith.addf %1512, %1513 : vector<8x256xf32>
    %cst_451 = arith.constant dense<0.000000e+00> : vector<8xf32>
    %1515 = vector.multi_reduction <add>, %1514, %cst_451 [1] : vector<8x256xf32> to vector<8xf32>
    %1516 = vector.shape_cast %1515 : vector<8xf32> to vector<8x1xf32>
    %cst_452 = arith.constant 2.560000e+02 : f32
    %1517 = vector.broadcast %cst_452 : f32 to vector<8x1xf32>
    %1518 = arith.divf %1516, %1517 : vector<8x1xf32>
    %1519 = arith.mulf %1514, %1514 : vector<8x256xf32>
    %cst_453 = arith.constant dense<0.000000e+00> : vector<8xf32>
    %1520 = vector.multi_reduction <add>, %1519, %cst_453 [1] : vector<8x256xf32> to vector<8xf32>
    %1521 = vector.shape_cast %1520 : vector<8xf32> to vector<8x1xf32>
    %cst_454 = arith.constant 2.560000e+02 : f32
    %1522 = vector.broadcast %cst_454 : f32 to vector<8x1xf32>
    %1523 = arith.divf %1521, %1522 : vector<8x1xf32>
    %1524 = arith.mulf %1518, %1518 : vector<8x1xf32>
    %1525 = arith.subf %1523, %1524 : vector<8x1xf32>
    %cst_455 = arith.constant 0.000000e+00 : f32
    %1526 = vector.broadcast %cst_455 : f32 to vector<8x1xf32>
    %1527 = arith.maximumf %1525, %1526 : vector<8x1xf32>
    %1528 = vector.broadcast %1518 : vector<8x1xf32> to vector<8x256xf32>
    %1529 = arith.subf %1514, %1528 : vector<8x256xf32>
    %cst_456 = arith.constant 9.99999974E-6 : f32
    %1530 = vector.broadcast %cst_456 : f32 to vector<8x1xf32>
    %1531 = arith.addf %1527, %1530 : vector<8x1xf32>
    %1532 = math.rsqrt %1531 : vector<8x1xf32>
    %1533 = vector.broadcast %1532 : vector<8x1xf32> to vector<8x256xf32>
    %1534 = arith.mulf %1529, %1533 : vector<8x256xf32>
    %1535 = vector.broadcast %1481 : vector<8x1xf32> to vector<8x256xf32>
    %1536 = arith.mulf %1534, %1535 : vector<8x256xf32>
    %1537 = vector.broadcast %1483 : vector<8x1xf32> to vector<8x256xf32>
    %1538 = arith.addf %1536, %1537 : vector<8x256xf32>
    %1539 = vector.broadcast %6 : vector<8x1xf32> to vector<8x256xf32>
    %1540 = arith.mulf %1538, %1539 : vector<8x256xf32>
    %cst_457 = arith.constant 1.000000e+00 : f32
    %1541 = vector.broadcast %cst_457 : f32 to vector<8x1xf32>
    %1542 = arith.subf %1541, %6 : vector<8x1xf32>
    %1543 = vector.broadcast %1542 : vector<8x1xf32> to vector<8x256xf32>
    %1544 = arith.mulf %1514, %1543 : vector<8x256xf32>
    %1545 = arith.addf %1540, %1544 : vector<8x256xf32>
    %cst_458 = arith.constant 0.000000e+00 : f32
    %1546 = vector.broadcast %cst_458 : f32 to vector<8x128xf32>
    %1547 = tpu.concatenate %1546, %1545, %1546 in 1 : vector<8x128xf32>, vector<8x256xf32>, vector<8x128xf32> -> vector<8x512xf32>
    %1548 = vector.extract_strided_slice %1547 {offsets = [0, 111], sizes = [8, 256], strides = [1, 1]} : vector<8x512xf32> to vector<8x256xf32>
    %1549 = vector.broadcast %0 : vector<1x256xf32> to vector<8x256xf32>
    %1550 = arith.mulf %1548, %1549 : vector<8x256xf32>
    %1551 = vector.extract_strided_slice %1547 {offsets = [0, 112], sizes = [8, 256], strides = [1, 1]} : vector<8x512xf32> to vector<8x256xf32>
    %1552 = vector.extract_strided_slice %1547 {offsets = [0, 113], sizes = [8, 256], strides = [1, 1]} : vector<8x512xf32> to vector<8x256xf32>
    %1553 = vector.broadcast %1 : vector<1x256xf32> to vector<8x256xf32>
    %1554 = arith.mulf %1552, %1553 : vector<8x256xf32>
    %1555 = vector.extract_strided_slice %1547 {offsets = [0, 127], sizes = [8, 256], strides = [1, 1]} : vector<8x512xf32> to vector<8x256xf32>
    %1556 = vector.broadcast %0 : vector<1x256xf32> to vector<8x256xf32>
    %1557 = arith.mulf %1555, %1556 : vector<8x256xf32>
    %1558 = vector.extract_strided_slice %1547 {offsets = [0, 128], sizes = [8, 256], strides = [1, 1]} : vector<8x512xf32> to vector<8x256xf32>
    %1559 = vector.extract_strided_slice %1547 {offsets = [0, 129], sizes = [8, 256], strides = [1, 1]} : vector<8x512xf32> to vector<8x256xf32>
    %1560 = vector.broadcast %1 : vector<1x256xf32> to vector<8x256xf32>
    %1561 = arith.mulf %1559, %1560 : vector<8x256xf32>
    %1562 = vector.extract_strided_slice %1547 {offsets = [0, 143], sizes = [8, 256], strides = [1, 1]} : vector<8x512xf32> to vector<8x256xf32>
    %1563 = vector.broadcast %0 : vector<1x256xf32> to vector<8x256xf32>
    %1564 = arith.mulf %1562, %1563 : vector<8x256xf32>
    %1565 = vector.extract_strided_slice %1547 {offsets = [0, 144], sizes = [8, 256], strides = [1, 1]} : vector<8x512xf32> to vector<8x256xf32>
    %1566 = vector.extract_strided_slice %1547 {offsets = [0, 145], sizes = [8, 256], strides = [1, 1]} : vector<8x512xf32> to vector<8x256xf32>
    %1567 = vector.broadcast %1 : vector<1x256xf32> to vector<8x256xf32>
    %1568 = arith.mulf %1566, %1567 : vector<8x256xf32>
    %1569 = tpu.concatenate %1550, %1551, %1554, %1557, %1558, %1561, %1564, %1565, %1568 in 0 : vector<8x256xf32>, vector<8x256xf32>, vector<8x256xf32>, vector<8x256xf32>, vector<8x256xf32>, vector<8x256xf32>, vector<8x256xf32>, vector<8x256xf32>, vector<8x256xf32> -> vector<72x256xf32>
    %cst_459 = arith.constant dense<0.000000e+00> : vector<8x256xf32>
    %1570 = tpu.matmul %1485, %1569, %cst_459 {dimension_numbers = #tpu.dot_dimension_numbers<[1], [0], [0], [1], [0, 0, 1, 1], [], []>} : vector<8x72xf32>, vector<72x256xf32>, vector<8x256xf32> -> vector<8x256xf32>
    %1571 = vector.broadcast %1487 : vector<8x1xf32> to vector<8x256xf32>
    %1572 = arith.addf %1570, %1571 : vector<8x256xf32>
    %1573 = arith.addf %1377, %1572 : vector<8x256xf32>
    %cst_460 = arith.constant 5.000000e-01 : f32
    %1574 = vector.broadcast %cst_460 : f32 to vector<8x256xf32>
    %1575 = arith.mulf %1574, %1475 : vector<8x256xf32>
    %1576 = math.tanh %1575 : vector<8x256xf32>
    %cst_461 = arith.constant 8.000000e-01 : f32
    %1577 = vector.broadcast %cst_461 : f32 to vector<8x256xf32>
    %1578 = arith.mulf %1577, %1576 : vector<8x256xf32>
    %1579 = math.exp %1578 : vector<8x256xf32>
    %1580 = arith.mulf %1278, %1579 : vector<8x256xf32>
    %1581 = arith.addf %1580, %1573 : vector<8x256xf32>
    %1582 = tpu.concatenate %1377, %1581 in 0 : vector<8x256xf32>, vector<8x256xf32> -> vector<16x256xf32>
    %c0_462 = arith.constant 0 : index
    %c0_463 = arith.constant 0 : index
    %1583 = vector.load %arg12[%c0_462, %c0_463] : memref<8x16xf32, #tpu.memory_space<vmem>>, vector<8x16xf32>
    %cst_464 = arith.constant dense<0.000000e+00> : vector<8x256xf32>
    %1584 = tpu.matmul %1583, %1582, %cst_464 {dimension_numbers = #tpu.dot_dimension_numbers<[1], [0], [0], [1], [0, 0, 1, 1], [], []>} : vector<8x16xf32>, vector<16x256xf32>, vector<8x256xf32> -> vector<8x256xf32>
    %c0_465 = arith.constant 0 : index
    %c0_466 = arith.constant 0 : index
    %1585 = vector.load %arg13[%c0_465, %c0_466] : memref<8x1xf32, #tpu.memory_space<vmem>>, vector<8x1xf32>
    %1586 = vector.broadcast %1585 : vector<8x1xf32> to vector<8x256xf32>
    %1587 = arith.addf %1584, %1586 : vector<8x256xf32>
    %c0_467 = arith.constant 0 : index
    %c0_468 = arith.constant 0 : index
    %c0_469 = arith.constant 0 : index
    %1588 = vector.load %arg14[%c0_467, %c0_468, %c0_469] : memref<1x8x256xf32, #tpu.memory_space<vmem>>, vector<1x8x256xf32>
    %1589 = vector.shape_cast %1588 : vector<1x8x256xf32> to vector<8x256xf32>
    %1590 = vector.shape_cast %1587 : vector<8x256xf32> to vector<1x8x256xf32>
    tpu.vector_store %arg14[%c0_467, %c0_468, %c0_469], %1590 {strides = array<i32>} : memref<1x8x256xf32, #tpu.memory_space<vmem>>, vector<1x8x256xf32>,
    return
  }
  func.func @transform_0(%arg0: i32) -> (i32, i32, i32) {
    %c0_i32 = arith.constant 0 : i32
    %c0_i32_0 = arith.constant 0 : i32
    %c0_i32_1 = arith.constant 0 : i32
    return %arg0, %c0_i32, %c0_i32_0 : i32, i32, i32
  }
  func.func @transform_1(%arg0: i32) -> (i32, i32) {
    %c0_i32 = arith.constant 0 : i32
    %c0_i32_0 = arith.constant 0 : i32
    %c0_i32_1 = arith.constant 0 : i32
    return %c0_i32, %c0_i32_0 : i32, i32
  }
  func.func @transform_2(%arg0: i32) -> (i32, i32) {
    %c0_i32 = arith.constant 0 : i32
    %c0_i32_0 = arith.constant 0 : i32
    %c0_i32_1 = arith.constant 0 : i32
    return %c0_i32, %c0_i32_0 : i32, i32
  }
  func.func @transform_3(%arg0: i32) -> (i32, i32) {
    %c0_i32 = arith.constant 0 : i32
    %c0_i32_0 = arith.constant 0 : i32
    %c0_i32_1 = arith.constant 0 : i32
    return %c0_i32, %c0_i32_0 : i32, i32
  }
  func.func @transform_4(%arg0: i32) -> (i32, i32, i32) {
    %c0_i32 = arith.constant 0 : i32
    %c0_i32_0 = arith.constant 0 : i32
    %c0_i32_1 = arith.constant 0 : i32
    %c0_i32_2 = arith.constant 0 : i32
    return %c0_i32, %c0_i32_0, %c0_i32_1 : i32, i32, i32
  }
  func.func @transform_5(%arg0: i32) -> (i32, i32, i32) {
    %c0_i32 = arith.constant 0 : i32
    %c0_i32_0 = arith.constant 0 : i32
    %c0_i32_1 = arith.constant 0 : i32
    %c0_i32_2 = arith.constant 0 : i32
    return %c0_i32, %c0_i32_0, %c0_i32_1 : i32, i32, i32
  }
  func.func @transform_6(%arg0: i32) -> (i32, i32, i32) {
    %c0_i32 = arith.constant 0 : i32
    %c0_i32_0 = arith.constant 0 : i32
    %c0_i32_1 = arith.constant 0 : i32
    %c0_i32_2 = arith.constant 0 : i32
    return %c0_i32, %c0_i32_0, %c0_i32_1 : i32, i32, i32
  }
  func.func @transform_7(%arg0: i32) -> (i32, i32, i32) {
    %c0_i32 = arith.constant 0 : i32
    %c0_i32_0 = arith.constant 0 : i32
    %c0_i32_1 = arith.constant 0 : i32
    %c0_i32_2 = arith.constant 0 : i32
    return %c0_i32, %c0_i32_0, %c0_i32_1 : i32, i32, i32
  }
  func.func @transform_8(%arg0: i32) -> (i32, i32, i32) {
    %c0_i32 = arith.constant 0 : i32
    %c0_i32_0 = arith.constant 0 : i32
    %c0_i32_1 = arith.constant 0 : i32
    %c0_i32_2 = arith.constant 0 : i32
    return %c0_i32, %c0_i32_0, %c0_i32_1 : i32, i32, i32
  }
  func.func @transform_9(%arg0: i32) -> (i32, i32, i32) {
    %c0_i32 = arith.constant 0 : i32
    %c0_i32_0 = arith.constant 0 : i32
    %c0_i32_1 = arith.constant 0 : i32
    %c0_i32_2 = arith.constant 0 : i32
    return %c0_i32, %c0_i32_0, %c0_i32_1 : i32, i32, i32
  }
  func.func @transform_10(%arg0: i32) -> (i32, i32, i32) {
    %c0_i32 = arith.constant 0 : i32
    %c0_i32_0 = arith.constant 0 : i32
    %c0_i32_1 = arith.constant 0 : i32
    %c0_i32_2 = arith.constant 0 : i32
    return %c0_i32, %c0_i32_0, %c0_i32_1 : i32, i32, i32
  }
  func.func @transform_11(%arg0: i32) -> (i32, i32) {
    %c0_i32 = arith.constant 0 : i32
    %c0_i32_0 = arith.constant 0 : i32
    %c0_i32_1 = arith.constant 0 : i32
    return %c0_i32, %c0_i32_0 : i32, i32
  }
  func.func @transform_12(%arg0: i32) -> (i32, i32) {
    %c0_i32 = arith.constant 0 : i32
    %c0_i32_0 = arith.constant 0 : i32
    %c0_i32_1 = arith.constant 0 : i32
    return %c0_i32, %c0_i32_0 : i32, i32
  }
  func.func @transform_13(%arg0: i32) -> (i32, i32, i32) {
    %c0_i32 = arith.constant 0 : i32
    %c0_i32_0 = arith.constant 0 : i32
    %c0_i32_1 = arith.constant 0 : i32
    return %arg0, %c0_i32, %c0_i32_0 : i32, i32, i32
  }
}

</mosaic_0001>

<llo_original>
// kernel: h_feature_process.1
$region0: #{h_feature_process.1}
  #allocation0 [shape = 'u32[]', space=smem, size = 0x4, offset = 0x4, fixed_abs, tag = 'smem constant byte address 0x4 - core index']
  #allocation1 [shape = 'u32[144,128]{1,0:T(1,128)}', space=vmem, size = 0x12000, scoped, tag = 'internal scratch']
  %s0 = inlined_call_operand.vmem [shape: f32[2,8,256], index: 0, kind: input, shape index: {}]
  %s1 = inlined_call_operand.vmem [shape: f32[2,256], index: 1, kind: input, shape index: {}]
  %s2 = inlined_call_operand.vmem [shape: f32[16,72], index: 2, kind: input, shape index: {}]
  %s3 = inlined_call_operand.vmem [shape: f32[16,1], index: 3, kind: input, shape index: {}]
  %s4 = inlined_call_operand.vmem [shape: f32[5,16,16], index: 4, kind: input, shape index: {}]
  %s5 = inlined_call_operand.vmem [shape: f32[15,8,72], index: 5, kind: input, shape index: {}]
  %s6 = inlined_call_operand.vmem [shape: f32[15,8,1], index: 6, kind: input, shape index: {}]
  %s7 = inlined_call_operand.vmem [shape: f32[15,8,1], index: 7, kind: input, shape index: {}]
  %s8 = inlined_call_operand.vmem [shape: f32[15,8,1], index: 8, kind: input, shape index: {}]
  %s9 = inlined_call_operand.vmem [shape: f32[15,8,72], index: 9, kind: input, shape index: {}]
  %s10 = inlined_call_operand.vmem [shape: f32[15,8,1], index: 10, kind: input, shape index: {}]
  %s11 = inlined_call_operand.vmem [shape: f32[8,16], index: 11, kind: input, shape index: {}]
  %s12 = inlined_call_operand.vmem [shape: f32[8,1], index: 12, kind: input, shape index: {}]
  %s13 = inlined_call_operand.vmem [shape: f32[2,8,256], index: 13, kind: output, shape index: {}]
  %s14 = sld [smem:[#allocation0]]
  $region85: #{h_feature_process.1} parent=0
    _
  %s16 = ssub.s32 1, %s14
  %s17 = scalar_select 0, %s16, %s14
  loop: start=0, step=1, limit=4
  $region2: #{h_feature_process.1} parent=0 // loop_pre_header
    _
  $region3: #{h_feature_process.1} parent=0 // loop_header
    %s19 = sphi 0, %s23
    %p20 = scmp.ge.s32.totalorder %s19, 4
    %s29 = sphi 0, %s31
    %s32 = sphi 0, %s29
    %s33 = sphi 0, %s32
    %s49 = sphi 0, %s33
    %s53 = sphi 0, %s53
    %s55 = sphi 0, %s53
    %s56 = sphi 0, %s55
    %s70 = sphi 0, %s56
    %s74 = sphi 0, %s74
    %s76 = sphi 0, %s74
    %s77 = sphi 0, %s76
    %s91 = sphi 0, %s77
    %s95 = sphi 0, %s95
    %s97 = sphi 0, %s95
    %s98 = sphi 0, %s97
    %s112 = sphi 0, %s98
    %s116 = sphi 0, %s116
    %s118 = sphi 0, %s116
    %s119 = sphi 0, %s118
    %s133 = sphi 0, %s119
    %s137 = sphi 0, %s137
    %s139 = sphi 0, %s137
    %s140 = sphi 0, %s139
    %s154 = sphi 0, %s140
    %s158 = sphi 0, %s158
    %s160 = sphi 0, %s158
    %s161 = sphi 0, %s160
    %s175 = sphi 0, %s161
    %s179 = sphi 0, %s179
    %s181 = sphi 0, %s179
    %s182 = sphi 0, %s181
    %s196 = sphi 0, %s182
    %s200 = sphi 0, %s200
    %s202 = sphi 0, %s200
    %s203 = sphi 0, %s202
    %s217 = sphi 0, %s203
    %s221 = sphi 0, %s221
    %s223 = sphi 0, %s221
    %s224 = sphi 0, %s223
    %s238 = sphi 0, %s224
    %s242 = sphi 0, %s242
    %s244 = sphi 0, %s242
    %s245 = sphi 0, %s244
    %s259 = sphi 0, %s245
    %s263 = sphi 0, %s263
    %s265 = sphi 0, %s263
    %s266 = sphi 0, %s265
    %s280 = sphi 0, %s266
    %s284 = sphi 0, %s284
    %s286 = sphi 0, %s284
    %s287 = sphi 0, %s286
    %s301 = sphi 0, %s287
    %s307 = sphi 0, %s309
    %s310 = sphi 0, %s307
    %s311 = sphi 0, %s310
    %s327 = sphi 0, %s311
  $region4: #{h_feature_process.1} parent=0 // loop_header_branch
    %22 = sbr.rel (%p20) target = $region8
  $region5: #{h_feature_process.1} parent=0 // loop_body
    %s24 = ssub.s32 %s19, 1
    %s25 = ssub.s32 %s19, 2
    %s26 = sadd.s32 %s19, 1
    %s27 = ssub.s32 %s19, %s26
    %p28 = scmp.eq.s32.totalorder %s27, 0
    %s30 = sadd.s32 %s29, 1
    %s31 = scalar_select %p28, %s29, %s30
    %p34 = pneg %p28
    %p35 = scmp.eq.s32.totalorder %s19, 1
    %p36 = por %p34, %p35
    %p37 = scmp.ne.s32.totalorder %s29, %s32
    %p38 = scmp.eq.s32.totalorder %s19, 0
    %p39 = por %p37, %p38
    %p40 = scmp.ne.s32.totalorder %s29, %s32
    %p41 = scmp.eq.s32.totalorder %s24, 1
    %p42 = por %p40, %p41
    %p43 = scmp.ne.s32.totalorder %s32, %s33
    %p44 = scmp.eq.s32.totalorder %s24, 0
    %p45 = por %p43, %p44
    %p46 = scmp.ne.s32.totalorder %s32, %s33
    %p47 = scmp.eq.s32.totalorder %s25, 1
    %p48 = por %p46, %p47
    %p50 = scmp.ne.s32.totalorder %s33, %s49
    %p51 = scmp.eq.s32.totalorder %s25, 0
    %p52 = por %p50, %p51
    %s54 = sadd.s32 %s53, 1
    %p57 = scmp.eq.s32.totalorder %s19, 1
    %p58 = scmp.ne.s32.totalorder %s53, %s55
    %p59 = scmp.eq.s32.totalorder %s19, 0
    %p60 = por %p58, %p59
    %p61 = scmp.ne.s32.totalorder %s53, %s55
    %p62 = scmp.eq.s32.totalorder %s24, 1
    %p63 = por %p61, %p62
    %p64 = scmp.ne.s32.totalorder %s55, %s56
    %p65 = scmp.eq.s32.totalorder %s24, 0
    %p66 = por %p64, %p65
    %p67 = scmp.ne.s32.totalorder %s55, %s56
    %p68 = scmp.eq.s32.totalorder %s25, 1
    %p69 = por %p67, %p68
    %p71 = scmp.ne.s32.totalorder %s56, %s70
    %p72 = scmp.eq.s32.totalorder %s25, 0
    %p73 = por %p71, %p72
    %s75 = sadd.s32 %s74, 1
    %p78 = scmp.eq.s32.totalorder %s19, 1
    %p79 = scmp.ne.s32.totalorder %s74, %s76
    %p80 = scmp.eq.s32.totalorder %s19, 0
    %p81 = por %p79, %p80
    %p82 = scmp.ne.s32.totalorder %s74, %s76
    %p83 = scmp.eq.s32.totalorder %s24, 1
    %p84 = por %p82, %p83
    %p85 = scmp.ne.s32.totalorder %s76, %s77
    %p86 = scmp.eq.s32.totalorder %s24, 0
    %p87 = por %p85, %p86
    %p88 = scmp.ne.s32.totalorder %s76, %s77
    %p89 = scmp.eq.s32.totalorder %s25, 1
    %p90 = por %p88, %p89
    %p92 = scmp.ne.s32.totalorder %s77, %s91
    %p93 = scmp.eq.s32.totalorder %s25, 0
    %p94 = por %p92, %p93
    %s96 = sadd.s32 %s95, 1
    %p99 = scmp.eq.s32.totalorder %s19, 1
    %p100 = scmp.ne.s32.totalorder %s95, %s97
    %p101 = scmp.eq.s32.totalorder %s19, 0
    %p102 = por %p100, %p101
    %p103 = scmp.ne.s32.totalorder %s95, %s97
    %p104 = scmp.eq.s32.totalorder %s24, 1
    %p105 = por %p103, %p104
    %p106 = scmp.ne.s32.totalorder %s97, %s98
    %p107 = scmp.eq.s32.totalorder %s24, 0
    %p108 = por %p106, %p107
    %p109 = scmp.ne.s32.totalorder %s97, %s98
    %p110 = scmp.eq.s32.totalorder %s25, 1
    %p111 = por %p109, %p110
    %p113 = scmp.ne.s32.totalorder %s98, %s112
    %p114 = scmp.eq.s32.totalorder %s25, 0
    %p115 = por %p113, %p114
    %s117 = sadd.s32 %s116, 1
    %p120 = scmp.eq.s32.totalorder %s19, 1
    %p121 = scmp.ne.s32.totalorder %s116, %s118
    %p122 = scmp.eq.s32.totalorder %s19, 0
    %p123 = por %p121, %p122
    %p124 = scmp.ne.s32.totalorder %s116, %s118
    %p125 = scmp.eq.s32.totalorder %s24, 1
    %p126 = por %p124, %p125
    %p127 = scmp.ne.s32.totalorder %s118, %s119
    %p128 = scmp.eq.s32.totalorder %s24, 0
    %p129 = por %p127, %p128
    %p130 = scmp.ne.s32.totalorder %s118, %s119
    %p131 = scmp.eq.s32.totalorder %s25, 1
    %p132 = por %p130, %p131
    %p134 = scmp.ne.s32.totalorder %s119, %s133
    %p135 = scmp.eq.s32.totalorder %s25, 0
    %p136 = por %p134, %p135
    %s138 = sadd.s32 %s137, 1
    %p141 = scmp.eq.s32.totalorder %s19, 1
    %p142 = scmp.ne.s32.totalorder %s137, %s139
    %p143 = scmp.eq.s32.totalorder %s19, 0
    %p144 = por %p142, %p143
    %p145 = scmp.ne.s32.totalorder %s137, %s139
    %p146 = scmp.eq.s32.totalorder %s24, 1
    %p147 = por %p145, %p146
    %p148 = scmp.ne.s32.totalorder %s139, %s140
    %p149 = scmp.eq.s32.totalorder %s24, 0
    %p150 = por %p148, %p149
    %p151 = scmp.ne.s32.totalorder %s139, %s140
    %p152 = scmp.eq.s32.totalorder %s25, 1
    %p153 = por %p151, %p152
    %p155 = scmp.ne.s32.totalorder %s140, %s154
    %p156 = scmp.eq.s32.totalorder %s25, 0
    %p157 = por %p155, %p156
    %s159 = sadd.s32 %s158, 1
    %p162 = scmp.eq.s32.totalorder %s19, 1
    %p163 = scmp.ne.s32.totalorder %s158, %s160
    %p164 = scmp.eq.s32.totalorder %s19, 0
    %p165 = por %p163, %p164
    %p166 = scmp.ne.s32.totalorder %s158, %s160
    %p167 = scmp.eq.s32.totalorder %s24, 1
    %p168 = por %p166, %p167
    %p169 = scmp.ne.s32.totalorder %s160, %s161
    %p170 = scmp.eq.s32.totalorder %s24, 0
    %p171 = por %p169, %p170
    %p172 = scmp.ne.s32.totalorder %s160, %s161
    %p173 = scmp.eq.s32.totalorder %s25, 1
    %p174 = por %p172, %p173
    %p176 = scmp.ne.s32.totalorder %s161, %s175
    %p177 = scmp.eq.s32.totalorder %s25, 0
    %p178 = por %p176, %p177
    %s180 = sadd.s32 %s179, 1
    %p183 = scmp.eq.s32.totalorder %s19, 1
    %p184 = scmp.ne.s32.totalorder %s179, %s181
    %p185 = scmp.eq.s32.totalorder %s19, 0
    %p186 = por %p184, %p185
    %p187 = scmp.ne.s32.totalorder %s179, %s181
    %p188 = scmp.eq.s32.totalorder %s24, 1
    %p189 = por %p187, %p188
    %p190 = scmp.ne.s32.totalorder %s181, %s182
    %p191 = scmp.eq.s32.totalorder %s24, 0
    %p192 = por %p190, %p191
    %p193 = scmp.ne.s32.totalorder %s181, %s182
    %p194 = scmp.eq.s32.totalorder %s25, 1
    %p195 = por %p193, %p194
    %p197 = scmp.ne.s32.totalorder %s182, %s196
    %p198 = scmp.eq.s32.totalorder %s25, 0
    %p199 = por %p197, %p198
    %s201 = sadd.s32 %s200, 1
    %p204 = scmp.eq.s32.totalorder %s19, 1
    %p205 = scmp.ne.s32.totalorder %s200, %s202
    %p206 = scmp.eq.s32.totalorder %s19, 0
    %p207 = por %p205, %p206
    %p208 = scmp.ne.s32.totalorder %s200, %s202
    %p209 = scmp.eq.s32.totalorder %s24, 1
    %p210 = por %p208, %p209
    %p211 = scmp.ne.s32.totalorder %s202, %s203
    %p212 = scmp.eq.s32.totalorder %s24, 0
    %p213 = por %p211, %p212
    %p214 = scmp.ne.s32.totalorder %s202, %s203
    %p215 = scmp.eq.s32.totalorder %s25, 1
    %p216 = por %p214, %p215
    %p218 = scmp.ne.s32.totalorder %s203, %s217
    %p219 = scmp.eq.s32.totalorder %s25, 0
    %p220 = por %p218, %p219
    %s222 = sadd.s32 %s221, 1
    %p225 = scmp.eq.s32.totalorder %s19, 1
    %p226 = scmp.ne.s32.totalorder %s221, %s223
    %p227 = scmp.eq.s32.totalorder %s19, 0
    %p228 = por %p226, %p227
    %p229 = scmp.ne.s32.totalorder %s221, %s223
    %p230 = scmp.eq.s32.totalorder %s24, 1
    %p231 = por %p229, %p230
    %p232 = scmp.ne.s32.totalorder %s223, %s224
    %p233 = scmp.eq.s32.totalorder %s24, 0
    %p234 = por %p232, %p233
    %p235 = scmp.ne.s32.totalorder %s223, %s224
    %p236 = scmp.eq.s32.totalorder %s25, 1
    %p237 = por %p235, %p236
    %p239 = scmp.ne.s32.totalorder %s224, %s238
    %p240 = scmp.eq.s32.totalorder %s25, 0
    %p241 = por %p239, %p240
    %s243 = sadd.s32 %s242, 1
    %p246 = scmp.eq.s32.totalorder %s19, 1
    %p247 = scmp.ne.s32.totalorder %s242, %s244
    %p248 = scmp.eq.s32.totalorder %s19, 0
    %p249 = por %p247, %p248
    %p250 = scmp.ne.s32.totalorder %s242, %s244
    %p251 = scmp.eq.s32.totalorder %s24, 1
    %p252 = por %p250, %p251
    %p253 = scmp.ne.s32.totalorder %s244, %s245
    %p254 = scmp.eq.s32.totalorder %s24, 0
    %p255 = por %p253, %p254
    %p256 = scmp.ne.s32.totalorder %s244, %s245
    %p257 = scmp.eq.s32.totalorder %s25, 1
    %p258 = por %p256, %p257
    %p260 = scmp.ne.s32.totalorder %s245, %s259
    %p261 = scmp.eq.s32.totalorder %s25, 0
    %p262 = por %p260, %p261
    %s264 = sadd.s32 %s263, 1
    %p267 = scmp.eq.s32.totalorder %s19, 1
    %p268 = scmp.ne.s32.totalorder %s263, %s265
    %p269 = scmp.eq.s32.totalorder %s19, 0
    %p270 = por %p268, %p269
    %p271 = scmp.ne.s32.totalorder %s263, %s265
    %p272 = scmp.eq.s32.totalorder %s24, 1
    %p273 = por %p271, %p272
    %p274 = scmp.ne.s32.totalorder %s265, %s266
    %p275 = scmp.eq.s32.totalorder %s24, 0
    %p276 = por %p274, %p275
    %p277 = scmp.ne.s32.totalorder %s265, %s266
    %p278 = scmp.eq.s32.totalorder %s25, 1
    %p279 = por %p277, %p278
    %p281 = scmp.ne.s32.totalorder %s266, %s280
    %p282 = scmp.eq.s32.totalorder %s25, 0
    %p283 = por %p281, %p282
    %s285 = sadd.s32 %s284, 1
    %p288 = scmp.eq.s32.totalorder %s19, 1
    %p289 = scmp.ne.s32.totalorder %s284, %s286
    %p290 = scmp.eq.s32.totalorder %s19, 0
    %p291 = por %p289, %p290
    %p292 = scmp.ne.s32.totalorder %s284, %s286
    %p293 = scmp.eq.s32.totalorder %s24, 1
    %p294 = por %p292, %p293
    %p295 = scmp.ne.s32.totalorder %s286, %s287
    %p296 = scmp.eq.s32.totalorder %s24, 0
    %p297 = por %p295, %p296
    %p298 = scmp.ne.s32.totalorder %s286, %s287
    %p299 = scmp.eq.s32.totalorder %s25, 1
    %p300 = por %p298, %p299
    %p302 = scmp.ne.s32.totalorder %s287, %s301
    %p303 = scmp.eq.s32.totalorder %s25, 0
    %p304 = por %p302, %p303
    %s305 = ssub.s32 %s19, %s26
    %p306 = scmp.eq.s32.totalorder %s305, 0
    %s308 = sadd.s32 %s307, 1
    %s309 = scalar_select %p306, %s307, %s308
    %p312 = pneg %p306
    %p313 = scmp.eq.s32.totalorder %s19, 1
    %p314 = por %p312, %p313
    %p315 = scmp.ne.s32.totalorder %s307, %s310
    %p316 = scmp.eq.s32.totalorder %s19, 0
    %p317 = por %p315, %p316
    %p318 = scmp.ne.s32.totalorder %s307, %s310
    %p319 = scmp.eq.s32.totalorder %s24, 1
    %p320 = por %p318, %p319
    %p321 = scmp.ne.s32.totalorder %s310, %s311
    %p322 = scmp.eq.s32.totalorder %s24, 0
    %p323 = por %p321, %p322
    %p324 = scmp.ne.s32.totalorder %s310, %s311
    %p325 = scmp.eq.s32.totalorder %s25, 1
    %p326 = por %p324, %p325
    %p328 = scmp.ne.s32.totalorder %s311, %s327
    %p329 = scmp.eq.s32.totalorder %s25, 0
    %p330 = por %p328, %p329
    %p331 = scmp.le.s32.totalorder 1, %s19
    %p332 = scmp.lt.s32.totalorder %s19, 3
    %p333 = pnand %p331, %p332
    %p334 = pneg %p333
    // Predicated region
    $region9: #{h_feature_process.1} parent=5 // pred_check
      _
    $region10: #{h_feature_process.1} parent=5 // pred_check_branch
      %336 = sbr.rel (%p333) target = $region12
    $region11: #{h_feature_process.1} parent=5 // pred_region
      %s337 = ssub.s32 %s19, 1
      // Predicated region
      $region13: #{h_feature_process.1} parent=11 // pred_check
        %p338 = pneg %p66
      $region14: #{h_feature_process.1} parent=11 // pred_check_branch
        %340 = sbr.rel (%p338) target = $region16
      $region15: #{h_feature_process.1} parent=11 // pred_region
        _
      $region16: #{h_feature_process.1} parent=11 // pred_fallthru
        _
      // Predicated region
      $region17: #{h_feature_process.1} parent=11 // pred_check
        %p341 = pneg %p87
      $region18: #{h_feature_process.1} parent=11 // pred_check_branch
        %343 = sbr.rel (%p341) target = $region20
      $region19: #{h_feature_process.1} parent=11 // pred_region
        _
      $region20: #{h_feature_process.1} parent=11 // pred_fallthru
        _
      // Predicated region
      $region21: #{h_feature_process.1} parent=11 // pred_check
        %p344 = pneg %p108
      $region22: #{h_feature_process.1} parent=11 // pred_check_branch
        %346 = sbr.rel (%p344) target = $region24
      $region23: #{h_feature_process.1} parent=11 // pred_region
        _
      $region24: #{h_feature_process.1} parent=11 // pred_fallthru
        _
      // Predicated region
      $region25: #{h_feature_process.1} parent=11 // pred_check
        %p347 = pneg %p129
      $region26: #{h_feature_process.1} parent=11 // pred_check_branch
        %349 = sbr.rel (%p347) target = $region28
      $region27: #{h_feature_process.1} parent=11 // pred_region
        _
      $region28: #{h_feature_process.1} parent=11 // pred_fallthru
        _
      // Predicated region
      $region29: #{h_feature_process.1} parent=11 // pred_check
        %p350 = pneg %p150
      $region30: #{h_feature_process.1} parent=11 // pred_check_branch
        %352 = sbr.rel (%p350) target = $region32
      $region31: #{h_feature_process.1} parent=11 // pred_region
        _
      $region32: #{h_feature_process.1} parent=11 // pred_fallthru
        _
      // Predicated region
      $region33: #{h_feature_process.1} parent=11 // pred_check
        %p353 = pneg %p171
      $region34: #{h_feature_process.1} parent=11 // pred_check_branch
        %355 = sbr.rel (%p353) target = $region36
      $region35: #{h_feature_process.1} parent=11 // pred_region
        _
      $region36: #{h_feature_process.1} parent=11 // pred_fallthru
        _
      // Predicated region
      $region37: #{h_feature_process.1} parent=11 // pred_check
        %p356 = pneg %p192
      $region38: #{h_feature_process.1} parent=11 // pred_check_branch
        %358 = sbr.rel (%p356) target = $region40
      $region39: #{h_feature_process.1} parent=11 // pred_region
        _
      $region40: #{h_feature_process.1} parent=11 // pred_fallthru
        _
      // Predicated region
      $region41: #{h_feature_process.1} parent=11 // pred_check
        %p359 = pneg %p213
      $region42: #{h_feature_process.1} parent=11 // pred_check_branch
        %361 = sbr.rel (%p359) target = $region44
      $region43: #{h_feature_process.1} parent=11 // pred_region
        _
      $region44: #{h_feature_process.1} parent=11 // pred_fallthru
        _
      // Predicated region
      $region45: #{h_feature_process.1} parent=11 // pred_check
        %p362 = pneg %p234
      $region46: #{h_feature_process.1} parent=11 // pred_check_branch
        %364 = sbr.rel (%p362) target = $region48
      $region47: #{h_feature_process.1} parent=11 // pred_region
        _
      $region48: #{h_feature_process.1} parent=11 // pred_fallthru
        _
      // Predicated region
      $region49: #{h_feature_process.1} parent=11 // pred_check
        %p365 = pneg %p255
      $region50: #{h_feature_process.1} parent=11 // pred_check_branch
        %367 = sbr.rel (%p365) target = $region52
      $region51: #{h_feature_process.1} parent=11 // pred_region
        _
      $region52: #{h_feature_process.1} parent=11 // pred_fallthru
        _
      // Predicated region
      $region53: #{h_feature_process.1} parent=11 // pred_check
        %p368 = pneg %p276
      $region54: #{h_feature_process.1} parent=11 // pred_check_branch
        %370 = sbr.rel (%p368) target = $region56
      $region55: #{h_feature_process.1} parent=11 // pred_region
        _
      $region56: #{h_feature_process.1} parent=11 // pred_fallthru
        _
      // Predicated region
      $region57: #{h_feature_process.1} parent=11 // pred_check
        %p371 = pneg %p297
      $region58: #{h_feature_process.1} parent=11 // pred_check_branch
        %373 = sbr.rel (%p371) target = $region60
      $region59: #{h_feature_process.1} parent=11 // pred_region
        _
      $region60: #{h_feature_process.1} parent=11 // pred_fallthru
        _
    $region12: #{h_feature_process.1} parent=5 // pred_fallthru
      _
    %p374 = scmp.lt.s32.totalorder %s19, 2
    // Predicated region
    $region61: #{h_feature_process.1} parent=5 // pred_check
      %p375 = pneg %p374
    $region62: #{h_feature_process.1} parent=5 // pred_check_branch
      %377 = sbr.rel (%p375) target = $region64
    $region63: #{h_feature_process.1} parent=5 // pred_region
      // Predicated region
      $region65: #{h_feature_process.1} parent=63 // pred_check
        %p378 = pneg %p39
      $region66: #{h_feature_process.1} parent=63 // pred_check_branch
        %380 = sbr.rel (%p378) target = $region68
      $region67: #{h_feature_process.1} parent=63 // pred_region
        %p381 = scmp.lt.s32.totalorder %s19, 1
        %s382 = scalar_select %p381, %s19, 1
        %s383 = smul.addr %s382, 2
        %s384 = smul.addr %s383, 8
        %s385 = scalar_lea.vmem %s0, %s384
      $region68: #{h_feature_process.1} parent=63 // pred_fallthru
        _
    $region64: #{h_feature_process.1} parent=5 // pred_fallthru
      _
    %p386 = scmp.le.s32.totalorder 1, %s19
    %p387 = scmp.lt.s32.totalorder %s19, 3
    %p388 = pnand %p386, %p387
    %p389 = pneg %p388
    // Predicated region
    $region69: #{h_feature_process.1} parent=5 // pred_check
      _
    $region70: #{h_feature_process.1} parent=5 // pred_check_branch
      %391 = sbr.rel (%p388) target = $region72
    $region71: #{h_feature_process.1} parent=5 // pred_region
      %s392 = ssub.s32 %s19, 1
      %p393 = scmp.lt.s32.totalorder %s24, 1
      %s394 = scalar_select %p393, %s24, 1
      %s395 = smul.addr %s394, 2
      %s396 = smul.addr %s395, 8
      %s397 = scalar_lea.vmem %s0, %s396
      %p398 = pneg %p45
      %p399 = pneg %p42
      %p400 = pneg %p66
      %p401 = pneg %p63
      %p402 = pneg %p87
      %p403 = pneg %p84
      %p404 = pneg %p108
      %p405 = pneg %p105
      %p406 = pneg %p129
      %p407 = pneg %p126
      %p408 = pneg %p150
      %p409 = pneg %p147
      %p410 = pneg %p171
      %p411 = pneg %p168
      %p412 = pneg %p192
      %p413 = pneg %p189
      %p414 = pneg %p213
      %p415 = pneg %p210
      %p416 = pneg %p234
      %p417 = pneg %p231
      %p418 = pneg %p255
      %p419 = pneg %p252
      %p420 = pneg %p276
      %p421 = pneg %p273
      %p422 = pneg %p297
      %p423 = pneg %p294
      %p424 = pneg %p323
      %p425 = pneg %p320
      %p426 = scmp.lt.s32.totalorder %s24, 1
      %s427 = scalar_select %p426, %s24, 1
      %s428 = smul.addr %s427, 2
      %s429 = smul.addr %s428, 8
      %s430 = scalar_lea.vmem %s13, %s429
      %p431 = scmp.lt.s32.totalorder %s24, 1
      %s432 = scalar_select %p431, %s24, 1
      %s433 = smul.addr %s432, 2
      %s434 = smul.addr %s433, 8
      %s435 = scalar_lea.vmem %s0, %s434
      %p436 = scmp.lt.s32.totalorder %s24, 1
      %s437 = scalar_select %p436, %s24, 1
      %s438 = smul.addr %s437, 2
      %s439 = smul.addr %s438, 8
      %s440 = scalar_lea.vmem %s13, %s439
      %v441 = vld [vmem:[%s1] ss:$2 sm:$0x3]
      %s442 = scalar_lea.vmem %s1, 1
      %v443 = vld [vmem:[%s442] ss:$2 sm:$0x3]
      %v444 = vlaneseq
      %v445 = vshrl.u32 %v444, 7
      %vm446 = vcmp.lt.s32.totalorder %v445, 4
      %v447 = vsel %vm446, 1, 0
      %v448 = vcvt.s32.f32 %v447
      %v449 = vld [vmem:[%s435] sm:$0xff]
      %v450 = vld [vmem:[%s435 + $0x8] sm:$0xff]
      %v451 = vld [vmem:[%s2] sm:$0xff]
      %v452 = vld [vmem:[%s2 + $0x8] sm:$0xff]
      %v453 = vld [vmem:[%s3] sm:$0xff]
      %v454 = vld [vmem:[%s3 + $0x8] sm:$0xff]
      %v456 = vlaneseq
      %v457 = vshrl.u32 %v456, 7
      %v458 = vsub.s32 0, %v457
      %v459 = vrot.slane %v441, %v458
      %v460 = vlaneseq
      %v461 = vshrl.u32 %v460, 7
      %v462 = vsub.s32 1, %v461
      %v463 = vrot.slane %v441, %v462
      %464 = vrot.lane.b32.xlu0 %v459, 111
      %v465 = vpop.permute.xlu0 %464
      %466 = vrot.lane.b32.xlu0 %v463, 111
      %v467 = vpop.permute.xlu0 %466
      %vm468 = vcmask 908288
      %v469 = vsel %vm468, %v465, %v467
      %v473 = vmul.f32 %v465, 0.0
      %v474 = vmul.f32 %v449, %v469
      %v475 = vmul.f32 %v450, %v467
      %v477 = vlaneseq
      %v478 = vshrl.u32 %v477, 7
      %v479 = vsub.s32 0, %v478
      %v480 = vrot.slane %v443, %v479
      %v481 = vlaneseq
      %v482 = vshrl.u32 %v481, 7
      %v483 = vsub.s32 1, %v482
      %v484 = vrot.slane %v443, %v483
      %485 = vrot.lane.b32.xlu0 %v480, 113
      %v486 = vpop.permute.xlu0 %485
      %487 = vrot.lane.b32.xlu0 %v484, 113
      %v488 = vpop.permute.xlu0 %487
      %vm489 = vcmask 924672
      %v490 = vsel %vm489, %v486, %v488
      %v494 = vmul.f32 %v486, 0.0
      %v495 = vmul.f32 %v449, %v490
      %v496 = vmul.f32 %v450, %v488
      %497 = vrot.lane.b32.xlu0 %v459, 127
      %v498 = vpop.permute.xlu0 %497
      %499 = vrot.lane.b32.xlu0 %v463, 127
      %v500 = vpop.permute.xlu0 %499
      %vm501 = vcmask 1039360
      %v502 = vsel %vm501, %v498, %v500
      %v506 = vmul.f32 %v498, 0.0
      %v507 = vmul.f32 %v449, %v502
      %v508 = vmul.f32 %v450, %v500
      %509 = vrot.lane.b32.xlu0 %v480, 1
      %v510 = vpop.permute.xlu0 %509
      %511 = vrot.lane.b32.xlu0 %v484, 1
      %v512 = vpop.permute.xlu0 %511
      %vm513 = vcmask 7168
      %v514 = vsel %vm513, %v510, %v512
      %v518 = vmul.f32 %v449, %v510
      %v519 = vmul.f32 %v450, %v514
      %v520 = vmul.f32 %v512, 0.0
      %521 = vrot.lane.b32.xlu0 %v459, 15
      %v522 = vpop.permute.xlu0 %521
      %523 = vrot.lane.b32.xlu0 %v463, 15
      %v524 = vpop.permute.xlu0 %523
      %vm525 = vcmask 121856
      %v526 = vsel %vm525, %v522, %v524
      %v530 = vmul.f32 %v449, %v522
      %v531 = vmul.f32 %v450, %v526
      %v532 = vmul.f32 %v524, 0.0
      %533 = vrot.lane.b32.xlu0 %v480, 17
      %v534 = vpop.permute.xlu0 %533
      %535 = vrot.lane.b32.xlu0 %v484, 17
      %v536 = vpop.permute.xlu0 %535
      %vm537 = vcmask 138240
      %v538 = vsel %vm537, %v534, %v536
      %v542 = vmul.f32 %v449, %v534
      %v543 = vmul.f32 %v450, %v538
      %v544 = vmul.f32 %v536, 0.0
      %548 = vrot.lane.b32.xlu0 0.0, 127
      %v549 = vpop.permute.xlu0 %548
      %550 = vrot.lane.b32.xlu0 %v449, 127
      %v551 = vpop.permute.xlu0 %550
      %552 = vrot.lane.b32.xlu0 %v450, 127
      %v553 = vpop.permute.xlu0 %552
      %v554 = vsel %vm501, %v549, %v551
      %v555 = vsel %vm501, %v551, %v553
      %559 = vrot.lane.b32.xlu0 %v494, 126
      %v560 = vpop.permute.xlu0 %559
      %561 = vrot.lane.b32.xlu0 %v495, 126
      %v562 = vpop.permute.xlu0 %561
      %563 = vrot.lane.b32.xlu0 %v496, 126
      %v564 = vpop.permute.xlu0 %563
      %vm565 = vcmask 1031168
      %v566 = vsel %vm565, %v560, %v562
      %v567 = vsel %vm565, %v562, %v564
      %571 = vrot.lane.b32.xlu0 %v506, 112
      %v572 = vpop.permute.xlu0 %571
      %573 = vrot.lane.b32.xlu0 %v507, 112
      %v574 = vpop.permute.xlu0 %573
      %575 = vrot.lane.b32.xlu0 %v508, 112
      %v576 = vpop.permute.xlu0 %575
      %vm577 = vcmask 916480
      %v578 = vsel %vm577, %v572, %v574
      %v579 = vsel %vm577, %v574, %v576
      %580 = vrot.lane.b32.xlu0 %v449, 111
      %v581 = vpop.permute.xlu0 %580
      %582 = vrot.lane.b32.xlu0 %v450, 111
      %v583 = vpop.permute.xlu0 %582
      %v584 = vsel %vm468, %v581, %v583
      %588 = vrot.lane.b32.xlu0 %v518, 110
      %v589 = vpop.permute.xlu0 %588
      %590 = vrot.lane.b32.xlu0 %v519, 110
      %v591 = vpop.permute.xlu0 %590
      %592 = vrot.lane.b32.xlu0 %v520, 110
      %v593 = vpop.permute.xlu0 %592
      %vm594 = vcmask 900096
      %v595 = vsel %vm594, %v589, %v591
      %v596 = vsel %vm594, %v591, %v593
      %600 = vrot.lane.b32.xlu0 %v530, 96
      %v601 = vpop.permute.xlu0 %600
      %602 = vrot.lane.b32.xlu0 %v531, 96
      %v603 = vpop.permute.xlu0 %602
      %604 = vrot.lane.b32.xlu0 %v532, 96
      %v605 = vpop.permute.xlu0 %604
      %vm606 = vcmask 785408
      %v607 = vsel %vm606, %v601, %v603
      %v608 = vsel %vm606, %v603, %v605
      %609 = vrot.lane.b32.xlu0 %v449, 95
      %v610 = vpop.permute.xlu0 %609
      %611 = vrot.lane.b32.xlu0 %v450, 95
      %v612 = vpop.permute.xlu0 %611
      %613 = vrot.lane.b32.xlu0 0.0, 95
      %v614 = vpop.permute.xlu0 %613
      %vm615 = vcmask 777216
      %v616 = vsel %vm615, %v610, %v612
      %v617 = vsel %vm615, %v612, %v614
      %621 = vrot.lane.b32.xlu0 %v542, 94
      %v622 = vpop.permute.xlu0 %621
      %623 = vrot.lane.b32.xlu0 %v543, 94
      %v624 = vpop.permute.xlu0 %623
      %625 = vrot.lane.b32.xlu0 %v544, 94
      %v626 = vpop.permute.xlu0 %625
      %vm627 = vcmask 769024
      %v628 = vsel %vm627, %v622, %v624
      %v629 = vsel %vm627, %v624, %v626
      %631 = vset.pattern.permute.xlu0 0
      %632 = vperm.xlu0 %631, %v453
      %v633 = vpop.permute.xlu0 %632
      %636 = vset.pattern.permute.xlu0 0
      %637 = vperm.xlu0 %636, %v454
      %v638 = vpop.permute.xlu0 %637
      %643 = vrot.lane.b32.xlu0 %v473, 17
      %v644 = vpop.permute.xlu0 %643
      %645 = vrot.lane.b32.xlu0 %v474, 17
      %v646 = vpop.permute.xlu0 %645
      %647 = vrot.lane.b32.xlu0 %v475, 17
      %v648 = vpop.permute.xlu0 %647
      %649 = vrot.lane.b32.xlu0 %v554, 17
      %v650 = vpop.permute.xlu0 %649
      %651 = vrot.lane.b32.xlu0 %v555, 17
      %v652 = vpop.permute.xlu0 %651
      %653 = vrot.lane.b32.xlu0 %v553, 17
      %v654 = vpop.permute.xlu0 %653
      %655 = vrot.lane.b32.xlu0 %v566, 17
      %v656 = vpop.permute.xlu0 %655
      %657 = vrot.lane.b32.xlu0 %v567, 17
      %v658 = vpop.permute.xlu0 %657
      %659 = vrot.lane.b32.xlu0 %v564, 17
      %v660 = vpop.permute.xlu0 %659
      %661 = vrot.lane.b32.xlu0 %v578, 17
      %v662 = vpop.permute.xlu0 %661
      %663 = vrot.lane.b32.xlu0 %v579, 17
      %v664 = vpop.permute.xlu0 %663
      %665 = vrot.lane.b32.xlu0 %v576, 17
      %v666 = vpop.permute.xlu0 %665
      %667 = vrot.lane.b32.xlu0 %v581, 17
      %v668 = vpop.permute.xlu0 %667
      %669 = vrot.lane.b32.xlu0 %v584, 17
      %v670 = vpop.permute.xlu0 %669
      %671 = vrot.lane.b32.xlu0 %v583, 17
      %v672 = vpop.permute.xlu0 %671
      %673 = vrot.lane.b32.xlu0 %v589, 17
      %v674 = vpop.permute.xlu0 %673
      %675 = vrot.lane.b32.xlu0 %v595, 17
      %v676 = vpop.permute.xlu0 %675
      %677 = vrot.lane.b32.xlu0 %v596, 17
      %v678 = vpop.permute.xlu0 %677
      %679 = vrot.lane.b32.xlu0 %v601, 17
      %v680 = vpop.permute.xlu0 %679
      %681 = vrot.lane.b32.xlu0 %v607, 17
      %v682 = vpop.permute.xlu0 %681
      %683 = vrot.lane.b32.xlu0 %v608, 17
      %v684 = vpop.permute.xlu0 %683
      %685 = vrot.lane.b32.xlu0 %v610, 17
      %v686 = vpop.permute.xlu0 %685
      %687 = vrot.lane.b32.xlu0 %v616, 17
      %v688 = vpop.permute.xlu0 %687
      %689 = vrot.lane.b32.xlu0 %v617, 17
      %v690 = vpop.permute.xlu0 %689
      %691 = vrot.lane.b32.xlu0 %v622, 17
      %v692 = vpop.permute.xlu0 %691
      %693 = vrot.lane.b32.xlu0 %v628, 17
      %v694 = vpop.permute.xlu0 %693
      %695 = vrot.lane.b32.xlu0 %v629, 17
      %v696 = vpop.permute.xlu0 %695
      %v697 = vsel %vm537, %v644, %v646
      %v698 = vsel %vm537, %v646, %v648
      %v699 = vsel %vm537, %v650, %v652
      %v700 = vsel %vm537, %v652, %v654
      %v701 = vsel %vm537, %v656, %v658
      %v702 = vsel %vm537, %v658, %v660
      %v703 = vsel %vm537, %v662, %v664
      %v704 = vsel %vm537, %v664, %v666
      %v705 = vsel %vm537, %v668, %v670
      %v706 = vsel %vm537, %v670, %v672
      %v707 = vsel %vm537, %v674, %v676
      %v708 = vsel %vm537, %v676, %v678
      %v709 = vsel %vm537, %v680, %v682
      %v710 = vsel %vm537, %v682, %v684
      %v711 = vsel %vm537, %v686, %v688
      %v712 = vsel %vm537, %v688, %v690
      %v713 = vsel %vm537, %v692, %v694
      %v714 = vsel %vm537, %v694, %v696
      %vm733 = vcmask 588800
      %v735 = vsel %vm733, %v451, 0
      %v738 = vsel %vm733, %v452, 0
      %740 = vmatprep.subr.mxu0 %v698
      %741 = vmatpush1.msra.mxu0 %v697
      %742 = vmatprep.subr.mxu0 %v700
      %743 = vmatpush1.msra.mxu0 %v699
      %744 = vmatprep.subr.mxu0 %v702
      %745 = vmatpush1.msra.mxu0 %v701
      %746 = vmatprep.subr.mxu0 %v704
      %747 = vmatpush1.msra.mxu0 %v703
      %748 = vmatprep.subr.mxu0 %v706
      %749 = vmatpush1.msra.mxu0 %v705
      %750 = vmatprep.subr.mxu0 %v708
      %751 = vmatpush1.msra.mxu0 %v707
      %752 = vmatprep.subr.mxu0 %v710
      %753 = vmatpush1.msra.mxu0 %v709
      %754 = vmatprep.subr.mxu0 %v712
      %755 = vmatpush1.msra.mxu0 %v711
      %756 = vmatprep.subr.mxu0 %v714
      %757 = vmatpush1.msra.mxu0 %v713
      %758 = vmatprep.subr.mxu0 0.0
      %759 = vmatpush1.msra.mxu0 0.0
      %760 = vmatprep.subr.mxu0 0.0
      %761 = vmatpush1.msra.mxu0 0.0
      %762 = vmatprep.subr.mxu0 0.0
      %763 = vmatpush1.msra.mxu0 0.0
      %764 = vmatprep.subr.mxu0 0.0
      %765 = vmatpush1.msra.mxu0 0.0
      %766 = vmatprep.subr.mxu0 0.0
      %767 = vmatpush1.msra.mxu0 0.0
      %768 = vmatprep.subr.mxu0 0.0
      %769 = vmatpush1.msra.mxu0 0.0
      %770 = vmatprep.subr.mxu0 0.0
      %771 = vmatpush1.msra.mxu0 0.0
      %772 = vmatprep.subr.mxu0 0.0
      %773 = vmatpush1.msra.mxu0 0.0
      %774 = vmatprep.subr.mxu0 0.0
      %775 = vmatpush1.msra.mxu0 0.0
      %776 = vmatprep.subr.mxu0 0.0
      %777 = vmatpush1.msra.mxu0 0.0
      %778 = vmatprep.subr.mxu0 0.0
      %779 = vmatpush1.msra.mxu0 0.0
      %780 = vmatprep.subr.mxu0 0.0
      %781 = vmatpush1.msra.mxu0 0.0
      %782 = vmatprep.subr.mxu0 0.0
      %783 = vmatpush1.msra.mxu0 0.0
      %784 = vmatprep.subr.mxu0 0.0
      %785 = vmatpush1.msra.mxu0 0.0
      %786 = vmatprep.subr.mxu0 0.0
      %787 = vmatpush1.msra.mxu0 0.0
      %788 = vmatprep.subr.mxu0 0.0
      %789 = vmatpush1.msra.mxu0 0.0
      %790 = vmatprep.subr.mxu0 0.0
      %791 = vmatpush1.msra.mxu0 0.0
      %792 = vmatprep.subr.mxu0 0.0
      %793 = vmatpush1.msra.mxu0 0.0
      %794 = vmatprep.subr.mxu0 0.0
      %795 = vmatpush1.msra.mxu0 0.0
      %796 = vmatprep.subr.mxu0 0.0
      %797 = vmatpush1.msra.mxu0 0.0
      %798 = vmatprep.subr.mxu0 0.0
      %799 = vmatpush1.msra.mxu0 0.0
      %800 = vmatprep.subr.mxu0 0.0
      %801 = vmatpush1.msra.mxu0 0.0
      %802 = vmatprep.subr.mxu0 0.0
      %803 = vmatpush1.msra.mxu0 0.0
      %804 = vmatprep.mubr.f32.mxu0 0.0
      %805 = vmatmul.mubr.f32.gmra.mrb[0].mxu0 %v735
      %v806 = vpop.f32.mrb[0].mxu0
      %v807 = vadd.f32 %v633, %v806
      %v808 = vpop.f32.mrb[0].mxu0
      %v809 = vadd.f32 %v633, %v808
      %810 = vmatprep.mubr.f32.mxu0 0.0
      %811 = vmatmul.mubr.f32.gmra.mrb[0].mxu0 %v738
      %v812 = vpop.f32.mrb[0].mxu0
      %v813 = vadd.f32 %v638, %v812
      %v814 = vpop.f32.mrb[0].mxu0
      %v815 = vadd.f32 %v638, %v814
      %816 = vdwg.mxu0
      %v817 = vld [vmem:[%s4] sm:$0xff]
      %v818 = vld [vmem:[%s4 + $0x8] sm:$0xff]
      %vm819 = vcmask 130048
      %v821 = vsel %vm819, %v817, 0
      %v824 = vsel %vm819, %v818, 0
      %826 = vmatprep.subr.mxu0 %v809
      %827 = vmatpush1.msra.mxu0 %v807
      %828 = vmatprep.subr.mxu0 %v815
      %829 = vmatpush1.msra.mxu0 %v813
      %830 = vmatprep.subr.mxu0 0.0
      %831 = vmatpush1.msra.mxu0 0.0
      %832 = vmatprep.subr.mxu0 0.0
      %833 = vmatpush1.msra.mxu0 0.0
      %834 = vmatprep.subr.mxu0 0.0
      %835 = vmatpush1.msra.mxu0 0.0
      %836 = vmatprep.subr.mxu0 0.0
      %837 = vmatpush1.msra.mxu0 0.0
      %838 = vmatprep.subr.mxu0 0.0
      %839 = vmatpush1.msra.mxu0 0.0
      %840 = vmatprep.subr.mxu0 0.0
      %841 = vmatpush1.msra.mxu0 0.0
      %842 = vmatprep.subr.mxu0 0.0
      %843 = vmatpush1.msra.mxu0 0.0
      %844 = vmatprep.subr.mxu0 0.0
      %845 = vmatpush1.msra.mxu0 0.0
      %846 = vmatprep.subr.mxu0 0.0
      %847 = vmatpush1.msra.mxu0 0.0
      %848 = vmatprep.subr.mxu0 0.0
      %849 = vmatpush1.msra.mxu0 0.0
      %850 = vmatprep.subr.mxu0 0.0
      %851 = vmatpush1.msra.mxu0 0.0
      %852 = vmatprep.subr.mxu0 0.0
      %853 = vmatpush1.msra.mxu0 0.0
      %854 = vmatprep.subr.mxu0 0.0
      %855 = vmatpush1.msra.mxu0 0.0
      %856 = vmatprep.subr.mxu0 0.0
      %857 = vmatpush1.msra.mxu0 0.0
      %858 = vmatprep.subr.mxu0 0.0
      %859 = vmatpush1.msra.mxu0 0.0
      %860 = vmatprep.subr.mxu0 0.0
      %861 = vmatpush1.msra.mxu0 0.0
      %862 = vmatprep.subr.mxu0 0.0
      %863 = vmatpush1.msra.mxu0 0.0
      %864 = vmatprep.subr.mxu0 0.0
      %865 = vmatpush1.msra.mxu0 0.0
      %866 = vmatprep.subr.mxu0 0.0
      %867 = vmatpush1.msra.mxu0 0.0
      %868 = vmatprep.subr.mxu0 0.0
      %869 = vmatpush1.msra.mxu0 0.0
      %870 = vmatprep.subr.mxu0 0.0
      %871 = vmatpush1.msra.mxu0 0.0
      %872 = vmatprep.subr.mxu0 0.0
      %873 = vmatpush1.msra.mxu0 0.0
      %874 = vmatprep.subr.mxu0 0.0
      %875 = vmatpush1.msra.mxu0 0.0
      %876 = vmatprep.subr.mxu0 0.0
      %877 = vmatpush1.msra.mxu0 0.0
      %878 = vmatprep.subr.mxu0 0.0
      %879 = vmatpush1.msra.mxu0 0.0
      %880 = vmatprep.subr.mxu0 0.0
      %881 = vmatpush1.msra.mxu0 0.0
      %882 = vmatprep.subr.mxu0 0.0
      %883 = vmatpush1.msra.mxu0 0.0
      %884 = vmatprep.subr.mxu0 0.0
      %885 = vmatpush1.msra.mxu0 0.0
      %886 = vmatprep.subr.mxu0 0.0
      %887 = vmatpush1.msra.mxu0 0.0
      %888 = vmatprep.subr.mxu0 0.0
      %889 = vmatpush1.msra.mxu0 0.0
      %890 = vmatprep.mubr.f32.mxu0 0.0
      %891 = vmatmul.mubr.f32.gmra.mrb[0].mxu0 %v821
      %v892 = vpop.f32.mrb[0].mxu0
      %v893 = vadd.f32 0.0, %v892
      %v894 = vpop.f32.mrb[0].mxu0
      %v895 = vadd.f32 0.0, %v894
      %896 = vmatprep.mubr.f32.mxu0 0.0
      %897 = vmatmul.mubr.f32.gmra.mrb[0].mxu0 %v824
      %v898 = vpop.f32.mrb[0].mxu0
      %v899 = vadd.f32 0.0, %v898
      %v900 = vpop.f32.mrb[0].mxu0
      %v901 = vadd.f32 0.0, %v900
      %902 = vdwg.mxu0
      %v903 = vld [vmem:[%s5] sm:$0xff]
      %v904 = vld [vmem:[%s6] sm:$0xff]
      %v905 = vld [vmem:[%s7] sm:$0xff]
      %v906 = vld [vmem:[%s8] sm:$0xff]
      %v907 = vld [vmem:[%s9] sm:$0xff]
      %v908 = vld [vmem:[%s10] sm:$0xff]
      %v909 = vmul.f32 %v899, %v469
      %v910 = vmul.f32 %v901, %v467
      %v911 = vmul.f32 %v899, %v490
      %v912 = vmul.f32 %v901, %v488
      %v913 = vmul.f32 %v899, %v502
      %v914 = vmul.f32 %v901, %v500
      %v915 = vmul.f32 %v899, %v510
      %v916 = vmul.f32 %v901, %v514
      %v917 = vmul.f32 %v899, %v522
      %v918 = vmul.f32 %v901, %v526
      %v919 = vmul.f32 %v899, %v534
      %v920 = vmul.f32 %v901, %v538
      %923 = vrot.lane.b32.xlu0 %v899, 127
      %v924 = vpop.permute.xlu0 %923
      %925 = vrot.lane.b32.xlu0 %v901, 127
      %v926 = vpop.permute.xlu0 %925
      %v927 = vsel %vm501, %v549, %v924
      %v928 = vsel %vm501, %v924, %v926
      %931 = vrot.lane.b32.xlu0 %v911, 126
      %v932 = vpop.permute.xlu0 %931
      %933 = vrot.lane.b32.xlu0 %v912, 126
      %v934 = vpop.permute.xlu0 %933
      %v935 = vsel %vm565, %v560, %v932
      %v936 = vsel %vm565, %v932, %v934
      %939 = vrot.lane.b32.xlu0 %v913, 112
      %v940 = vpop.permute.xlu0 %939
      %941 = vrot.lane.b32.xlu0 %v914, 112
      %v942 = vpop.permute.xlu0 %941
      %v943 = vsel %vm577, %v572, %v940
      %v944 = vsel %vm577, %v940, %v942
      %945 = vrot.lane.b32.xlu0 %v899, 111
      %v946 = vpop.permute.xlu0 %945
      %947 = vrot.lane.b32.xlu0 %v901, 111
      %v948 = vpop.permute.xlu0 %947
      %v949 = vsel %vm468, %v946, %v948
      %952 = vrot.lane.b32.xlu0 %v915, 110
      %v953 = vpop.permute.xlu0 %952
      %954 = vrot.lane.b32.xlu0 %v916, 110
      %v955 = vpop.permute.xlu0 %954
      %v956 = vsel %vm594, %v953, %v955
      %v957 = vsel %vm594, %v955, %v593
      %960 = vrot.lane.b32.xlu0 %v917, 96
      %v961 = vpop.permute.xlu0 %960
      %962 = vrot.lane.b32.xlu0 %v918, 96
      %v963 = vpop.permute.xlu0 %962
      %v964 = vsel %vm606, %v961, %v963
      %v965 = vsel %vm606, %v963, %v605
      %966 = vrot.lane.b32.xlu0 %v899, 95
      %v967 = vpop.permute.xlu0 %966
      %968 = vrot.lane.b32.xlu0 %v901, 95
      %v969 = vpop.permute.xlu0 %968
      %v970 = vsel %vm615, %v967, %v969
      %v971 = vsel %vm615, %v969, %v614
      %974 = vrot.lane.b32.xlu0 %v919, 94
      %v975 = vpop.permute.xlu0 %974
      %976 = vrot.lane.b32.xlu0 %v920, 94
      %v977 = vpop.permute.xlu0 %976
      %v978 = vsel %vm627, %v975, %v977
      %v979 = vsel %vm627, %v977, %v626
      %981 = vset.pattern.permute.xlu0 0
      %982 = vperm.xlu0 %981, %v904
      %v983 = vpop.permute.xlu0 %982
      %987 = vrot.lane.b32.xlu0 %v909, 17
      %v988 = vpop.permute.xlu0 %987
      %989 = vrot.lane.b32.xlu0 %v910, 17
      %v990 = vpop.permute.xlu0 %989
      %991 = vrot.lane.b32.xlu0 %v927, 17
      %v992 = vpop.permute.xlu0 %991
      %993 = vrot.lane.b32.xlu0 %v928, 17
      %v994 = vpop.permute.xlu0 %993
      %995 = vrot.lane.b32.xlu0 %v926, 17
      %v996 = vpop.permute.xlu0 %995
      %997 = vrot.lane.b32.xlu0 %v935, 17
      %v998 = vpop.permute.xlu0 %997
      %999 = vrot.lane.b32.xlu0 %v936, 17
      %v1000 = vpop.permute.xlu0 %999
      %1001 = vrot.lane.b32.xlu0 %v934, 17
      %v1002 = vpop.permute.xlu0 %1001
      %1003 = vrot.lane.b32.xlu0 %v943, 17
      %v1004 = vpop.permute.xlu0 %1003
      %1005 = vrot.lane.b32.xlu0 %v944, 17
      %v1006 = vpop.permute.xlu0 %1005
      %1007 = vrot.lane.b32.xlu0 %v942, 17
      %v1008 = vpop.permute.xlu0 %1007
      %1009 = vrot.lane.b32.xlu0 %v946, 17
      %v1010 = vpop.permute.xlu0 %1009
      %1011 = vrot.lane.b32.xlu0 %v949, 17
      %v1012 = vpop.permute.xlu0 %1011
      %1013 = vrot.lane.b32.xlu0 %v948, 17
      %v1014 = vpop.permute.xlu0 %1013
      %1015 = vrot.lane.b32.xlu0 %v953, 17
      %v1016 = vpop.permute.xlu0 %1015
      %1017 = vrot.lane.b32.xlu0 %v956, 17
      %v1018 = vpop.permute.xlu0 %1017
      %1019 = vrot.lane.b32.xlu0 %v957, 17
      %v1020 = vpop.permute.xlu0 %1019
      %1021 = vrot.lane.b32.xlu0 %v961, 17
      %v1022 = vpop.permute.xlu0 %1021
      %1023 = vrot.lane.b32.xlu0 %v964, 17
      %v1024 = vpop.permute.xlu0 %1023
      %1025 = vrot.lane.b32.xlu0 %v965, 17
      %v1026 = vpop.permute.xlu0 %1025
      %1027 = vrot.lane.b32.xlu0 %v967, 17
      %v1028 = vpop.permute.xlu0 %1027
      %1029 = vrot.lane.b32.xlu0 %v970, 17
      %v1030 = vpop.permute.xlu0 %1029
      %1031 = vrot.lane.b32.xlu0 %v971, 17
      %v1032 = vpop.permute.xlu0 %1031
      %1033 = vrot.lane.b32.xlu0 %v975, 17
      %v1034 = vpop.permute.xlu0 %1033
      %1035 = vrot.lane.b32.xlu0 %v978, 17
      %v1036 = vpop.permute.xlu0 %1035
      %1037 = vrot.lane.b32.xlu0 %v979, 17
      %v1038 = vpop.permute.xlu0 %1037
      %v1039 = vsel %vm537, %v644, %v988
      %v1040 = vsel %vm537, %v988, %v990
      %v1041 = vsel %vm537, %v992, %v994
      %v1042 = vsel %vm537, %v994, %v996
      %v1043 = vsel %vm537, %v998, %v1000
      %v1044 = vsel %vm537, %v1000, %v1002
      %v1045 = vsel %vm537, %v1004, %v1006
      %v1046 = vsel %vm537, %v1006, %v1008
      %v1047 = vsel %vm537, %v1010, %v1012
      %v1048 = vsel %vm537, %v1012, %v1014
      %v1049 = vsel %vm537, %v1016, %v1018
      %v1050 = vsel %vm537, %v1018, %v1020
      %v1051 = vsel %vm537, %v1022, %v1024
      %v1052 = vsel %vm537, %v1024, %v1026
      %v1053 = vsel %vm537, %v1028, %v1030
      %v1054 = vsel %vm537, %v1030, %v1032
      %v1055 = vsel %vm537, %v1034, %v1036
      %v1056 = vsel %vm537, %v1036, %v1038
      %v1076 = vsel %vm733, %v903, 0
      %1078 = vmatprep.subr.mxu0 %v1040
      %1079 = vmatpush1.msra.mxu0 %v1039
      %1080 = vmatprep.subr.mxu0 %v1042
      %1081 = vmatpush1.msra.mxu0 %v1041
      %1082 = vmatprep.subr.mxu0 %v1044
      %1083 = vmatpush1.msra.mxu0 %v1043
      %1084 = vmatprep.subr.mxu0 %v1046
      %1085 = vmatpush1.msra.mxu0 %v1045
      %1086 = vmatprep.subr.mxu0 %v1048
      %1087 = vmatpush1.msra.mxu0 %v1047
      %1088 = vmatprep.subr.mxu0 %v1050
      %1089 = vmatpush1.msra.mxu0 %v1049
      %1090 = vmatprep.subr.mxu0 %v1052
      %1091 = vmatpush1.msra.mxu0 %v1051
      %1092 = vmatprep.subr.mxu0 %v1054
      %1093 = vmatpush1.msra.mxu0 %v1053
      %1094 = vmatprep.subr.mxu0 %v1056
      %1095 = vmatpush1.msra.mxu0 %v1055
      %1096 = vmatprep.subr.mxu0 0.0
      %1097 = vmatpush1.msra.mxu0 0.0
      %1098 = vmatprep.subr.mxu0 0.0
      %1099 = vmatpush1.msra.mxu0 0.0
      %1100 = vmatprep.subr.mxu0 0.0
      %1101 = vmatpush1.msra.mxu0 0.0
      %1102 = vmatprep.subr.mxu0 0.0
      %1103 = vmatpush1.msra.mxu0 0.0
      %1104 = vmatprep.subr.mxu0 0.0
      %1105 = vmatpush1.msra.mxu0 0.0
      %1106 = vmatprep.subr.mxu0 0.0
      %1107 = vmatpush1.msra.mxu0 0.0
      %1108 = vmatprep.subr.mxu0 0.0
      %1109 = vmatpush1.msra.mxu0 0.0
      %1110 = vmatprep.subr.mxu0 0.0
      %1111 = vmatpush1.msra.mxu0 0.0
      %1112 = vmatprep.subr.mxu0 0.0
      %1113 = vmatpush1.msra.mxu0 0.0
      %1114 = vmatprep.subr.mxu0 0.0
      %1115 = vmatpush1.msra.mxu0 0.0
      %1116 = vmatprep.subr.mxu0 0.0
      %1117 = vmatpush1.msra.mxu0 0.0
      %1118 = vmatprep.subr.mxu0 0.0
      %1119 = vmatpush1.msra.mxu0 0.0
      %1120 = vmatprep.subr.mxu0 0.0
      %1121 = vmatpush1.msra.mxu0 0.0
      %1122 = vmatprep.subr.mxu0 0.0
      %1123 = vmatpush1.msra.mxu0 0.0
      %1124 = vmatprep.subr.mxu0 0.0
      %1125 = vmatpush1.msra.mxu0 0.0
      %1126 = vmatprep.subr.mxu0 0.0
      %1127 = vmatpush1.msra.mxu0 0.0
      %1128 = vmatprep.subr.mxu0 0.0
      %1129 = vmatpush1.msra.mxu0 0.0
      %1130 = vmatprep.subr.mxu0 0.0
      %1131 = vmatpush1.msra.mxu0 0.0
      %1132 = vmatprep.subr.mxu0 0.0
      %1133 = vmatpush1.msra.mxu0 0.0
      %1134 = vmatprep.subr.mxu0 0.0
      %1135 = vmatpush1.msra.mxu0 0.0
      %1136 = vmatprep.subr.mxu0 0.0
      %1137 = vmatpush1.msra.mxu0 0.0
      %1138 = vmatprep.subr.mxu0 0.0
      %1139 = vmatpush1.msra.mxu0 0.0
      %1140 = vmatprep.subr.mxu0 0.0
      %1141 = vmatpush1.msra.mxu0 0.0
      %1142 = vmatprep.mubr.f32.mxu0 0.0
      %1143 = vmatmul.mubr.f32.gmra.mrb[0].mxu0 %v1076
      %v1144 = vpop.f32.mrb[0].mxu0
      %v1145 = vadd.f32 %v983, %v1144
      %v1146 = vpop.f32.mrb[0].mxu0
      %v1147 = vadd.f32 %v983, %v1146
      %1148 = vdwg.mxu0
      %v1149 = vadd.f32 %v1145, %v1147
      %1150 = vadd.xlane.f32.xlu0 %v1149
      %v1151 = vpop.xlane.xlu0 %1150
      %v1152 = vrcp.pop 256.0
      %v1153 = vmul.f32 %v1151, %v1152
      %v1154 = vmul.f32 %v1145, %v1145
      %v1155 = vmul.f32 %v1147, %v1147
      %v1156 = vadd.f32 %v1154, %v1155
      %1157 = vadd.xlane.f32.xlu0 %v1156
      %v1158 = vpop.xlane.xlu0 %1157
      %v1159 = vmul.f32 %v1158, %v1152
      %v1160 = vmul.f32 %v1153, %v1153
      %v1161 = vsub.f32 %v1159, %v1160
      %v1162 = vmax.f32 %v1161, 0.0
      %v1163 = vsub.f32 %v1145, %v1153
      %v1164 = vsub.f32 %v1147, %v1153
      %v1165 = vadd.f32 %v1162, 1e-05
      %v1166 = vrsqrt.pop %v1165
      %v1167 = vmul.f32 %v1163, %v1166
      %v1168 = vmul.f32 %v1164, %v1166
      %1170 = vset.pattern.permute.xlu0 0
      %1171 = vperm.xlu0 %1170, %v905
      %v1172 = vpop.permute.xlu0 %1171
      %v1174 = vmul.f32 %v1167, %v1172
      %v1175 = vmul.f32 %v1168, %v1172
      %1177 = vset.pattern.permute.xlu0 0
      %1178 = vperm.xlu0 %1177, %v906
      %v1179 = vpop.permute.xlu0 %1178
      %v1181 = vadd.f32 %v1174, %v1179
      %v1182 = vadd.f32 %v1175, %v1179
      %v1183 = vmul.f32 %v1181, %v448
      %v1184 = vmul.f32 %v1182, %v448
      %v1185 = vsub.f32 1.0, %v448
      %v1186 = vmul.f32 %v1145, %v1185
      %v1187 = vmul.f32 %v1147, %v1185
      %v1188 = vadd.f32 %v1183, %v1186
      %v1189 = vadd.f32 %v1184, %v1187
      %v1190 = vmul.f32 %v1188, %v469
      %v1191 = vmul.f32 %v1189, %v467
      %v1192 = vmul.f32 %v1188, %v490
      %v1193 = vmul.f32 %v1189, %v488
      %v1194 = vmul.f32 %v1188, %v502
      %v1195 = vmul.f32 %v1189, %v500
      %v1196 = vmul.f32 %v1188, %v510
      %v1197 = vmul.f32 %v1189, %v514
      %v1198 = vmul.f32 %v1188, %v522
      %v1199 = vmul.f32 %v1189, %v526
      %v1200 = vmul.f32 %v1188, %v534
      %v1201 = vmul.f32 %v1189, %v538
      %1204 = vrot.lane.b32.xlu0 %v1188, 127
      %v1205 = vpop.permute.xlu0 %1204
      %1206 = vrot.lane.b32.xlu0 %v1189, 127
      %v1207 = vpop.permute.xlu0 %1206
      %v1208 = vsel %vm501, %v549, %v1205
      %v1209 = vsel %vm501, %v1205, %v1207
      %1212 = vrot.lane.b32.xlu0 %v1192, 126
      %v1213 = vpop.permute.xlu0 %1212
      %1214 = vrot.lane.b32.xlu0 %v1193, 126
      %v1215 = vpop.permute.xlu0 %1214
      %v1216 = vsel %vm565, %v560, %v1213
      %v1217 = vsel %vm565, %v1213, %v1215
      %1220 = vrot.lane.b32.xlu0 %v1194, 112
      %v1221 = vpop.permute.xlu0 %1220
      %1222 = vrot.lane.b32.xlu0 %v1195, 112
      %v1223 = vpop.permute.xlu0 %1222
      %v1224 = vsel %vm577, %v572, %v1221
      %v1225 = vsel %vm577, %v1221, %v1223
      %1226 = vrot.lane.b32.xlu0 %v1188, 111
      %v1227 = vpop.permute.xlu0 %1226
      %1228 = vrot.lane.b32.xlu0 %v1189, 111
      %v1229 = vpop.permute.xlu0 %1228
      %v1230 = vsel %vm468, %v1227, %v1229
      %1233 = vrot.lane.b32.xlu0 %v1196, 110
      %v1234 = vpop.permute.xlu0 %1233
      %1235 = vrot.lane.b32.xlu0 %v1197, 110
      %v1236 = vpop.permute.xlu0 %1235
      %v1237 = vsel %vm594, %v1234, %v1236
      %v1238 = vsel %vm594, %v1236, %v593
      %1241 = vrot.lane.b32.xlu0 %v1198, 96
      %v1242 = vpop.permute.xlu0 %1241
      %1243 = vrot.lane.b32.xlu0 %v1199, 96
      %v1244 = vpop.permute.xlu0 %1243
      %v1245 = vsel %vm606, %v1242, %v1244
      %v1246 = vsel %vm606, %v1244, %v605
      %1247 = vrot.lane.b32.xlu0 %v1188, 95
      %v1248 = vpop.permute.xlu0 %1247
      %1249 = vrot.lane.b32.xlu0 %v1189, 95
      %v1250 = vpop.permute.xlu0 %1249
      %v1251 = vsel %vm615, %v1248, %v1250
      %v1252 = vsel %vm615, %v1250, %v614
      %1255 = vrot.lane.b32.xlu0 %v1200, 94
      %v1256 = vpop.permute.xlu0 %1255
      %1257 = vrot.lane.b32.xlu0 %v1201, 94
      %v1258 = vpop.permute.xlu0 %1257
      %v1259 = vsel %vm627, %v1256, %v1258
      %v1260 = vsel %vm627, %v1258, %v626
      %1262 = vset.pattern.permute.xlu0 0
      %1263 = vperm.xlu0 %1262, %v908
      %v1264 = vpop.permute.xlu0 %1263
      %1268 = vrot.lane.b32.xlu0 %v1190, 17
      %v1269 = vpop.permute.xlu0 %1268
      %1270 = vrot.lane.b32.xlu0 %v1191, 17
      %v1271 = vpop.permute.xlu0 %1270
      %1272 = vrot.lane.b32.xlu0 %v1208, 17
      %v1273 = vpop.permute.xlu0 %1272
      %1274 = vrot.lane.b32.xlu0 %v1209, 17
      %v1275 = vpop.permute.xlu0 %1274
      %1276 = vrot.lane.b32.xlu0 %v1207, 17
      %v1277 = vpop.permute.xlu0 %1276
      %1278 = vrot.lane.b32.xlu0 %v1216, 17
      %v1279 = vpop.permute.xlu0 %1278
      %1280 = vrot.lane.b32.xlu0 %v1217, 17
      %v1281 = vpop.permute.xlu0 %1280
      %1282 = vrot.lane.b32.xlu0 %v1215, 17
      %v1283 = vpop.permute.xlu0 %1282
      %1284 = vrot.lane.b32.xlu0 %v1224, 17
      %v1285 = vpop.permute.xlu0 %1284
      %1286 = vrot.lane.b32.xlu0 %v1225, 17
      %v1287 = vpop.permute.xlu0 %1286
      %1288 = vrot.lane.b32.xlu0 %v1223, 17
      %v1289 = vpop.permute.xlu0 %1288
      %1290 = vrot.lane.b32.xlu0 %v1227, 17
      %v1291 = vpop.permute.xlu0 %1290
      %1292 = vrot.lane.b32.xlu0 %v1230, 17
      %v1293 = vpop.permute.xlu0 %1292
      %1294 = vrot.lane.b32.xlu0 %v1229, 17
      %v1295 = vpop.permute.xlu0 %1294
      %1296 = vrot.lane.b32.xlu0 %v1234, 17
      %v1297 = vpop.permute.xlu0 %1296
      %1298 = vrot.lane.b32.xlu0 %v1237, 17
      %v1299 = vpop.permute.xlu0 %1298
      %1300 = vrot.lane.b32.xlu0 %v1238, 17
      %v1301 = vpop.permute.xlu0 %1300
      %1302 = vrot.lane.b32.xlu0 %v1242, 17
      %v1303 = vpop.permute.xlu0 %1302
      %1304 = vrot.lane.b32.xlu0 %v1245, 17
      %v1305 = vpop.permute.xlu0 %1304
      %1306 = vrot.lane.b32.xlu0 %v1246, 17
      %v1307 = vpop.permute.xlu0 %1306
      %1308 = vrot.lane.b32.xlu0 %v1248, 17
      %v1309 = vpop.permute.xlu0 %1308
      %1310 = vrot.lane.b32.xlu0 %v1251, 17
      %v1311 = vpop.permute.xlu0 %1310
      %1312 = vrot.lane.b32.xlu0 %v1252, 17
      %v1313 = vpop.permute.xlu0 %1312
      %1314 = vrot.lane.b32.xlu0 %v1256, 17
      %v1315 = vpop.permute.xlu0 %1314
      %1316 = vrot.lane.b32.xlu0 %v1259, 17
      %v1317 = vpop.permute.xlu0 %1316
      %1318 = vrot.lane.b32.xlu0 %v1260, 17
      %v1319 = vpop.permute.xlu0 %1318
      %v1320 = vsel %vm537, %v644, %v1269
      %v1321 = vsel %vm537, %v1269, %v1271
      %v1322 = vsel %vm537, %v1273, %v1275
      %v1323 = vsel %vm537, %v1275, %v1277
      %v1324 = vsel %vm537, %v1279, %v1281
      %v1325 = vsel %vm537, %v1281, %v1283
      %v1326 = vsel %vm537, %v1285, %v1287
      %v1327 = vsel %vm537, %v1287, %v1289
      %v1328 = vsel %vm537, %v1291, %v1293
      %v1329 = vsel %vm537, %v1293, %v1295
      %v1330 = vsel %vm537, %v1297, %v1299
      %v1331 = vsel %vm537, %v1299, %v1301
      %v1332 = vsel %vm537, %v1303, %v1305
      %v1333 = vsel %vm537, %v1305, %v1307
      %v1334 = vsel %vm537, %v1309, %v1311
      %v1335 = vsel %vm537, %v1311, %v1313
      %v1336 = vsel %vm537, %v1315, %v1317
      %v1337 = vsel %vm537, %v1317, %v1319
      %v1357 = vsel %vm733, %v907, 0
      %1359 = vmatprep.subr.mxu0 %v1321
      %1360 = vmatpush1.msra.mxu0 %v1320
      %1361 = vmatprep.subr.mxu0 %v1323
      %1362 = vmatpush1.msra.mxu0 %v1322
      %1363 = vmatprep.subr.mxu0 %v1325
      %1364 = vmatpush1.msra.mxu0 %v1324
      %1365 = vmatprep.subr.mxu0 %v1327
      %1366 = vmatpush1.msra.mxu0 %v1326
      %1367 = vmatprep.subr.mxu0 %v1329
      %1368 = vmatpush1.msra.mxu0 %v1328
      %1369 = vmatprep.subr.mxu0 %v1331
      %1370 = vmatpush1.msra.mxu0 %v1330
      %1371 = vmatprep.subr.mxu0 %v1333
      %1372 = vmatpush1.msra.mxu0 %v1332
      %1373 = vmatprep.subr.mxu0 %v1335
      %1374 = vmatpush1.msra.mxu0 %v1334
      %1375 = vmatprep.subr.mxu0 %v1337
      %1376 = vmatpush1.msra.mxu0 %v1336
      %1377 = vmatprep.subr.mxu0 0.0
      %1378 = vmatpush1.msra.mxu0 0.0
      %1379 = vmatprep.subr.mxu0 0.0
      %1380 = vmatpush1.msra.mxu0 0.0
      %1381 = vmatprep.subr.mxu0 0.0
      %1382 = vmatpush1.msra.mxu0 0.0
      %1383 = vmatprep.subr.mxu0 0.0
      %1384 = vmatpush1.msra.mxu0 0.0
      %1385 = vmatprep.subr.mxu0 0.0
      %1386 = vmatpush1.msra.mxu0 0.0
      %1387 = vmatprep.subr.mxu0 0.0
      %1388 = vmatpush1.msra.mxu0 0.0
      %1389 = vmatprep.subr.mxu0 0.0
      %1390 = vmatpush1.msra.mxu0 0.0
      %1391 = vmatprep.subr.mxu0 0.0
      %1392 = vmatpush1.msra.mxu0 0.0
      %1393 = vmatprep.subr.mxu0 0.0
      %1394 = vmatpush1.msra.mxu0 0.0
      %1395 = vmatprep.subr.mxu0 0.0
      %1396 = vmatpush1.msra.mxu0 0.0
      %1397 = vmatprep.subr.mxu0 0.0
      %1398 = vmatpush1.msra.mxu0 0.0
      %1399 = vmatprep.subr.mxu0 0.0
      %1400 = vmatpush1.msra.mxu0 0.0
      %1401 = vmatprep.subr.mxu0 0.0
      %1402 = vmatpush1.msra.mxu0 0.0
      %1403 = vmatprep.subr.mxu0 0.0
      %1404 = vmatpush1.msra.mxu0 0.0
      %1405 = vmatprep.subr.mxu0 0.0
      %1406 = vmatpush1.msra.mxu0 0.0
      %1407 = vmatprep.subr.mxu0 0.0
      %1408 = vmatpush1.msra.mxu0 0.0
      %1409 = vmatprep.subr.mxu0 0.0
      %1410 = vmatpush1.msra.mxu0 0.0
      %1411 = vmatprep.subr.mxu0 0.0
      %1412 = vmatpush1.msra.mxu0 0.0
      %1413 = vmatprep.subr.mxu0 0.0
      %1414 = vmatpush1.msra.mxu0 0.0
      %1415 = vmatprep.subr.mxu0 0.0
      %1416 = vmatpush1.msra.mxu0 0.0
      %1417 = vmatprep.subr.mxu0 0.0
      %1418 = vmatpush1.msra.mxu0 0.0
      %1419 = vmatprep.subr.mxu0 0.0
      %1420 = vmatpush1.msra.mxu0 0.0
      %1421 = vmatprep.subr.mxu0 0.0
      %1422 = vmatpush1.msra.mxu0 0.0
      %1423 = vmatprep.mubr.f32.mxu0 0.0
      %1424 = vmatmul.mubr.f32.gmra.mrb[0].mxu0 %v1357
      %v1425 = vpop.f32.mrb[0].mxu0
      %v1426 = vadd.f32 %v1264, %v1425
      %v1427 = vpop.f32.mrb[0].mxu0
      %v1428 = vadd.f32 %v1264, %v1427
      %1429 = vdwg.mxu0
      %v1430 = vadd.f32 %v899, %v1426
      %v1431 = vadd.f32 %v901, %v1428
      %v1432 = vadd.f32 %v893, %v1430
      %v1433 = vadd.f32 %v895, %v1431
      %s1434 = scalar_lea.vmem %s5, 8
      %v1435 = vld [vmem:[%s1434] sm:$0xff]
      %s1436 = scalar_lea.vmem %s6, 8
      %v1437 = vld [vmem:[%s1436] sm:$0xff]
      %s1438 = scalar_lea.vmem %s7, 8
      %v1439 = vld [vmem:[%s1438] sm:$0xff]
      %s1440 = scalar_lea.vmem %s8, 8
      %v1441 = vld [vmem:[%s1440] sm:$0xff]
      %s1442 = scalar_lea.vmem %s9, 8
      %v1443 = vld [vmem:[%s1442] sm:$0xff]
      %s1444 = scalar_lea.vmem %s10, 8
      %v1445 = vld [vmem:[%s1444] sm:$0xff]
      %v1446 = vmul.f32 %v1432, %v469
      %v1447 = vmul.f32 %v1433, %v467
      %v1448 = vmul.f32 %v1432, %v490
      %v1449 = vmul.f32 %v1433, %v488
      %v1450 = vmul.f32 %v1432, %v502
      %v1451 = vmul.f32 %v1433, %v500
      %v1452 = vmul.f32 %v1432, %v510
      %v1453 = vmul.f32 %v1433, %v514
      %v1454 = vmul.f32 %v1432, %v522
      %v1455 = vmul.f32 %v1433, %v526
      %v1456 = vmul.f32 %v1432, %v534
      %v1457 = vmul.f32 %v1433, %v538
      %1460 = vrot.lane.b32.xlu0 %v1432, 127
      %v1461 = vpop.permute.xlu0 %1460
      %1462 = vrot.lane.b32.xlu0 %v1433, 127
      %v1463 = vpop.permute.xlu0 %1462
      %v1464 = vsel %vm501, %v549, %v1461
      %v1465 = vsel %vm501, %v1461, %v1463
      %1468 = vrot.lane.b32.xlu0 %v1448, 126
      %v1469 = vpop.permute.xlu0 %1468
      %1470 = vrot.lane.b32.xlu0 %v1449, 126
      %v1471 = vpop.permute.xlu0 %1470
      %v1472 = vsel %vm565, %v560, %v1469
      %v1473 = vsel %vm565, %v1469, %v1471
      %1476 = vrot.lane.b32.xlu0 %v1450, 112
      %v1477 = vpop.permute.xlu0 %1476
      %1478 = vrot.lane.b32.xlu0 %v1451, 112
      %v1479 = vpop.permute.xlu0 %1478
      %v1480 = vsel %vm577, %v572, %v1477
      %v1481 = vsel %vm577, %v1477, %v1479
      %1482 = vrot.lane.b32.xlu0 %v1432, 111
      %v1483 = vpop.permute.xlu0 %1482
      %1484 = vrot.lane.b32.xlu0 %v1433, 111
      %v1485 = vpop.permute.xlu0 %1484
      %v1486 = vsel %vm468, %v1483, %v1485
      %1489 = vrot.lane.b32.xlu0 %v1452, 110
      %v1490 = vpop.permute.xlu0 %1489
      %1491 = vrot.lane.b32.xlu0 %v1453, 110
      %v1492 = vpop.permute.xlu0 %1491
      %v1493 = vsel %vm594, %v1490, %v1492
      %v1494 = vsel %vm594, %v1492, %v593
      %1497 = vrot.lane.b32.xlu0 %v1454, 96
      %v1498 = vpop.permute.xlu0 %1497
      %1499 = vrot.lane.b32.xlu0 %v1455, 96
      %v1500 = vpop.permute.xlu0 %1499
      %v1501 = vsel %vm606, %v1498, %v1500
      %v1502 = vsel %vm606, %v1500, %v605
      %1503 = vrot.lane.b32.xlu0 %v1432, 95
      %v1504 = vpop.permute.xlu0 %1503
      %1505 = vrot.lane.b32.xlu0 %v1433, 95
      %v1506 = vpop.permute.xlu0 %1505
      %v1507 = vsel %vm615, %v1504, %v1506
      %v1508 = vsel %vm615, %v1506, %v614
      %1511 = vrot.lane.b32.xlu0 %v1456, 94
      %v1512 = vpop.permute.xlu0 %1511
      %1513 = vrot.lane.b32.xlu0 %v1457, 94
      %v1514 = vpop.permute.xlu0 %1513
      %v1515 = vsel %vm627, %v1512, %v1514
      %v1516 = vsel %vm627, %v1514, %v626
      %1518 = vset.pattern.permute.xlu0 0
      %1519 = vperm.xlu0 %1518, %v1437
      %v1520 = vpop.permute.xlu0 %1519
      %1524 = vrot.lane.b32.xlu0 %v1446, 17
      %v1525 = vpop.permute.xlu0 %1524
      %1526 = vrot.lane.b32.xlu0 %v1447, 17
      %v1527 = vpop.permute.xlu0 %1526
      %1528 = vrot.lane.b32.xlu0 %v1464, 17
      %v1529 = vpop.permute.xlu0 %1528
      %1530 = vrot.lane.b32.xlu0 %v1465, 17
      %v1531 = vpop.permute.xlu0 %1530
      %1532 = vrot.lane.b32.xlu0 %v1463, 17
      %v1533 = vpop.permute.xlu0 %1532
      %1534 = vrot.lane.b32.xlu0 %v1472, 17
      %v1535 = vpop.permute.xlu0 %1534
      %1536 = vrot.lane.b32.xlu0 %v1473, 17
      %v1537 = vpop.permute.xlu0 %1536
      %1538 = vrot.lane.b32.xlu0 %v1471, 17
      %v1539 = vpop.permute.xlu0 %1538
      %1540 = vrot.lane.b32.xlu0 %v1480, 17
      %v1541 = vpop.permute.xlu0 %1540
      %1542 = vrot.lane.b32.xlu0 %v1481, 17
      %v1543 = vpop.permute.xlu0 %1542
      %1544 = vrot.lane.b32.xlu0 %v1479, 17
      %v1545 = vpop.permute.xlu0 %1544
      %1546 = vrot.lane.b32.xlu0 %v1483, 17
      %v1547 = vpop.permute.xlu0 %1546
      %1548 = vrot.lane.b32.xlu0 %v1486, 17
      %v1549 = vpop.permute.xlu0 %1548
      %1550 = vrot.lane.b32.xlu0 %v1485, 17
      %v1551 = vpop.permute.xlu0 %1550
      %1552 = vrot.lane.b32.xlu0 %v1490, 17
      %v1553 = vpop.permute.xlu0 %1552
      %1554 = vrot.lane.b32.xlu0 %v1493, 17
      %v1555 = vpop.permute.xlu0 %1554
      %1556 = vrot.lane.b32.xlu0 %v1494, 17
      %v1557 = vpop.permute.xlu0 %1556
      %1558 = vrot.lane.b32.xlu0 %v1498, 17
      %v1559 = vpop.permute.xlu0 %1558
      %1560 = vrot.lane.b32.xlu0 %v1501, 17
      %v1561 = vpop.permute.xlu0 %1560
      %1562 = vrot.lane.b32.xlu0 %v1502, 17
      %v1563 = vpop.permute.xlu0 %1562
      %1564 = vrot.lane.b32.xlu0 %v1504, 17
      %v1565 = vpop.permute.xlu0 %1564
      %1566 = vrot.lane.b32.xlu0 %v1507, 17
      %v1567 = vpop.permute.xlu0 %1566
      %1568 = vrot.lane.b32.xlu0 %v1508, 17
      %v1569 = vpop.permute.xlu0 %1568
      %1570 = vrot.lane.b32.xlu0 %v1512, 17
      %v1571 = vpop.permute.xlu0 %1570
      %1572 = vrot.lane.b32.xlu0 %v1515, 17
      %v1573 = vpop.permute.xlu0 %1572
      %1574 = vrot.lane.b32.xlu0 %v1516, 17
      %v1575 = vpop.permute.xlu0 %1574
      %v1576 = vsel %vm537, %v644, %v1525
      %v1577 = vsel %vm537, %v1525, %v1527
      %v1578 = vsel %vm537, %v1529, %v1531
      %v1579 = vsel %vm537, %v1531, %v1533
      %v1580 = vsel %vm537, %v1535, %v1537
      %v1581 = vsel %vm537, %v1537, %v1539
      %v1582 = vsel %vm537, %v1541, %v1543
      %v1583 = vsel %vm537, %v1543, %v1545
      %v1584 = vsel %vm537, %v1547, %v1549
      %v1585 = vsel %vm537, %v1549, %v1551
      %v1586 = vsel %vm537, %v1553, %v1555
      %v1587 = vsel %vm537, %v1555, %v1557
      %v1588 = vsel %vm537, %v1559, %v1561
      %v1589 = vsel %vm537, %v1561, %v1563
      %v1590 = vsel %vm537, %v1565, %v1567
      %v1591 = vsel %vm537, %v1567, %v1569
      %v1592 = vsel %vm537, %v1571, %v1573
      %v1593 = vsel %vm537, %v1573, %v1575
      %v1613 = vsel %vm733, %v1435, 0
      %1615 = vmatprep.subr.mxu0 %v1577
      %1616 = vmatpush1.msra.mxu0 %v1576
      %1617 = vmatprep.subr.mxu0 %v1579
      %1618 = vmatpush1.msra.mxu0 %v1578
      %1619 = vmatprep.subr.mxu0 %v1581
      %1620 = vmatpush1.msra.mxu0 %v1580
      %1621 = vmatprep.subr.mxu0 %v1583
      %1622 = vmatpush1.msra.mxu0 %v1582
      %1623 = vmatprep.subr.mxu0 %v1585
      %1624 = vmatpush1.msra.mxu0 %v1584
      %1625 = vmatprep.subr.mxu0 %v1587
      %1626 = vmatpush1.msra.mxu0 %v1586
      %1627 = vmatprep.subr.mxu0 %v1589
      %1628 = vmatpush1.msra.mxu0 %v1588
      %1629 = vmatprep.subr.mxu0 %v1591
      %1630 = vmatpush1.msra.mxu0 %v1590
      %1631 = vmatprep.subr.mxu0 %v1593
      %1632 = vmatpush1.msra.mxu0 %v1592
      %1633 = vmatprep.subr.mxu0 0.0
      %1634 = vmatpush1.msra.mxu0 0.0
      %1635 = vmatprep.subr.mxu0 0.0
      %1636 = vmatpush1.msra.mxu0 0.0
      %1637 = vmatprep.subr.mxu0 0.0
      %1638 = vmatpush1.msra.mxu0 0.0
      %1639 = vmatprep.subr.mxu0 0.0
      %1640 = vmatpush1.msra.mxu0 0.0
      %1641 = vmatprep.subr.mxu0 0.0
      %1642 = vmatpush1.msra.mxu0 0.0
      %1643 = vmatprep.subr.mxu0 0.0
      %1644 = vmatpush1.msra.mxu0 0.0
      %1645 = vmatprep.subr.mxu0 0.0
      %1646 = vmatpush1.msra.mxu0 0.0
      %1647 = vmatprep.subr.mxu0 0.0
      %1648 = vmatpush1.msra.mxu0 0.0
      %1649 = vmatprep.subr.mxu0 0.0
      %1650 = vmatpush1.msra.mxu0 0.0
      %1651 = vmatprep.subr.mxu0 0.0
      %1652 = vmatpush1.msra.mxu0 0.0
      %1653 = vmatprep.subr.mxu0 0.0
      %1654 = vmatpush1.msra.mxu0 0.0
      %1655 = vmatprep.subr.mxu0 0.0
      %1656 = vmatpush1.msra.mxu0 0.0
      %1657 = vmatprep.subr.mxu0 0.0
      %1658 = vmatpush1.msra.mxu0 0.0
      %1659 = vmatprep.subr.mxu0 0.0
      %1660 = vmatpush1.msra.mxu0 0.0
      %1661 = vmatprep.subr.mxu0 0.0
      %1662 = vmatpush1.msra.mxu0 0.0
      %1663 = vmatprep.subr.mxu0 0.0
      %1664 = vmatpush1.msra.mxu0 0.0
      %1665 = vmatprep.subr.mxu0 0.0
      %1666 = vmatpush1.msra.mxu0 0.0
      %1667 = vmatprep.subr.mxu0 0.0
      %1668 = vmatpush1.msra.mxu0 0.0
      %1669 = vmatprep.subr.mxu0 0.0
      %1670 = vmatpush1.msra.mxu0 0.0
      %1671 = vmatprep.subr.mxu0 0.0
      %1672 = vmatpush1.msra.mxu0 0.0
      %1673 = vmatprep.subr.mxu0 0.0
      %1674 = vmatpush1.msra.mxu0 0.0
      %1675 = vmatprep.subr.mxu0 0.0
      %1676 = vmatpush1.msra.mxu0 0.0
      %1677 = vmatprep.subr.mxu0 0.0
      %1678 = vmatpush1.msra.mxu0 0.0
      %1679 = vmatprep.mubr.f32.mxu0 0.0
      %1680 = vmatmul.mubr.f32.gmra.mrb[0].mxu0 %v1613
      %v1681 = vpop.f32.mrb[0].mxu0
      %v1682 = vadd.f32 %v1520, %v1681
      %v1683 = vpop.f32.mrb[0].mxu0
      %v1684 = vadd.f32 %v1520, %v1683
      %1685 = vdwg.mxu0
      %v1686 = vadd.f32 %v1682, %v1684
      %1687 = vadd.xlane.f32.xlu0 %v1686
      %v1688 = vpop.xlane.xlu0 %1687
      %v1689 = vmul.f32 %v1688, %v1152
      %v1690 = vmul.f32 %v1682, %v1682
      %v1691 = vmul.f32 %v1684, %v1684
      %v1692 = vadd.f32 %v1690, %v1691
      %1693 = vadd.xlane.f32.xlu0 %v1692
      %v1694 = vpop.xlane.xlu0 %1693
      %v1695 = vmul.f32 %v1694, %v1152
      %v1696 = vmul.f32 %v1689, %v1689
      %v1697 = vsub.f32 %v1695, %v1696
      %v1698 = vmax.f32 %v1697, 0.0
      %v1699 = vsub.f32 %v1682, %v1689
      %v1700 = vsub.f32 %v1684, %v1689
      %v1701 = vadd.f32 %v1698, 1e-05
      %v1702 = vrsqrt.pop %v1701
      %v1703 = vmul.f32 %v1699, %v1702
      %v1704 = vmul.f32 %v1700, %v1702
      %1706 = vset.pattern.permute.xlu0 0
      %1707 = vperm.xlu0 %1706, %v1439
      %v1708 = vpop.permute.xlu0 %1707
      %v1710 = vmul.f32 %v1703, %v1708
      %v1711 = vmul.f32 %v1704, %v1708
      %1713 = vset.pattern.permute.xlu0 0
      %1714 = vperm.xlu0 %1713, %v1441
      %v1715 = vpop.permute.xlu0 %1714
      %v1717 = vadd.f32 %v1710, %v1715
      %v1718 = vadd.f32 %v1711, %v1715
      %v1719 = vmul.f32 %v1717, %v448
      %v1720 = vmul.f32 %v1718, %v448
      %v1721 = vmul.f32 %v1682, %v1185
      %v1722 = vmul.f32 %v1684, %v1185
      %v1723 = vadd.f32 %v1719, %v1721
      %v1724 = vadd.f32 %v1720, %v1722
      %v1725 = vmul.f32 %v1723, %v469
      %v1726 = vmul.f32 %v1724, %v467
      %v1727 = vmul.f32 %v1723, %v490
      %v1728 = vmul.f32 %v1724, %v488
      %v1729 = vmul.f32 %v1723, %v502
      %v1730 = vmul.f32 %v1724, %v500
      %v1731 = vmul.f32 %v1723, %v510
      %v1732 = vmul.f32 %v1724, %v514
      %v1733 = vmul.f32 %v1723, %v522
      %v1734 = vmul.f32 %v1724, %v526
      %v1735 = vmul.f32 %v1723, %v534
      %v1736 = vmul.f32 %v1724, %v538
      %1739 = vrot.lane.b32.xlu0 %v1723, 127
      %v1740 = vpop.permute.xlu0 %1739
      %1741 = vrot.lane.b32.xlu0 %v1724, 127
      %v1742 = vpop.permute.xlu0 %1741
      %v1743 = vsel %vm501, %v549, %v1740
      %v1744 = vsel %vm501, %v1740, %v1742
      %1747 = vrot.lane.b32.xlu0 %v1727, 126
      %v1748 = vpop.permute.xlu0 %1747
      %1749 = vrot.lane.b32.xlu0 %v1728, 126
      %v1750 = vpop.permute.xlu0 %1749
      %v1751 = vsel %vm565, %v560, %v1748
      %v1752 = vsel %vm565, %v1748, %v1750
      %1755 = vrot.lane.b32.xlu0 %v1729, 112
      %v1756 = vpop.permute.xlu0 %1755
      %1757 = vrot.lane.b32.xlu0 %v1730, 112
      %v1758 = vpop.permute.xlu0 %1757
      %v1759 = vsel %vm577, %v572, %v1756
      %v1760 = vsel %vm577, %v1756, %v1758
      %1761 = vrot.lane.b32.xlu0 %v1723, 111
      %v1762 = vpop.permute.xlu0 %1761
      %1763 = vrot.lane.b32.xlu0 %v1724, 111
      %v1764 = vpop.permute.xlu0 %1763
      %v1765 = vsel %vm468, %v1762, %v1764
      %1768 = vrot.lane.b32.xlu0 %v1731, 110
      %v1769 = vpop.permute.xlu0 %1768
      %1770 = vrot.lane.b32.xlu0 %v1732, 110
      %v1771 = vpop.permute.xlu0 %1770
      %v1772 = vsel %vm594, %v1769, %v1771
      %v1773 = vsel %vm594, %v1771, %v593
      %1776 = vrot.lane.b32.xlu0 %v1733, 96
      %v1777 = vpop.permute.xlu0 %1776
      %1778 = vrot.lane.b32.xlu0 %v1734, 96
      %v1779 = vpop.permute.xlu0 %1778
      %v1780 = vsel %vm606, %v1777, %v1779
      %v1781 = vsel %vm606, %v1779, %v605
      %1782 = vrot.lane.b32.xlu0 %v1723, 95
      %v1783 = vpop.permute.xlu0 %1782
      %1784 = vrot.lane.b32.xlu0 %v1724, 95
      %v1785 = vpop.permute.xlu0 %1784
      %v1786 = vsel %vm615, %v1783, %v1785
      %v1787 = vsel %vm615, %v1785, %v614
      %1790 = vrot.lane.b32.xlu0 %v1735, 94
      %v1791 = vpop.permute.xlu0 %1790
      %1792 = vrot.lane.b32.xlu0 %v1736, 94
      %v1793 = vpop.permute.xlu0 %1792
      %v1794 = vsel %vm627, %v1791, %v1793
      %v1795 = vsel %vm627, %v1793, %v626
      %1797 = vset.pattern.permute.xlu0 0
      %1798 = vperm.xlu0 %1797, %v1445
      %v1799 = vpop.permute.xlu0 %1798
      %1803 = vrot.lane.b32.xlu0 %v1725, 17
      %v1804 = vpop.permute.xlu0 %1803
      %1805 = vrot.lane.b32.xlu0 %v1726, 17
      %v1806 = vpop.permute.xlu0 %1805
      %1807 = vrot.lane.b32.xlu0 %v1743, 17
      %v1808 = vpop.permute.xlu0 %1807
      %1809 = vrot.lane.b32.xlu0 %v1744, 17
      %v1810 = vpop.permute.xlu0 %1809
      %1811 = vrot.lane.b32.xlu0 %v1742, 17
      %v1812 = vpop.permute.xlu0 %1811
      %1813 = vrot.lane.b32.xlu0 %v1751, 17
      %v1814 = vpop.permute.xlu0 %1813
      %1815 = vrot.lane.b32.xlu0 %v1752, 17
      %v1816 = vpop.permute.xlu0 %1815
      %1817 = vrot.lane.b32.xlu0 %v1750, 17
      %v1818 = vpop.permute.xlu0 %1817
      %1819 = vrot.lane.b32.xlu0 %v1759, 17
      %v1820 = vpop.permute.xlu0 %1819
      %1821 = vrot.lane.b32.xlu0 %v1760, 17
      %v1822 = vpop.permute.xlu0 %1821
      %1823 = vrot.lane.b32.xlu0 %v1758, 17
      %v1824 = vpop.permute.xlu0 %1823
      %1825 = vrot.lane.b32.xlu0 %v1762, 17
      %v1826 = vpop.permute.xlu0 %1825
      %1827 = vrot.lane.b32.xlu0 %v1765, 17
      %v1828 = vpop.permute.xlu0 %1827
      %1829 = vrot.lane.b32.xlu0 %v1764, 17
      %v1830 = vpop.permute.xlu0 %1829
      %1831 = vrot.lane.b32.xlu0 %v1769, 17
      %v1832 = vpop.permute.xlu0 %1831
      %1833 = vrot.lane.b32.xlu0 %v1772, 17
      %v1834 = vpop.permute.xlu0 %1833
      %1835 = vrot.lane.b32.xlu0 %v1773, 17
      %v1836 = vpop.permute.xlu0 %1835
      %1837 = vrot.lane.b32.xlu0 %v1777, 17
      %v1838 = vpop.permute.xlu0 %1837
      %1839 = vrot.lane.b32.xlu0 %v1780, 17
      %v1840 = vpop.permute.xlu0 %1839
      %1841 = vrot.lane.b32.xlu0 %v1781, 17
      %v1842 = vpop.permute.xlu0 %1841
      %1843 = vrot.lane.b32.xlu0 %v1783, 17
      %v1844 = vpop.permute.xlu0 %1843
      %1845 = vrot.lane.b32.xlu0 %v1786, 17
      %v1846 = vpop.permute.xlu0 %1845
      %1847 = vrot.lane.b32.xlu0 %v1787, 17
      %v1848 = vpop.permute.xlu0 %1847
      %1849 = vrot.lane.b32.xlu0 %v1791, 17
      %v1850 = vpop.permute.xlu0 %1849
      %1851 = vrot.lane.b32.xlu0 %v1794, 17
      %v1852 = vpop.permute.xlu0 %1851
      %1853 = vrot.lane.b32.xlu0 %v1795, 17
      %v1854 = vpop.permute.xlu0 %1853
      %v1855 = vsel %vm537, %v644, %v1804
      %v1856 = vsel %vm537, %v1804, %v1806
      %v1857 = vsel %vm537, %v1808, %v1810
      %v1858 = vsel %vm537, %v1810, %v1812
      %v1859 = vsel %vm537, %v1814, %v1816
      %v1860 = vsel %vm537, %v1816, %v1818
      %v1861 = vsel %vm537, %v1820, %v1822
      %v1862 = vsel %vm537, %v1822, %v1824
      %v1863 = vsel %vm537, %v1826, %v1828
      %v1864 = vsel %vm537, %v1828, %v1830
      %v1865 = vsel %vm537, %v1832, %v1834
      %v1866 = vsel %vm537, %v1834, %v1836
      %v1867 = vsel %vm537, %v1838, %v1840
      %v1868 = vsel %vm537, %v1840, %v1842
      %v1869 = vsel %vm537, %v1844, %v1846
      %v1870 = vsel %vm537, %v1846, %v1848
      %v1871 = vsel %vm537, %v1850, %v1852
      %v1872 = vsel %vm537, %v1852, %v1854
      %v1892 = vsel %vm733, %v1443, 0
      %1894 = vmatprep.subr.mxu0 %v1856
      %1895 = vmatpush1.msra.mxu0 %v1855
      %1896 = vmatprep.subr.mxu0 %v1858
      %1897 = vmatpush1.msra.mxu0 %v1857
      %1898 = vmatprep.subr.mxu0 %v1860
      %1899 = vmatpush1.msra.mxu0 %v1859
      %1900 = vmatprep.subr.mxu0 %v1862
      %1901 = vmatpush1.msra.mxu0 %v1861
      %1902 = vmatprep.subr.mxu0 %v1864
      %1903 = vmatpush1.msra.mxu0 %v1863
      %1904 = vmatprep.subr.mxu0 %v1866
      %1905 = vmatpush1.msra.mxu0 %v1865
      %1906 = vmatprep.subr.mxu0 %v1868
      %1907 = vmatpush1.msra.mxu0 %v1867
      %1908 = vmatprep.subr.mxu0 %v1870
      %1909 = vmatpush1.msra.mxu0 %v1869
      %1910 = vmatprep.subr.mxu0 %v1872
      %1911 = vmatpush1.msra.mxu0 %v1871
      %1912 = vmatprep.subr.mxu0 0.0
      %1913 = vmatpush1.msra.mxu0 0.0
      %1914 = vmatprep.subr.mxu0 0.0
      %1915 = vmatpush1.msra.mxu0 0.0
      %1916 = vmatprep.subr.mxu0 0.0
      %1917 = vmatpush1.msra.mxu0 0.0
      %1918 = vmatprep.subr.mxu0 0.0
      %1919 = vmatpush1.msra.mxu0 0.0
      %1920 = vmatprep.subr.mxu0 0.0
      %1921 = vmatpush1.msra.mxu0 0.0
      %1922 = vmatprep.subr.mxu0 0.0
      %1923 = vmatpush1.msra.mxu0 0.0
      %1924 = vmatprep.subr.mxu0 0.0
      %1925 = vmatpush1.msra.mxu0 0.0
      %1926 = vmatprep.subr.mxu0 0.0
      %1927 = vmatpush1.msra.mxu0 0.0
      %1928 = vmatprep.subr.mxu0 0.0
      %1929 = vmatpush1.msra.mxu0 0.0
      %1930 = vmatprep.subr.mxu0 0.0
      %1931 = vmatpush1.msra.mxu0 0.0
      %1932 = vmatprep.subr.mxu0 0.0
      %1933 = vmatpush1.msra.mxu0 0.0
      %1934 = vmatprep.subr.mxu0 0.0
      %1935 = vmatpush1.msra.mxu0 0.0
      %1936 = vmatprep.subr.mxu0 0.0
      %1937 = vmatpush1.msra.mxu0 0.0
      %1938 = vmatprep.subr.mxu0 0.0
      %1939 = vmatpush1.msra.mxu0 0.0
      %1940 = vmatprep.subr.mxu0 0.0
      %1941 = vmatpush1.msra.mxu0 0.0
      %1942 = vmatprep.subr.mxu0 0.0
      %1943 = vmatpush1.msra.mxu0 0.0
      %1944 = vmatprep.subr.mxu0 0.0
      %1945 = vmatpush1.msra.mxu0 0.0
      %1946 = vmatprep.subr.mxu0 0.0
      %1947 = vmatpush1.msra.mxu0 0.0
      %1948 = vmatprep.subr.mxu0 0.0
      %1949 = vmatpush1.msra.mxu0 0.0
      %1950 = vmatprep.subr.mxu0 0.0
      %1951 = vmatpush1.msra.mxu0 0.0
      %1952 = vmatprep.subr.mxu0 0.0
      %1953 = vmatpush1.msra.mxu0 0.0
      %1954 = vmatprep.subr.mxu0 0.0
      %1955 = vmatpush1.msra.mxu0 0.0
      %1956 = vmatprep.subr.mxu0 0.0
      %1957 = vmatpush1.msra.mxu0 0.0
      %1958 = vmatprep.mubr.f32.mxu0 0.0
      %1959 = vmatmul.mubr.f32.gmra.mrb[0].mxu0 %v1892
      %v1960 = vpop.f32.mrb[0].mxu0
      %v1961 = vadd.f32 %v1799, %v1960
      %v1962 = vpop.f32.mrb[0].mxu0
      %v1963 = vadd.f32 %v1799, %v1962
      %1964 = vdwg.mxu0
      %v1965 = vadd.f32 %v1432, %v1961
      %v1966 = vadd.f32 %v1433, %v1963
      %s1967 = scalar_lea.vmem %s5, 16
      %v1968 = vld [vmem:[%s1967] sm:$0xff]
      %s1969 = scalar_lea.vmem %s6, 16
      %v1970 = vld [vmem:[%s1969] sm:$0xff]
      %s1971 = scalar_lea.vmem %s7, 16
      %v1972 = vld [vmem:[%s1971] sm:$0xff]
      %s1973 = scalar_lea.vmem %s8, 16
      %v1974 = vld [vmem:[%s1973] sm:$0xff]
      %s1975 = scalar_lea.vmem %s9, 16
      %v1976 = vld [vmem:[%s1975] sm:$0xff]
      %s1977 = scalar_lea.vmem %s10, 16
      %v1978 = vld [vmem:[%s1977] sm:$0xff]
      %1980 = vset.pattern.permute.xlu0 0
      %1981 = vperm.xlu0 %1980, %v1970
      %v1982 = vpop.permute.xlu0 %1981
      %v1985 = vsel %vm733, %v1968, 0
      %1987 = vmatprep.subr.mxu0 %v1577
      %1988 = vmatpush1.msra.mxu0 %v1576
      %1989 = vmatprep.subr.mxu0 %v1579
      %1990 = vmatpush1.msra.mxu0 %v1578
      %1991 = vmatprep.subr.mxu0 %v1581
      %1992 = vmatpush1.msra.mxu0 %v1580
      %1993 = vmatprep.subr.mxu0 %v1583
      %1994 = vmatpush1.msra.mxu0 %v1582
      %1995 = vmatprep.subr.mxu0 %v1585
      %1996 = vmatpush1.msra.mxu0 %v1584
      %1997 = vmatprep.subr.mxu0 %v1587
      %1998 = vmatpush1.msra.mxu0 %v1586
      %1999 = vmatprep.subr.mxu0 %v1589
      %2000 = vmatpush1.msra.mxu0 %v1588
      %2001 = vmatprep.subr.mxu0 %v1591
      %2002 = vmatpush1.msra.mxu0 %v1590
      %2003 = vmatprep.subr.mxu0 %v1593
      %2004 = vmatpush1.msra.mxu0 %v1592
      %2005 = vmatprep.subr.mxu0 0.0
      %2006 = vmatpush1.msra.mxu0 0.0
      %2007 = vmatprep.subr.mxu0 0.0
      %2008 = vmatpush1.msra.mxu0 0.0
      %2009 = vmatprep.subr.mxu0 0.0
      %2010 = vmatpush1.msra.mxu0 0.0
      %2011 = vmatprep.subr.mxu0 0.0
      %2012 = vmatpush1.msra.mxu0 0.0
      %2013 = vmatprep.subr.mxu0 0.0
      %2014 = vmatpush1.msra.mxu0 0.0
      %2015 = vmatprep.subr.mxu0 0.0
      %2016 = vmatpush1.msra.mxu0 0.0
      %2017 = vmatprep.subr.mxu0 0.0
      %2018 = vmatpush1.msra.mxu0 0.0
      %2019 = vmatprep.subr.mxu0 0.0
      %2020 = vmatpush1.msra.mxu0 0.0
      %2021 = vmatprep.subr.mxu0 0.0
      %2022 = vmatpush1.msra.mxu0 0.0
      %2023 = vmatprep.subr.mxu0 0.0
      %2024 = vmatpush1.msra.mxu0 0.0
      %2025 = vmatprep.subr.mxu0 0.0
      %2026 = vmatpush1.msra.mxu0 0.0
      %2027 = vmatprep.subr.mxu0 0.0
      %2028 = vmatpush1.msra.mxu0 0.0
      %2029 = vmatprep.subr.mxu0 0.0
      %2030 = vmatpush1.msra.mxu0 0.0
      %2031 = vmatprep.subr.mxu0 0.0
      %2032 = vmatpush1.msra.mxu0 0.0
      %2033 = vmatprep.subr.mxu0 0.0
      %2034 = vmatpush1.msra.mxu0 0.0
      %2035 = vmatprep.subr.mxu0 0.0
      %2036 = vmatpush1.msra.mxu0 0.0
      %2037 = vmatprep.subr.mxu0 0.0
      %2038 = vmatpush1.msra.mxu0 0.0
      %2039 = vmatprep.subr.mxu0 0.0
      %2040 = vmatpush1.msra.mxu0 0.0
      %2041 = vmatprep.subr.mxu0 0.0
      %2042 = vmatpush1.msra.mxu0 0.0
      %2043 = vmatprep.subr.mxu0 0.0
      %2044 = vmatpush1.msra.mxu0 0.0
      %2045 = vmatprep.subr.mxu0 0.0
      %2046 = vmatpush1.msra.mxu0 0.0
      %2047 = vmatprep.subr.mxu0 0.0
      %2048 = vmatpush1.msra.mxu0 0.0
      %2049 = vmatprep.subr.mxu0 0.0
      %2050 = vmatpush1.msra.mxu0 0.0
      %2051 = vmatprep.mubr.f32.mxu0 0.0
      %2052 = vmatmul.mubr.f32.gmra.mrb[0].mxu0 %v1985
      %v2053 = vpop.f32.mrb[0].mxu0
      %v2054 = vadd.f32 %v1982, %v2053
      %v2055 = vpop.f32.mrb[0].mxu0
      %v2056 = vadd.f32 %v1982, %v2055
      %2057 = vdwg.mxu0
      %v2058 = vadd.f32 %v2054, %v2056
      %2059 = vadd.xlane.f32.xlu0 %v2058
      %v2060 = vpop.xlane.xlu0 %2059
      %v2061 = vmul.f32 %v2060, %v1152
      %v2062 = vmul.f32 %v2054, %v2054
      %v2063 = vmul.f32 %v2056, %v2056
      %v2064 = vadd.f32 %v2062, %v2063
      %2065 = vadd.xlane.f32.xlu0 %v2064
      %v2066 = vpop.xlane.xlu0 %2065
      %v2067 = vmul.f32 %v2066, %v1152
      %v2068 = vmul.f32 %v2061, %v2061
      %v2069 = vsub.f32 %v2067, %v2068
      %v2070 = vmax.f32 %v2069, 0.0
      %v2071 = vsub.f32 %v2054, %v2061
      %v2072 = vsub.f32 %v2056, %v2061
      %v2073 = vadd.f32 %v2070, 1e-05
      %v2074 = vrsqrt.pop %v2073
      %v2075 = vmul.f32 %v2071, %v2074
      %v2076 = vmul.f32 %v2072, %v2074
      %2078 = vset.pattern.permute.xlu0 0
      %2079 = vperm.xlu0 %2078, %v1972
      %v2080 = vpop.permute.xlu0 %2079
      %v2082 = vmul.f32 %v2075, %v2080
      %v2083 = vmul.f32 %v2076, %v2080
      %2085 = vset.pattern.permute.xlu0 0
      %2086 = vperm.xlu0 %2085, %v1974
      %v2087 = vpop.permute.xlu0 %2086
      %v2089 = vadd.f32 %v2082, %v2087
      %v2090 = vadd.f32 %v2083, %v2087
      %v2091 = vmul.f32 %v2089, %v448
      %v2092 = vmul.f32 %v2090, %v448
      %v2093 = vmul.f32 %v2054, %v1185
      %v2094 = vmul.f32 %v2056, %v1185
      %v2095 = vadd.f32 %v2091, %v2093
      %v2096 = vadd.f32 %v2092, %v2094
      %v2097 = vmul.f32 %v2095, %v469
      %v2098 = vmul.f32 %v2096, %v467
      %v2099 = vmul.f32 %v2095, %v490
      %v2100 = vmul.f32 %v2096, %v488
      %v2101 = vmul.f32 %v2095, %v502
      %v2102 = vmul.f32 %v2096, %v500
      %v2103 = vmul.f32 %v2095, %v510
      %v2104 = vmul.f32 %v2096, %v514
      %v2105 = vmul.f32 %v2095, %v522
      %v2106 = vmul.f32 %v2096, %v526
      %v2107 = vmul.f32 %v2095, %v534
      %v2108 = vmul.f32 %v2096, %v538
      %2111 = vrot.lane.b32.xlu0 %v2095, 127
      %v2112 = vpop.permute.xlu0 %2111
      %2113 = vrot.lane.b32.xlu0 %v2096, 127
      %v2114 = vpop.permute.xlu0 %2113
      %v2115 = vsel %vm501, %v549, %v2112
      %v2116 = vsel %vm501, %v2112, %v2114
      %2119 = vrot.lane.b32.xlu0 %v2099, 126
      %v2120 = vpop.permute.xlu0 %2119
      %2121 = vrot.lane.b32.xlu0 %v2100, 126
      %v2122 = vpop.permute.xlu0 %2121
      %v2123 = vsel %vm565, %v560, %v2120
      %v2124 = vsel %vm565, %v2120, %v2122
      %2127 = vrot.lane.b32.xlu0 %v2101, 112
      %v2128 = vpop.permute.xlu0 %2127
      %2129 = vrot.lane.b32.xlu0 %v2102, 112
      %v2130 = vpop.permute.xlu0 %2129
      %v2131 = vsel %vm577, %v572, %v2128
      %v2132 = vsel %vm577, %v2128, %v2130
      %2133 = vrot.lane.b32.xlu0 %v2095, 111
      %v2134 = vpop.permute.xlu0 %2133
      %2135 = vrot.lane.b32.xlu0 %v2096, 111
      %v2136 = vpop.permute.xlu0 %2135
      %v2137 = vsel %vm468, %v2134, %v2136
      %2140 = vrot.lane.b32.xlu0 %v2103, 110
      %v2141 = vpop.permute.xlu0 %2140
      %2142 = vrot.lane.b32.xlu0 %v2104, 110
      %v2143 = vpop.permute.xlu0 %2142
      %v2144 = vsel %vm594, %v2141, %v2143
      %v2145 = vsel %vm594, %v2143, %v593
      %2148 = vrot.lane.b32.xlu0 %v2105, 96
      %v2149 = vpop.permute.xlu0 %2148
      %2150 = vrot.lane.b32.xlu0 %v2106, 96
      %v2151 = vpop.permute.xlu0 %2150
      %v2152 = vsel %vm606, %v2149, %v2151
      %v2153 = vsel %vm606, %v2151, %v605
      %2154 = vrot.lane.b32.xlu0 %v2095, 95
      %v2155 = vpop.permute.xlu0 %2154
      %2156 = vrot.lane.b32.xlu0 %v2096, 95
      %v2157 = vpop.permute.xlu0 %2156
      %v2158 = vsel %vm615, %v2155, %v2157
      %v2159 = vsel %vm615, %v2157, %v614
      %2162 = vrot.lane.b32.xlu0 %v2107, 94
      %v2163 = vpop.permute.xlu0 %2162
      %2164 = vrot.lane.b32.xlu0 %v2108, 94
      %v2165 = vpop.permute.xlu0 %2164
      %v2166 = vsel %vm627, %v2163, %v2165
      %v2167 = vsel %vm627, %v2165, %v626
      %2169 = vset.pattern.permute.xlu0 0
      %2170 = vperm.xlu0 %2169, %v1978
      %v2171 = vpop.permute.xlu0 %2170
      %2175 = vrot.lane.b32.xlu0 %v2097, 17
      %v2176 = vpop.permute.xlu0 %2175
      %2177 = vrot.lane.b32.xlu0 %v2098, 17
      %v2178 = vpop.permute.xlu0 %2177
      %2179 = vrot.lane.b32.xlu0 %v2115, 17
      %v2180 = vpop.permute.xlu0 %2179
      %2181 = vrot.lane.b32.xlu0 %v2116, 17
      %v2182 = vpop.permute.xlu0 %2181
      %2183 = vrot.lane.b32.xlu0 %v2114, 17
      %v2184 = vpop.permute.xlu0 %2183
      %2185 = vrot.lane.b32.xlu0 %v2123, 17
      %v2186 = vpop.permute.xlu0 %2185
      %2187 = vrot.lane.b32.xlu0 %v2124, 17
      %v2188 = vpop.permute.xlu0 %2187
      %2189 = vrot.lane.b32.xlu0 %v2122, 17
      %v2190 = vpop.permute.xlu0 %2189
      %2191 = vrot.lane.b32.xlu0 %v2131, 17
      %v2192 = vpop.permute.xlu0 %2191
      %2193 = vrot.lane.b32.xlu0 %v2132, 17
      %v2194 = vpop.permute.xlu0 %2193
      %2195 = vrot.lane.b32.xlu0 %v2130, 17
      %v2196 = vpop.permute.xlu0 %2195
      %2197 = vrot.lane.b32.xlu0 %v2134, 17
      %v2198 = vpop.permute.xlu0 %2197
      %2199 = vrot.lane.b32.xlu0 %v2137, 17
      %v2200 = vpop.permute.xlu0 %2199
      %2201 = vrot.lane.b32.xlu0 %v2136, 17
      %v2202 = vpop.permute.xlu0 %2201
      %2203 = vrot.lane.b32.xlu0 %v2141, 17
      %v2204 = vpop.permute.xlu0 %2203
      %2205 = vrot.lane.b32.xlu0 %v2144, 17
      %v2206 = vpop.permute.xlu0 %2205
      %2207 = vrot.lane.b32.xlu0 %v2145, 17
      %v2208 = vpop.permute.xlu0 %2207
      %2209 = vrot.lane.b32.xlu0 %v2149, 17
      %v2210 = vpop.permute.xlu0 %2209
      %2211 = vrot.lane.b32.xlu0 %v2152, 17
      %v2212 = vpop.permute.xlu0 %2211
      %2213 = vrot.lane.b32.xlu0 %v2153, 17
      %v2214 = vpop.permute.xlu0 %2213
      %2215 = vrot.lane.b32.xlu0 %v2155, 17
      %v2216 = vpop.permute.xlu0 %2215
      %2217 = vrot.lane.b32.xlu0 %v2158, 17
      %v2218 = vpop.permute.xlu0 %2217
      %2219 = vrot.lane.b32.xlu0 %v2159, 17
      %v2220 = vpop.permute.xlu0 %2219
      %2221 = vrot.lane.b32.xlu0 %v2163, 17
      %v2222 = vpop.permute.xlu0 %2221
      %2223 = vrot.lane.b32.xlu0 %v2166, 17
      %v2224 = vpop.permute.xlu0 %2223
      %2225 = vrot.lane.b32.xlu0 %v2167, 17
      %v2226 = vpop.permute.xlu0 %2225
      %v2227 = vsel %vm537, %v644, %v2176
      %v2228 = vsel %vm537, %v2176, %v2178
      %v2229 = vsel %vm537, %v2180, %v2182
      %v2230 = vsel %vm537, %v2182, %v2184
      %v2231 = vsel %vm537, %v2186, %v2188
      %v2232 = vsel %vm537, %v2188, %v2190
      %v2233 = vsel %vm537, %v2192, %v2194
      %v2234 = vsel %vm537, %v2194, %v2196
      %v2235 = vsel %vm537, %v2198, %v2200
      %v2236 = vsel %vm537, %v2200, %v2202
      %v2237 = vsel %vm537, %v2204, %v2206
      %v2238 = vsel %vm537, %v2206, %v2208
      %v2239 = vsel %vm537, %v2210, %v2212
      %v2240 = vsel %vm537, %v2212, %v2214
      %v2241 = vsel %vm537, %v2216, %v2218
      %v2242 = vsel %vm537, %v2218, %v2220
      %v2243 = vsel %vm537, %v2222, %v2224
      %v2244 = vsel %vm537, %v2224, %v2226
      %v2264 = vsel %vm733, %v1976, 0
      %2266 = vmatprep.subr.mxu0 %v2228
      %2267 = vmatpush1.msra.mxu0 %v2227
      %2268 = vmatprep.subr.mxu0 %v2230
      %2269 = vmatpush1.msra.mxu0 %v2229
      %2270 = vmatprep.subr.mxu0 %v2232
      %2271 = vmatpush1.msra.mxu0 %v2231
      %2272 = vmatprep.subr.mxu0 %v2234
      %2273 = vmatpush1.msra.mxu0 %v2233
      %2274 = vmatprep.subr.mxu0 %v2236
      %2275 = vmatpush1.msra.mxu0 %v2235
      %2276 = vmatprep.subr.mxu0 %v2238
      %2277 = vmatpush1.msra.mxu0 %v2237
      %2278 = vmatprep.subr.mxu0 %v2240
      %2279 = vmatpush1.msra.mxu0 %v2239
      %2280 = vmatprep.subr.mxu0 %v2242
      %2281 = vmatpush1.msra.mxu0 %v2241
      %2282 = vmatprep.subr.mxu0 %v2244
      %2283 = vmatpush1.msra.mxu0 %v2243
      %2284 = vmatprep.subr.mxu0 0.0
      %2285 = vmatpush1.msra.mxu0 0.0
      %2286 = vmatprep.subr.mxu0 0.0
      %2287 = vmatpush1.msra.mxu0 0.0
      %2288 = vmatprep.subr.mxu0 0.0
      %2289 = vmatpush1.msra.mxu0 0.0
      %2290 = vmatprep.subr.mxu0 0.0
      %2291 = vmatpush1.msra.mxu0 0.0
      %2292 = vmatprep.subr.mxu0 0.0
      %2293 = vmatpush1.msra.mxu0 0.0
      %2294 = vmatprep.subr.mxu0 0.0
      %2295 = vmatpush1.msra.mxu0 0.0
      %2296 = vmatprep.subr.mxu0 0.0
      %2297 = vmatpush1.msra.mxu0 0.0
      %2298 = vmatprep.subr.mxu0 0.0
      %2299 = vmatpush1.msra.mxu0 0.0
      %2300 = vmatprep.subr.mxu0 0.0
      %2301 = vmatpush1.msra.mxu0 0.0
      %2302 = vmatprep.subr.mxu0 0.0
      %2303 = vmatpush1.msra.mxu0 0.0
      %2304 = vmatprep.subr.mxu0 0.0
      %2305 = vmatpush1.msra.mxu0 0.0
      %2306 = vmatprep.subr.mxu0 0.0
      %2307 = vmatpush1.msra.mxu0 0.0
      %2308 = vmatprep.subr.mxu0 0.0
      %2309 = vmatpush1.msra.mxu0 0.0
      %2310 = vmatprep.subr.mxu0 0.0
      %2311 = vmatpush1.msra.mxu0 0.0
      %2312 = vmatprep.subr.mxu0 0.0
      %2313 = vmatpush1.msra.mxu0 0.0
      %2314 = vmatprep.subr.mxu0 0.0
      %2315 = vmatpush1.msra.mxu0 0.0
      %2316 = vmatprep.subr.mxu0 0.0
      %2317 = vmatpush1.msra.mxu0 0.0
      %2318 = vmatprep.subr.mxu0 0.0
      %2319 = vmatpush1.msra.mxu0 0.0
      %2320 = vmatprep.subr.mxu0 0.0
      %2321 = vmatpush1.msra.mxu0 0.0
      %2322 = vmatprep.subr.mxu0 0.0
      %2323 = vmatpush1.msra.mxu0 0.0
      %2324 = vmatprep.subr.mxu0 0.0
      %2325 = vmatpush1.msra.mxu0 0.0
      %2326 = vmatprep.subr.mxu0 0.0
      %2327 = vmatpush1.msra.mxu0 0.0
      %2328 = vmatprep.subr.mxu0 0.0
      %2329 = vmatpush1.msra.mxu0 0.0
      %2330 = vmatprep.mubr.f32.mxu0 0.0
      %2331 = vmatmul.mubr.f32.gmra.mrb[0].mxu0 %v2264
      %v2332 = vpop.f32.mrb[0].mxu0
      %v2333 = vadd.f32 %v2171, %v2332
      %v2334 = vpop.f32.mrb[0].mxu0
      %v2335 = vadd.f32 %v2171, %v2334
      %2336 = vdwg.mxu0
      %v2337 = vadd.f32 %v1432, %v2333
      %v2338 = vadd.f32 %v1433, %v2335
      %v2339 = vmul.f32 %v1965, 0.5
      %v2340 = vmul.f32 %v1966, 0.5
      %v2341 = vtanh.pop %v2339
      %v2342 = vtanh.pop %v2340
      %v2343 = vmul.f32 %v2341, 0.8
      %v2344 = vmul.f32 %v2342, 0.8
      %v2345 = vmul.f32 %v2343, 1.442695
      %v2346 = vpow.pop %v2345
      %v2347 = vmul.f32 %v2344, 1.442695
      %v2348 = vpow.pop %v2347
      %v2349 = vmul.f32 %v899, %v2346
      %v2350 = vmul.f32 %v901, %v2348
      %v2351 = vadd.f32 %v2349, %v2337
      %v2352 = vadd.f32 %v2350, %v2338
      %s2353 = scalar_lea.vmem %s4, 16
      %v2354 = vld [vmem:[%s2353] sm:$0xff]
      %v2355 = vld [vmem:[%s2353 + $0x8] sm:$0xff]
      %v2357 = vsel %vm819, %v2354, 0
      %v2360 = vsel %vm819, %v2355, 0
      %2362 = vmatprep.subr.mxu0 %v1433
      %2363 = vmatpush1.msra.mxu0 %v1432
      %2364 = vmatprep.subr.mxu0 %v2352
      %2365 = vmatpush1.msra.mxu0 %v2351
      %2366 = vmatprep.subr.mxu0 0.0
      %2367 = vmatpush1.msra.mxu0 0.0
      %2368 = vmatprep.subr.mxu0 0.0
      %2369 = vmatpush1.msra.mxu0 0.0
      %2370 = vmatprep.subr.mxu0 0.0
      %2371 = vmatpush1.msra.mxu0 0.0
      %2372 = vmatprep.subr.mxu0 0.0
      %2373 = vmatpush1.msra.mxu0 0.0
      %2374 = vmatprep.subr.mxu0 0.0
      %2375 = vmatpush1.msra.mxu0 0.0
      %2376 = vmatprep.subr.mxu0 0.0
      %2377 = vmatpush1.msra.mxu0 0.0
      %2378 = vmatprep.subr.mxu0 0.0
      %2379 = vmatpush1.msra.mxu0 0.0
      %2380 = vmatprep.subr.mxu0 0.0
      %2381 = vmatpush1.msra.mxu0 0.0
      %2382 = vmatprep.subr.mxu0 0.0
      %2383 = vmatpush1.msra.mxu0 0.0
      %2384 = vmatprep.subr.mxu0 0.0
      %2385 = vmatpush1.msra.mxu0 0.0
      %2386 = vmatprep.subr.mxu0 0.0
      %2387 = vmatpush1.msra.mxu0 0.0
      %2388 = vmatprep.subr.mxu0 0.0
      %2389 = vmatpush1.msra.mxu0 0.0
      %2390 = vmatprep.subr.mxu0 0.0
      %2391 = vmatpush1.msra.mxu0 0.0
      %2392 = vmatprep.subr.mxu0 0.0
      %2393 = vmatpush1.msra.mxu0 0.0
      %2394 = vmatprep.subr.mxu0 0.0
      %2395 = vmatpush1.msra.mxu0 0.0
      %2396 = vmatprep.subr.mxu0 0.0
      %2397 = vmatpush1.msra.mxu0 0.0
      %2398 = vmatprep.subr.mxu0 0.0
      %2399 = vmatpush1.msra.mxu0 0.0
      %2400 = vmatprep.subr.mxu0 0.0
      %2401 = vmatpush1.msra.mxu0 0.0
      %2402 = vmatprep.subr.mxu0 0.0
      %2403 = vmatpush1.msra.mxu0 0.0
      %2404 = vmatprep.subr.mxu0 0.0
      %2405 = vmatpush1.msra.mxu0 0.0
      %2406 = vmatprep.subr.mxu0 0.0
      %2407 = vmatpush1.msra.mxu0 0.0
      %2408 = vmatprep.subr.mxu0 0.0
      %2409 = vmatpush1.msra.mxu0 0.0
      %2410 = vmatprep.subr.mxu0 0.0
      %2411 = vmatpush1.msra.mxu0 0.0
      %2412 = vmatprep.subr.mxu0 0.0
      %2413 = vmatpush1.msra.mxu0 0.0
      %2414 = vmatprep.subr.mxu0 0.0
      %2415 = vmatpush1.msra.mxu0 0.0
      %2416 = vmatprep.subr.mxu0 0.0
      %2417 = vmatpush1.msra.mxu0 0.0
      %2418 = vmatprep.subr.mxu0 0.0
      %2419 = vmatpush1.msra.mxu0 0.0
      %2420 = vmatprep.subr.mxu0 0.0
      %2421 = vmatpush1.msra.mxu0 0.0
      %2422 = vmatprep.subr.mxu0 0.0
      %2423 = vmatpush1.msra.mxu0 0.0
      %2424 = vmatprep.subr.mxu0 0.0
      %2425 = vmatpush1.msra.mxu0 0.0
      %2426 = vmatprep.mubr.f32.mxu0 0.0
      %2427 = vmatmul.mubr.f32.gmra.mrb[0].mxu0 %v2357
      %v2428 = vpop.f32.mrb[0].mxu0
      %v2429 = vadd.f32 0.0, %v2428
      %v2430 = vpop.f32.mrb[0].mxu0
      %v2431 = vadd.f32 0.0, %v2430
      %2432 = vmatprep.mubr.f32.mxu0 0.0
      %2433 = vmatmul.mubr.f32.gmra.mrb[0].mxu0 %v2360
      %v2434 = vpop.f32.mrb[0].mxu0
      %v2435 = vadd.f32 0.0, %v2434
      %v2436 = vpop.f32.mrb[0].mxu0
      %v2437 = vadd.f32 0.0, %v2436
      %2438 = vdwg.mxu0
      %s2439 = scalar_lea.vmem %s5, 24
      %v2440 = vld [vmem:[%s2439] sm:$0xff]
      %s2441 = scalar_lea.vmem %s6, 24
      %v2442 = vld [vmem:[%s2441] sm:$0xff]
      %s2443 = scalar_lea.vmem %s7, 24
      %v2444 = vld [vmem:[%s2443] sm:$0xff]
      %s2445 = scalar_lea.vmem %s8, 24
      %v2446 = vld [vmem:[%s2445] sm:$0xff]
      %s2447 = scalar_lea.vmem %s9, 24
      %v2448 = vld [vmem:[%s2447] sm:$0xff]
      %s2449 = scalar_lea.vmem %s10, 24
      %v2450 = vld [vmem:[%s2449] sm:$0xff]
      %v2451 = vmul.f32 %v2435, %v469
      %v2452 = vmul.f32 %v2437, %v467
      %v2453 = vmul.f32 %v2435, %v490
      %v2454 = vmul.f32 %v2437, %v488
      %v2455 = vmul.f32 %v2435, %v502
      %v2456 = vmul.f32 %v2437, %v500
      %v2457 = vmul.f32 %v2435, %v510
      %v2458 = vmul.f32 %v2437, %v514
      %v2459 = vmul.f32 %v2435, %v522
      %v2460 = vmul.f32 %v2437, %v526
      %v2461 = vmul.f32 %v2435, %v534
      %v2462 = vmul.f32 %v2437, %v538
      %2465 = vrot.lane.b32.xlu0 %v2435, 127
      %v2466 = vpop.permute.xlu0 %2465
      %2467 = vrot.lane.b32.xlu0 %v2437, 127
      %v2468 = vpop.permute.xlu0 %2467
      %v2469 = vsel %vm501, %v549, %v2466
      %v2470 = vsel %vm501, %v2466, %v2468
      %2473 = vrot.lane.b32.xlu0 %v2453, 126
      %v2474 = vpop.permute.xlu0 %2473
      %2475 = vrot.lane.b32.xlu0 %v2454, 126
      %v2476 = vpop.permute.xlu0 %2475
      %v2477 = vsel %vm565, %v560, %v2474
      %v2478 = vsel %vm565, %v2474, %v2476
      %2481 = vrot.lane.b32.xlu0 %v2455, 112
      %v2482 = vpop.permute.xlu0 %2481
      %2483 = vrot.lane.b32.xlu0 %v2456, 112
      %v2484 = vpop.permute.xlu0 %2483
      %v2485 = vsel %vm577, %v572, %v2482
      %v2486 = vsel %vm577, %v2482, %v2484
      %2487 = vrot.lane.b32.xlu0 %v2435, 111
      %v2488 = vpop.permute.xlu0 %2487
      %2489 = vrot.lane.b32.xlu0 %v2437, 111
      %v2490 = vpop.permute.xlu0 %2489
      %v2491 = vsel %vm468, %v2488, %v2490
      %2494 = vrot.lane.b32.xlu0 %v2457, 110
      %v2495 = vpop.permute.xlu0 %2494
      %2496 = vrot.lane.b32.xlu0 %v2458, 110
      %v2497 = vpop.permute.xlu0 %2496
      %v2498 = vsel %vm594, %v2495, %v2497
      %v2499 = vsel %vm594, %v2497, %v593
      %2502 = vrot.lane.b32.xlu0 %v2459, 96
      %v2503 = vpop.permute.xlu0 %2502
      %2504 = vrot.lane.b32.xlu0 %v2460, 96
      %v2505 = vpop.permute.xlu0 %2504
      %v2506 = vsel %vm606, %v2503, %v2505
      %v2507 = vsel %vm606, %v2505, %v605
      %2508 = vrot.lane.b32.xlu0 %v2435, 95
      %v2509 = vpop.permute.xlu0 %2508
      %2510 = vrot.lane.b32.xlu0 %v2437, 95
      %v2511 = vpop.permute.xlu0 %2510
      %v2512 = vsel %vm615, %v2509, %v2511
      %v2513 = vsel %vm615, %v2511, %v614
      %2516 = vrot.lane.b32.xlu0 %v2461, 94
      %v2517 = vpop.permute.xlu0 %2516
      %2518 = vrot.lane.b32.xlu0 %v2462, 94
      %v2519 = vpop.permute.xlu0 %2518
      %v2520 = vsel %vm627, %v2517, %v2519
      %v2521 = vsel %vm627, %v2519, %v626
      %2523 = vset.pattern.permute.xlu0 0
      %2524 = vperm.xlu0 %2523, %v2442
      %v2525 = vpop.permute.xlu0 %2524
      %2529 = vrot.lane.b32.xlu0 %v2451, 17
      %v2530 = vpop.permute.xlu0 %2529
      %2531 = vrot.lane.b32.xlu0 %v2452, 17
      %v2532 = vpop.permute.xlu0 %2531
      %2533 = vrot.lane.b32.xlu0 %v2469, 17
      %v2534 = vpop.permute.xlu0 %2533
      %2535 = vrot.lane.b32.xlu0 %v2470, 17
      %v2536 = vpop.permute.xlu0 %2535
      %2537 = vrot.lane.b32.xlu0 %v2468, 17
      %v2538 = vpop.permute.xlu0 %2537
      %2539 = vrot.lane.b32.xlu0 %v2477, 17
      %v2540 = vpop.permute.xlu0 %2539
      %2541 = vrot.lane.b32.xlu0 %v2478, 17
      %v2542 = vpop.permute.xlu0 %2541
      %2543 = vrot.lane.b32.xlu0 %v2476, 17
      %v2544 = vpop.permute.xlu0 %2543
      %2545 = vrot.lane.b32.xlu0 %v2485, 17
      %v2546 = vpop.permute.xlu0 %2545
      %2547 = vrot.lane.b32.xlu0 %v2486, 17
      %v2548 = vpop.permute.xlu0 %2547
      %2549 = vrot.lane.b32.xlu0 %v2484, 17
      %v2550 = vpop.permute.xlu0 %2549
      %2551 = vrot.lane.b32.xlu0 %v2488, 17
      %v2552 = vpop.permute.xlu0 %2551
      %2553 = vrot.lane.b32.xlu0 %v2491, 17
      %v2554 = vpop.permute.xlu0 %2553
      %2555 = vrot.lane.b32.xlu0 %v2490, 17
      %v2556 = vpop.permute.xlu0 %2555
      %2557 = vrot.lane.b32.xlu0 %v2495, 17
      %v2558 = vpop.permute.xlu0 %2557
      %2559 = vrot.lane.b32.xlu0 %v2498, 17
      %v2560 = vpop.permute.xlu0 %2559
      %2561 = vrot.lane.b32.xlu0 %v2499, 17
      %v2562 = vpop.permute.xlu0 %2561
      %2563 = vrot.lane.b32.xlu0 %v2503, 17
      %v2564 = vpop.permute.xlu0 %2563
      %2565 = vrot.lane.b32.xlu0 %v2506, 17
      %v2566 = vpop.permute.xlu0 %2565
      %2567 = vrot.lane.b32.xlu0 %v2507, 17
      %v2568 = vpop.permute.xlu0 %2567
      %2569 = vrot.lane.b32.xlu0 %v2509, 17
      %v2570 = vpop.permute.xlu0 %2569
      %2571 = vrot.lane.b32.xlu0 %v2512, 17
      %v2572 = vpop.permute.xlu0 %2571
      %2573 = vrot.lane.b32.xlu0 %v2513, 17
      %v2574 = vpop.permute.xlu0 %2573
      %2575 = vrot.lane.b32.xlu0 %v2517, 17
      %v2576 = vpop.permute.xlu0 %2575
      %2577 = vrot.lane.b32.xlu0 %v2520, 17
      %v2578 = vpop.permute.xlu0 %2577
      %2579 = vrot.lane.b32.xlu0 %v2521, 17
      %v2580 = vpop.permute.xlu0 %2579
      %v2581 = vsel %vm537, %v644, %v2530
      %v2582 = vsel %vm537, %v2530, %v2532
      %v2583 = vsel %vm537, %v2534, %v2536
      %v2584 = vsel %vm537, %v2536, %v2538
      %v2585 = vsel %vm537, %v2540, %v2542
      %v2586 = vsel %vm537, %v2542, %v2544
      %v2587 = vsel %vm537, %v2546, %v2548
      %v2588 = vsel %vm537, %v2548, %v2550
      %v2589 = vsel %vm537, %v2552, %v2554
      %v2590 = vsel %vm537, %v2554, %v2556
      %v2591 = vsel %vm537, %v2558, %v2560
      %v2592 = vsel %vm537, %v2560, %v2562
      %v2593 = vsel %vm537, %v2564, %v2566
      %v2594 = vsel %vm537, %v2566, %v2568
      %v2595 = vsel %vm537, %v2570, %v2572
      %v2596 = vsel %vm537, %v2572, %v2574
      %v2597 = vsel %vm537, %v2576, %v2578
      %v2598 = vsel %vm537, %v2578, %v2580
      %v2618 = vsel %vm733, %v2440, 0
      %2620 = vmatprep.subr.mxu0 %v2582
      %2621 = vmatpush1.msra.mxu0 %v2581
      %2622 = vmatprep.subr.mxu0 %v2584
      %2623 = vmatpush1.msra.mxu0 %v2583
      %2624 = vmatprep.subr.mxu0 %v2586
      %2625 = vmatpush1.msra.mxu0 %v2585
      %2626 = vmatprep.subr.mxu0 %v2588
      %2627 = vmatpush1.msra.mxu0 %v2587
      %2628 = vmatprep.subr.mxu0 %v2590
      %2629 = vmatpush1.msra.mxu0 %v2589
      %2630 = vmatprep.subr.mxu0 %v2592
      %2631 = vmatpush1.msra.mxu0 %v2591
      %2632 = vmatprep.subr.mxu0 %v2594
      %2633 = vmatpush1.msra.mxu0 %v2593
      %2634 = vmatprep.subr.mxu0 %v2596
      %2635 = vmatpush1.msra.mxu0 %v2595
      %2636 = vmatprep.subr.mxu0 %v2598
      %2637 = vmatpush1.msra.mxu0 %v2597
      %2638 = vmatprep.subr.mxu0 0.0
      %2639 = vmatpush1.msra.mxu0 0.0
      %2640 = vmatprep.subr.mxu0 0.0
      %2641 = vmatpush1.msra.mxu0 0.0
      %2642 = vmatprep.subr.mxu0 0.0
      %2643 = vmatpush1.msra.mxu0 0.0
      %2644 = vmatprep.subr.mxu0 0.0
      %2645 = vmatpush1.msra.mxu0 0.0
      %2646 = vmatprep.subr.mxu0 0.0
      %2647 = vmatpush1.msra.mxu0 0.0
      %2648 = vmatprep.subr.mxu0 0.0
      %2649 = vmatpush1.msra.mxu0 0.0
      %2650 = vmatprep.subr.mxu0 0.0
      %2651 = vmatpush1.msra.mxu0 0.0
      %2652 = vmatprep.subr.mxu0 0.0
      %2653 = vmatpush1.msra.mxu0 0.0
      %2654 = vmatprep.subr.mxu0 0.0
      %2655 = vmatpush1.msra.mxu0 0.0
      %2656 = vmatprep.subr.mxu0 0.0
      %2657 = vmatpush1.msra.mxu0 0.0
      %2658 = vmatprep.subr.mxu0 0.0
      %2659 = vmatpush1.msra.mxu0 0.0
      %2660 = vmatprep.subr.mxu0 0.0
      %2661 = vmatpush1.msra.mxu0 0.0
      %2662 = vmatprep.subr.mxu0 0.0
      %2663 = vmatpush1.msra.mxu0 0.0
      %2664 = vmatprep.subr.mxu0 0.0
      %2665 = vmatpush1.msra.mxu0 0.0
      %2666 = vmatprep.subr.mxu0 0.0
      %2667 = vmatpush1.msra.mxu0 0.0
      %2668 = vmatprep.subr.mxu0 0.0
      %2669 = vmatpush1.msra.mxu0 0.0
      %2670 = vmatprep.subr.mxu0 0.0
      %2671 = vmatpush1.msra.mxu0 0.0
      %2672 = vmatprep.subr.mxu0 0.0
      %2673 = vmatpush1.msra.mxu0 0.0
      %2674 = vmatprep.subr.mxu0 0.0
      %2675 = vmatpush1.msra.mxu0 0.0
      %2676 = vmatprep.subr.mxu0 0.0
      %2677 = vmatpush1.msra.mxu0 0.0
      %2678 = vmatprep.subr.mxu0 0.0
      %2679 = vmatpush1.msra.mxu0 0.0
      %2680 = vmatprep.subr.mxu0 0.0
      %2681 = vmatpush1.msra.mxu0 0.0
      %2682 = vmatprep.subr.mxu0 0.0
      %2683 = vmatpush1.msra.mxu0 0.0
      %2684 = vmatprep.mubr.f32.mxu0 0.0
      %2685 = vmatmul.mubr.f32.gmra.mrb[0].mxu0 %v2618
      %v2686 = vpop.f32.mrb[0].mxu0
      %v2687 = vadd.f32 %v2525, %v2686
      %v2688 = vpop.f32.mrb[0].mxu0
      %v2689 = vadd.f32 %v2525, %v2688
      %2690 = vdwg.mxu0
      %v2691 = vadd.f32 %v2687, %v2689
      %2692 = vadd.xlane.f32.xlu0 %v2691
      %v2693 = vpop.xlane.xlu0 %2692
      %v2694 = vmul.f32 %v2693, %v1152
      %v2695 = vmul.f32 %v2687, %v2687
      %v2696 = vmul.f32 %v2689, %v2689
      %v2697 = vadd.f32 %v2695, %v2696
      %2698 = vadd.xlane.f32.xlu0 %v2697
      %v2699 = vpop.xlane.xlu0 %2698
      %v2700 = vmul.f32 %v2699, %v1152
      %v2701 = vmul.f32 %v2694, %v2694
      %v2702 = vsub.f32 %v2700, %v2701
      %v2703 = vmax.f32 %v2702, 0.0
      %v2704 = vsub.f32 %v2687, %v2694
      %v2705 = vsub.f32 %v2689, %v2694
      %v2706 = vadd.f32 %v2703, 1e-05
      %v2707 = vrsqrt.pop %v2706
      %v2708 = vmul.f32 %v2704, %v2707
      %v2709 = vmul.f32 %v2705, %v2707
      %2711 = vset.pattern.permute.xlu0 0
      %2712 = vperm.xlu0 %2711, %v2444
      %v2713 = vpop.permute.xlu0 %2712
      %v2715 = vmul.f32 %v2708, %v2713
      %v2716 = vmul.f32 %v2709, %v2713
      %2718 = vset.pattern.permute.xlu0 0
      %2719 = vperm.xlu0 %2718, %v2446
      %v2720 = vpop.permute.xlu0 %2719
      %v2722 = vadd.f32 %v2715, %v2720
      %v2723 = vadd.f32 %v2716, %v2720
      %v2724 = vmul.f32 %v2722, %v448
      %v2725 = vmul.f32 %v2723, %v448
      %v2726 = vmul.f32 %v2687, %v1185
      %v2727 = vmul.f32 %v2689, %v1185
      %v2728 = vadd.f32 %v2724, %v2726
      %v2729 = vadd.f32 %v2725, %v2727
      %v2730 = vmul.f32 %v2728, %v469
      %v2731 = vmul.f32 %v2729, %v467
      %v2732 = vmul.f32 %v2728, %v490
      %v2733 = vmul.f32 %v2729, %v488
      %v2734 = vmul.f32 %v2728, %v502
      %v2735 = vmul.f32 %v2729, %v500
      %v2736 = vmul.f32 %v2728, %v510
      %v2737 = vmul.f32 %v2729, %v514
      %v2738 = vmul.f32 %v2728, %v522
      %v2739 = vmul.f32 %v2729, %v526
      %v2740 = vmul.f32 %v2728, %v534
      %v2741 = vmul.f32 %v2729, %v538
      %2744 = vrot.lane.b32.xlu0 %v2728, 127
      %v2745 = vpop.permute.xlu0 %2744
      %2746 = vrot.lane.b32.xlu0 %v2729, 127
      %v2747 = vpop.permute.xlu0 %2746
      %v2748 = vsel %vm501, %v549, %v2745
      %v2749 = vsel %vm501, %v2745, %v2747
      %2752 = vrot.lane.b32.xlu0 %v2732, 126
      %v2753 = vpop.permute.xlu0 %2752
      %2754 = vrot.lane.b32.xlu0 %v2733, 126
      %v2755 = vpop.permute.xlu0 %2754
      %v2756 = vsel %vm565, %v560, %v2753
      %v2757 = vsel %vm565, %v2753, %v2755
      %2760 = vrot.lane.b32.xlu0 %v2734, 112
      %v2761 = vpop.permute.xlu0 %2760
      %2762 = vrot.lane.b32.xlu0 %v2735, 112
      %v2763 = vpop.permute.xlu0 %2762
      %v2764 = vsel %vm577, %v572, %v2761
      %v2765 = vsel %vm577, %v2761, %v2763
      %2766 = vrot.lane.b32.xlu0 %v2728, 111
      %v2767 = vpop.permute.xlu0 %2766
      %2768 = vrot.lane.b32.xlu0 %v2729, 111
      %v2769 = vpop.permute.xlu0 %2768
      %v2770 = vsel %vm468, %v2767, %v2769
      %2773 = vrot.lane.b32.xlu0 %v2736, 110
      %v2774 = vpop.permute.xlu0 %2773
      %2775 = vrot.lane.b32.xlu0 %v2737, 110
      %v2776 = vpop.permute.xlu0 %2775
      %v2777 = vsel %vm594, %v2774, %v2776
      %v2778 = vsel %vm594, %v2776, %v593
      %2781 = vrot.lane.b32.xlu0 %v2738, 96
      %v2782 = vpop.permute.xlu0 %2781
      %2783 = vrot.lane.b32.xlu0 %v2739, 96
      %v2784 = vpop.permute.xlu0 %2783
      %v2785 = vsel %vm606, %v2782, %v2784
      %v2786 = vsel %vm606, %v2784, %v605
      %2787 = vrot.lane.b32.xlu0 %v2728, 95
      %v2788 = vpop.permute.xlu0 %2787
      %2789 = vrot.lane.b32.xlu0 %v2729, 95
      %v2790 = vpop.permute.xlu0 %2789
      %v2791 = vsel %vm615, %v2788, %v2790
      %v2792 = vsel %vm615, %v2790, %v614
      %2795 = vrot.lane.b32.xlu0 %v2740, 94
      %v2796 = vpop.permute.xlu0 %2795
      %2797 = vrot.lane.b32.xlu0 %v2741, 94
      %v2798 = vpop.permute.xlu0 %2797
      %v2799 = vsel %vm627, %v2796, %v2798
      %v2800 = vsel %vm627, %v2798, %v626
      %2802 = vset.pattern.permute.xlu0 0
      %2803 = vperm.xlu0 %2802, %v2450
      %v2804 = vpop.permute.xlu0 %2803
      %2808 = vrot.lane.b32.xlu0 %v2730, 17
      %v2809 = vpop.permute.xlu0 %2808
      %2810 = vrot.lane.b32.xlu0 %v2731, 17
      %v2811 = vpop.permute.xlu0 %2810
      %2812 = vrot.lane.b32.xlu0 %v2748, 17
      %v2813 = vpop.permute.xlu0 %2812
      %2814 = vrot.lane.b32.xlu0 %v2749, 17
      %v2815 = vpop.permute.xlu0 %2814
      %2816 = vrot.lane.b32.xlu0 %v2747, 17
      %v2817 = vpop.permute.xlu0 %2816
      %2818 = vrot.lane.b32.xlu0 %v2756, 17
      %v2819 = vpop.permute.xlu0 %2818
      %2820 = vrot.lane.b32.xlu0 %v2757, 17
      %v2821 = vpop.permute.xlu0 %2820
      %2822 = vrot.lane.b32.xlu0 %v2755, 17
      %v2823 = vpop.permute.xlu0 %2822
      %2824 = vrot.lane.b32.xlu0 %v2764, 17
      %v2825 = vpop.permute.xlu0 %2824
      %2826 = vrot.lane.b32.xlu0 %v2765, 17
      %v2827 = vpop.permute.xlu0 %2826
      %2828 = vrot.lane.b32.xlu0 %v2763, 17
      %v2829 = vpop.permute.xlu0 %2828
      %2830 = vrot.lane.b32.xlu0 %v2767, 17
      %v2831 = vpop.permute.xlu0 %2830
      %2832 = vrot.lane.b32.xlu0 %v2770, 17
      %v2833 = vpop.permute.xlu0 %2832
      %2834 = vrot.lane.b32.xlu0 %v2769, 17
      %v2835 = vpop.permute.xlu0 %2834
      %2836 = vrot.lane.b32.xlu0 %v2774, 17
      %v2837 = vpop.permute.xlu0 %2836
      %2838 = vrot.lane.b32.xlu0 %v2777, 17
      %v2839 = vpop.permute.xlu0 %2838
      %2840 = vrot.lane.b32.xlu0 %v2778, 17
      %v2841 = vpop.permute.xlu0 %2840
      %2842 = vrot.lane.b32.xlu0 %v2782, 17
      %v2843 = vpop.permute.xlu0 %2842
      %2844 = vrot.lane.b32.xlu0 %v2785, 17
      %v2845 = vpop.permute.xlu0 %2844
      %2846 = vrot.lane.b32.xlu0 %v2786, 17
      %v2847 = vpop.permute.xlu0 %2846
      %2848 = vrot.lane.b32.xlu0 %v2788, 17
      %v2849 = vpop.permute.xlu0 %2848
      %2850 = vrot.lane.b32.xlu0 %v2791, 17
      %v2851 = vpop.permute.xlu0 %2850
      %2852 = vrot.lane.b32.xlu0 %v2792, 17
      %v2853 = vpop.permute.xlu0 %2852
      %2854 = vrot.lane.b32.xlu0 %v2796, 17
      %v2855 = vpop.permute.xlu0 %2854
      %2856 = vrot.lane.b32.xlu0 %v2799, 17
      %v2857 = vpop.permute.xlu0 %2856
      %2858 = vrot.lane.b32.xlu0 %v2800, 17
      %v2859 = vpop.permute.xlu0 %2858
      %v2860 = vsel %vm537, %v644, %v2809
      %v2861 = vsel %vm537, %v2809, %v2811
      %v2862 = vsel %vm537, %v2813, %v2815
      %v2863 = vsel %vm537, %v2815, %v2817
      %v2864 = vsel %vm537, %v2819, %v2821
      %v2865 = vsel %vm537, %v2821, %v2823
      %v2866 = vsel %vm537, %v2825, %v2827
      %v2867 = vsel %vm537, %v2827, %v2829
      %v2868 = vsel %vm537, %v2831, %v2833
      %v2869 = vsel %vm537, %v2833, %v2835
      %v2870 = vsel %vm537, %v2837, %v2839
      %v2871 = vsel %vm537, %v2839, %v2841
      %v2872 = vsel %vm537, %v2843, %v2845
      %v2873 = vsel %vm537, %v2845, %v2847
      %v2874 = vsel %vm537, %v2849, %v2851
      %v2875 = vsel %vm537, %v2851, %v2853
      %v2876 = vsel %vm537, %v2855, %v2857
      %v2877 = vsel %vm537, %v2857, %v2859
      %v2897 = vsel %vm733, %v2448, 0
      %2899 = vmatprep.subr.mxu0 %v2861
      %2900 = vmatpush1.msra.mxu0 %v2860
      %2901 = vmatprep.subr.mxu0 %v2863
      %2902 = vmatpush1.msra.mxu0 %v2862
      %2903 = vmatprep.subr.mxu0 %v2865
      %2904 = vmatpush1.msra.mxu0 %v2864
      %2905 = vmatprep.subr.mxu0 %v2867
      %2906 = vmatpush1.msra.mxu0 %v2866
      %2907 = vmatprep.subr.mxu0 %v2869
      %2908 = vmatpush1.msra.mxu0 %v2868
      %2909 = vmatprep.subr.mxu0 %v2871
      %2910 = vmatpush1.msra.mxu0 %v2870
      %2911 = vmatprep.subr.mxu0 %v2873
      %2912 = vmatpush1.msra.mxu0 %v2872
      %2913 = vmatprep.subr.mxu0 %v2875
      %2914 = vmatpush1.msra.mxu0 %v2874
      %2915 = vmatprep.subr.mxu0 %v2877
      %2916 = vmatpush1.msra.mxu0 %v2876
      %2917 = vmatprep.subr.mxu0 0.0
      %2918 = vmatpush1.msra.mxu0 0.0
      %2919 = vmatprep.subr.mxu0 0.0
      %2920 = vmatpush1.msra.mxu0 0.0
      %2921 = vmatprep.subr.mxu0 0.0
      %2922 = vmatpush1.msra.mxu0 0.0
      %2923 = vmatprep.subr.mxu0 0.0
      %2924 = vmatpush1.msra.mxu0 0.0
      %2925 = vmatprep.subr.mxu0 0.0
      %2926 = vmatpush1.msra.mxu0 0.0
      %2927 = vmatprep.subr.mxu0 0.0
      %2928 = vmatpush1.msra.mxu0 0.0
      %2929 = vmatprep.subr.mxu0 0.0
      %2930 = vmatpush1.msra.mxu0 0.0
      %2931 = vmatprep.subr.mxu0 0.0
      %2932 = vmatpush1.msra.mxu0 0.0
      %2933 = vmatprep.subr.mxu0 0.0
      %2934 = vmatpush1.msra.mxu0 0.0
      %2935 = vmatprep.subr.mxu0 0.0
      %2936 = vmatpush1.msra.mxu0 0.0
      %2937 = vmatprep.subr.mxu0 0.0
      %2938 = vmatpush1.msra.mxu0 0.0
      %2939 = vmatprep.subr.mxu0 0.0
      %2940 = vmatpush1.msra.mxu0 0.0
      %2941 = vmatprep.subr.mxu0 0.0
      %2942 = vmatpush1.msra.mxu0 0.0
      %2943 = vmatprep.subr.mxu0 0.0
      %2944 = vmatpush1.msra.mxu0 0.0
      %2945 = vmatprep.subr.mxu0 0.0
      %2946 = vmatpush1.msra.mxu0 0.0
      %2947 = vmatprep.subr.mxu0 0.0
      %2948 = vmatpush1.msra.mxu0 0.0
      %2949 = vmatprep.subr.mxu0 0.0
      %2950 = vmatpush1.msra.mxu0 0.0
      %2951 = vmatprep.subr.mxu0 0.0
      %2952 = vmatpush1.msra.mxu0 0.0
      %2953 = vmatprep.subr.mxu0 0.0
      %2954 = vmatpush1.msra.mxu0 0.0
      %2955 = vmatprep.subr.mxu0 0.0
      %2956 = vmatpush1.msra.mxu0 0.0
      %2957 = vmatprep.subr.mxu0 0.0
      %2958 = vmatpush1.msra.mxu0 0.0
      %2959 = vmatprep.subr.mxu0 0.0
      %2960 = vmatpush1.msra.mxu0 0.0
      %2961 = vmatprep.subr.mxu0 0.0
      %2962 = vmatpush1.msra.mxu0 0.0
      %2963 = vmatprep.mubr.f32.mxu0 0.0
      %2964 = vmatmul.mubr.f32.gmra.mrb[0].mxu0 %v2897
      %v2965 = vpop.f32.mrb[0].mxu0
      %v2966 = vadd.f32 %v2804, %v2965
      %v2967 = vpop.f32.mrb[0].mxu0
      %v2968 = vadd.f32 %v2804, %v2967
      %2969 = vdwg.mxu0
      %v2970 = vadd.f32 %v2435, %v2966
      %v2971 = vadd.f32 %v2437, %v2968
      %v2972 = vadd.f32 %v2429, %v2970
      %v2973 = vadd.f32 %v2431, %v2971
      %s2974 = scalar_lea.vmem %s5, 32
      %v2975 = vld [vmem:[%s2974] sm:$0xff]
      %s2976 = scalar_lea.vmem %s6, 32
      %v2977 = vld [vmem:[%s2976] sm:$0xff]
      %s2978 = scalar_lea.vmem %s7, 32
      %v2979 = vld [vmem:[%s2978] sm:$0xff]
      %s2980 = scalar_lea.vmem %s8, 32
      %v2981 = vld [vmem:[%s2980] sm:$0xff]
      %s2982 = scalar_lea.vmem %s9, 32
      %v2983 = vld [vmem:[%s2982] sm:$0xff]
      %s2984 = scalar_lea.vmem %s10, 32
      %v2985 = vld [vmem:[%s2984] sm:$0xff]
      %v2986 = vmul.f32 %v2972, %v469
      %v2987 = vmul.f32 %v2973, %v467
      %v2988 = vmul.f32 %v2972, %v490
      %v2989 = vmul.f32 %v2973, %v488
      %v2990 = vmul.f32 %v2972, %v502
      %v2991 = vmul.f32 %v2973, %v500
      %v2992 = vmul.f32 %v2972, %v510
      %v2993 = vmul.f32 %v2973, %v514
      %v2994 = vmul.f32 %v2972, %v522
      %v2995 = vmul.f32 %v2973, %v526
      %v2996 = vmul.f32 %v2972, %v534
      %v2997 = vmul.f32 %v2973, %v538
      %3000 = vrot.lane.b32.xlu0 %v2972, 127
      %v3001 = vpop.permute.xlu0 %3000
      %3002 = vrot.lane.b32.xlu0 %v2973, 127
      %v3003 = vpop.permute.xlu0 %3002
      %v3004 = vsel %vm501, %v549, %v3001
      %v3005 = vsel %vm501, %v3001, %v3003
      %3008 = vrot.lane.b32.xlu0 %v2988, 126
      %v3009 = vpop.permute.xlu0 %3008
      %3010 = vrot.lane.b32.xlu0 %v2989, 126
      %v3011 = vpop.permute.xlu0 %3010
      %v3012 = vsel %vm565, %v560, %v3009
      %v3013 = vsel %vm565, %v3009, %v3011
      %3016 = vrot.lane.b32.xlu0 %v2990, 112
      %v3017 = vpop.permute.xlu0 %3016
      %3018 = vrot.lane.b32.xlu0 %v2991, 112
      %v3019 = vpop.permute.xlu0 %3018
      %v3020 = vsel %vm577, %v572, %v3017
      %v3021 = vsel %vm577, %v3017, %v3019
      %3022 = vrot.lane.b32.xlu0 %v2972, 111
      %v3023 = vpop.permute.xlu0 %3022
      %3024 = vrot.lane.b32.xlu0 %v2973, 111
      %v3025 = vpop.permute.xlu0 %3024
      %v3026 = vsel %vm468, %v3023, %v3025
      %3029 = vrot.lane.b32.xlu0 %v2992, 110
      %v3030 = vpop.permute.xlu0 %3029
      %3031 = vrot.lane.b32.xlu0 %v2993, 110
      %v3032 = vpop.permute.xlu0 %3031
      %v3033 = vsel %vm594, %v3030, %v3032
      %v3034 = vsel %vm594, %v3032, %v593
      %3037 = vrot.lane.b32.xlu0 %v2994, 96
      %v3038 = vpop.permute.xlu0 %3037
      %3039 = vrot.lane.b32.xlu0 %v2995, 96
      %v3040 = vpop.permute.xlu0 %3039
      %v3041 = vsel %vm606, %v3038, %v3040
      %v3042 = vsel %vm606, %v3040, %v605
      %3043 = vrot.lane.b32.xlu0 %v2972, 95
      %v3044 = vpop.permute.xlu0 %3043
      %3045 = vrot.lane.b32.xlu0 %v2973, 95
      %v3046 = vpop.permute.xlu0 %3045
      %v3047 = vsel %vm615, %v3044, %v3046
      %v3048 = vsel %vm615, %v3046, %v614
      %3051 = vrot.lane.b32.xlu0 %v2996, 94
      %v3052 = vpop.permute.xlu0 %3051
      %3053 = vrot.lane.b32.xlu0 %v2997, 94
      %v3054 = vpop.permute.xlu0 %3053
      %v3055 = vsel %vm627, %v3052, %v3054
      %v3056 = vsel %vm627, %v3054, %v626
      %3058 = vset.pattern.permute.xlu0 0
      %3059 = vperm.xlu0 %3058, %v2977
      %v3060 = vpop.permute.xlu0 %3059
      %3064 = vrot.lane.b32.xlu0 %v2986, 17
      %v3065 = vpop.permute.xlu0 %3064
      %3066 = vrot.lane.b32.xlu0 %v2987, 17
      %v3067 = vpop.permute.xlu0 %3066
      %3068 = vrot.lane.b32.xlu0 %v3004, 17
      %v3069 = vpop.permute.xlu0 %3068
      %3070 = vrot.lane.b32.xlu0 %v3005, 17
      %v3071 = vpop.permute.xlu0 %3070
      %3072 = vrot.lane.b32.xlu0 %v3003, 17
      %v3073 = vpop.permute.xlu0 %3072
      %3074 = vrot.lane.b32.xlu0 %v3012, 17
      %v3075 = vpop.permute.xlu0 %3074
      %3076 = vrot.lane.b32.xlu0 %v3013, 17
      %v3077 = vpop.permute.xlu0 %3076
      %3078 = vrot.lane.b32.xlu0 %v3011, 17
      %v3079 = vpop.permute.xlu0 %3078
      %3080 = vrot.lane.b32.xlu0 %v3020, 17
      %v3081 = vpop.permute.xlu0 %3080
      %3082 = vrot.lane.b32.xlu0 %v3021, 17
      %v3083 = vpop.permute.xlu0 %3082
      %3084 = vrot.lane.b32.xlu0 %v3019, 17
      %v3085 = vpop.permute.xlu0 %3084
      %3086 = vrot.lane.b32.xlu0 %v3023, 17
      %v3087 = vpop.permute.xlu0 %3086
      %3088 = vrot.lane.b32.xlu0 %v3026, 17
      %v3089 = vpop.permute.xlu0 %3088
      %3090 = vrot.lane.b32.xlu0 %v3025, 17
      %v3091 = vpop.permute.xlu0 %3090
      %3092 = vrot.lane.b32.xlu0 %v3030, 17
      %v3093 = vpop.permute.xlu0 %3092
      %3094 = vrot.lane.b32.xlu0 %v3033, 17
      %v3095 = vpop.permute.xlu0 %3094
      %3096 = vrot.lane.b32.xlu0 %v3034, 17
      %v3097 = vpop.permute.xlu0 %3096
      %3098 = vrot.lane.b32.xlu0 %v3038, 17
      %v3099 = vpop.permute.xlu0 %3098
      %3100 = vrot.lane.b32.xlu0 %v3041, 17
      %v3101 = vpop.permute.xlu0 %3100
      %3102 = vrot.lane.b32.xlu0 %v3042, 17
      %v3103 = vpop.permute.xlu0 %3102
      %3104 = vrot.lane.b32.xlu0 %v3044, 17
      %v3105 = vpop.permute.xlu0 %3104
      %3106 = vrot.lane.b32.xlu0 %v3047, 17
      %v3107 = vpop.permute.xlu0 %3106
      %3108 = vrot.lane.b32.xlu0 %v3048, 17
      %v3109 = vpop.permute.xlu0 %3108
      %3110 = vrot.lane.b32.xlu0 %v3052, 17
      %v3111 = vpop.permute.xlu0 %3110
      %3112 = vrot.lane.b32.xlu0 %v3055, 17
      %v3113 = vpop.permute.xlu0 %3112
      %3114 = vrot.lane.b32.xlu0 %v3056, 17
      %v3115 = vpop.permute.xlu0 %3114
      %v3116 = vsel %vm537, %v644, %v3065
      %v3117 = vsel %vm537, %v3065, %v3067
      %v3118 = vsel %vm537, %v3069, %v3071
      %v3119 = vsel %vm537, %v3071, %v3073
      %v3120 = vsel %vm537, %v3075, %v3077
      %v3121 = vsel %vm537, %v3077, %v3079
      %v3122 = vsel %vm537, %v3081, %v3083
      %v3123 = vsel %vm537, %v3083, %v3085
      %v3124 = vsel %vm537, %v3087, %v3089
      %v3125 = vsel %vm537, %v3089, %v3091
      %v3126 = vsel %vm537, %v3093, %v3095
      %v3127 = vsel %vm537, %v3095, %v3097
      %v3128 = vsel %vm537, %v3099, %v3101
      %v3129 = vsel %vm537, %v3101, %v3103
      %v3130 = vsel %vm537, %v3105, %v3107
      %v3131 = vsel %vm537, %v3107, %v3109
      %v3132 = vsel %vm537, %v3111, %v3113
      %v3133 = vsel %vm537, %v3113, %v3115
      %v3153 = vsel %vm733, %v2975, 0
      %3155 = vmatprep.subr.mxu0 %v3117
      %3156 = vmatpush1.msra.mxu0 %v3116
      %3157 = vmatprep.subr.mxu0 %v3119
      %3158 = vmatpush1.msra.mxu0 %v3118
      %3159 = vmatprep.subr.mxu0 %v3121
      %3160 = vmatpush1.msra.mxu0 %v3120
      %3161 = vmatprep.subr.mxu0 %v3123
      %3162 = vmatpush1.msra.mxu0 %v3122
      %3163 = vmatprep.subr.mxu0 %v3125
      %3164 = vmatpush1.msra.mxu0 %v3124
      %3165 = vmatprep.subr.mxu0 %v3127
      %3166 = vmatpush1.msra.mxu0 %v3126
      %3167 = vmatprep.subr.mxu0 %v3129
      %3168 = vmatpush1.msra.mxu0 %v3128
      %3169 = vmatprep.subr.mxu0 %v3131
      %3170 = vmatpush1.msra.mxu0 %v3130
      %3171 = vmatprep.subr.mxu0 %v3133
      %3172 = vmatpush1.msra.mxu0 %v3132
      %3173 = vmatprep.subr.mxu0 0.0
      %3174 = vmatpush1.msra.mxu0 0.0
      %3175 = vmatprep.subr.mxu0 0.0
      %3176 = vmatpush1.msra.mxu0 0.0
      %3177 = vmatprep.subr.mxu0 0.0
      %3178 = vmatpush1.msra.mxu0 0.0
      %3179 = vmatprep.subr.mxu0 0.0
      %3180 = vmatpush1.msra.mxu0 0.0
      %3181 = vmatprep.subr.mxu0 0.0
      %3182 = vmatpush1.msra.mxu0 0.0
      %3183 = vmatprep.subr.mxu0 0.0
      %3184 = vmatpush1.msra.mxu0 0.0
      %3185 = vmatprep.subr.mxu0 0.0
      %3186 = vmatpush1.msra.mxu0 0.0
      %3187 = vmatprep.subr.mxu0 0.0
      %3188 = vmatpush1.msra.mxu0 0.0
      %3189 = vmatprep.subr.mxu0 0.0
      %3190 = vmatpush1.msra.mxu0 0.0
      %3191 = vmatprep.subr.mxu0 0.0
      %3192 = vmatpush1.msra.mxu0 0.0
      %3193 = vmatprep.subr.mxu0 0.0
      %3194 = vmatpush1.msra.mxu0 0.0
      %3195 = vmatprep.subr.mxu0 0.0
      %3196 = vmatpush1.msra.mxu0 0.0
      %3197 = vmatprep.subr.mxu0 0.0
      %3198 = vmatpush1.msra.mxu0 0.0
      %3199 = vmatprep.subr.mxu0 0.0
      %3200 = vmatpush1.msra.mxu0 0.0
      %3201 = vmatprep.subr.mxu0 0.0
      %3202 = vmatpush1.msra.mxu0 0.0
      %3203 = vmatprep.subr.mxu0 0.0
      %3204 = vmatpush1.msra.mxu0 0.0
      %3205 = vmatprep.subr.mxu0 0.0
      %3206 = vmatpush1.msra.mxu0 0.0
      %3207 = vmatprep.subr.mxu0 0.0
      %3208 = vmatpush1.msra.mxu0 0.0
      %3209 = vmatprep.subr.mxu0 0.0
      %3210 = vmatpush1.msra.mxu0 0.0
      %3211 = vmatprep.subr.mxu0 0.0
      %3212 = vmatpush1.msra.mxu0 0.0
      %3213 = vmatprep.subr.mxu0 0.0
      %3214 = vmatpush1.msra.mxu0 0.0
      %3215 = vmatprep.subr.mxu0 0.0
      %3216 = vmatpush1.msra.mxu0 0.0
      %3217 = vmatprep.subr.mxu0 0.0
      %3218 = vmatpush1.msra.mxu0 0.0
      %3219 = vmatprep.mubr.f32.mxu0 0.0
      %3220 = vmatmul.mubr.f32.gmra.mrb[0].mxu0 %v3153
      %v3221 = vpop.f32.mrb[0].mxu0
      %v3222 = vadd.f32 %v3060, %v3221
      %v3223 = vpop.f32.mrb[0].mxu0
      %v3224 = vadd.f32 %v3060, %v3223
      %3225 = vdwg.mxu0
      %v3226 = vadd.f32 %v3222, %v3224
      %3227 = vadd.xlane.f32.xlu0 %v3226
      %v3228 = vpop.xlane.xlu0 %3227
      %v3229 = vmul.f32 %v3228, %v1152
      %v3230 = vmul.f32 %v3222, %v3222
      %v3231 = vmul.f32 %v3224, %v3224
      %v3232 = vadd.f32 %v3230, %v3231
      %3233 = vadd.xlane.f32.xlu0 %v3232
      %v3234 = vpop.xlane.xlu0 %3233
      %v3235 = vmul.f32 %v3234, %v1152
      %v3236 = vmul.f32 %v3229, %v3229
      %v3237 = vsub.f32 %v3235, %v3236
      %v3238 = vmax.f32 %v3237, 0.0
      %v3239 = vsub.f32 %v3222, %v3229
      %v3240 = vsub.f32 %v3224, %v3229
      %v3241 = vadd.f32 %v3238, 1e-05
      %v3242 = vrsqrt.pop %v3241
      %v3243 = vmul.f32 %v3239, %v3242
      %v3244 = vmul.f32 %v3240, %v3242
      %3246 = vset.pattern.permute.xlu0 0
      %3247 = vperm.xlu0 %3246, %v2979
      %v3248 = vpop.permute.xlu0 %3247
      %v3250 = vmul.f32 %v3243, %v3248
      %v3251 = vmul.f32 %v3244, %v3248
      %3253 = vset.pattern.permute.xlu0 0
      %3254 = vperm.xlu0 %3253, %v2981
      %v3255 = vpop.permute.xlu0 %3254
      %v3257 = vadd.f32 %v3250, %v3255
      %v3258 = vadd.f32 %v3251, %v3255
      %v3259 = vmul.f32 %v3257, %v448
      %v3260 = vmul.f32 %v3258, %v448
      %v3261 = vmul.f32 %v3222, %v1185
      %v3262 = vmul.f32 %v3224, %v1185
      %v3263 = vadd.f32 %v3259, %v3261
      %v3264 = vadd.f32 %v3260, %v3262
      %v3265 = vmul.f32 %v3263, %v469
      %v3266 = vmul.f32 %v3264, %v467
      %v3267 = vmul.f32 %v3263, %v490
      %v3268 = vmul.f32 %v3264, %v488
      %v3269 = vmul.f32 %v3263, %v502
      %v3270 = vmul.f32 %v3264, %v500
      %v3271 = vmul.f32 %v3263, %v510
      %v3272 = vmul.f32 %v3264, %v514
      %v3273 = vmul.f32 %v3263, %v522
      %v3274 = vmul.f32 %v3264, %v526
      %v3275 = vmul.f32 %v3263, %v534
      %v3276 = vmul.f32 %v3264, %v538
      %3279 = vrot.lane.b32.xlu0 %v3263, 127
      %v3280 = vpop.permute.xlu0 %3279
      %3281 = vrot.lane.b32.xlu0 %v3264, 127
      %v3282 = vpop.permute.xlu0 %3281
      %v3283 = vsel %vm501, %v549, %v3280
      %v3284 = vsel %vm501, %v3280, %v3282
      %3287 = vrot.lane.b32.xlu0 %v3267, 126
      %v3288 = vpop.permute.xlu0 %3287
      %3289 = vrot.lane.b32.xlu0 %v3268, 126
      %v3290 = vpop.permute.xlu0 %3289
      %v3291 = vsel %vm565, %v560, %v3288
      %v3292 = vsel %vm565, %v3288, %v3290
      %3295 = vrot.lane.b32.xlu0 %v3269, 112
      %v3296 = vpop.permute.xlu0 %3295
      %3297 = vrot.lane.b32.xlu0 %v3270, 112
      %v3298 = vpop.permute.xlu0 %3297
      %v3299 = vsel %vm577, %v572, %v3296
      %v3300 = vsel %vm577, %v3296, %v3298
      %3301 = vrot.lane.b32.xlu0 %v3263, 111
      %v3302 = vpop.permute.xlu0 %3301
      %3303 = vrot.lane.b32.xlu0 %v3264, 111
      %v3304 = vpop.permute.xlu0 %3303
      %v3305 = vsel %vm468, %v3302, %v3304
      %3308 = vrot.lane.b32.xlu0 %v3271, 110
      %v3309 = vpop.permute.xlu0 %3308
      %3310 = vrot.lane.b32.xlu0 %v3272, 110
      %v3311 = vpop.permute.xlu0 %3310
      %v3312 = vsel %vm594, %v3309, %v3311
      %v3313 = vsel %vm594, %v3311, %v593
      %3316 = vrot.lane.b32.xlu0 %v3273, 96
      %v3317 = vpop.permute.xlu0 %3316
      %3318 = vrot.lane.b32.xlu0 %v3274, 96
      %v3319 = vpop.permute.xlu0 %3318
      %v3320 = vsel %vm606, %v3317, %v3319
      %v3321 = vsel %vm606, %v3319, %v605
      %3322 = vrot.lane.b32.xlu0 %v3263, 95
      %v3323 = vpop.permute.xlu0 %3322
      %3324 = vrot.lane.b32.xlu0 %v3264, 95
      %v3325 = vpop.permute.xlu0 %3324
      %v3326 = vsel %vm615, %v3323, %v3325
      %v3327 = vsel %vm615, %v3325, %v614
      %3330 = vrot.lane.b32.xlu0 %v3275, 94
      %v3331 = vpop.permute.xlu0 %3330
      %3332 = vrot.lane.b32.xlu0 %v3276, 94
      %v3333 = vpop.permute.xlu0 %3332
      %v3334 = vsel %vm627, %v3331, %v3333
      %v3335 = vsel %vm627, %v3333, %v626
      %3337 = vset.pattern.permute.xlu0 0
      %3338 = vperm.xlu0 %3337, %v2985
      %v3339 = vpop.permute.xlu0 %3338
      %3343 = vrot.lane.b32.xlu0 %v3265, 17
      %v3344 = vpop.permute.xlu0 %3343
      %3345 = vrot.lane.b32.xlu0 %v3266, 17
      %v3346 = vpop.permute.xlu0 %3345
      %3347 = vrot.lane.b32.xlu0 %v3283, 17
      %v3348 = vpop.permute.xlu0 %3347
      %3349 = vrot.lane.b32.xlu0 %v3284, 17
      %v3350 = vpop.permute.xlu0 %3349
      %3351 = vrot.lane.b32.xlu0 %v3282, 17
      %v3352 = vpop.permute.xlu0 %3351
      %3353 = vrot.lane.b32.xlu0 %v3291, 17
      %v3354 = vpop.permute.xlu0 %3353
      %3355 = vrot.lane.b32.xlu0 %v3292, 17
      %v3356 = vpop.permute.xlu0 %3355
      %3357 = vrot.lane.b32.xlu0 %v3290, 17
      %v3358 = vpop.permute.xlu0 %3357
      %3359 = vrot.lane.b32.xlu0 %v3299, 17
      %v3360 = vpop.permute.xlu0 %3359
      %3361 = vrot.lane.b32.xlu0 %v3300, 17
      %v3362 = vpop.permute.xlu0 %3361
      %3363 = vrot.lane.b32.xlu0 %v3298, 17
      %v3364 = vpop.permute.xlu0 %3363
      %3365 = vrot.lane.b32.xlu0 %v3302, 17
      %v3366 = vpop.permute.xlu0 %3365
      %3367 = vrot.lane.b32.xlu0 %v3305, 17
      %v3368 = vpop.permute.xlu0 %3367
      %3369 = vrot.lane.b32.xlu0 %v3304, 17
      %v3370 = vpop.permute.xlu0 %3369
      %3371 = vrot.lane.b32.xlu0 %v3309, 17
      %v3372 = vpop.permute.xlu0 %3371
      %3373 = vrot.lane.b32.xlu0 %v3312, 17
      %v3374 = vpop.permute.xlu0 %3373
      %3375 = vrot.lane.b32.xlu0 %v3313, 17
      %v3376 = vpop.permute.xlu0 %3375
      %3377 = vrot.lane.b32.xlu0 %v3317, 17
      %v3378 = vpop.permute.xlu0 %3377
      %3379 = vrot.lane.b32.xlu0 %v3320, 17
      %v3380 = vpop.permute.xlu0 %3379
      %3381 = vrot.lane.b32.xlu0 %v3321, 17
      %v3382 = vpop.permute.xlu0 %3381
      %3383 = vrot.lane.b32.xlu0 %v3323, 17
      %v3384 = vpop.permute.xlu0 %3383
      %3385 = vrot.lane.b32.xlu0 %v3326, 17
      %v3386 = vpop.permute.xlu0 %3385
      %3387 = vrot.lane.b32.xlu0 %v3327, 17
      %v3388 = vpop.permute.xlu0 %3387
      %3389 = vrot.lane.b32.xlu0 %v3331, 17
      %v3390 = vpop.permute.xlu0 %3389
      %3391 = vrot.lane.b32.xlu0 %v3334, 17
      %v3392 = vpop.permute.xlu0 %3391
      %3393 = vrot.lane.b32.xlu0 %v3335, 17
      %v3394 = vpop.permute.xlu0 %3393
      %v3395 = vsel %vm537, %v644, %v3344
      %v3396 = vsel %vm537, %v3344, %v3346
      %v3397 = vsel %vm537, %v3348, %v3350
      %v3398 = vsel %vm537, %v3350, %v3352
      %v3399 = vsel %vm537, %v3354, %v3356
      %v3400 = vsel %vm537, %v3356, %v3358
      %v3401 = vsel %vm537, %v3360, %v3362
      %v3402 = vsel %vm537, %v3362, %v3364
      %v3403 = vsel %vm537, %v3366, %v3368
      %v3404 = vsel %vm537, %v3368, %v3370
      %v3405 = vsel %vm537, %v3372, %v3374
      %v3406 = vsel %vm537, %v3374, %v3376
      %v3407 = vsel %vm537, %v3378, %v3380
      %v3408 = vsel %vm537, %v3380, %v3382
      %v3409 = vsel %vm537, %v3384, %v3386
      %v3410 = vsel %vm537, %v3386, %v3388
      %v3411 = vsel %vm537, %v3390, %v3392
      %v3412 = vsel %vm537, %v3392, %v3394
      %v3432 = vsel %vm733, %v2983, 0
      %3434 = vmatprep.subr.mxu0 %v3396
      %3435 = vmatpush1.msra.mxu0 %v3395
      %3436 = vmatprep.subr.mxu0 %v3398
      %3437 = vmatpush1.msra.mxu0 %v3397
      %3438 = vmatprep.subr.mxu0 %v3400
      %3439 = vmatpush1.msra.mxu0 %v3399
      %3440 = vmatprep.subr.mxu0 %v3402
      %3441 = vmatpush1.msra.mxu0 %v3401
      %3442 = vmatprep.subr.mxu0 %v3404
      %3443 = vmatpush1.msra.mxu0 %v3403
      %3444 = vmatprep.subr.mxu0 %v3406
      %3445 = vmatpush1.msra.mxu0 %v3405
      %3446 = vmatprep.subr.mxu0 %v3408
      %3447 = vmatpush1.msra.mxu0 %v3407
      %3448 = vmatprep.subr.mxu0 %v3410
      %3449 = vmatpush1.msra.mxu0 %v3409
      %3450 = vmatprep.subr.mxu0 %v3412
      %3451 = vmatpush1.msra.mxu0 %v3411
      %3452 = vmatprep.subr.mxu0 0.0
      %3453 = vmatpush1.msra.mxu0 0.0
      %3454 = vmatprep.subr.mxu0 0.0
      %3455 = vmatpush1.msra.mxu0 0.0
      %3456 = vmatprep.subr.mxu0 0.0
      %3457 = vmatpush1.msra.mxu0 0.0
      %3458 = vmatprep.subr.mxu0 0.0
      %3459 = vmatpush1.msra.mxu0 0.0
      %3460 = vmatprep.subr.mxu0 0.0
      %3461 = vmatpush1.msra.mxu0 0.0
      %3462 = vmatprep.subr.mxu0 0.0
      %3463 = vmatpush1.msra.mxu0 0.0
      %3464 = vmatprep.subr.mxu0 0.0
      %3465 = vmatpush1.msra.mxu0 0.0
      %3466 = vmatprep.subr.mxu0 0.0
      %3467 = vmatpush1.msra.mxu0 0.0
      %3468 = vmatprep.subr.mxu0 0.0
      %3469 = vmatpush1.msra.mxu0 0.0
      %3470 = vmatprep.subr.mxu0 0.0
      %3471 = vmatpush1.msra.mxu0 0.0
      %3472 = vmatprep.subr.mxu0 0.0
      %3473 = vmatpush1.msra.mxu0 0.0
      %3474 = vmatprep.subr.mxu0 0.0
      %3475 = vmatpush1.msra.mxu0 0.0
      %3476 = vmatprep.subr.mxu0 0.0
      %3477 = vmatpush1.msra.mxu0 0.0
      %3478 = vmatprep.subr.mxu0 0.0
      %3479 = vmatpush1.msra.mxu0 0.0
      %3480 = vmatprep.subr.mxu0 0.0
      %3481 = vmatpush1.msra.mxu0 0.0
      %3482 = vmatprep.subr.mxu0 0.0
      %3483 = vmatpush1.msra.mxu0 0.0
      %3484 = vmatprep.subr.mxu0 0.0
      %3485 = vmatpush1.msra.mxu0 0.0
      %3486 = vmatprep.subr.mxu0 0.0
      %3487 = vmatpush1.msra.mxu0 0.0
      %3488 = vmatprep.subr.mxu0 0.0
      %3489 = vmatpush1.msra.mxu0 0.0
      %3490 = vmatprep.subr.mxu0 0.0
      %3491 = vmatpush1.msra.mxu0 0.0
      %3492 = vmatprep.subr.mxu0 0.0
      %3493 = vmatpush1.msra.mxu0 0.0
      %3494 = vmatprep.subr.mxu0 0.0
      %3495 = vmatpush1.msra.mxu0 0.0
      %3496 = vmatprep.subr.mxu0 0.0
      %3497 = vmatpush1.msra.mxu0 0.0
      %3498 = vmatprep.mubr.f32.mxu0 0.0
      %3499 = vmatmul.mubr.f32.gmra.mrb[0].mxu0 %v3432
      %v3500 = vpop.f32.mrb[0].mxu0
      %v3501 = vadd.f32 %v3339, %v3500
      %v3502 = vpop.f32.mrb[0].mxu0
      %v3503 = vadd.f32 %v3339, %v3502
      %3504 = vdwg.mxu0
      %v3505 = vadd.f32 %v2972, %v3501
      %v3506 = vadd.f32 %v2973, %v3503
      %s3507 = scalar_lea.vmem %s5, 40
      %v3508 = vld [vmem:[%s3507] sm:$0xff]
      %s3509 = scalar_lea.vmem %s6, 40
      %v3510 = vld [vmem:[%s3509] sm:$0xff]
      %s3511 = scalar_lea.vmem %s7, 40
      %v3512 = vld [vmem:[%s3511] sm:$0xff]
      %s3513 = scalar_lea.vmem %s8, 40
      %v3514 = vld [vmem:[%s3513] sm:$0xff]
      %s3515 = scalar_lea.vmem %s9, 40
      %v3516 = vld [vmem:[%s3515] sm:$0xff]
      %s3517 = scalar_lea.vmem %s10, 40
      %v3518 = vld [vmem:[%s3517] sm:$0xff]
      %3520 = vset.pattern.permute.xlu0 0
      %3521 = vperm.xlu0 %3520, %v3510
      %v3522 = vpop.permute.xlu0 %3521
      %v3525 = vsel %vm733, %v3508, 0
      %3527 = vmatprep.subr.mxu0 %v3117
      %3528 = vmatpush1.msra.mxu0 %v3116
      %3529 = vmatprep.subr.mxu0 %v3119
      %3530 = vmatpush1.msra.mxu0 %v3118
      %3531 = vmatprep.subr.mxu0 %v3121
      %3532 = vmatpush1.msra.mxu0 %v3120
      %3533 = vmatprep.subr.mxu0 %v3123
      %3534 = vmatpush1.msra.mxu0 %v3122
      %3535 = vmatprep.subr.mxu0 %v3125
      %3536 = vmatpush1.msra.mxu0 %v3124
      %3537 = vmatprep.subr.mxu0 %v3127
      %3538 = vmatpush1.msra.mxu0 %v3126
      %3539 = vmatprep.subr.mxu0 %v3129
      %3540 = vmatpush1.msra.mxu0 %v3128
      %3541 = vmatprep.subr.mxu0 %v3131
      %3542 = vmatpush1.msra.mxu0 %v3130
      %3543 = vmatprep.subr.mxu0 %v3133
      %3544 = vmatpush1.msra.mxu0 %v3132
      %3545 = vmatprep.subr.mxu0 0.0
      %3546 = vmatpush1.msra.mxu0 0.0
      %3547 = vmatprep.subr.mxu0 0.0
      %3548 = vmatpush1.msra.mxu0 0.0
      %3549 = vmatprep.subr.mxu0 0.0
      %3550 = vmatpush1.msra.mxu0 0.0
      %3551 = vmatprep.subr.mxu0 0.0
      %3552 = vmatpush1.msra.mxu0 0.0
      %3553 = vmatprep.subr.mxu0 0.0
      %3554 = vmatpush1.msra.mxu0 0.0
      %3555 = vmatprep.subr.mxu0 0.0
      %3556 = vmatpush1.msra.mxu0 0.0
      %3557 = vmatprep.subr.mxu0 0.0
      %3558 = vmatpush1.msra.mxu0 0.0
      %3559 = vmatprep.subr.mxu0 0.0
      %3560 = vmatpush1.msra.mxu0 0.0
      %3561 = vmatprep.subr.mxu0 0.0
      %3562 = vmatpush1.msra.mxu0 0.0
      %3563 = vmatprep.subr.mxu0 0.0
      %3564 = vmatpush1.msra.mxu0 0.0
      %3565 = vmatprep.subr.mxu0 0.0
      %3566 = vmatpush1.msra.mxu0 0.0
      %3567 = vmatprep.subr.mxu0 0.0
      %3568 = vmatpush1.msra.mxu0 0.0
      %3569 = vmatprep.subr.mxu0 0.0
      %3570 = vmatpush1.msra.mxu0 0.0
      %3571 = vmatprep.subr.mxu0 0.0
      %3572 = vmatpush1.msra.mxu0 0.0
      %3573 = vmatprep.subr.mxu0 0.0
      %3574 = vmatpush1.msra.mxu0 0.0
      %3575 = vmatprep.subr.mxu0 0.0
      %3576 = vmatpush1.msra.mxu0 0.0
      %3577 = vmatprep.subr.mxu0 0.0
      %3578 = vmatpush1.msra.mxu0 0.0
      %3579 = vmatprep.subr.mxu0 0.0
      %3580 = vmatpush1.msra.mxu0 0.0
      %3581 = vmatprep.subr.mxu0 0.0
      %3582 = vmatpush1.msra.mxu0 0.0
      %3583 = vmatprep.subr.mxu0 0.0
      %3584 = vmatpush1.msra.mxu0 0.0
      %3585 = vmatprep.subr.mxu0 0.0
      %3586 = vmatpush1.msra.mxu0 0.0
      %3587 = vmatprep.subr.mxu0 0.0
      %3588 = vmatpush1.msra.mxu0 0.0
      %3589 = vmatprep.subr.mxu0 0.0
      %3590 = vmatpush1.msra.mxu0 0.0
      %3591 = vmatprep.mubr.f32.mxu0 0.0
      %3592 = vmatmul.mubr.f32.gmra.mrb[0].mxu0 %v3525
      %v3593 = vpop.f32.mrb[0].mxu0
      %v3594 = vadd.f32 %v3522, %v3593
      %v3595 = vpop.f32.mrb[0].mxu0
      %v3596 = vadd.f32 %v3522, %v3595
      %3597 = vdwg.mxu0
      %v3598 = vadd.f32 %v3594, %v3596
      %3599 = vadd.xlane.f32.xlu0 %v3598
      %v3600 = vpop.xlane.xlu0 %3599
      %v3601 = vmul.f32 %v3600, %v1152
      %v3602 = vmul.f32 %v3594, %v3594
      %v3603 = vmul.f32 %v3596, %v3596
      %v3604 = vadd.f32 %v3602, %v3603
      %3605 = vadd.xlane.f32.xlu0 %v3604
      %v3606 = vpop.xlane.xlu0 %3605
      %v3607 = vmul.f32 %v3606, %v1152
      %v3608 = vmul.f32 %v3601, %v3601
      %v3609 = vsub.f32 %v3607, %v3608
      %v3610 = vmax.f32 %v3609, 0.0
      %v3611 = vsub.f32 %v3594, %v3601
      %v3612 = vsub.f32 %v3596, %v3601
      %v3613 = vadd.f32 %v3610, 1e-05
      %v3614 = vrsqrt.pop %v3613
      %v3615 = vmul.f32 %v3611, %v3614
      %v3616 = vmul.f32 %v3612, %v3614
      %3618 = vset.pattern.permute.xlu0 0
      %3619 = vperm.xlu0 %3618, %v3512
      %v3620 = vpop.permute.xlu0 %3619
      %v3622 = vmul.f32 %v3615, %v3620
      %v3623 = vmul.f32 %v3616, %v3620
      %3625 = vset.pattern.permute.xlu0 0
      %3626 = vperm.xlu0 %3625, %v3514
      %v3627 = vpop.permute.xlu0 %3626
      %v3629 = vadd.f32 %v3622, %v3627
      %v3630 = vadd.f32 %v3623, %v3627
      %v3631 = vmul.f32 %v3629, %v448
      %v3632 = vmul.f32 %v3630, %v448
      %v3633 = vmul.f32 %v3594, %v1185
      %v3634 = vmul.f32 %v3596, %v1185
      %v3635 = vadd.f32 %v3631, %v3633
      %v3636 = vadd.f32 %v3632, %v3634
      %v3637 = vmul.f32 %v3635, %v469
      %v3638 = vmul.f32 %v3636, %v467
      %v3639 = vmul.f32 %v3635, %v490
      %v3640 = vmul.f32 %v3636, %v488
      %v3641 = vmul.f32 %v3635, %v502
      %v3642 = vmul.f32 %v3636, %v500
      %v3643 = vmul.f32 %v3635, %v510
      %v3644 = vmul.f32 %v3636, %v514
      %v3645 = vmul.f32 %v3635, %v522
      %v3646 = vmul.f32 %v3636, %v526
      %v3647 = vmul.f32 %v3635, %v534
      %v3648 = vmul.f32 %v3636, %v538
      %3651 = vrot.lane.b32.xlu0 %v3635, 127
      %v3652 = vpop.permute.xlu0 %3651
      %3653 = vrot.lane.b32.xlu0 %v3636, 127
      %v3654 = vpop.permute.xlu0 %3653
      %v3655 = vsel %vm501, %v549, %v3652
      %v3656 = vsel %vm501, %v3652, %v3654
      %3659 = vrot.lane.b32.xlu0 %v3639, 126
      %v3660 = vpop.permute.xlu0 %3659
      %3661 = vrot.lane.b32.xlu0 %v3640, 126
      %v3662 = vpop.permute.xlu0 %3661
      %v3663 = vsel %vm565, %v560, %v3660
      %v3664 = vsel %vm565, %v3660, %v3662
      %3667 = vrot.lane.b32.xlu0 %v3641, 112
      %v3668 = vpop.permute.xlu0 %3667
      %3669 = vrot.lane.b32.xlu0 %v3642, 112
      %v3670 = vpop.permute.xlu0 %3669
      %v3671 = vsel %vm577, %v572, %v3668
      %v3672 = vsel %vm577, %v3668, %v3670
      %3673 = vrot.lane.b32.xlu0 %v3635, 111
      %v3674 = vpop.permute.xlu0 %3673
      %3675 = vrot.lane.b32.xlu0 %v3636, 111
      %v3676 = vpop.permute.xlu0 %3675
      %v3677 = vsel %vm468, %v3674, %v3676
      %3680 = vrot.lane.b32.xlu0 %v3643, 110
      %v3681 = vpop.permute.xlu0 %3680
      %3682 = vrot.lane.b32.xlu0 %v3644, 110
      %v3683 = vpop.permute.xlu0 %3682
      %v3684 = vsel %vm594, %v3681, %v3683
      %v3685 = vsel %vm594, %v3683, %v593
      %3688 = vrot.lane.b32.xlu0 %v3645, 96
      %v3689 = vpop.permute.xlu0 %3688
      %3690 = vrot.lane.b32.xlu0 %v3646, 96
      %v3691 = vpop.permute.xlu0 %3690
      %v3692 = vsel %vm606, %v3689, %v3691
      %v3693 = vsel %vm606, %v3691, %v605
      %3694 = vrot.lane.b32.xlu0 %v3635, 95
      %v3695 = vpop.permute.xlu0 %3694
      %3696 = vrot.lane.b32.xlu0 %v3636, 95
      %v3697 = vpop.permute.xlu0 %3696
      %v3698 = vsel %vm615, %v3695, %v3697
      %v3699 = vsel %vm615, %v3697, %v614
      %3702 = vrot.lane.b32.xlu0 %v3647, 94
      %v3703 = vpop.permute.xlu0 %3702
      %3704 = vrot.lane.b32.xlu0 %v3648, 94
      %v3705 = vpop.permute.xlu0 %3704
      %v3706 = vsel %vm627, %v3703, %v3705
      %v3707 = vsel %vm627, %v3705, %v626
      %3709 = vset.pattern.permute.xlu0 0
      %3710 = vperm.xlu0 %3709, %v3518
      %v3711 = vpop.permute.xlu0 %3710
      %3715 = vrot.lane.b32.xlu0 %v3637, 17
      %v3716 = vpop.permute.xlu0 %3715
      %3717 = vrot.lane.b32.xlu0 %v3638, 17
      %v3718 = vpop.permute.xlu0 %3717
      %3719 = vrot.lane.b32.xlu0 %v3655, 17
      %v3720 = vpop.permute.xlu0 %3719
      %3721 = vrot.lane.b32.xlu0 %v3656, 17
      %v3722 = vpop.permute.xlu0 %3721
      %3723 = vrot.lane.b32.xlu0 %v3654, 17
      %v3724 = vpop.permute.xlu0 %3723
      %3725 = vrot.lane.b32.xlu0 %v3663, 17
      %v3726 = vpop.permute.xlu0 %3725
      %3727 = vrot.lane.b32.xlu0 %v3664, 17
      %v3728 = vpop.permute.xlu0 %3727
      %3729 = vrot.lane.b32.xlu0 %v3662, 17
      %v3730 = vpop.permute.xlu0 %3729
      %3731 = vrot.lane.b32.xlu0 %v3671, 17
      %v3732 = vpop.permute.xlu0 %3731
      %3733 = vrot.lane.b32.xlu0 %v3672, 17
      %v3734 = vpop.permute.xlu0 %3733
      %3735 = vrot.lane.b32.xlu0 %v3670, 17
      %v3736 = vpop.permute.xlu0 %3735
      %3737 = vrot.lane.b32.xlu0 %v3674, 17
      %v3738 = vpop.permute.xlu0 %3737
      %3739 = vrot.lane.b32.xlu0 %v3677, 17
      %v3740 = vpop.permute.xlu0 %3739
      %3741 = vrot.lane.b32.xlu0 %v3676, 17
      %v3742 = vpop.permute.xlu0 %3741
      %3743 = vrot.lane.b32.xlu0 %v3681, 17
      %v3744 = vpop.permute.xlu0 %3743
      %3745 = vrot.lane.b32.xlu0 %v3684, 17
      %v3746 = vpop.permute.xlu0 %3745
      %3747 = vrot.lane.b32.xlu0 %v3685, 17
      %v3748 = vpop.permute.xlu0 %3747
      %3749 = vrot.lane.b32.xlu0 %v3689, 17
      %v3750 = vpop.permute.xlu0 %3749
      %3751 = vrot.lane.b32.xlu0 %v3692, 17
      %v3752 = vpop.permute.xlu0 %3751
      %3753 = vrot.lane.b32.xlu0 %v3693, 17
      %v3754 = vpop.permute.xlu0 %3753
      %3755 = vrot.lane.b32.xlu0 %v3695, 17
      %v3756 = vpop.permute.xlu0 %3755
      %3757 = vrot.lane.b32.xlu0 %v3698, 17
      %v3758 = vpop.permute.xlu0 %3757
      %3759 = vrot.lane.b32.xlu0 %v3699, 17
      %v3760 = vpop.permute.xlu0 %3759
      %3761 = vrot.lane.b32.xlu0 %v3703, 17
      %v3762 = vpop.permute.xlu0 %3761
      %3763 = vrot.lane.b32.xlu0 %v3706, 17
      %v3764 = vpop.permute.xlu0 %3763
      %3765 = vrot.lane.b32.xlu0 %v3707, 17
      %v3766 = vpop.permute.xlu0 %3765
      %v3767 = vsel %vm537, %v644, %v3716
      %v3768 = vsel %vm537, %v3716, %v3718
      %v3769 = vsel %vm537, %v3720, %v3722
      %v3770 = vsel %vm537, %v3722, %v3724
      %v3771 = vsel %vm537, %v3726, %v3728
      %v3772 = vsel %vm537, %v3728, %v3730
      %v3773 = vsel %vm537, %v3732, %v3734
      %v3774 = vsel %vm537, %v3734, %v3736
      %v3775 = vsel %vm537, %v3738, %v3740
      %v3776 = vsel %vm537, %v3740, %v3742
      %v3777 = vsel %vm537, %v3744, %v3746
      %v3778 = vsel %vm537, %v3746, %v3748
      %v3779 = vsel %vm537, %v3750, %v3752
      %v3780 = vsel %vm537, %v3752, %v3754
      %v3781 = vsel %vm537, %v3756, %v3758
      %v3782 = vsel %vm537, %v3758, %v3760
      %v3783 = vsel %vm537, %v3762, %v3764
      %v3784 = vsel %vm537, %v3764, %v3766
      %v3804 = vsel %vm733, %v3516, 0
      %3806 = vmatprep.subr.mxu0 %v3768
      %3807 = vmatpush1.msra.mxu0 %v3767
      %3808 = vmatprep.subr.mxu0 %v3770
      %3809 = vmatpush1.msra.mxu0 %v3769
      %3810 = vmatprep.subr.mxu0 %v3772
      %3811 = vmatpush1.msra.mxu0 %v3771
      %3812 = vmatprep.subr.mxu0 %v3774
      %3813 = vmatpush1.msra.mxu0 %v3773
      %3814 = vmatprep.subr.mxu0 %v3776
      %3815 = vmatpush1.msra.mxu0 %v3775
      %3816 = vmatprep.subr.mxu0 %v3778
      %3817 = vmatpush1.msra.mxu0 %v3777
      %3818 = vmatprep.subr.mxu0 %v3780
      %3819 = vmatpush1.msra.mxu0 %v3779
      %3820 = vmatprep.subr.mxu0 %v3782
      %3821 = vmatpush1.msra.mxu0 %v3781
      %3822 = vmatprep.subr.mxu0 %v3784
      %3823 = vmatpush1.msra.mxu0 %v3783
      %3824 = vmatprep.subr.mxu0 0.0
      %3825 = vmatpush1.msra.mxu0 0.0
      %3826 = vmatprep.subr.mxu0 0.0
      %3827 = vmatpush1.msra.mxu0 0.0
      %3828 = vmatprep.subr.mxu0 0.0
      %3829 = vmatpush1.msra.mxu0 0.0
      %3830 = vmatprep.subr.mxu0 0.0
      %3831 = vmatpush1.msra.mxu0 0.0
      %3832 = vmatprep.subr.mxu0 0.0
      %3833 = vmatpush1.msra.mxu0 0.0
      %3834 = vmatprep.subr.mxu0 0.0
      %3835 = vmatpush1.msra.mxu0 0.0
      %3836 = vmatprep.subr.mxu0 0.0
      %3837 = vmatpush1.msra.mxu0 0.0
      %3838 = vmatprep.subr.mxu0 0.0
      %3839 = vmatpush1.msra.mxu0 0.0
      %3840 = vmatprep.subr.mxu0 0.0
      %3841 = vmatpush1.msra.mxu0 0.0
      %3842 = vmatprep.subr.mxu0 0.0
      %3843 = vmatpush1.msra.mxu0 0.0
      %3844 = vmatprep.subr.mxu0 0.0
      %3845 = vmatpush1.msra.mxu0 0.0
      %3846 = vmatprep.subr.mxu0 0.0
      %3847 = vmatpush1.msra.mxu0 0.0
      %3848 = vmatprep.subr.mxu0 0.0
      %3849 = vmatpush1.msra.mxu0 0.0
      %3850 = vmatprep.subr.mxu0 0.0
      %3851 = vmatpush1.msra.mxu0 0.0
      %3852 = vmatprep.subr.mxu0 0.0
      %3853 = vmatpush1.msra.mxu0 0.0
      %3854 = vmatprep.subr.mxu0 0.0
      %3855 = vmatpush1.msra.mxu0 0.0
      %3856 = vmatprep.subr.mxu0 0.0
      %3857 = vmatpush1.msra.mxu0 0.0
      %3858 = vmatprep.subr.mxu0 0.0
      %3859 = vmatpush1.msra.mxu0 0.0
      %3860 = vmatprep.subr.mxu0 0.0
      %3861 = vmatpush1.msra.mxu0 0.0
      %3862 = vmatprep.subr.mxu0 0.0
      %3863 = vmatpush1.msra.mxu0 0.0
      %3864 = vmatprep.subr.mxu0 0.0
      %3865 = vmatpush1.msra.mxu0 0.0
      %3866 = vmatprep.subr.mxu0 0.0
      %3867 = vmatpush1.msra.mxu0 0.0
      %3868 = vmatprep.subr.mxu0 0.0
      %3869 = vmatpush1.msra.mxu0 0.0
      %3870 = vmatprep.mubr.f32.mxu0 0.0
      %3871 = vmatmul.mubr.f32.gmra.mrb[0].mxu0 %v3804
      %v3872 = vpop.f32.mrb[0].mxu0
      %v3873 = vadd.f32 %v3711, %v3872
      %v3874 = vpop.f32.mrb[0].mxu0
      %v3875 = vadd.f32 %v3711, %v3874
      %3876 = vdwg.mxu0
      %v3877 = vadd.f32 %v2972, %v3873
      %v3878 = vadd.f32 %v2973, %v3875
      %v3879 = vmul.f32 %v3505, 0.5
      %v3880 = vmul.f32 %v3506, 0.5
      %v3881 = vtanh.pop %v3879
      %v3882 = vtanh.pop %v3880
      %v3883 = vmul.f32 %v3881, 0.8
      %v3884 = vmul.f32 %v3882, 0.8
      %v3885 = vmul.f32 %v3883, 1.442695
      %v3886 = vpow.pop %v3885
      %v3887 = vmul.f32 %v3884, 1.442695
      %v3888 = vpow.pop %v3887
      %v3889 = vmul.f32 %v2435, %v3886
      %v3890 = vmul.f32 %v2437, %v3888
      %v3891 = vadd.f32 %v3889, %v3877
      %v3892 = vadd.f32 %v3890, %v3878
      %s3893 = scalar_lea.vmem %s4, 32
      %v3894 = vld [vmem:[%s3893] sm:$0xff]
      %v3895 = vld [vmem:[%s3893 + $0x8] sm:$0xff]
      %v3897 = vsel %vm819, %v3894, 0
      %v3900 = vsel %vm819, %v3895, 0
      %3902 = vmatprep.subr.mxu0 %v2973
      %3903 = vmatpush1.msra.mxu0 %v2972
      %3904 = vmatprep.subr.mxu0 %v3892
      %3905 = vmatpush1.msra.mxu0 %v3891
      %3906 = vmatprep.subr.mxu0 0.0
      %3907 = vmatpush1.msra.mxu0 0.0
      %3908 = vmatprep.subr.mxu0 0.0
      %3909 = vmatpush1.msra.mxu0 0.0
      %3910 = vmatprep.subr.mxu0 0.0
      %3911 = vmatpush1.msra.mxu0 0.0
      %3912 = vmatprep.subr.mxu0 0.0
      %3913 = vmatpush1.msra.mxu0 0.0
      %3914 = vmatprep.subr.mxu0 0.0
      %3915 = vmatpush1.msra.mxu0 0.0
      %3916 = vmatprep.subr.mxu0 0.0
      %3917 = vmatpush1.msra.mxu0 0.0
      %3918 = vmatprep.subr.mxu0 0.0
      %3919 = vmatpush1.msra.mxu0 0.0
      %3920 = vmatprep.subr.mxu0 0.0
      %3921 = vmatpush1.msra.mxu0 0.0
      %3922 = vmatprep.subr.mxu0 0.0
      %3923 = vmatpush1.msra.mxu0 0.0
      %3924 = vmatprep.subr.mxu0 0.0
      %3925 = vmatpush1.msra.mxu0 0.0
      %3926 = vmatprep.subr.mxu0 0.0
      %3927 = vmatpush1.msra.mxu0 0.0
      %3928 = vmatprep.subr.mxu0 0.0
      %3929 = vmatpush1.msra.mxu0 0.0
      %3930 = vmatprep.subr.mxu0 0.0
      %3931 = vmatpush1.msra.mxu0 0.0
      %3932 = vmatprep.subr.mxu0 0.0
      %3933 = vmatpush1.msra.mxu0 0.0
      %3934 = vmatprep.subr.mxu0 0.0
      %3935 = vmatpush1.msra.mxu0 0.0
      %3936 = vmatprep.subr.mxu0 0.0
      %3937 = vmatpush1.msra.mxu0 0.0
      %3938 = vmatprep.subr.mxu0 0.0
      %3939 = vmatpush1.msra.mxu0 0.0
      %3940 = vmatprep.subr.mxu0 0.0
      %3941 = vmatpush1.msra.mxu0 0.0
      %3942 = vmatprep.subr.mxu0 0.0
      %3943 = vmatpush1.msra.mxu0 0.0
      %3944 = vmatprep.subr.mxu0 0.0
      %3945 = vmatpush1.msra.mxu0 0.0
      %3946 = vmatprep.subr.mxu0 0.0
      %3947 = vmatpush1.msra.mxu0 0.0
      %3948 = vmatprep.subr.mxu0 0.0
      %3949 = vmatpush1.msra.mxu0 0.0
      %3950 = vmatprep.subr.mxu0 0.0
      %3951 = vmatpush1.msra.mxu0 0.0
      %3952 = vmatprep.subr.mxu0 0.0
      %3953 = vmatpush1.msra.mxu0 0.0
      %3954 = vmatprep.subr.mxu0 0.0
      %3955 = vmatpush1.msra.mxu0 0.0
      %3956 = vmatprep.subr.mxu0 0.0
      %3957 = vmatpush1.msra.mxu0 0.0
      %3958 = vmatprep.subr.mxu0 0.0
      %3959 = vmatpush1.msra.mxu0 0.0
      %3960 = vmatprep.subr.mxu0 0.0
      %3961 = vmatpush1.msra.mxu0 0.0
      %3962 = vmatprep.subr.mxu0 0.0
      %3963 = vmatpush1.msra.mxu0 0.0
      %3964 = vmatprep.subr.mxu0 0.0
      %3965 = vmatpush1.msra.mxu0 0.0
      %3966 = vmatprep.mubr.f32.mxu0 0.0
      %3967 = vmatmul.mubr.f32.gmra.mrb[0].mxu0 %v3897
      %v3968 = vpop.f32.mrb[0].mxu0
      %v3969 = vadd.f32 0.0, %v3968
      %v3970 = vpop.f32.mrb[0].mxu0
      %v3971 = vadd.f32 0.0, %v3970
      %3972 = vmatprep.mubr.f32.mxu0 0.0
      %3973 = vmatmul.mubr.f32.gmra.mrb[0].mxu0 %v3900
      %v3974 = vpop.f32.mrb[0].mxu0
      %v3975 = vadd.f32 0.0, %v3974
      %v3976 = vpop.f32.mrb[0].mxu0
      %v3977 = vadd.f32 0.0, %v3976
      %3978 = vdwg.mxu0
      %s3979 = scalar_lea.vmem %s5, 48
      %v3980 = vld [vmem:[%s3979] sm:$0xff]
      %s3981 = scalar_lea.vmem %s6, 48
      %v3982 = vld [vmem:[%s3981] sm:$0xff]
      %s3983 = scalar_lea.vmem %s7, 48
      %v3984 = vld [vmem:[%s3983] sm:$0xff]
      %s3985 = scalar_lea.vmem %s8, 48
      %v3986 = vld [vmem:[%s3985] sm:$0xff]
      %s3987 = scalar_lea.vmem %s9, 48
      %v3988 = vld [vmem:[%s3987] sm:$0xff]
      %s3989 = scalar_lea.vmem %s10, 48
      %v3990 = vld [vmem:[%s3989] sm:$0xff]
      %v3991 = vmul.f32 %v3975, %v469
      %v3992 = vmul.f32 %v3977, %v467
      %v3993 = vmul.f32 %v3975, %v490
      %v3994 = vmul.f32 %v3977, %v488
      %v3995 = vmul.f32 %v3975, %v502
      %v3996 = vmul.f32 %v3977, %v500
      %v3997 = vmul.f32 %v3975, %v510
      %v3998 = vmul.f32 %v3977, %v514
      %v3999 = vmul.f32 %v3975, %v522
      %v4000 = vmul.f32 %v3977, %v526
      %v4001 = vmul.f32 %v3975, %v534
      %v4002 = vmul.f32 %v3977, %v538
      %4005 = vrot.lane.b32.xlu0 %v3975, 127
      %v4006 = vpop.permute.xlu0 %4005
      %4007 = vrot.lane.b32.xlu0 %v3977, 127
      %v4008 = vpop.permute.xlu0 %4007
      %v4009 = vsel %vm501, %v549, %v4006
      %v4010 = vsel %vm501, %v4006, %v4008
      %4013 = vrot.lane.b32.xlu0 %v3993, 126
      %v4014 = vpop.permute.xlu0 %4013
      %4015 = vrot.lane.b32.xlu0 %v3994, 126
      %v4016 = vpop.permute.xlu0 %4015
      %v4017 = vsel %vm565, %v560, %v4014
      %v4018 = vsel %vm565, %v4014, %v4016
      %4021 = vrot.lane.b32.xlu0 %v3995, 112
      %v4022 = vpop.permute.xlu0 %4021
      %4023 = vrot.lane.b32.xlu0 %v3996, 112
      %v4024 = vpop.permute.xlu0 %4023
      %v4025 = vsel %vm577, %v572, %v4022
      %v4026 = vsel %vm577, %v4022, %v4024
      %4027 = vrot.lane.b32.xlu0 %v3975, 111
      %v4028 = vpop.permute.xlu0 %4027
      %4029 = vrot.lane.b32.xlu0 %v3977, 111
      %v4030 = vpop.permute.xlu0 %4029
      %v4031 = vsel %vm468, %v4028, %v4030
      %4034 = vrot.lane.b32.xlu0 %v3997, 110
      %v4035 = vpop.permute.xlu0 %4034
      %4036 = vrot.lane.b32.xlu0 %v3998, 110
      %v4037 = vpop.permute.xlu0 %4036
      %v4038 = vsel %vm594, %v4035, %v4037
      %v4039 = vsel %vm594, %v4037, %v593
      %4042 = vrot.lane.b32.xlu0 %v3999, 96
      %v4043 = vpop.permute.xlu0 %4042
      %4044 = vrot.lane.b32.xlu0 %v4000, 96
      %v4045 = vpop.permute.xlu0 %4044
      %v4046 = vsel %vm606, %v4043, %v4045
      %v4047 = vsel %vm606, %v4045, %v605
      %4048 = vrot.lane.b32.xlu0 %v3975, 95
      %v4049 = vpop.permute.xlu0 %4048
      %4050 = vrot.lane.b32.xlu0 %v3977, 95
      %v4051 = vpop.permute.xlu0 %4050
      %v4052 = vsel %vm615, %v4049, %v4051
      %v4053 = vsel %vm615, %v4051, %v614
      %4056 = vrot.lane.b32.xlu0 %v4001, 94
      %v4057 = vpop.permute.xlu0 %4056
      %4058 = vrot.lane.b32.xlu0 %v4002, 94
      %v4059 = vpop.permute.xlu0 %4058
      %v4060 = vsel %vm627, %v4057, %v4059
      %v4061 = vsel %vm627, %v4059, %v626
      %4063 = vset.pattern.permute.xlu0 0
      %4064 = vperm.xlu0 %4063, %v3982
      %v4065 = vpop.permute.xlu0 %4064
      %4069 = vrot.lane.b32.xlu0 %v3991, 17
      %v4070 = vpop.permute.xlu0 %4069
      %4071 = vrot.lane.b32.xlu0 %v3992, 17
      %v4072 = vpop.permute.xlu0 %4071
      %4073 = vrot.lane.b32.xlu0 %v4009, 17
      %v4074 = vpop.permute.xlu0 %4073
      %4075 = vrot.lane.b32.xlu0 %v4010, 17
      %v4076 = vpop.permute.xlu0 %4075
      %4077 = vrot.lane.b32.xlu0 %v4008, 17
      %v4078 = vpop.permute.xlu0 %4077
      %4079 = vrot.lane.b32.xlu0 %v4017, 17
      %v4080 = vpop.permute.xlu0 %4079
      %4081 = vrot.lane.b32.xlu0 %v4018, 17
      %v4082 = vpop.permute.xlu0 %4081
      %4083 = vrot.lane.b32.xlu0 %v4016, 17
      %v4084 = vpop.permute.xlu0 %4083
      %4085 = vrot.lane.b32.xlu0 %v4025, 17
      %v4086 = vpop.permute.xlu0 %4085
      %4087 = vrot.lane.b32.xlu0 %v4026, 17
      %v4088 = vpop.permute.xlu0 %4087
      %4089 = vrot.lane.b32.xlu0 %v4024, 17
      %v4090 = vpop.permute.xlu0 %4089
      %4091 = vrot.lane.b32.xlu0 %v4028, 17
      %v4092 = vpop.permute.xlu0 %4091
      %4093 = vrot.lane.b32.xlu0 %v4031, 17
      %v4094 = vpop.permute.xlu0 %4093
      %4095 = vrot.lane.b32.xlu0 %v4030, 17
      %v4096 = vpop.permute.xlu0 %4095
      %4097 = vrot.lane.b32.xlu0 %v4035, 17
      %v4098 = vpop.permute.xlu0 %4097
      %4099 = vrot.lane.b32.xlu0 %v4038, 17
      %v4100 = vpop.permute.xlu0 %4099
      %4101 = vrot.lane.b32.xlu0 %v4039, 17
      %v4102 = vpop.permute.xlu0 %4101
      %4103 = vrot.lane.b32.xlu0 %v4043, 17
      %v4104 = vpop.permute.xlu0 %4103
      %4105 = vrot.lane.b32.xlu0 %v4046, 17
      %v4106 = vpop.permute.xlu0 %4105
      %4107 = vrot.lane.b32.xlu0 %v4047, 17
      %v4108 = vpop.permute.xlu0 %4107
      %4109 = vrot.lane.b32.xlu0 %v4049, 17
      %v4110 = vpop.permute.xlu0 %4109
      %4111 = vrot.lane.b32.xlu0 %v4052, 17
      %v4112 = vpop.permute.xlu0 %4111
      %4113 = vrot.lane.b32.xlu0 %v4053, 17
      %v4114 = vpop.permute.xlu0 %4113
      %4115 = vrot.lane.b32.xlu0 %v4057, 17
      %v4116 = vpop.permute.xlu0 %4115
      %4117 = vrot.lane.b32.xlu0 %v4060, 17
      %v4118 = vpop.permute.xlu0 %4117
      %4119 = vrot.lane.b32.xlu0 %v4061, 17
      %v4120 = vpop.permute.xlu0 %4119
      %v4121 = vsel %vm537, %v644, %v4070
      %v4122 = vsel %vm537, %v4070, %v4072
      %v4123 = vsel %vm537, %v4074, %v4076
      %v4124 = vsel %vm537, %v4076, %v4078
      %v4125 = vsel %vm537, %v4080, %v4082
      %v4126 = vsel %vm537, %v4082, %v4084
      %v4127 = vsel %vm537, %v4086, %v4088
      %v4128 = vsel %vm537, %v4088, %v4090
      %v4129 = vsel %vm537, %v4092, %v4094
      %v4130 = vsel %vm537, %v4094, %v4096
      %v4131 = vsel %vm537, %v4098, %v4100
      %v4132 = vsel %vm537, %v4100, %v4102
      %v4133 = vsel %vm537, %v4104, %v4106
      %v4134 = vsel %vm537, %v4106, %v4108
      %v4135 = vsel %vm537, %v4110, %v4112
      %v4136 = vsel %vm537, %v4112, %v4114
      %v4137 = vsel %vm537, %v4116, %v4118
      %v4138 = vsel %vm537, %v4118, %v4120
      %v4158 = vsel %vm733, %v3980, 0
      %4160 = vmatprep.subr.mxu0 %v4122
      %4161 = vmatpush1.msra.mxu0 %v4121
      %4162 = vmatprep.subr.mxu0 %v4124
      %4163 = vmatpush1.msra.mxu0 %v4123
      %4164 = vmatprep.subr.mxu0 %v4126
      %4165 = vmatpush1.msra.mxu0 %v4125
      %4166 = vmatprep.subr.mxu0 %v4128
      %4167 = vmatpush1.msra.mxu0 %v4127
      %4168 = vmatprep.subr.mxu0 %v4130
      %4169 = vmatpush1.msra.mxu0 %v4129
      %4170 = vmatprep.subr.mxu0 %v4132
      %4171 = vmatpush1.msra.mxu0 %v4131
      %4172 = vmatprep.subr.mxu0 %v4134
      %4173 = vmatpush1.msra.mxu0 %v4133
      %4174 = vmatprep.subr.mxu0 %v4136
      %4175 = vmatpush1.msra.mxu0 %v4135
      %4176 = vmatprep.subr.mxu0 %v4138
      %4177 = vmatpush1.msra.mxu0 %v4137
      %4178 = vmatprep.subr.mxu0 0.0
      %4179 = vmatpush1.msra.mxu0 0.0
      %4180 = vmatprep.subr.mxu0 0.0
      %4181 = vmatpush1.msra.mxu0 0.0
      %4182 = vmatprep.subr.mxu0 0.0
      %4183 = vmatpush1.msra.mxu0 0.0
      %4184 = vmatprep.subr.mxu0 0.0
      %4185 = vmatpush1.msra.mxu0 0.0
      %4186 = vmatprep.subr.mxu0 0.0
      %4187 = vmatpush1.msra.mxu0 0.0
      %4188 = vmatprep.subr.mxu0 0.0
      %4189 = vmatpush1.msra.mxu0 0.0
      %4190 = vmatprep.subr.mxu0 0.0
      %4191 = vmatpush1.msra.mxu0 0.0
      %4192 = vmatprep.subr.mxu0 0.0
      %4193 = vmatpush1.msra.mxu0 0.0
      %4194 = vmatprep.subr.mxu0 0.0
      %4195 = vmatpush1.msra.mxu0 0.0
      %4196 = vmatprep.subr.mxu0 0.0
      %4197 = vmatpush1.msra.mxu0 0.0
      %4198 = vmatprep.subr.mxu0 0.0
      %4199 = vmatpush1.msra.mxu0 0.0
      %4200 = vmatprep.subr.mxu0 0.0
      %4201 = vmatpush1.msra.mxu0 0.0
      %4202 = vmatprep.subr.mxu0 0.0
      %4203 = vmatpush1.msra.mxu0 0.0
      %4204 = vmatprep.subr.mxu0 0.0
      %4205 = vmatpush1.msra.mxu0 0.0
      %4206 = vmatprep.subr.mxu0 0.0
      %4207 = vmatpush1.msra.mxu0 0.0
      %4208 = vmatprep.subr.mxu0 0.0
      %4209 = vmatpush1.msra.mxu0 0.0
      %4210 = vmatprep.subr.mxu0 0.0
      %4211 = vmatpush1.msra.mxu0 0.0
      %4212 = vmatprep.subr.mxu0 0.0
      %4213 = vmatpush1.msra.mxu0 0.0
      %4214 = vmatprep.subr.mxu0 0.0
      %4215 = vmatpush1.msra.mxu0 0.0
      %4216 = vmatprep.subr.mxu0 0.0
      %4217 = vmatpush1.msra.mxu0 0.0
      %4218 = vmatprep.subr.mxu0 0.0
      %4219 = vmatpush1.msra.mxu0 0.0
      %4220 = vmatprep.subr.mxu0 0.0
      %4221 = vmatpush1.msra.mxu0 0.0
      %4222 = vmatprep.subr.mxu0 0.0
      %4223 = vmatpush1.msra.mxu0 0.0
      %4224 = vmatprep.mubr.f32.mxu0 0.0
      %4225 = vmatmul.mubr.f32.gmra.mrb[0].mxu0 %v4158
      %v4226 = vpop.f32.mrb[0].mxu0
      %v4227 = vadd.f32 %v4065, %v4226
      %v4228 = vpop.f32.mrb[0].mxu0
      %v4229 = vadd.f32 %v4065, %v4228
      %4230 = vdwg.mxu0
      %v4231 = vadd.f32 %v4227, %v4229
      %4232 = vadd.xlane.f32.xlu0 %v4231
      %v4233 = vpop.xlane.xlu0 %4232
      %v4234 = vmul.f32 %v4233, %v1152
      %v4235 = vmul.f32 %v4227, %v4227
      %v4236 = vmul.f32 %v4229, %v4229
      %v4237 = vadd.f32 %v4235, %v4236
      %4238 = vadd.xlane.f32.xlu0 %v4237
      %v4239 = vpop.xlane.xlu0 %4238
      %v4240 = vmul.f32 %v4239, %v1152
      %v4241 = vmul.f32 %v4234, %v4234
      %v4242 = vsub.f32 %v4240, %v4241
      %v4243 = vmax.f32 %v4242, 0.0
      %v4244 = vsub.f32 %v4227, %v4234
      %v4245 = vsub.f32 %v4229, %v4234
      %v4246 = vadd.f32 %v4243, 1e-05
      %v4247 = vrsqrt.pop %v4246
      %v4248 = vmul.f32 %v4244, %v4247
      %v4249 = vmul.f32 %v4245, %v4247
      %4251 = vset.pattern.permute.xlu0 0
      %4252 = vperm.xlu0 %4251, %v3984
      %v4253 = vpop.permute.xlu0 %4252
      %v4255 = vmul.f32 %v4248, %v4253
      %v4256 = vmul.f32 %v4249, %v4253
      %4258 = vset.pattern.permute.xlu0 0
      %4259 = vperm.xlu0 %4258, %v3986
      %v4260 = vpop.permute.xlu0 %4259
      %v4262 = vadd.f32 %v4255, %v4260
      %v4263 = vadd.f32 %v4256, %v4260
      %v4264 = vmul.f32 %v4262, %v448
      %v4265 = vmul.f32 %v4263, %v448
      %v4266 = vmul.f32 %v4227, %v1185
      %v4267 = vmul.f32 %v4229, %v1185
      %v4268 = vadd.f32 %v4264, %v4266
      %v4269 = vadd.f32 %v4265, %v4267
      %v4270 = vmul.f32 %v4268, %v469
      %v4271 = vmul.f32 %v4269, %v467
      %v4272 = vmul.f32 %v4268, %v490
      %v4273 = vmul.f32 %v4269, %v488
      %v4274 = vmul.f32 %v4268, %v502
      %v4275 = vmul.f32 %v4269, %v500
      %v4276 = vmul.f32 %v4268, %v510
      %v4277 = vmul.f32 %v4269, %v514
      %v4278 = vmul.f32 %v4268, %v522
      %v4279 = vmul.f32 %v4269, %v526
      %v4280 = vmul.f32 %v4268, %v534
      %v4281 = vmul.f32 %v4269, %v538
      %4284 = vrot.lane.b32.xlu0 %v4268, 127
      %v4285 = vpop.permute.xlu0 %4284
      %4286 = vrot.lane.b32.xlu0 %v4269, 127
      %v4287 = vpop.permute.xlu0 %4286
      %v4288 = vsel %vm501, %v549, %v4285
      %v4289 = vsel %vm501, %v4285, %v4287
      %4292 = vrot.lane.b32.xlu0 %v4272, 126
      %v4293 = vpop.permute.xlu0 %4292
      %4294 = vrot.lane.b32.xlu0 %v4273, 126
      %v4295 = vpop.permute.xlu0 %4294
      %v4296 = vsel %vm565, %v560, %v4293
      %v4297 = vsel %vm565, %v4293, %v4295
      %4300 = vrot.lane.b32.xlu0 %v4274, 112
      %v4301 = vpop.permute.xlu0 %4300
      %4302 = vrot.lane.b32.xlu0 %v4275, 112
      %v4303 = vpop.permute.xlu0 %4302
      %v4304 = vsel %vm577, %v572, %v4301
      %v4305 = vsel %vm577, %v4301, %v4303
      %4306 = vrot.lane.b32.xlu0 %v4268, 111
      %v4307 = vpop.permute.xlu0 %4306
      %4308 = vrot.lane.b32.xlu0 %v4269, 111
      %v4309 = vpop.permute.xlu0 %4308
      %v4310 = vsel %vm468, %v4307, %v4309
      %4313 = vrot.lane.b32.xlu0 %v4276, 110
      %v4314 = vpop.permute.xlu0 %4313
      %4315 = vrot.lane.b32.xlu0 %v4277, 110
      %v4316 = vpop.permute.xlu0 %4315
      %v4317 = vsel %vm594, %v4314, %v4316
      %v4318 = vsel %vm594, %v4316, %v593
      %4321 = vrot.lane.b32.xlu0 %v4278, 96
      %v4322 = vpop.permute.xlu0 %4321
      %4323 = vrot.lane.b32.xlu0 %v4279, 96
      %v4324 = vpop.permute.xlu0 %4323
      %v4325 = vsel %vm606, %v4322, %v4324
      %v4326 = vsel %vm606, %v4324, %v605
      %4327 = vrot.lane.b32.xlu0 %v4268, 95
      %v4328 = vpop.permute.xlu0 %4327
      %4329 = vrot.lane.b32.xlu0 %v4269, 95
      %v4330 = vpop.permute.xlu0 %4329
      %v4331 = vsel %vm615, %v4328, %v4330
      %v4332 = vsel %vm615, %v4330, %v614
      %4335 = vrot.lane.b32.xlu0 %v4280, 94
      %v4336 = vpop.permute.xlu0 %4335
      %4337 = vrot.lane.b32.xlu0 %v4281, 94
      %v4338 = vpop.permute.xlu0 %4337
      %v4339 = vsel %vm627, %v4336, %v4338
      %v4340 = vsel %vm627, %v4338, %v626
      %4342 = vset.pattern.permute.xlu0 0
      %4343 = vperm.xlu0 %4342, %v3990
      %v4344 = vpop.permute.xlu0 %4343
      %4348 = vrot.lane.b32.xlu0 %v4270, 17
      %v4349 = vpop.permute.xlu0 %4348
      %4350 = vrot.lane.b32.xlu0 %v4271, 17
      %v4351 = vpop.permute.xlu0 %4350
      %4352 = vrot.lane.b32.xlu0 %v4288, 17
      %v4353 = vpop.permute.xlu0 %4352
      %4354 = vrot.lane.b32.xlu0 %v4289, 17
      %v4355 = vpop.permute.xlu0 %4354
      %4356 = vrot.lane.b32.xlu0 %v4287, 17
      %v4357 = vpop.permute.xlu0 %4356
      %4358 = vrot.lane.b32.xlu0 %v4296, 17
      %v4359 = vpop.permute.xlu0 %4358
      %4360 = vrot.lane.b32.xlu0 %v4297, 17
      %v4361 = vpop.permute.xlu0 %4360
      %4362 = vrot.lane.b32.xlu0 %v4295, 17
      %v4363 = vpop.permute.xlu0 %4362
      %4364 = vrot.lane.b32.xlu0 %v4304, 17
      %v4365 = vpop.permute.xlu0 %4364
      %4366 = vrot.lane.b32.xlu0 %v4305, 17
      %v4367 = vpop.permute.xlu0 %4366
      %4368 = vrot.lane.b32.xlu0 %v4303, 17
      %v4369 = vpop.permute.xlu0 %4368
      %4370 = vrot.lane.b32.xlu0 %v4307, 17
      %v4371 = vpop.permute.xlu0 %4370
      %4372 = vrot.lane.b32.xlu0 %v4310, 17
      %v4373 = vpop.permute.xlu0 %4372
      %4374 = vrot.lane.b32.xlu0 %v4309, 17
      %v4375 = vpop.permute.xlu0 %4374
      %4376 = vrot.lane.b32.xlu0 %v4314, 17
      %v4377 = vpop.permute.xlu0 %4376
      %4378 = vrot.lane.b32.xlu0 %v4317, 17
      %v4379 = vpop.permute.xlu0 %4378
      %4380 = vrot.lane.b32.xlu0 %v4318, 17
      %v4381 = vpop.permute.xlu0 %4380
      %4382 = vrot.lane.b32.xlu0 %v4322, 17
      %v4383 = vpop.permute.xlu0 %4382
      %4384 = vrot.lane.b32.xlu0 %v4325, 17
      %v4385 = vpop.permute.xlu0 %4384
      %4386 = vrot.lane.b32.xlu0 %v4326, 17
      %v4387 = vpop.permute.xlu0 %4386
      %4388 = vrot.lane.b32.xlu0 %v4328, 17
      %v4389 = vpop.permute.xlu0 %4388
      %4390 = vrot.lane.b32.xlu0 %v4331, 17
      %v4391 = vpop.permute.xlu0 %4390
      %4392 = vrot.lane.b32.xlu0 %v4332, 17
      %v4393 = vpop.permute.xlu0 %4392
      %4394 = vrot.lane.b32.xlu0 %v4336, 17
      %v4395 = vpop.permute.xlu0 %4394
      %4396 = vrot.lane.b32.xlu0 %v4339, 17
      %v4397 = vpop.permute.xlu0 %4396
      %4398 = vrot.lane.b32.xlu0 %v4340, 17
      %v4399 = vpop.permute.xlu0 %4398
      %v4400 = vsel %vm537, %v644, %v4349
      %v4401 = vsel %vm537, %v4349, %v4351
      %v4402 = vsel %vm537, %v4353, %v4355
      %v4403 = vsel %vm537, %v4355, %v4357
      %v4404 = vsel %vm537, %v4359, %v4361
      %v4405 = vsel %vm537, %v4361, %v4363
      %v4406 = vsel %vm537, %v4365, %v4367
      %v4407 = vsel %vm537, %v4367, %v4369
      %v4408 = vsel %vm537, %v4371, %v4373
      %v4409 = vsel %vm537, %v4373, %v4375
      %v4410 = vsel %vm537, %v4377, %v4379
      %v4411 = vsel %vm537, %v4379, %v4381
      %v4412 = vsel %vm537, %v4383, %v4385
      %v4413 = vsel %vm537, %v4385, %v4387
      %v4414 = vsel %vm537, %v4389, %v4391
      %v4415 = vsel %vm537, %v4391, %v4393
      %v4416 = vsel %vm537, %v4395, %v4397
      %v4417 = vsel %vm537, %v4397, %v4399
      %v4437 = vsel %vm733, %v3988, 0
      %4439 = vmatprep.subr.mxu0 %v4401
      %4440 = vmatpush1.msra.mxu0 %v4400
      %4441 = vmatprep.subr.mxu0 %v4403
      %4442 = vmatpush1.msra.mxu0 %v4402
      %4443 = vmatprep.subr.mxu0 %v4405
      %4444 = vmatpush1.msra.mxu0 %v4404
      %4445 = vmatprep.subr.mxu0 %v4407
      %4446 = vmatpush1.msra.mxu0 %v4406
      %4447 = vmatprep.subr.mxu0 %v4409
      %4448 = vmatpush1.msra.mxu0 %v4408
      %4449 = vmatprep.subr.mxu0 %v4411
      %4450 = vmatpush1.msra.mxu0 %v4410
      %4451 = vmatprep.subr.mxu0 %v4413
      %4452 = vmatpush1.msra.mxu0 %v4412
      %4453 = vmatprep.subr.mxu0 %v4415
      %4454 = vmatpush1.msra.mxu0 %v4414
      %4455 = vmatprep.subr.mxu0 %v4417
      %4456 = vmatpush1.msra.mxu0 %v4416
      %4457 = vmatprep.subr.mxu0 0.0
      %4458 = vmatpush1.msra.mxu0 0.0
      %4459 = vmatprep.subr.mxu0 0.0
      %4460 = vmatpush1.msra.mxu0 0.0
      %4461 = vmatprep.subr.mxu0 0.0
      %4462 = vmatpush1.msra.mxu0 0.0
      %4463 = vmatprep.subr.mxu0 0.0
      %4464 = vmatpush1.msra.mxu0 0.0
      %4465 = vmatprep.subr.mxu0 0.0
      %4466 = vmatpush1.msra.mxu0 0.0
      %4467 = vmatprep.subr.mxu0 0.0
      %4468 = vmatpush1.msra.mxu0 0.0
      %4469 = vmatprep.subr.mxu0 0.0
      %4470 = vmatpush1.msra.mxu0 0.0
      %4471 = vmatprep.subr.mxu0 0.0
      %4472 = vmatpush1.msra.mxu0 0.0
      %4473 = vmatprep.subr.mxu0 0.0
      %4474 = vmatpush1.msra.mxu0 0.0
      %4475 = vmatprep.subr.mxu0 0.0
      %4476 = vmatpush1.msra.mxu0 0.0
      %4477 = vmatprep.subr.mxu0 0.0
      %4478 = vmatpush1.msra.mxu0 0.0
      %4479 = vmatprep.subr.mxu0 0.0
      %4480 = vmatpush1.msra.mxu0 0.0
      %4481 = vmatprep.subr.mxu0 0.0
      %4482 = vmatpush1.msra.mxu0 0.0
      %4483 = vmatprep.subr.mxu0 0.0
      %4484 = vmatpush1.msra.mxu0 0.0
      %4485 = vmatprep.subr.mxu0 0.0
      %4486 = vmatpush1.msra.mxu0 0.0
      %4487 = vmatprep.subr.mxu0 0.0
      %4488 = vmatpush1.msra.mxu0 0.0
      %4489 = vmatprep.subr.mxu0 0.0
      %4490 = vmatpush1.msra.mxu0 0.0
      %4491 = vmatprep.subr.mxu0 0.0
      %4492 = vmatpush1.msra.mxu0 0.0
      %4493 = vmatprep.subr.mxu0 0.0
      %4494 = vmatpush1.msra.mxu0 0.0
      %4495 = vmatprep.subr.mxu0 0.0
      %4496 = vmatpush1.msra.mxu0 0.0
      %4497 = vmatprep.subr.mxu0 0.0
      %4498 = vmatpush1.msra.mxu0 0.0
      %4499 = vmatprep.subr.mxu0 0.0
      %4500 = vmatpush1.msra.mxu0 0.0
      %4501 = vmatprep.subr.mxu0 0.0
      %4502 = vmatpush1.msra.mxu0 0.0
      %4503 = vmatprep.mubr.f32.mxu0 0.0
      %4504 = vmatmul.mubr.f32.gmra.mrb[0].mxu0 %v4437
      %v4505 = vpop.f32.mrb[0].mxu0
      %v4506 = vadd.f32 %v4344, %v4505
      %v4507 = vpop.f32.mrb[0].mxu0
      %v4508 = vadd.f32 %v4344, %v4507
      %4509 = vdwg.mxu0
      %v4510 = vadd.f32 %v3975, %v4506
      %v4511 = vadd.f32 %v3977, %v4508
      %v4512 = vadd.f32 %v3969, %v4510
      %v4513 = vadd.f32 %v3971, %v4511
      %s4514 = scalar_lea.vmem %s5, 56
      %v4515 = vld [vmem:[%s4514] sm:$0xff]
      %s4516 = scalar_lea.vmem %s6, 56
      %v4517 = vld [vmem:[%s4516] sm:$0xff]
      %s4518 = scalar_lea.vmem %s7, 56
      %v4519 = vld [vmem:[%s4518] sm:$0xff]
      %s4520 = scalar_lea.vmem %s8, 56
      %v4521 = vld [vmem:[%s4520] sm:$0xff]
      %s4522 = scalar_lea.vmem %s9, 56
      %v4523 = vld [vmem:[%s4522] sm:$0xff]
      %s4524 = scalar_lea.vmem %s10, 56
      %v4525 = vld [vmem:[%s4524] sm:$0xff]
      %v4526 = vmul.f32 %v4512, %v469
      %v4527 = vmul.f32 %v4513, %v467
      %v4528 = vmul.f32 %v4512, %v490
      %v4529 = vmul.f32 %v4513, %v488
      %v4530 = vmul.f32 %v4512, %v502
      %v4531 = vmul.f32 %v4513, %v500
      %v4532 = vmul.f32 %v4512, %v510
      %v4533 = vmul.f32 %v4513, %v514
      %v4534 = vmul.f32 %v4512, %v522
      %v4535 = vmul.f32 %v4513, %v526
      %v4536 = vmul.f32 %v4512, %v534
      %v4537 = vmul.f32 %v4513, %v538
      %4540 = vrot.lane.b32.xlu0 %v4512, 127
      %v4541 = vpop.permute.xlu0 %4540
      %4542 = vrot.lane.b32.xlu0 %v4513, 127
      %v4543 = vpop.permute.xlu0 %4542
      %v4544 = vsel %vm501, %v549, %v4541
      %v4545 = vsel %vm501, %v4541, %v4543
      %4548 = vrot.lane.b32.xlu0 %v4528, 126
      %v4549 = vpop.permute.xlu0 %4548
      %4550 = vrot.lane.b32.xlu0 %v4529, 126
      %v4551 = vpop.permute.xlu0 %4550
      %v4552 = vsel %vm565, %v560, %v4549
      %v4553 = vsel %vm565, %v4549, %v4551
      %4556 = vrot.lane.b32.xlu0 %v4530, 112
      %v4557 = vpop.permute.xlu0 %4556
      %4558 = vrot.lane.b32.xlu0 %v4531, 112
      %v4559 = vpop.permute.xlu0 %4558
      %v4560 = vsel %vm577, %v572, %v4557
      %v4561 = vsel %vm577, %v4557, %v4559
      %4562 = vrot.lane.b32.xlu0 %v4512, 111
      %v4563 = vpop.permute.xlu0 %4562
      %4564 = vrot.lane.b32.xlu0 %v4513, 111
      %v4565 = vpop.permute.xlu0 %4564
      %v4566 = vsel %vm468, %v4563, %v4565
      %4569 = vrot.lane.b32.xlu0 %v4532, 110
      %v4570 = vpop.permute.xlu0 %4569
      %4571 = vrot.lane.b32.xlu0 %v4533, 110
      %v4572 = vpop.permute.xlu0 %4571
      %v4573 = vsel %vm594, %v4570, %v4572
      %v4574 = vsel %vm594, %v4572, %v593
      %4577 = vrot.lane.b32.xlu0 %v4534, 96
      %v4578 = vpop.permute.xlu0 %4577
      %4579 = vrot.lane.b32.xlu0 %v4535, 96
      %v4580 = vpop.permute.xlu0 %4579
      %v4581 = vsel %vm606, %v4578, %v4580
      %v4582 = vsel %vm606, %v4580, %v605
      %4583 = vrot.lane.b32.xlu0 %v4512, 95
      %v4584 = vpop.permute.xlu0 %4583
      %4585 = vrot.lane.b32.xlu0 %v4513, 95
      %v4586 = vpop.permute.xlu0 %4585
      %v4587 = vsel %vm615, %v4584, %v4586
      %v4588 = vsel %vm615, %v4586, %v614
      %4591 = vrot.lane.b32.xlu0 %v4536, 94
      %v4592 = vpop.permute.xlu0 %4591
      %4593 = vrot.lane.b32.xlu0 %v4537, 94
      %v4594 = vpop.permute.xlu0 %4593
      %v4595 = vsel %vm627, %v4592, %v4594
      %v4596 = vsel %vm627, %v4594, %v626
      %4598 = vset.pattern.permute.xlu0 0
      %4599 = vperm.xlu0 %4598, %v4517
      %v4600 = vpop.permute.xlu0 %4599
      %4604 = vrot.lane.b32.xlu0 %v4526, 17
      %v4605 = vpop.permute.xlu0 %4604
      %4606 = vrot.lane.b32.xlu0 %v4527, 17
      %v4607 = vpop.permute.xlu0 %4606
      %4608 = vrot.lane.b32.xlu0 %v4544, 17
      %v4609 = vpop.permute.xlu0 %4608
      %4610 = vrot.lane.b32.xlu0 %v4545, 17
      %v4611 = vpop.permute.xlu0 %4610
      %4612 = vrot.lane.b32.xlu0 %v4543, 17
      %v4613 = vpop.permute.xlu0 %4612
      %4614 = vrot.lane.b32.xlu0 %v4552, 17
      %v4615 = vpop.permute.xlu0 %4614
      %4616 = vrot.lane.b32.xlu0 %v4553, 17
      %v4617 = vpop.permute.xlu0 %4616
      %4618 = vrot.lane.b32.xlu0 %v4551, 17
      %v4619 = vpop.permute.xlu0 %4618
      %4620 = vrot.lane.b32.xlu0 %v4560, 17
      %v4621 = vpop.permute.xlu0 %4620
      %4622 = vrot.lane.b32.xlu0 %v4561, 17
      %v4623 = vpop.permute.xlu0 %4622
      %4624 = vrot.lane.b32.xlu0 %v4559, 17
      %v4625 = vpop.permute.xlu0 %4624
      %4626 = vrot.lane.b32.xlu0 %v4563, 17
      %v4627 = vpop.permute.xlu0 %4626
      %4628 = vrot.lane.b32.xlu0 %v4566, 17
      %v4629 = vpop.permute.xlu0 %4628
      %4630 = vrot.lane.b32.xlu0 %v4565, 17
      %v4631 = vpop.permute.xlu0 %4630
      %4632 = vrot.lane.b32.xlu0 %v4570, 17
      %v4633 = vpop.permute.xlu0 %4632
      %4634 = vrot.lane.b32.xlu0 %v4573, 17
      %v4635 = vpop.permute.xlu0 %4634
      %4636 = vrot.lane.b32.xlu0 %v4574, 17
      %v4637 = vpop.permute.xlu0 %4636
      %4638 = vrot.lane.b32.xlu0 %v4578, 17
      %v4639 = vpop.permute.xlu0 %4638
      %4640 = vrot.lane.b32.xlu0 %v4581, 17
      %v4641 = vpop.permute.xlu0 %4640
      %4642 = vrot.lane.b32.xlu0 %v4582, 17
      %v4643 = vpop.permute.xlu0 %4642
      %4644 = vrot.lane.b32.xlu0 %v4584, 17
      %v4645 = vpop.permute.xlu0 %4644
      %4646 = vrot.lane.b32.xlu0 %v4587, 17
      %v4647 = vpop.permute.xlu0 %4646
      %4648 = vrot.lane.b32.xlu0 %v4588, 17
      %v4649 = vpop.permute.xlu0 %4648
      %4650 = vrot.lane.b32.xlu0 %v4592, 17
      %v4651 = vpop.permute.xlu0 %4650
      %4652 = vrot.lane.b32.xlu0 %v4595, 17
      %v4653 = vpop.permute.xlu0 %4652
      %4654 = vrot.lane.b32.xlu0 %v4596, 17
      %v4655 = vpop.permute.xlu0 %4654
      %v4656 = vsel %vm537, %v644, %v4605
      %v4657 = vsel %vm537, %v4605, %v4607
      %v4658 = vsel %vm537, %v4609, %v4611
      %v4659 = vsel %vm537, %v4611, %v4613
      %v4660 = vsel %vm537, %v4615, %v4617
      %v4661 = vsel %vm537, %v4617, %v4619
      %v4662 = vsel %vm537, %v4621, %v4623
      %v4663 = vsel %vm537, %v4623, %v4625
      %v4664 = vsel %vm537, %v4627, %v4629
      %v4665 = vsel %vm537, %v4629, %v4631
      %v4666 = vsel %vm537, %v4633, %v4635
      %v4667 = vsel %vm537, %v4635, %v4637
      %v4668 = vsel %vm537, %v4639, %v4641
      %v4669 = vsel %vm537, %v4641, %v4643
      %v4670 = vsel %vm537, %v4645, %v4647
      %v4671 = vsel %vm537, %v4647, %v4649
      %v4672 = vsel %vm537, %v4651, %v4653
      %v4673 = vsel %vm537, %v4653, %v4655
      %v4693 = vsel %vm733, %v4515, 0
      %4695 = vmatprep.subr.mxu0 %v4657
      %4696 = vmatpush1.msra.mxu0 %v4656
      %4697 = vmatprep.subr.mxu0 %v4659
      %4698 = vmatpush1.msra.mxu0 %v4658
      %4699 = vmatprep.subr.mxu0 %v4661
      %4700 = vmatpush1.msra.mxu0 %v4660
      %4701 = vmatprep.subr.mxu0 %v4663
      %4702 = vmatpush1.msra.mxu0 %v4662
      %4703 = vmatprep.subr.mxu0 %v4665
      %4704 = vmatpush1.msra.mxu0 %v4664
      %4705 = vmatprep.subr.mxu0 %v4667
      %4706 = vmatpush1.msra.mxu0 %v4666
      %4707 = vmatprep.subr.mxu0 %v4669
      %4708 = vmatpush1.msra.mxu0 %v4668
      %4709 = vmatprep.subr.mxu0 %v4671
      %4710 = vmatpush1.msra.mxu0 %v4670
      %4711 = vmatprep.subr.mxu0 %v4673
      %4712 = vmatpush1.msra.mxu0 %v4672
      %4713 = vmatprep.subr.mxu0 0.0
      %4714 = vmatpush1.msra.mxu0 0.0
      %4715 = vmatprep.subr.mxu0 0.0
      %4716 = vmatpush1.msra.mxu0 0.0
      %4717 = vmatprep.subr.mxu0 0.0
      %4718 = vmatpush1.msra.mxu0 0.0
      %4719 = vmatprep.subr.mxu0 0.0
      %4720 = vmatpush1.msra.mxu0 0.0
      %4721 = vmatprep.subr.mxu0 0.0
      %4722 = vmatpush1.msra.mxu0 0.0
      %4723 = vmatprep.subr.mxu0 0.0
      %4724 = vmatpush1.msra.mxu0 0.0
      %4725 = vmatprep.subr.mxu0 0.0
      %4726 = vmatpush1.msra.mxu0 0.0
      %4727 = vmatprep.subr.mxu0 0.0
      %4728 = vmatpush1.msra.mxu0 0.0
      %4729 = vmatprep.subr.mxu0 0.0
      %4730 = vmatpush1.msra.mxu0 0.0
      %4731 = vmatprep.subr.mxu0 0.0
      %4732 = vmatpush1.msra.mxu0 0.0
      %4733 = vmatprep.subr.mxu0 0.0
      %4734 = vmatpush1.msra.mxu0 0.0
      %4735 = vmatprep.subr.mxu0 0.0
      %4736 = vmatpush1.msra.mxu0 0.0
      %4737 = vmatprep.subr.mxu0 0.0
      %4738 = vmatpush1.msra.mxu0 0.0
      %4739 = vmatprep.subr.mxu0 0.0
      %4740 = vmatpush1.msra.mxu0 0.0
      %4741 = vmatprep.subr.mxu0 0.0
      %4742 = vmatpush1.msra.mxu0 0.0
      %4743 = vmatprep.subr.mxu0 0.0
      %4744 = vmatpush1.msra.mxu0 0.0
      %4745 = vmatprep.subr.mxu0 0.0
      %4746 = vmatpush1.msra.mxu0 0.0
      %4747 = vmatprep.subr.mxu0 0.0
      %4748 = vmatpush1.msra.mxu0 0.0
      %4749 = vmatprep.subr.mxu0 0.0
      %4750 = vmatpush1.msra.mxu0 0.0
      %4751 = vmatprep.subr.mxu0 0.0
      %4752 = vmatpush1.msra.mxu0 0.0
      %4753 = vmatprep.subr.mxu0 0.0
      %4754 = vmatpush1.msra.mxu0 0.0
      %4755 = vmatprep.subr.mxu0 0.0
      %4756 = vmatpush1.msra.mxu0 0.0
      %4757 = vmatprep.subr.mxu0 0.0
      %4758 = vmatpush1.msra.mxu0 0.0
      %4759 = vmatprep.mubr.f32.mxu0 0.0
      %4760 = vmatmul.mubr.f32.gmra.mrb[0].mxu0 %v4693
      %v4761 = vpop.f32.mrb[0].mxu0
      %v4762 = vadd.f32 %v4600, %v4761
      %v4763 = vpop.f32.mrb[0].mxu0
      %v4764 = vadd.f32 %v4600, %v4763
      %4765 = vdwg.mxu0
      %v4766 = vadd.f32 %v4762, %v4764
      %4767 = vadd.xlane.f32.xlu0 %v4766
      %v4768 = vpop.xlane.xlu0 %4767
      %v4769 = vmul.f32 %v4768, %v1152
      %v4770 = vmul.f32 %v4762, %v4762
      %v4771 = vmul.f32 %v4764, %v4764
      %v4772 = vadd.f32 %v4770, %v4771
      %4773 = vadd.xlane.f32.xlu0 %v4772
      %v4774 = vpop.xlane.xlu0 %4773
      %v4775 = vmul.f32 %v4774, %v1152
      %v4776 = vmul.f32 %v4769, %v4769
      %v4777 = vsub.f32 %v4775, %v4776
      %v4778 = vmax.f32 %v4777, 0.0
      %v4779 = vsub.f32 %v4762, %v4769
      %v4780 = vsub.f32 %v4764, %v4769
      %v4781 = vadd.f32 %v4778, 1e-05
      %v4782 = vrsqrt.pop %v4781
      %v4783 = vmul.f32 %v4779, %v4782
      %v4784 = vmul.f32 %v4780, %v4782
      %4786 = vset.pattern.permute.xlu0 0
      %4787 = vperm.xlu0 %4786, %v4519
      %v4788 = vpop.permute.xlu0 %4787
      %v4790 = vmul.f32 %v4783, %v4788
      %v4791 = vmul.f32 %v4784, %v4788
      %4793 = vset.pattern.permute.xlu0 0
      %4794 = vperm.xlu0 %4793, %v4521
      %v4795 = vpop.permute.xlu0 %4794
      %v4797 = vadd.f32 %v4790, %v4795
      %v4798 = vadd.f32 %v4791, %v4795
      %v4799 = vmul.f32 %v4797, %v448
      %v4800 = vmul.f32 %v4798, %v448
      %v4801 = vmul.f32 %v4762, %v1185
      %v4802 = vmul.f32 %v4764, %v1185
      %v4803 = vadd.f32 %v4799, %v4801
      %v4804 = vadd.f32 %v4800, %v4802
      %v4805 = vmul.f32 %v4803, %v469
      %v4806 = vmul.f32 %v4804, %v467
      %v4807 = vmul.f32 %v4803, %v490
      %v4808 = vmul.f32 %v4804, %v488
      %v4809 = vmul.f32 %v4803, %v502
      %v4810 = vmul.f32 %v4804, %v500
      %v4811 = vmul.f32 %v4803, %v510
      %v4812 = vmul.f32 %v4804, %v514
      %v4813 = vmul.f32 %v4803, %v522
      %v4814 = vmul.f32 %v4804, %v526
      %v4815 = vmul.f32 %v4803, %v534
      %v4816 = vmul.f32 %v4804, %v538
      %4819 = vrot.lane.b32.xlu0 %v4803, 127
      %v4820 = vpop.permute.xlu0 %4819
      %4821 = vrot.lane.b32.xlu0 %v4804, 127
      %v4822 = vpop.permute.xlu0 %4821
      %v4823 = vsel %vm501, %v549, %v4820
      %v4824 = vsel %vm501, %v4820, %v4822
      %4827 = vrot.lane.b32.xlu0 %v4807, 126
      %v4828 = vpop.permute.xlu0 %4827
      %4829 = vrot.lane.b32.xlu0 %v4808, 126
      %v4830 = vpop.permute.xlu0 %4829
      %v4831 = vsel %vm565, %v560, %v4828
      %v4832 = vsel %vm565, %v4828, %v4830
      %4835 = vrot.lane.b32.xlu0 %v4809, 112
      %v4836 = vpop.permute.xlu0 %4835
      %4837 = vrot.lane.b32.xlu0 %v4810, 112
      %v4838 = vpop.permute.xlu0 %4837
      %v4839 = vsel %vm577, %v572, %v4836
      %v4840 = vsel %vm577, %v4836, %v4838
      %4841 = vrot.lane.b32.xlu0 %v4803, 111
      %v4842 = vpop.permute.xlu0 %4841
      %4843 = vrot.lane.b32.xlu0 %v4804, 111
      %v4844 = vpop.permute.xlu0 %4843
      %v4845 = vsel %vm468, %v4842, %v4844
      %4848 = vrot.lane.b32.xlu0 %v4811, 110
      %v4849 = vpop.permute.xlu0 %4848
      %4850 = vrot.lane.b32.xlu0 %v4812, 110
      %v4851 = vpop.permute.xlu0 %4850
      %v4852 = vsel %vm594, %v4849, %v4851
      %v4853 = vsel %vm594, %v4851, %v593
      %4856 = vrot.lane.b32.xlu0 %v4813, 96
      %v4857 = vpop.permute.xlu0 %4856
      %4858 = vrot.lane.b32.xlu0 %v4814, 96
      %v4859 = vpop.permute.xlu0 %4858
      %v4860 = vsel %vm606, %v4857, %v4859
      %v4861 = vsel %vm606, %v4859, %v605
      %4862 = vrot.lane.b32.xlu0 %v4803, 95
      %v4863 = vpop.permute.xlu0 %4862
      %4864 = vrot.lane.b32.xlu0 %v4804, 95
      %v4865 = vpop.permute.xlu0 %4864
      %v4866 = vsel %vm615, %v4863, %v4865
      %v4867 = vsel %vm615, %v4865, %v614
      %4870 = vrot.lane.b32.xlu0 %v4815, 94
      %v4871 = vpop.permute.xlu0 %4870
      %4872 = vrot.lane.b32.xlu0 %v4816, 94
      %v4873 = vpop.permute.xlu0 %4872
      %v4874 = vsel %vm627, %v4871, %v4873
      %v4875 = vsel %vm627, %v4873, %v626
      %4877 = vset.pattern.permute.xlu0 0
      %4878 = vperm.xlu0 %4877, %v4525
      %v4879 = vpop.permute.xlu0 %4878
      %4883 = vrot.lane.b32.xlu0 %v4805, 17
      %v4884 = vpop.permute.xlu0 %4883
      %4885 = vrot.lane.b32.xlu0 %v4806, 17
      %v4886 = vpop.permute.xlu0 %4885
      %4887 = vrot.lane.b32.xlu0 %v4823, 17
      %v4888 = vpop.permute.xlu0 %4887
      %4889 = vrot.lane.b32.xlu0 %v4824, 17
      %v4890 = vpop.permute.xlu0 %4889
      %4891 = vrot.lane.b32.xlu0 %v4822, 17
      %v4892 = vpop.permute.xlu0 %4891
      %4893 = vrot.lane.b32.xlu0 %v4831, 17
      %v4894 = vpop.permute.xlu0 %4893
      %4895 = vrot.lane.b32.xlu0 %v4832, 17
      %v4896 = vpop.permute.xlu0 %4895
      %4897 = vrot.lane.b32.xlu0 %v4830, 17
      %v4898 = vpop.permute.xlu0 %4897
      %4899 = vrot.lane.b32.xlu0 %v4839, 17
      %v4900 = vpop.permute.xlu0 %4899
      %4901 = vrot.lane.b32.xlu0 %v4840, 17
      %v4902 = vpop.permute.xlu0 %4901
      %4903 = vrot.lane.b32.xlu0 %v4838, 17
      %v4904 = vpop.permute.xlu0 %4903
      %4905 = vrot.lane.b32.xlu0 %v4842, 17
      %v4906 = vpop.permute.xlu0 %4905
      %4907 = vrot.lane.b32.xlu0 %v4845, 17
      %v4908 = vpop.permute.xlu0 %4907
      %4909 = vrot.lane.b32.xlu0 %v4844, 17
      %v4910 = vpop.permute.xlu0 %4909
      %4911 = vrot.lane.b32.xlu0 %v4849, 17
      %v4912 = vpop.permute.xlu0 %4911
      %4913 = vrot.lane.b32.xlu0 %v4852, 17
      %v4914 = vpop.permute.xlu0 %4913
      %4915 = vrot.lane.b32.xlu0 %v4853, 17
      %v4916 = vpop.permute.xlu0 %4915
      %4917 = vrot.lane.b32.xlu0 %v4857, 17
      %v4918 = vpop.permute.xlu0 %4917
      %4919 = vrot.lane.b32.xlu0 %v4860, 17
      %v4920 = vpop.permute.xlu0 %4919
      %4921 = vrot.lane.b32.xlu0 %v4861, 17
      %v4922 = vpop.permute.xlu0 %4921
      %4923 = vrot.lane.b32.xlu0 %v4863, 17
      %v4924 = vpop.permute.xlu0 %4923
      %4925 = vrot.lane.b32.xlu0 %v4866, 17
      %v4926 = vpop.permute.xlu0 %4925
      %4927 = vrot.lane.b32.xlu0 %v4867, 17
      %v4928 = vpop.permute.xlu0 %4927
      %4929 = vrot.lane.b32.xlu0 %v4871, 17
      %v4930 = vpop.permute.xlu0 %4929
      %4931 = vrot.lane.b32.xlu0 %v4874, 17
      %v4932 = vpop.permute.xlu0 %4931
      %4933 = vrot.lane.b32.xlu0 %v4875, 17
      %v4934 = vpop.permute.xlu0 %4933
      %v4935 = vsel %vm537, %v644, %v4884
      %v4936 = vsel %vm537, %v4884, %v4886
      %v4937 = vsel %vm537, %v4888, %v4890
      %v4938 = vsel %vm537, %v4890, %v4892
      %v4939 = vsel %vm537, %v4894, %v4896
      %v4940 = vsel %vm537, %v4896, %v4898
      %v4941 = vsel %vm537, %v4900, %v4902
      %v4942 = vsel %vm537, %v4902, %v4904
      %v4943 = vsel %vm537, %v4906, %v4908
      %v4944 = vsel %vm537, %v4908, %v4910
      %v4945 = vsel %vm537, %v4912, %v4914
      %v4946 = vsel %vm537, %v4914, %v4916
      %v4947 = vsel %vm537, %v4918, %v4920
      %v4948 = vsel %vm537, %v4920, %v4922
      %v4949 = vsel %vm537, %v4924, %v4926
      %v4950 = vsel %vm537, %v4926, %v4928
      %v4951 = vsel %vm537, %v4930, %v4932
      %v4952 = vsel %vm537, %v4932, %v4934
      %v4972 = vsel %vm733, %v4523, 0
      %4974 = vmatprep.subr.mxu0 %v4936
      %4975 = vmatpush1.msra.mxu0 %v4935
      %4976 = vmatprep.subr.mxu0 %v4938
      %4977 = vmatpush1.msra.mxu0 %v4937
      %4978 = vmatprep.subr.mxu0 %v4940
      %4979 = vmatpush1.msra.mxu0 %v4939
      %4980 = vmatprep.subr.mxu0 %v4942
      %4981 = vmatpush1.msra.mxu0 %v4941
      %4982 = vmatprep.subr.mxu0 %v4944
      %4983 = vmatpush1.msra.mxu0 %v4943
      %4984 = vmatprep.subr.mxu0 %v4946
      %4985 = vmatpush1.msra.mxu0 %v4945
      %4986 = vmatprep.subr.mxu0 %v4948
      %4987 = vmatpush1.msra.mxu0 %v4947
      %4988 = vmatprep.subr.mxu0 %v4950
      %4989 = vmatpush1.msra.mxu0 %v4949
      %4990 = vmatprep.subr.mxu0 %v4952
      %4991 = vmatpush1.msra.mxu0 %v4951
      %4992 = vmatprep.subr.mxu0 0.0
      %4993 = vmatpush1.msra.mxu0 0.0
      %4994 = vmatprep.subr.mxu0 0.0
      %4995 = vmatpush1.msra.mxu0 0.0
      %4996 = vmatprep.subr.mxu0 0.0
      %4997 = vmatpush1.msra.mxu0 0.0
      %4998 = vmatprep.subr.mxu0 0.0
      %4999 = vmatpush1.msra.mxu0 0.0
      %5000 = vmatprep.subr.mxu0 0.0
      %5001 = vmatpush1.msra.mxu0 0.0
      %5002 = vmatprep.subr.mxu0 0.0
      %5003 = vmatpush1.msra.mxu0 0.0
      %5004 = vmatprep.subr.mxu0 0.0
      %5005 = vmatpush1.msra.mxu0 0.0
      %5006 = vmatprep.subr.mxu0 0.0
      %5007 = vmatpush1.msra.mxu0 0.0
      %5008 = vmatprep.subr.mxu0 0.0
      %5009 = vmatpush1.msra.mxu0 0.0
      %5010 = vmatprep.subr.mxu0 0.0
      %5011 = vmatpush1.msra.mxu0 0.0
      %5012 = vmatprep.subr.mxu0 0.0
      %5013 = vmatpush1.msra.mxu0 0.0
      %5014 = vmatprep.subr.mxu0 0.0
      %5015 = vmatpush1.msra.mxu0 0.0
      %5016 = vmatprep.subr.mxu0 0.0
      %5017 = vmatpush1.msra.mxu0 0.0
      %5018 = vmatprep.subr.mxu0 0.0
      %5019 = vmatpush1.msra.mxu0 0.0
      %5020 = vmatprep.subr.mxu0 0.0
      %5021 = vmatpush1.msra.mxu0 0.0
      %5022 = vmatprep.subr.mxu0 0.0
      %5023 = vmatpush1.msra.mxu0 0.0
      %5024 = vmatprep.subr.mxu0 0.0
      %5025 = vmatpush1.msra.mxu0 0.0
      %5026 = vmatprep.subr.mxu0 0.0
      %5027 = vmatpush1.msra.mxu0 0.0
      %5028 = vmatprep.subr.mxu0 0.0
      %5029 = vmatpush1.msra.mxu0 0.0
      %5030 = vmatprep.subr.mxu0 0.0
      %5031 = vmatpush1.msra.mxu0 0.0
      %5032 = vmatprep.subr.mxu0 0.0
      %5033 = vmatpush1.msra.mxu0 0.0
      %5034 = vmatprep.subr.mxu0 0.0
      %5035 = vmatpush1.msra.mxu0 0.0
      %5036 = vmatprep.subr.mxu0 0.0
      %5037 = vmatpush1.msra.mxu0 0.0
      %5038 = vmatprep.mubr.f32.mxu0 0.0
      %5039 = vmatmul.mubr.f32.gmra.mrb[0].mxu0 %v4972
      %v5040 = vpop.f32.mrb[0].mxu0
      %v5041 = vadd.f32 %v4879, %v5040
      %v5042 = vpop.f32.mrb[0].mxu0
      %v5043 = vadd.f32 %v4879, %v5042
      %5044 = vdwg.mxu0
      %v5045 = vadd.f32 %v4512, %v5041
      %v5046 = vadd.f32 %v4513, %v5043
      %s5047 = scalar_lea.vmem %s5, 64
      %v5048 = vld [vmem:[%s5047] sm:$0xff]
      %s5049 = scalar_lea.vmem %s6, 64
      %v5050 = vld [vmem:[%s5049] sm:$0xff]
      %s5051 = scalar_lea.vmem %s7, 64
      %v5052 = vld [vmem:[%s5051] sm:$0xff]
      %s5053 = scalar_lea.vmem %s8, 64
      %v5054 = vld [vmem:[%s5053] sm:$0xff]
      %s5055 = scalar_lea.vmem %s9, 64
      %v5056 = vld [vmem:[%s5055] sm:$0xff]
      %s5057 = scalar_lea.vmem %s10, 64
      %v5058 = vld [vmem:[%s5057] sm:$0xff]
      %5060 = vset.pattern.permute.xlu0 0
      %5061 = vperm.xlu0 %5060, %v5050
      %v5062 = vpop.permute.xlu0 %5061
      %v5065 = vsel %vm733, %v5048, 0
      %5067 = vmatprep.subr.mxu0 %v4657
      %5068 = vmatpush1.msra.mxu0 %v4656
      %5069 = vmatprep.subr.mxu0 %v4659
      %5070 = vmatpush1.msra.mxu0 %v4658
      %5071 = vmatprep.subr.mxu0 %v4661
      %5072 = vmatpush1.msra.mxu0 %v4660
      %5073 = vmatprep.subr.mxu0 %v4663
      %5074 = vmatpush1.msra.mxu0 %v4662
      %5075 = vmatprep.subr.mxu0 %v4665
      %5076 = vmatpush1.msra.mxu0 %v4664
      %5077 = vmatprep.subr.mxu0 %v4667
      %5078 = vmatpush1.msra.mxu0 %v4666
      %5079 = vmatprep.subr.mxu0 %v4669
      %5080 = vmatpush1.msra.mxu0 %v4668
      %5081 = vmatprep.subr.mxu0 %v4671
      %5082 = vmatpush1.msra.mxu0 %v4670
      %5083 = vmatprep.subr.mxu0 %v4673
      %5084 = vmatpush1.msra.mxu0 %v4672
      %5085 = vmatprep.subr.mxu0 0.0
      %5086 = vmatpush1.msra.mxu0 0.0
      %5087 = vmatprep.subr.mxu0 0.0
      %5088 = vmatpush1.msra.mxu0 0.0
      %5089 = vmatprep.subr.mxu0 0.0
      %5090 = vmatpush1.msra.mxu0 0.0
      %5091 = vmatprep.subr.mxu0 0.0
      %5092 = vmatpush1.msra.mxu0 0.0
      %5093 = vmatprep.subr.mxu0 0.0
      %5094 = vmatpush1.msra.mxu0 0.0
      %5095 = vmatprep.subr.mxu0 0.0
      %5096 = vmatpush1.msra.mxu0 0.0
      %5097 = vmatprep.subr.mxu0 0.0
      %5098 = vmatpush1.msra.mxu0 0.0
      %5099 = vmatprep.subr.mxu0 0.0
      %5100 = vmatpush1.msra.mxu0 0.0
      %5101 = vmatprep.subr.mxu0 0.0
      %5102 = vmatpush1.msra.mxu0 0.0
      %5103 = vmatprep.subr.mxu0 0.0
      %5104 = vmatpush1.msra.mxu0 0.0
      %5105 = vmatprep.subr.mxu0 0.0
      %5106 = vmatpush1.msra.mxu0 0.0
      %5107 = vmatprep.subr.mxu0 0.0
      %5108 = vmatpush1.msra.mxu0 0.0
      %5109 = vmatprep.subr.mxu0 0.0
      %5110 = vmatpush1.msra.mxu0 0.0
      %5111 = vmatprep.subr.mxu0 0.0
      %5112 = vmatpush1.msra.mxu0 0.0
      %5113 = vmatprep.subr.mxu0 0.0
      %5114 = vmatpush1.msra.mxu0 0.0
      %5115 = vmatprep.subr.mxu0 0.0
      %5116 = vmatpush1.msra.mxu0 0.0
      %5117 = vmatprep.subr.mxu0 0.0
      %5118 = vmatpush1.msra.mxu0 0.0
      %5119 = vmatprep.subr.mxu0 0.0
      %5120 = vmatpush1.msra.mxu0 0.0
      %5121 = vmatprep.subr.mxu0 0.0
      %5122 = vmatpush1.msra.mxu0 0.0
      %5123 = vmatprep.subr.mxu0 0.0
      %5124 = vmatpush1.msra.mxu0 0.0
      %5125 = vmatprep.subr.mxu0 0.0
      %5126 = vmatpush1.msra.mxu0 0.0
      %5127 = vmatprep.subr.mxu0 0.0
      %5128 = vmatpush1.msra.mxu0 0.0
      %5129 = vmatprep.subr.mxu0 0.0
      %5130 = vmatpush1.msra.mxu0 0.0
      %5131 = vmatprep.mubr.f32.mxu0 0.0
      %5132 = vmatmul.mubr.f32.gmra.mrb[0].mxu0 %v5065
      %v5133 = vpop.f32.mrb[0].mxu0
      %v5134 = vadd.f32 %v5062, %v5133
      %v5135 = vpop.f32.mrb[0].mxu0
      %v5136 = vadd.f32 %v5062, %v5135
      %5137 = vdwg.mxu0
      %v5138 = vadd.f32 %v5134, %v5136
      %5139 = vadd.xlane.f32.xlu0 %v5138
      %v5140 = vpop.xlane.xlu0 %5139
      %v5141 = vmul.f32 %v5140, %v1152
      %v5142 = vmul.f32 %v5134, %v5134
      %v5143 = vmul.f32 %v5136, %v5136
      %v5144 = vadd.f32 %v5142, %v5143
      %5145 = vadd.xlane.f32.xlu0 %v5144
      %v5146 = vpop.xlane.xlu0 %5145
      %v5147 = vmul.f32 %v5146, %v1152
      %v5148 = vmul.f32 %v5141, %v5141
      %v5149 = vsub.f32 %v5147, %v5148
      %v5150 = vmax.f32 %v5149, 0.0
      %v5151 = vsub.f32 %v5134, %v5141
      %v5152 = vsub.f32 %v5136, %v5141
      %v5153 = vadd.f32 %v5150, 1e-05
      %v5154 = vrsqrt.pop %v5153
      %v5155 = vmul.f32 %v5151, %v5154
      %v5156 = vmul.f32 %v5152, %v5154
      %5158 = vset.pattern.permute.xlu0 0
      %5159 = vperm.xlu0 %5158, %v5052
      %v5160 = vpop.permute.xlu0 %5159
      %v5162 = vmul.f32 %v5155, %v5160
      %v5163 = vmul.f32 %v5156, %v5160
      %5165 = vset.pattern.permute.xlu0 0
      %5166 = vperm.xlu0 %5165, %v5054
      %v5167 = vpop.permute.xlu0 %5166
      %v5169 = vadd.f32 %v5162, %v5167
      %v5170 = vadd.f32 %v5163, %v5167
      %v5171 = vmul.f32 %v5169, %v448
      %v5172 = vmul.f32 %v5170, %v448
      %v5173 = vmul.f32 %v5134, %v1185
      %v5174 = vmul.f32 %v5136, %v1185
      %v5175 = vadd.f32 %v5171, %v5173
      %v5176 = vadd.f32 %v5172, %v5174
      %v5177 = vmul.f32 %v5175, %v469
      %v5178 = vmul.f32 %v5176, %v467
      %v5179 = vmul.f32 %v5175, %v490
      %v5180 = vmul.f32 %v5176, %v488
      %v5181 = vmul.f32 %v5175, %v502
      %v5182 = vmul.f32 %v5176, %v500
      %v5183 = vmul.f32 %v5175, %v510
      %v5184 = vmul.f32 %v5176, %v514
      %v5185 = vmul.f32 %v5175, %v522
      %v5186 = vmul.f32 %v5176, %v526
      %v5187 = vmul.f32 %v5175, %v534
      %v5188 = vmul.f32 %v5176, %v538
      %5191 = vrot.lane.b32.xlu0 %v5175, 127
      %v5192 = vpop.permute.xlu0 %5191
      %5193 = vrot.lane.b32.xlu0 %v5176, 127
      %v5194 = vpop.permute.xlu0 %5193
      %v5195 = vsel %vm501, %v549, %v5192
      %v5196 = vsel %vm501, %v5192, %v5194
      %5199 = vrot.lane.b32.xlu0 %v5179, 126
      %v5200 = vpop.permute.xlu0 %5199
      %5201 = vrot.lane.b32.xlu0 %v5180, 126
      %v5202 = vpop.permute.xlu0 %5201
      %v5203 = vsel %vm565, %v560, %v5200
      %v5204 = vsel %vm565, %v5200, %v5202
      %5207 = vrot.lane.b32.xlu0 %v5181, 112
      %v5208 = vpop.permute.xlu0 %5207
      %5209 = vrot.lane.b32.xlu0 %v5182, 112
      %v5210 = vpop.permute.xlu0 %5209
      %v5211 = vsel %vm577, %v572, %v5208
      %v5212 = vsel %vm577, %v5208, %v5210
      %5213 = vrot.lane.b32.xlu0 %v5175, 111
      %v5214 = vpop.permute.xlu0 %5213
      %5215 = vrot.lane.b32.xlu0 %v5176, 111
      %v5216 = vpop.permute.xlu0 %5215
      %v5217 = vsel %vm468, %v5214, %v5216
      %5220 = vrot.lane.b32.xlu0 %v5183, 110
      %v5221 = vpop.permute.xlu0 %5220
      %5222 = vrot.lane.b32.xlu0 %v5184, 110
      %v5223 = vpop.permute.xlu0 %5222
      %v5224 = vsel %vm594, %v5221, %v5223
      %v5225 = vsel %vm594, %v5223, %v593
      %5228 = vrot.lane.b32.xlu0 %v5185, 96
      %v5229 = vpop.permute.xlu0 %5228
      %5230 = vrot.lane.b32.xlu0 %v5186, 96
      %v5231 = vpop.permute.xlu0 %5230
      %v5232 = vsel %vm606, %v5229, %v5231
      %v5233 = vsel %vm606, %v5231, %v605
      %5234 = vrot.lane.b32.xlu0 %v5175, 95
      %v5235 = vpop.permute.xlu0 %5234
      %5236 = vrot.lane.b32.xlu0 %v5176, 95
      %v5237 = vpop.permute.xlu0 %5236
      %v5238 = vsel %vm615, %v5235, %v5237
      %v5239 = vsel %vm615, %v5237, %v614
      %5242 = vrot.lane.b32.xlu0 %v5187, 94
      %v5243 = vpop.permute.xlu0 %5242
      %5244 = vrot.lane.b32.xlu0 %v5188, 94
      %v5245 = vpop.permute.xlu0 %5244
      %v5246 = vsel %vm627, %v5243, %v5245
      %v5247 = vsel %vm627, %v5245, %v626
      %5249 = vset.pattern.permute.xlu0 0
      %5250 = vperm.xlu0 %5249, %v5058
      %v5251 = vpop.permute.xlu0 %5250
      %5255 = vrot.lane.b32.xlu0 %v5177, 17
      %v5256 = vpop.permute.xlu0 %5255
      %5257 = vrot.lane.b32.xlu0 %v5178, 17
      %v5258 = vpop.permute.xlu0 %5257
      %5259 = vrot.lane.b32.xlu0 %v5195, 17
      %v5260 = vpop.permute.xlu0 %5259
      %5261 = vrot.lane.b32.xlu0 %v5196, 17
      %v5262 = vpop.permute.xlu0 %5261
      %5263 = vrot.lane.b32.xlu0 %v5194, 17
      %v5264 = vpop.permute.xlu0 %5263
      %5265 = vrot.lane.b32.xlu0 %v5203, 17
      %v5266 = vpop.permute.xlu0 %5265
      %5267 = vrot.lane.b32.xlu0 %v5204, 17
      %v5268 = vpop.permute.xlu0 %5267
      %5269 = vrot.lane.b32.xlu0 %v5202, 17
      %v5270 = vpop.permute.xlu0 %5269
      %5271 = vrot.lane.b32.xlu0 %v5211, 17
      %v5272 = vpop.permute.xlu0 %5271
      %5273 = vrot.lane.b32.xlu0 %v5212, 17
      %v5274 = vpop.permute.xlu0 %5273
      %5275 = vrot.lane.b32.xlu0 %v5210, 17
      %v5276 = vpop.permute.xlu0 %5275
      %5277 = vrot.lane.b32.xlu0 %v5214, 17
      %v5278 = vpop.permute.xlu0 %5277
      %5279 = vrot.lane.b32.xlu0 %v5217, 17
      %v5280 = vpop.permute.xlu0 %5279
      %5281 = vrot.lane.b32.xlu0 %v5216, 17
      %v5282 = vpop.permute.xlu0 %5281
      %5283 = vrot.lane.b32.xlu0 %v5221, 17
      %v5284 = vpop.permute.xlu0 %5283
      %5285 = vrot.lane.b32.xlu0 %v5224, 17
      %v5286 = vpop.permute.xlu0 %5285
      %5287 = vrot.lane.b32.xlu0 %v5225, 17
      %v5288 = vpop.permute.xlu0 %5287
      %5289 = vrot.lane.b32.xlu0 %v5229, 17
      %v5290 = vpop.permute.xlu0 %5289
      %5291 = vrot.lane.b32.xlu0 %v5232, 17
      %v5292 = vpop.permute.xlu0 %5291
      %5293 = vrot.lane.b32.xlu0 %v5233, 17
      %v5294 = vpop.permute.xlu0 %5293
      %5295 = vrot.lane.b32.xlu0 %v5235, 17
      %v5296 = vpop.permute.xlu0 %5295
      %5297 = vrot.lane.b32.xlu0 %v5238, 17
      %v5298 = vpop.permute.xlu0 %5297
      %5299 = vrot.lane.b32.xlu0 %v5239, 17
      %v5300 = vpop.permute.xlu0 %5299
      %5301 = vrot.lane.b32.xlu0 %v5243, 17
      %v5302 = vpop.permute.xlu0 %5301
      %5303 = vrot.lane.b32.xlu0 %v5246, 17
      %v5304 = vpop.permute.xlu0 %5303
      %5305 = vrot.lane.b32.xlu0 %v5247, 17
      %v5306 = vpop.permute.xlu0 %5305
      %v5307 = vsel %vm537, %v644, %v5256
      %v5308 = vsel %vm537, %v5256, %v5258
      %v5309 = vsel %vm537, %v5260, %v5262
      %v5310 = vsel %vm537, %v5262, %v5264
      %v5311 = vsel %vm537, %v5266, %v5268
      %v5312 = vsel %vm537, %v5268, %v5270
      %v5313 = vsel %vm537, %v5272, %v5274
      %v5314 = vsel %vm537, %v5274, %v5276
      %v5315 = vsel %vm537, %v5278, %v5280
      %v5316 = vsel %vm537, %v5280, %v5282
      %v5317 = vsel %vm537, %v5284, %v5286
      %v5318 = vsel %vm537, %v5286, %v5288
      %v5319 = vsel %vm537, %v5290, %v5292
      %v5320 = vsel %vm537, %v5292, %v5294
      %v5321 = vsel %vm537, %v5296, %v5298
      %v5322 = vsel %vm537, %v5298, %v5300
      %v5323 = vsel %vm537, %v5302, %v5304
      %v5324 = vsel %vm537, %v5304, %v5306
      %v5344 = vsel %vm733, %v5056, 0
      %5346 = vmatprep.subr.mxu0 %v5308
      %5347 = vmatpush1.msra.mxu0 %v5307
      %5348 = vmatprep.subr.mxu0 %v5310
      %5349 = vmatpush1.msra.mxu0 %v5309
      %5350 = vmatprep.subr.mxu0 %v5312
      %5351 = vmatpush1.msra.mxu0 %v5311
      %5352 = vmatprep.subr.mxu0 %v5314
      %5353 = vmatpush1.msra.mxu0 %v5313
      %5354 = vmatprep.subr.mxu0 %v5316
      %5355 = vmatpush1.msra.mxu0 %v5315
      %5356 = vmatprep.subr.mxu0 %v5318
      %5357 = vmatpush1.msra.mxu0 %v5317
      %5358 = vmatprep.subr.mxu0 %v5320
      %5359 = vmatpush1.msra.mxu0 %v5319
      %5360 = vmatprep.subr.mxu0 %v5322
      %5361 = vmatpush1.msra.mxu0 %v5321
      %5362 = vmatprep.subr.mxu0 %v5324
      %5363 = vmatpush1.msra.mxu0 %v5323
      %5364 = vmatprep.subr.mxu0 0.0
      %5365 = vmatpush1.msra.mxu0 0.0
      %5366 = vmatprep.subr.mxu0 0.0
      %5367 = vmatpush1.msra.mxu0 0.0
      %5368 = vmatprep.subr.mxu0 0.0
      %5369 = vmatpush1.msra.mxu0 0.0
      %5370 = vmatprep.subr.mxu0 0.0
      %5371 = vmatpush1.msra.mxu0 0.0
      %5372 = vmatprep.subr.mxu0 0.0
      %5373 = vmatpush1.msra.mxu0 0.0
      %5374 = vmatprep.subr.mxu0 0.0
      %5375 = vmatpush1.msra.mxu0 0.0
      %5376 = vmatprep.subr.mxu0 0.0
      %5377 = vmatpush1.msra.mxu0 0.0
      %5378 = vmatprep.subr.mxu0 0.0
      %5379 = vmatpush1.msra.mxu0 0.0
      %5380 = vmatprep.subr.mxu0 0.0
      %5381 = vmatpush1.msra.mxu0 0.0
      %5382 = vmatprep.subr.mxu0 0.0
      %5383 = vmatpush1.msra.mxu0 0.0
      %5384 = vmatprep.subr.mxu0 0.0
      %5385 = vmatpush1.msra.mxu0 0.0
      %5386 = vmatprep.subr.mxu0 0.0
      %5387 = vmatpush1.msra.mxu0 0.0
      %5388 = vmatprep.subr.mxu0 0.0
      %5389 = vmatpush1.msra.mxu0 0.0
      %5390 = vmatprep.subr.mxu0 0.0
      %5391 = vmatpush1.msra.mxu0 0.0
      %5392 = vmatprep.subr.mxu0 0.0
      %5393 = vmatpush1.msra.mxu0 0.0
      %5394 = vmatprep.subr.mxu0 0.0
      %5395 = vmatpush1.msra.mxu0 0.0
      %5396 = vmatprep.subr.mxu0 0.0
      %5397 = vmatpush1.msra.mxu0 0.0
      %5398 = vmatprep.subr.mxu0 0.0
      %5399 = vmatpush1.msra.mxu0 0.0
      %5400 = vmatprep.subr.mxu0 0.0
      %5401 = vmatpush1.msra.mxu0 0.0
      %5402 = vmatprep.subr.mxu0 0.0
      %5403 = vmatpush1.msra.mxu0 0.0
      %5404 = vmatprep.subr.mxu0 0.0
      %5405 = vmatpush1.msra.mxu0 0.0
      %5406 = vmatprep.subr.mxu0 0.0
      %5407 = vmatpush1.msra.mxu0 0.0
      %5408 = vmatprep.subr.mxu0 0.0
      %5409 = vmatpush1.msra.mxu0 0.0
      %5410 = vmatprep.mubr.f32.mxu0 0.0
      %5411 = vmatmul.mubr.f32.gmra.mrb[0].mxu0 %v5344
      %v5412 = vpop.f32.mrb[0].mxu0
      %v5413 = vadd.f32 %v5251, %v5412
      %v5414 = vpop.f32.mrb[0].mxu0
      %v5415 = vadd.f32 %v5251, %v5414
      %5416 = vdwg.mxu0
      %v5417 = vadd.f32 %v4512, %v5413
      %v5418 = vadd.f32 %v4513, %v5415
      %v5419 = vmul.f32 %v5045, 0.5
      %v5420 = vmul.f32 %v5046, 0.5
      %v5421 = vtanh.pop %v5419
      %v5422 = vtanh.pop %v5420
      %v5423 = vmul.f32 %v5421, 0.8
      %v5424 = vmul.f32 %v5422, 0.8
      %v5425 = vmul.f32 %v5423, 1.442695
      %v5426 = vpow.pop %v5425
      %v5427 = vmul.f32 %v5424, 1.442695
      %v5428 = vpow.pop %v5427
      %v5429 = vmul.f32 %v3975, %v5426
      %v5430 = vmul.f32 %v3977, %v5428
      %v5431 = vadd.f32 %v5429, %v5417
      %v5432 = vadd.f32 %v5430, %v5418
      %s5433 = scalar_lea.vmem %s4, 48
      %v5434 = vld [vmem:[%s5433] sm:$0xff]
      %v5435 = vld [vmem:[%s5433 + $0x8] sm:$0xff]
      %v5437 = vsel %vm819, %v5434, 0
      %v5440 = vsel %vm819, %v5435, 0
      %5442 = vmatprep.subr.mxu0 %v4513
      %5443 = vmatpush1.msra.mxu0 %v4512
      %5444 = vmatprep.subr.mxu0 %v5432
      %5445 = vmatpush1.msra.mxu0 %v5431
      %5446 = vmatprep.subr.mxu0 0.0
      %5447 = vmatpush1.msra.mxu0 0.0
      %5448 = vmatprep.subr.mxu0 0.0
      %5449 = vmatpush1.msra.mxu0 0.0
      %5450 = vmatprep.subr.mxu0 0.0
      %5451 = vmatpush1.msra.mxu0 0.0
      %5452 = vmatprep.subr.mxu0 0.0
      %5453 = vmatpush1.msra.mxu0 0.0
      %5454 = vmatprep.subr.mxu0 0.0
      %5455 = vmatpush1.msra.mxu0 0.0
      %5456 = vmatprep.subr.mxu0 0.0
      %5457 = vmatpush1.msra.mxu0 0.0
      %5458 = vmatprep.subr.mxu0 0.0
      %5459 = vmatpush1.msra.mxu0 0.0
      %5460 = vmatprep.subr.mxu0 0.0
      %5461 = vmatpush1.msra.mxu0 0.0
      %5462 = vmatprep.subr.mxu0 0.0
      %5463 = vmatpush1.msra.mxu0 0.0
      %5464 = vmatprep.subr.mxu0 0.0
      %5465 = vmatpush1.msra.mxu0 0.0
      %5466 = vmatprep.subr.mxu0 0.0
      %5467 = vmatpush1.msra.mxu0 0.0
      %5468 = vmatprep.subr.mxu0 0.0
      %5469 = vmatpush1.msra.mxu0 0.0
      %5470 = vmatprep.subr.mxu0 0.0
      %5471 = vmatpush1.msra.mxu0 0.0
      %5472 = vmatprep.subr.mxu0 0.0
      %5473 = vmatpush1.msra.mxu0 0.0
      %5474 = vmatprep.subr.mxu0 0.0
      %5475 = vmatpush1.msra.mxu0 0.0
      %5476 = vmatprep.subr.mxu0 0.0
      %5477 = vmatpush1.msra.mxu0 0.0
      %5478 = vmatprep.subr.mxu0 0.0
      %5479 = vmatpush1.msra.mxu0 0.0
      %5480 = vmatprep.subr.mxu0 0.0
      %5481 = vmatpush1.msra.mxu0 0.0
      %5482 = vmatprep.subr.mxu0 0.0
      %5483 = vmatpush1.msra.mxu0 0.0
      %5484 = vmatprep.subr.mxu0 0.0
      %5485 = vmatpush1.msra.mxu0 0.0
      %5486 = vmatprep.subr.mxu0 0.0
      %5487 = vmatpush1.msra.mxu0 0.0
      %5488 = vmatprep.subr.mxu0 0.0
      %5489 = vmatpush1.msra.mxu0 0.0
      %5490 = vmatprep.subr.mxu0 0.0
      %5491 = vmatpush1.msra.mxu0 0.0
      %5492 = vmatprep.subr.mxu0 0.0
      %5493 = vmatpush1.msra.mxu0 0.0
      %5494 = vmatprep.subr.mxu0 0.0
      %5495 = vmatpush1.msra.mxu0 0.0
      %5496 = vmatprep.subr.mxu0 0.0
      %5497 = vmatpush1.msra.mxu0 0.0
      %5498 = vmatprep.subr.mxu0 0.0
      %5499 = vmatpush1.msra.mxu0 0.0
      %5500 = vmatprep.subr.mxu0 0.0
      %5501 = vmatpush1.msra.mxu0 0.0
      %5502 = vmatprep.subr.mxu0 0.0
      %5503 = vmatpush1.msra.mxu0 0.0
      %5504 = vmatprep.subr.mxu0 0.0
      %5505 = vmatpush1.msra.mxu0 0.0
      %5506 = vmatprep.mubr.f32.mxu0 0.0
      %5507 = vmatmul.mubr.f32.gmra.mrb[0].mxu0 %v5437
      %v5508 = vpop.f32.mrb[0].mxu0
      %v5509 = vadd.f32 0.0, %v5508
      %v5510 = vpop.f32.mrb[0].mxu0
      %v5511 = vadd.f32 0.0, %v5510
      %5512 = vmatprep.mubr.f32.mxu0 0.0
      %5513 = vmatmul.mubr.f32.gmra.mrb[0].mxu0 %v5440
      %v5514 = vpop.f32.mrb[0].mxu0
      %v5515 = vadd.f32 0.0, %v5514
      %v5516 = vpop.f32.mrb[0].mxu0
      %v5517 = vadd.f32 0.0, %v5516
      %5518 = vdwg.mxu0
      %s5519 = scalar_lea.vmem %s5, 72
      %v5520 = vld [vmem:[%s5519] sm:$0xff]
      %s5521 = scalar_lea.vmem %s6, 72
      %v5522 = vld [vmem:[%s5521] sm:$0xff]
      %s5523 = scalar_lea.vmem %s7, 72
      %v5524 = vld [vmem:[%s5523] sm:$0xff]
      %s5525 = scalar_lea.vmem %s8, 72
      %v5526 = vld [vmem:[%s5525] sm:$0xff]
      %s5527 = scalar_lea.vmem %s9, 72
      %v5528 = vld [vmem:[%s5527] sm:$0xff]
      %s5529 = scalar_lea.vmem %s10, 72
      %v5530 = vld [vmem:[%s5529] sm:$0xff]
      %v5531 = vmul.f32 %v5515, %v469
      %v5532 = vmul.f32 %v5517, %v467
      %v5533 = vmul.f32 %v5515, %v490
      %v5534 = vmul.f32 %v5517, %v488
      %v5535 = vmul.f32 %v5515, %v502
      %v5536 = vmul.f32 %v5517, %v500
      %v5537 = vmul.f32 %v5515, %v510
      %v5538 = vmul.f32 %v5517, %v514
      %v5539 = vmul.f32 %v5515, %v522
      %v5540 = vmul.f32 %v5517, %v526
      %v5541 = vmul.f32 %v5515, %v534
      %v5542 = vmul.f32 %v5517, %v538
      %5545 = vrot.lane.b32.xlu0 %v5515, 127
      %v5546 = vpop.permute.xlu0 %5545
      %5547 = vrot.lane.b32.xlu0 %v5517, 127
      %v5548 = vpop.permute.xlu0 %5547
      %v5549 = vsel %vm501, %v549, %v5546
      %v5550 = vsel %vm501, %v5546, %v5548
      %5553 = vrot.lane.b32.xlu0 %v5533, 126
      %v5554 = vpop.permute.xlu0 %5553
      %5555 = vrot.lane.b32.xlu0 %v5534, 126
      %v5556 = vpop.permute.xlu0 %5555
      %v5557 = vsel %vm565, %v560, %v5554
      %v5558 = vsel %vm565, %v5554, %v5556
      %5561 = vrot.lane.b32.xlu0 %v5535, 112
      %v5562 = vpop.permute.xlu0 %5561
      %5563 = vrot.lane.b32.xlu0 %v5536, 112
      %v5564 = vpop.permute.xlu0 %5563
      %v5565 = vsel %vm577, %v572, %v5562
      %v5566 = vsel %vm577, %v5562, %v5564
      %5567 = vrot.lane.b32.xlu0 %v5515, 111
      %v5568 = vpop.permute.xlu0 %5567
      %5569 = vrot.lane.b32.xlu0 %v5517, 111
      %v5570 = vpop.permute.xlu0 %5569
      %v5571 = vsel %vm468, %v5568, %v5570
      %5574 = vrot.lane.b32.xlu0 %v5537, 110
      %v5575 = vpop.permute.xlu0 %5574
      %5576 = vrot.lane.b32.xlu0 %v5538, 110
      %v5577 = vpop.permute.xlu0 %5576
      %v5578 = vsel %vm594, %v5575, %v5577
      %v5579 = vsel %vm594, %v5577, %v593
      %5582 = vrot.lane.b32.xlu0 %v5539, 96
      %v5583 = vpop.permute.xlu0 %5582
      %5584 = vrot.lane.b32.xlu0 %v5540, 96
      %v5585 = vpop.permute.xlu0 %5584
      %v5586 = vsel %vm606, %v5583, %v5585
      %v5587 = vsel %vm606, %v5585, %v605
      %5588 = vrot.lane.b32.xlu0 %v5515, 95
      %v5589 = vpop.permute.xlu0 %5588
      %5590 = vrot.lane.b32.xlu0 %v5517, 95
      %v5591 = vpop.permute.xlu0 %5590
      %v5592 = vsel %vm615, %v5589, %v5591
      %v5593 = vsel %vm615, %v5591, %v614
      %5596 = vrot.lane.b32.xlu0 %v5541, 94
      %v5597 = vpop.permute.xlu0 %5596
      %5598 = vrot.lane.b32.xlu0 %v5542, 94
      %v5599 = vpop.permute.xlu0 %5598
      %v5600 = vsel %vm627, %v5597, %v5599
      %v5601 = vsel %vm627, %v5599, %v626
      %5603 = vset.pattern.permute.xlu0 0
      %5604 = vperm.xlu0 %5603, %v5522
      %v5605 = vpop.permute.xlu0 %5604
      %5609 = vrot.lane.b32.xlu0 %v5531, 17
      %v5610 = vpop.permute.xlu0 %5609
      %5611 = vrot.lane.b32.xlu0 %v5532, 17
      %v5612 = vpop.permute.xlu0 %5611
      %5613 = vrot.lane.b32.xlu0 %v5549, 17
      %v5614 = vpop.permute.xlu0 %5613
      %5615 = vrot.lane.b32.xlu0 %v5550, 17
      %v5616 = vpop.permute.xlu0 %5615
      %5617 = vrot.lane.b32.xlu0 %v5548, 17
      %v5618 = vpop.permute.xlu0 %5617
      %5619 = vrot.lane.b32.xlu0 %v5557, 17
      %v5620 = vpop.permute.xlu0 %5619
      %5621 = vrot.lane.b32.xlu0 %v5558, 17
      %v5622 = vpop.permute.xlu0 %5621
      %5623 = vrot.lane.b32.xlu0 %v5556, 17
      %v5624 = vpop.permute.xlu0 %5623
      %5625 = vrot.lane.b32.xlu0 %v5565, 17
      %v5626 = vpop.permute.xlu0 %5625
      %5627 = vrot.lane.b32.xlu0 %v5566, 17
      %v5628 = vpop.permute.xlu0 %5627
      %5629 = vrot.lane.b32.xlu0 %v5564, 17
      %v5630 = vpop.permute.xlu0 %5629
      %5631 = vrot.lane.b32.xlu0 %v5568, 17
      %v5632 = vpop.permute.xlu0 %5631
      %5633 = vrot.lane.b32.xlu0 %v5571, 17
      %v5634 = vpop.permute.xlu0 %5633
      %5635 = vrot.lane.b32.xlu0 %v5570, 17
      %v5636 = vpop.permute.xlu0 %5635
      %5637 = vrot.lane.b32.xlu0 %v5575, 17
      %v5638 = vpop.permute.xlu0 %5637
      %5639 = vrot.lane.b32.xlu0 %v5578, 17
      %v5640 = vpop.permute.xlu0 %5639
      %5641 = vrot.lane.b32.xlu0 %v5579, 17
      %v5642 = vpop.permute.xlu0 %5641
      %5643 = vrot.lane.b32.xlu0 %v5583, 17
      %v5644 = vpop.permute.xlu0 %5643
      %5645 = vrot.lane.b32.xlu0 %v5586, 17
      %v5646 = vpop.permute.xlu0 %5645
      %5647 = vrot.lane.b32.xlu0 %v5587, 17
      %v5648 = vpop.permute.xlu0 %5647
      %5649 = vrot.lane.b32.xlu0 %v5589, 17
      %v5650 = vpop.permute.xlu0 %5649
      %5651 = vrot.lane.b32.xlu0 %v5592, 17
      %v5652 = vpop.permute.xlu0 %5651
      %5653 = vrot.lane.b32.xlu0 %v5593, 17
      %v5654 = vpop.permute.xlu0 %5653
      %5655 = vrot.lane.b32.xlu0 %v5597, 17
      %v5656 = vpop.permute.xlu0 %5655
      %5657 = vrot.lane.b32.xlu0 %v5600, 17
      %v5658 = vpop.permute.xlu0 %5657
      %5659 = vrot.lane.b32.xlu0 %v5601, 17
      %v5660 = vpop.permute.xlu0 %5659
      %v5661 = vsel %vm537, %v644, %v5610
      %v5662 = vsel %vm537, %v5610, %v5612
      %v5663 = vsel %vm537, %v5614, %v5616
      %v5664 = vsel %vm537, %v5616, %v5618
      %v5665 = vsel %vm537, %v5620, %v5622
      %v5666 = vsel %vm537, %v5622, %v5624
      %v5667 = vsel %vm537, %v5626, %v5628
      %v5668 = vsel %vm537, %v5628, %v5630
      %v5669 = vsel %vm537, %v5632, %v5634
      %v5670 = vsel %vm537, %v5634, %v5636
      %v5671 = vsel %vm537, %v5638, %v5640
      %v5672 = vsel %vm537, %v5640, %v5642
      %v5673 = vsel %vm537, %v5644, %v5646
      %v5674 = vsel %vm537, %v5646, %v5648
      %v5675 = vsel %vm537, %v5650, %v5652
      %v5676 = vsel %vm537, %v5652, %v5654
      %v5677 = vsel %vm537, %v5656, %v5658
      %v5678 = vsel %vm537, %v5658, %v5660
      %v5698 = vsel %vm733, %v5520, 0
      %5700 = vmatprep.subr.mxu0 %v5662
      %5701 = vmatpush1.msra.mxu0 %v5661
      %5702 = vmatprep.subr.mxu0 %v5664
      %5703 = vmatpush1.msra.mxu0 %v5663
      %5704 = vmatprep.subr.mxu0 %v5666
      %5705 = vmatpush1.msra.mxu0 %v5665
      %5706 = vmatprep.subr.mxu0 %v5668
      %5707 = vmatpush1.msra.mxu0 %v5667
      %5708 = vmatprep.subr.mxu0 %v5670
      %5709 = vmatpush1.msra.mxu0 %v5669
      %5710 = vmatprep.subr.mxu0 %v5672
      %5711 = vmatpush1.msra.mxu0 %v5671
      %5712 = vmatprep.subr.mxu0 %v5674
      %5713 = vmatpush1.msra.mxu0 %v5673
      %5714 = vmatprep.subr.mxu0 %v5676
      %5715 = vmatpush1.msra.mxu0 %v5675
      %5716 = vmatprep.subr.mxu0 %v5678
      %5717 = vmatpush1.msra.mxu0 %v5677
      %5718 = vmatprep.subr.mxu0 0.0
      %5719 = vmatpush1.msra.mxu0 0.0
      %5720 = vmatprep.subr.mxu0 0.0
      %5721 = vmatpush1.msra.mxu0 0.0
      %5722 = vmatprep.subr.mxu0 0.0
      %5723 = vmatpush1.msra.mxu0 0.0
      %5724 = vmatprep.subr.mxu0 0.0
      %5725 = vmatpush1.msra.mxu0 0.0
      %5726 = vmatprep.subr.mxu0 0.0
      %5727 = vmatpush1.msra.mxu0 0.0
      %5728 = vmatprep.subr.mxu0 0.0
      %5729 = vmatpush1.msra.mxu0 0.0
      %5730 = vmatprep.subr.mxu0 0.0
      %5731 = vmatpush1.msra.mxu0 0.0
      %5732 = vmatprep.subr.mxu0 0.0
      %5733 = vmatpush1.msra.mxu0 0.0
      %5734 = vmatprep.subr.mxu0 0.0
      %5735 = vmatpush1.msra.mxu0 0.0
      %5736 = vmatprep.subr.mxu0 0.0
      %5737 = vmatpush1.msra.mxu0 0.0
      %5738 = vmatprep.subr.mxu0 0.0
      %5739 = vmatpush1.msra.mxu0 0.0
      %5740 = vmatprep.subr.mxu0 0.0
      %5741 = vmatpush1.msra.mxu0 0.0
      %5742 = vmatprep.subr.mxu0 0.0
      %5743 = vmatpush1.msra.mxu0 0.0
      %5744 = vmatprep.subr.mxu0 0.0
      %5745 = vmatpush1.msra.mxu0 0.0
      %5746 = vmatprep.subr.mxu0 0.0
      %5747 = vmatpush1.msra.mxu0 0.0
      %5748 = vmatprep.subr.mxu0 0.0
      %5749 = vmatpush1.msra.mxu0 0.0
      %5750 = vmatprep.subr.mxu0 0.0
      %5751 = vmatpush1.msra.mxu0 0.0
      %5752 = vmatprep.subr.mxu0 0.0
      %5753 = vmatpush1.msra.mxu0 0.0
      %5754 = vmatprep.subr.mxu0 0.0
      %5755 = vmatpush1.msra.mxu0 0.0
      %5756 = vmatprep.subr.mxu0 0.0
      %5757 = vmatpush1.msra.mxu0 0.0
      %5758 = vmatprep.subr.mxu0 0.0
      %5759 = vmatpush1.msra.mxu0 0.0
      %5760 = vmatprep.subr.mxu0 0.0
      %5761 = vmatpush1.msra.mxu0 0.0
      %5762 = vmatprep.subr.mxu0 0.0
      %5763 = vmatpush1.msra.mxu0 0.0
      %5764 = vmatprep.mubr.f32.mxu0 0.0
      %5765 = vmatmul.mubr.f32.gmra.mrb[0].mxu0 %v5698
      %v5766 = vpop.f32.mrb[0].mxu0
      %v5767 = vadd.f32 %v5605, %v5766
      %v5768 = vpop.f32.mrb[0].mxu0
      %v5769 = vadd.f32 %v5605, %v5768
      %5770 = vdwg.mxu0
      %v5771 = vadd.f32 %v5767, %v5769
      %5772 = vadd.xlane.f32.xlu0 %v5771
      %v5773 = vpop.xlane.xlu0 %5772
      %v5774 = vmul.f32 %v5773, %v1152
      %v5775 = vmul.f32 %v5767, %v5767
      %v5776 = vmul.f32 %v5769, %v5769
      %v5777 = vadd.f32 %v5775, %v5776
      %5778 = vadd.xlane.f32.xlu0 %v5777
      %v5779 = vpop.xlane.xlu0 %5778
      %v5780 = vmul.f32 %v5779, %v1152
      %v5781 = vmul.f32 %v5774, %v5774
      %v5782 = vsub.f32 %v5780, %v5781
      %v5783 = vmax.f32 %v5782, 0.0
      %v5784 = vsub.f32 %v5767, %v5774
      %v5785 = vsub.f32 %v5769, %v5774
      %v5786 = vadd.f32 %v5783, 1e-05
      %v5787 = vrsqrt.pop %v5786
      %v5788 = vmul.f32 %v5784, %v5787
      %v5789 = vmul.f32 %v5785, %v5787
      %5791 = vset.pattern.permute.xlu0 0
      %5792 = vperm.xlu0 %5791, %v5524
      %v5793 = vpop.permute.xlu0 %5792
      %v5795 = vmul.f32 %v5788, %v5793
      %v5796 = vmul.f32 %v5789, %v5793
      %5798 = vset.pattern.permute.xlu0 0
      %5799 = vperm.xlu0 %5798, %v5526
      %v5800 = vpop.permute.xlu0 %5799
      %v5802 = vadd.f32 %v5795, %v5800
      %v5803 = vadd.f32 %v5796, %v5800
      %v5804 = vmul.f32 %v5802, %v448
      %v5805 = vmul.f32 %v5803, %v448
      %v5806 = vmul.f32 %v5767, %v1185
      %v5807 = vmul.f32 %v5769, %v1185
      %v5808 = vadd.f32 %v5804, %v5806
      %v5809 = vadd.f32 %v5805, %v5807
      %v5810 = vmul.f32 %v5808, %v469
      %v5811 = vmul.f32 %v5809, %v467
      %v5812 = vmul.f32 %v5808, %v490
      %v5813 = vmul.f32 %v5809, %v488
      %v5814 = vmul.f32 %v5808, %v502
      %v5815 = vmul.f32 %v5809, %v500
      %v5816 = vmul.f32 %v5808, %v510
      %v5817 = vmul.f32 %v5809, %v514
      %v5818 = vmul.f32 %v5808, %v522
      %v5819 = vmul.f32 %v5809, %v526
      %v5820 = vmul.f32 %v5808, %v534
      %v5821 = vmul.f32 %v5809, %v538
      %5824 = vrot.lane.b32.xlu0 %v5808, 127
      %v5825 = vpop.permute.xlu0 %5824
      %5826 = vrot.lane.b32.xlu0 %v5809, 127
      %v5827 = vpop.permute.xlu0 %5826
      %v5828 = vsel %vm501, %v549, %v5825
      %v5829 = vsel %vm501, %v5825, %v5827
      %5832 = vrot.lane.b32.xlu0 %v5812, 126
      %v5833 = vpop.permute.xlu0 %5832
      %5834 = vrot.lane.b32.xlu0 %v5813, 126
      %v5835 = vpop.permute.xlu0 %5834
      %v5836 = vsel %vm565, %v560, %v5833
      %v5837 = vsel %vm565, %v5833, %v5835
      %5840 = vrot.lane.b32.xlu0 %v5814, 112
      %v5841 = vpop.permute.xlu0 %5840
      %5842 = vrot.lane.b32.xlu0 %v5815, 112
      %v5843 = vpop.permute.xlu0 %5842
      %v5844 = vsel %vm577, %v572, %v5841
      %v5845 = vsel %vm577, %v5841, %v5843
      %5846 = vrot.lane.b32.xlu0 %v5808, 111
      %v5847 = vpop.permute.xlu0 %5846
      %5848 = vrot.lane.b32.xlu0 %v5809, 111
      %v5849 = vpop.permute.xlu0 %5848
      %v5850 = vsel %vm468, %v5847, %v5849
      %5853 = vrot.lane.b32.xlu0 %v5816, 110
      %v5854 = vpop.permute.xlu0 %5853
      %5855 = vrot.lane.b32.xlu0 %v5817, 110
      %v5856 = vpop.permute.xlu0 %5855
      %v5857 = vsel %vm594, %v5854, %v5856
      %v5858 = vsel %vm594, %v5856, %v593
      %5861 = vrot.lane.b32.xlu0 %v5818, 96
      %v5862 = vpop.permute.xlu0 %5861
      %5863 = vrot.lane.b32.xlu0 %v5819, 96
      %v5864 = vpop.permute.xlu0 %5863
      %v5865 = vsel %vm606, %v5862, %v5864
      %v5866 = vsel %vm606, %v5864, %v605
      %5867 = vrot.lane.b32.xlu0 %v5808, 95
      %v5868 = vpop.permute.xlu0 %5867
      %5869 = vrot.lane.b32.xlu0 %v5809, 95
      %v5870 = vpop.permute.xlu0 %5869
      %v5871 = vsel %vm615, %v5868, %v5870
      %v5872 = vsel %vm615, %v5870, %v614
      %5875 = vrot.lane.b32.xlu0 %v5820, 94
      %v5876 = vpop.permute.xlu0 %5875
      %5877 = vrot.lane.b32.xlu0 %v5821, 94
      %v5878 = vpop.permute.xlu0 %5877
      %v5879 = vsel %vm627, %v5876, %v5878
      %v5880 = vsel %vm627, %v5878, %v626
      %5882 = vset.pattern.permute.xlu0 0
      %5883 = vperm.xlu0 %5882, %v5530
      %v5884 = vpop.permute.xlu0 %5883
      %5888 = vrot.lane.b32.xlu0 %v5810, 17
      %v5889 = vpop.permute.xlu0 %5888
      %5890 = vrot.lane.b32.xlu0 %v5811, 17
      %v5891 = vpop.permute.xlu0 %5890
      %5892 = vrot.lane.b32.xlu0 %v5828, 17
      %v5893 = vpop.permute.xlu0 %5892
      %5894 = vrot.lane.b32.xlu0 %v5829, 17
      %v5895 = vpop.permute.xlu0 %5894
      %5896 = vrot.lane.b32.xlu0 %v5827, 17
      %v5897 = vpop.permute.xlu0 %5896
      %5898 = vrot.lane.b32.xlu0 %v5836, 17
      %v5899 = vpop.permute.xlu0 %5898
      %5900 = vrot.lane.b32.xlu0 %v5837, 17
      %v5901 = vpop.permute.xlu0 %5900
      %5902 = vrot.lane.b32.xlu0 %v5835, 17
      %v5903 = vpop.permute.xlu0 %5902
      %5904 = vrot.lane.b32.xlu0 %v5844, 17
      %v5905 = vpop.permute.xlu0 %5904
      %5906 = vrot.lane.b32.xlu0 %v5845, 17
      %v5907 = vpop.permute.xlu0 %5906
      %5908 = vrot.lane.b32.xlu0 %v5843, 17
      %v5909 = vpop.permute.xlu0 %5908
      %5910 = vrot.lane.b32.xlu0 %v5847, 17
      %v5911 = vpop.permute.xlu0 %5910
      %5912 = vrot.lane.b32.xlu0 %v5850, 17
      %v5913 = vpop.permute.xlu0 %5912
      %5914 = vrot.lane.b32.xlu0 %v5849, 17
      %v5915 = vpop.permute.xlu0 %5914
      %5916 = vrot.lane.b32.xlu0 %v5854, 17
      %v5917 = vpop.permute.xlu0 %5916
      %5918 = vrot.lane.b32.xlu0 %v5857, 17
      %v5919 = vpop.permute.xlu0 %5918
      %5920 = vrot.lane.b32.xlu0 %v5858, 17
      %v5921 = vpop.permute.xlu0 %5920
      %5922 = vrot.lane.b32.xlu0 %v5862, 17
      %v5923 = vpop.permute.xlu0 %5922
      %5924 = vrot.lane.b32.xlu0 %v5865, 17
      %v5925 = vpop.permute.xlu0 %5924
      %5926 = vrot.lane.b32.xlu0 %v5866, 17
      %v5927 = vpop.permute.xlu0 %5926
      %5928 = vrot.lane.b32.xlu0 %v5868, 17
      %v5929 = vpop.permute.xlu0 %5928
      %5930 = vrot.lane.b32.xlu0 %v5871, 17
      %v5931 = vpop.permute.xlu0 %5930
      %5932 = vrot.lane.b32.xlu0 %v5872, 17
      %v5933 = vpop.permute.xlu0 %5932
      %5934 = vrot.lane.b32.xlu0 %v5876, 17
      %v5935 = vpop.permute.xlu0 %5934
      %5936 = vrot.lane.b32.xlu0 %v5879, 17
      %v5937 = vpop.permute.xlu0 %5936
      %5938 = vrot.lane.b32.xlu0 %v5880, 17
      %v5939 = vpop.permute.xlu0 %5938
      %v5940 = vsel %vm537, %v644, %v5889
      %v5941 = vsel %vm537, %v5889, %v5891
      %v5942 = vsel %vm537, %v5893, %v5895
      %v5943 = vsel %vm537, %v5895, %v5897
      %v5944 = vsel %vm537, %v5899, %v5901
      %v5945 = vsel %vm537, %v5901, %v5903
      %v5946 = vsel %vm537, %v5905, %v5907
      %v5947 = vsel %vm537, %v5907, %v5909
      %v5948 = vsel %vm537, %v5911, %v5913
      %v5949 = vsel %vm537, %v5913, %v5915
      %v5950 = vsel %vm537, %v5917, %v5919
      %v5951 = vsel %vm537, %v5919, %v5921
      %v5952 = vsel %vm537, %v5923, %v5925
      %v5953 = vsel %vm537, %v5925, %v5927
      %v5954 = vsel %vm537, %v5929, %v5931
      %v5955 = vsel %vm537, %v5931, %v5933
      %v5956 = vsel %vm537, %v5935, %v5937
      %v5957 = vsel %vm537, %v5937, %v5939
      %v5977 = vsel %vm733, %v5528, 0
      %5979 = vmatprep.subr.mxu0 %v5941
      %5980 = vmatpush1.msra.mxu0 %v5940
      %5981 = vmatprep.subr.mxu0 %v5943
      %5982 = vmatpush1.msra.mxu0 %v5942
      %5983 = vmatprep.subr.mxu0 %v5945
      %5984 = vmatpush1.msra.mxu0 %v5944
      %5985 = vmatprep.subr.mxu0 %v5947
      %5986 = vmatpush1.msra.mxu0 %v5946
      %5987 = vmatprep.subr.mxu0 %v5949
      %5988 = vmatpush1.msra.mxu0 %v5948
      %5989 = vmatprep.subr.mxu0 %v5951
      %5990 = vmatpush1.msra.mxu0 %v5950
      %5991 = vmatprep.subr.mxu0 %v5953
      %5992 = vmatpush1.msra.mxu0 %v5952
      %5993 = vmatprep.subr.mxu0 %v5955
      %5994 = vmatpush1.msra.mxu0 %v5954
      %5995 = vmatprep.subr.mxu0 %v5957
      %5996 = vmatpush1.msra.mxu0 %v5956
      %5997 = vmatprep.subr.mxu0 0.0
      %5998 = vmatpush1.msra.mxu0 0.0
      %5999 = vmatprep.subr.mxu0 0.0
      %6000 = vmatpush1.msra.mxu0 0.0
      %6001 = vmatprep.subr.mxu0 0.0
      %6002 = vmatpush1.msra.mxu0 0.0
      %6003 = vmatprep.subr.mxu0 0.0
      %6004 = vmatpush1.msra.mxu0 0.0
      %6005 = vmatprep.subr.mxu0 0.0
      %6006 = vmatpush1.msra.mxu0 0.0
      %6007 = vmatprep.subr.mxu0 0.0
      %6008 = vmatpush1.msra.mxu0 0.0
      %6009 = vmatprep.subr.mxu0 0.0
      %6010 = vmatpush1.msra.mxu0 0.0
      %6011 = vmatprep.subr.mxu0 0.0
      %6012 = vmatpush1.msra.mxu0 0.0
      %6013 = vmatprep.subr.mxu0 0.0
      %6014 = vmatpush1.msra.mxu0 0.0
      %6015 = vmatprep.subr.mxu0 0.0
      %6016 = vmatpush1.msra.mxu0 0.0
      %6017 = vmatprep.subr.mxu0 0.0
      %6018 = vmatpush1.msra.mxu0 0.0
      %6019 = vmatprep.subr.mxu0 0.0
      %6020 = vmatpush1.msra.mxu0 0.0
      %6021 = vmatprep.subr.mxu0 0.0
      %6022 = vmatpush1.msra.mxu0 0.0
      %6023 = vmatprep.subr.mxu0 0.0
      %6024 = vmatpush1.msra.mxu0 0.0
      %6025 = vmatprep.subr.mxu0 0.0
      %6026 = vmatpush1.msra.mxu0 0.0
      %6027 = vmatprep.subr.mxu0 0.0
      %6028 = vmatpush1.msra.mxu0 0.0
      %6029 = vmatprep.subr.mxu0 0.0
      %6030 = vmatpush1.msra.mxu0 0.0
      %6031 = vmatprep.subr.mxu0 0.0
      %6032 = vmatpush1.msra.mxu0 0.0
      %6033 = vmatprep.subr.mxu0 0.0
      %6034 = vmatpush1.msra.mxu0 0.0
      %6035 = vmatprep.subr.mxu0 0.0
      %6036 = vmatpush1.msra.mxu0 0.0
      %6037 = vmatprep.subr.mxu0 0.0
      %6038 = vmatpush1.msra.mxu0 0.0
      %6039 = vmatprep.subr.mxu0 0.0
      %6040 = vmatpush1.msra.mxu0 0.0
      %6041 = vmatprep.subr.mxu0 0.0
      %6042 = vmatpush1.msra.mxu0 0.0
      %6043 = vmatprep.mubr.f32.mxu0 0.0
      %6044 = vmatmul.mubr.f32.gmra.mrb[0].mxu0 %v5977
      %v6045 = vpop.f32.mrb[0].mxu0
      %v6046 = vadd.f32 %v5884, %v6045
      %v6047 = vpop.f32.mrb[0].mxu0
      %v6048 = vadd.f32 %v5884, %v6047
      %6049 = vdwg.mxu0
      %v6050 = vadd.f32 %v5515, %v6046
      %v6051 = vadd.f32 %v5517, %v6048
      %v6052 = vadd.f32 %v5509, %v6050
      %v6053 = vadd.f32 %v5511, %v6051
      %s6054 = scalar_lea.vmem %s5, 80
      %v6055 = vld [vmem:[%s6054] sm:$0xff]
      %s6056 = scalar_lea.vmem %s6, 80
      %v6057 = vld [vmem:[%s6056] sm:$0xff]
      %s6058 = scalar_lea.vmem %s7, 80
      %v6059 = vld [vmem:[%s6058] sm:$0xff]
      %s6060 = scalar_lea.vmem %s8, 80
      %v6061 = vld [vmem:[%s6060] sm:$0xff]
      %s6062 = scalar_lea.vmem %s9, 80
      %v6063 = vld [vmem:[%s6062] sm:$0xff]
      %s6064 = scalar_lea.vmem %s10, 80
      %v6065 = vld [vmem:[%s6064] sm:$0xff]
      %v6066 = vmul.f32 %v6052, %v469
      %v6067 = vmul.f32 %v6053, %v467
      %v6068 = vmul.f32 %v6052, %v490
      %v6069 = vmul.f32 %v6053, %v488
      %v6070 = vmul.f32 %v6052, %v502
      %v6071 = vmul.f32 %v6053, %v500
      %v6072 = vmul.f32 %v6052, %v510
      %v6073 = vmul.f32 %v6053, %v514
      %v6074 = vmul.f32 %v6052, %v522
      %v6075 = vmul.f32 %v6053, %v526
      %v6076 = vmul.f32 %v6052, %v534
      %v6077 = vmul.f32 %v6053, %v538
      %6080 = vrot.lane.b32.xlu0 %v6052, 127
      %v6081 = vpop.permute.xlu0 %6080
      %6082 = vrot.lane.b32.xlu0 %v6053, 127
      %v6083 = vpop.permute.xlu0 %6082
      %v6084 = vsel %vm501, %v549, %v6081
      %v6085 = vsel %vm501, %v6081, %v6083
      %6088 = vrot.lane.b32.xlu0 %v6068, 126
      %v6089 = vpop.permute.xlu0 %6088
      %6090 = vrot.lane.b32.xlu0 %v6069, 126
      %v6091 = vpop.permute.xlu0 %6090
      %v6092 = vsel %vm565, %v560, %v6089
      %v6093 = vsel %vm565, %v6089, %v6091
      %6096 = vrot.lane.b32.xlu0 %v6070, 112
      %v6097 = vpop.permute.xlu0 %6096
      %6098 = vrot.lane.b32.xlu0 %v6071, 112
      %v6099 = vpop.permute.xlu0 %6098
      %v6100 = vsel %vm577, %v572, %v6097
      %v6101 = vsel %vm577, %v6097, %v6099
      %6102 = vrot.lane.b32.xlu0 %v6052, 111
      %v6103 = vpop.permute.xlu0 %6102
      %6104 = vrot.lane.b32.xlu0 %v6053, 111
      %v6105 = vpop.permute.xlu0 %6104
      %v6106 = vsel %vm468, %v6103, %v6105
      %6109 = vrot.lane.b32.xlu0 %v6072, 110
      %v6110 = vpop.permute.xlu0 %6109
      %6111 = vrot.lane.b32.xlu0 %v6073, 110
      %v6112 = vpop.permute.xlu0 %6111
      %v6113 = vsel %vm594, %v6110, %v6112
      %v6114 = vsel %vm594, %v6112, %v593
      %6117 = vrot.lane.b32.xlu0 %v6074, 96
      %v6118 = vpop.permute.xlu0 %6117
      %6119 = vrot.lane.b32.xlu0 %v6075, 96
      %v6120 = vpop.permute.xlu0 %6119
      %v6121 = vsel %vm606, %v6118, %v6120
      %v6122 = vsel %vm606, %v6120, %v605
      %6123 = vrot.lane.b32.xlu0 %v6052, 95
      %v6124 = vpop.permute.xlu0 %6123
      %6125 = vrot.lane.b32.xlu0 %v6053, 95
      %v6126 = vpop.permute.xlu0 %6125
      %v6127 = vsel %vm615, %v6124, %v6126
      %v6128 = vsel %vm615, %v6126, %v614
      %6131 = vrot.lane.b32.xlu0 %v6076, 94
      %v6132 = vpop.permute.xlu0 %6131
      %6133 = vrot.lane.b32.xlu0 %v6077, 94
      %v6134 = vpop.permute.xlu0 %6133
      %v6135 = vsel %vm627, %v6132, %v6134
      %v6136 = vsel %vm627, %v6134, %v626
      %6138 = vset.pattern.permute.xlu0 0
      %6139 = vperm.xlu0 %6138, %v6057
      %v6140 = vpop.permute.xlu0 %6139
      %6144 = vrot.lane.b32.xlu0 %v6066, 17
      %v6145 = vpop.permute.xlu0 %6144
      %6146 = vrot.lane.b32.xlu0 %v6067, 17
      %v6147 = vpop.permute.xlu0 %6146
      %6148 = vrot.lane.b32.xlu0 %v6084, 17
      %v6149 = vpop.permute.xlu0 %6148
      %6150 = vrot.lane.b32.xlu0 %v6085, 17
      %v6151 = vpop.permute.xlu0 %6150
      %6152 = vrot.lane.b32.xlu0 %v6083, 17
      %v6153 = vpop.permute.xlu0 %6152
      %6154 = vrot.lane.b32.xlu0 %v6092, 17
      %v6155 = vpop.permute.xlu0 %6154
      %6156 = vrot.lane.b32.xlu0 %v6093, 17
      %v6157 = vpop.permute.xlu0 %6156
      %6158 = vrot.lane.b32.xlu0 %v6091, 17
      %v6159 = vpop.permute.xlu0 %6158
      %6160 = vrot.lane.b32.xlu0 %v6100, 17
      %v6161 = vpop.permute.xlu0 %6160
      %6162 = vrot.lane.b32.xlu0 %v6101, 17
      %v6163 = vpop.permute.xlu0 %6162
      %6164 = vrot.lane.b32.xlu0 %v6099, 17
      %v6165 = vpop.permute.xlu0 %6164
      %6166 = vrot.lane.b32.xlu0 %v6103, 17
      %v6167 = vpop.permute.xlu0 %6166
      %6168 = vrot.lane.b32.xlu0 %v6106, 17
      %v6169 = vpop.permute.xlu0 %6168
      %6170 = vrot.lane.b32.xlu0 %v6105, 17
      %v6171 = vpop.permute.xlu0 %6170
      %6172 = vrot.lane.b32.xlu0 %v6110, 17
      %v6173 = vpop.permute.xlu0 %6172
      %6174 = vrot.lane.b32.xlu0 %v6113, 17
      %v6175 = vpop.permute.xlu0 %6174
      %6176 = vrot.lane.b32.xlu0 %v6114, 17
      %v6177 = vpop.permute.xlu0 %6176
      %6178 = vrot.lane.b32.xlu0 %v6118, 17
      %v6179 = vpop.permute.xlu0 %6178
      %6180 = vrot.lane.b32.xlu0 %v6121, 17
      %v6181 = vpop.permute.xlu0 %6180
      %6182 = vrot.lane.b32.xlu0 %v6122, 17
      %v6183 = vpop.permute.xlu0 %6182
      %6184 = vrot.lane.b32.xlu0 %v6124, 17
      %v6185 = vpop.permute.xlu0 %6184
      %6186 = vrot.lane.b32.xlu0 %v6127, 17
      %v6187 = vpop.permute.xlu0 %6186
      %6188 = vrot.lane.b32.xlu0 %v6128, 17
      %v6189 = vpop.permute.xlu0 %6188
      %6190 = vrot.lane.b32.xlu0 %v6132, 17
      %v6191 = vpop.permute.xlu0 %6190
      %6192 = vrot.lane.b32.xlu0 %v6135, 17
      %v6193 = vpop.permute.xlu0 %6192
      %6194 = vrot.lane.b32.xlu0 %v6136, 17
      %v6195 = vpop.permute.xlu0 %6194
      %v6196 = vsel %vm537, %v644, %v6145
      %v6197 = vsel %vm537, %v6145, %v6147
      %v6198 = vsel %vm537, %v6149, %v6151
      %v6199 = vsel %vm537, %v6151, %v6153
      %v6200 = vsel %vm537, %v6155, %v6157
      %v6201 = vsel %vm537, %v6157, %v6159
      %v6202 = vsel %vm537, %v6161, %v6163
      %v6203 = vsel %vm537, %v6163, %v6165
      %v6204 = vsel %vm537, %v6167, %v6169
      %v6205 = vsel %vm537, %v6169, %v6171
      %v6206 = vsel %vm537, %v6173, %v6175
      %v6207 = vsel %vm537, %v6175, %v6177
      %v6208 = vsel %vm537, %v6179, %v6181
      %v6209 = vsel %vm537, %v6181, %v6183
      %v6210 = vsel %vm537, %v6185, %v6187
      %v6211 = vsel %vm537, %v6187, %v6189
      %v6212 = vsel %vm537, %v6191, %v6193
      %v6213 = vsel %vm537, %v6193, %v6195
      %v6233 = vsel %vm733, %v6055, 0
      %6235 = vmatprep.subr.mxu0 %v6197
      %6236 = vmatpush1.msra.mxu0 %v6196
      %6237 = vmatprep.subr.mxu0 %v6199
      %6238 = vmatpush1.msra.mxu0 %v6198
      %6239 = vmatprep.subr.mxu0 %v6201
      %6240 = vmatpush1.msra.mxu0 %v6200
      %6241 = vmatprep.subr.mxu0 %v6203
      %6242 = vmatpush1.msra.mxu0 %v6202
      %6243 = vmatprep.subr.mxu0 %v6205
      %6244 = vmatpush1.msra.mxu0 %v6204
      %6245 = vmatprep.subr.mxu0 %v6207
      %6246 = vmatpush1.msra.mxu0 %v6206
      %6247 = vmatprep.subr.mxu0 %v6209
      %6248 = vmatpush1.msra.mxu0 %v6208
      %6249 = vmatprep.subr.mxu0 %v6211
      %6250 = vmatpush1.msra.mxu0 %v6210
      %6251 = vmatprep.subr.mxu0 %v6213
      %6252 = vmatpush1.msra.mxu0 %v6212
      %6253 = vmatprep.subr.mxu0 0.0
      %6254 = vmatpush1.msra.mxu0 0.0
      %6255 = vmatprep.subr.mxu0 0.0
      %6256 = vmatpush1.msra.mxu0 0.0
      %6257 = vmatprep.subr.mxu0 0.0
      %6258 = vmatpush1.msra.mxu0 0.0
      %6259 = vmatprep.subr.mxu0 0.0
      %6260 = vmatpush1.msra.mxu0 0.0
      %6261 = vmatprep.subr.mxu0 0.0
      %6262 = vmatpush1.msra.mxu0 0.0
      %6263 = vmatprep.subr.mxu0 0.0
      %6264 = vmatpush1.msra.mxu0 0.0
      %6265 = vmatprep.subr.mxu0 0.0
      %6266 = vmatpush1.msra.mxu0 0.0
      %6267 = vmatprep.subr.mxu0 0.0
      %6268 = vmatpush1.msra.mxu0 0.0
      %6269 = vmatprep.subr.mxu0 0.0
      %6270 = vmatpush1.msra.mxu0 0.0
      %6271 = vmatprep.subr.mxu0 0.0
      %6272 = vmatpush1.msra.mxu0 0.0
      %6273 = vmatprep.subr.mxu0 0.0
      %6274 = vmatpush1.msra.mxu0 0.0
      %6275 = vmatprep.subr.mxu0 0.0
      %6276 = vmatpush1.msra.mxu0 0.0
      %6277 = vmatprep.subr.mxu0 0.0
      %6278 = vmatpush1.msra.mxu0 0.0
      %6279 = vmatprep.subr.mxu0 0.0
      %6280 = vmatpush1.msra.mxu0 0.0
      %6281 = vmatprep.subr.mxu0 0.0
      %6282 = vmatpush1.msra.mxu0 0.0
      %6283 = vmatprep.subr.mxu0 0.0
      %6284 = vmatpush1.msra.mxu0 0.0
      %6285 = vmatprep.subr.mxu0 0.0
      %6286 = vmatpush1.msra.mxu0 0.0
      %6287 = vmatprep.subr.mxu0 0.0
      %6288 = vmatpush1.msra.mxu0 0.0
      %6289 = vmatprep.subr.mxu0 0.0
      %6290 = vmatpush1.msra.mxu0 0.0
      %6291 = vmatprep.subr.mxu0 0.0
      %6292 = vmatpush1.msra.mxu0 0.0
      %6293 = vmatprep.subr.mxu0 0.0
      %6294 = vmatpush1.msra.mxu0 0.0
      %6295 = vmatprep.subr.mxu0 0.0
      %6296 = vmatpush1.msra.mxu0 0.0
      %6297 = vmatprep.subr.mxu0 0.0
      %6298 = vmatpush1.msra.mxu0 0.0
      %6299 = vmatprep.mubr.f32.mxu0 0.0
      %6300 = vmatmul.mubr.f32.gmra.mrb[0].mxu0 %v6233
      %v6301 = vpop.f32.mrb[0].mxu0
      %v6302 = vadd.f32 %v6140, %v6301
      %v6303 = vpop.f32.mrb[0].mxu0
      %v6304 = vadd.f32 %v6140, %v6303
      %6305 = vdwg.mxu0
      %v6306 = vadd.f32 %v6302, %v6304
      %6307 = vadd.xlane.f32.xlu0 %v6306
      %v6308 = vpop.xlane.xlu0 %6307
      %v6309 = vmul.f32 %v6308, %v1152
      %v6310 = vmul.f32 %v6302, %v6302
      %v6311 = vmul.f32 %v6304, %v6304
      %v6312 = vadd.f32 %v6310, %v6311
      %6313 = vadd.xlane.f32.xlu0 %v6312
      %v6314 = vpop.xlane.xlu0 %6313
      %v6315 = vmul.f32 %v6314, %v1152
      %v6316 = vmul.f32 %v6309, %v6309
      %v6317 = vsub.f32 %v6315, %v6316
      %v6318 = vmax.f32 %v6317, 0.0
      %v6319 = vsub.f32 %v6302, %v6309
      %v6320 = vsub.f32 %v6304, %v6309
      %v6321 = vadd.f32 %v6318, 1e-05
      %v6322 = vrsqrt.pop %v6321
      %v6323 = vmul.f32 %v6319, %v6322
      %v6324 = vmul.f32 %v6320, %v6322
      %6326 = vset.pattern.permute.xlu0 0
      %6327 = vperm.xlu0 %6326, %v6059
      %v6328 = vpop.permute.xlu0 %6327
      %v6330 = vmul.f32 %v6323, %v6328
      %v6331 = vmul.f32 %v6324, %v6328
      %6333 = vset.pattern.permute.xlu0 0
      %6334 = vperm.xlu0 %6333, %v6061
      %v6335 = vpop.permute.xlu0 %6334
      %v6337 = vadd.f32 %v6330, %v6335
      %v6338 = vadd.f32 %v6331, %v6335
      %v6339 = vmul.f32 %v6337, %v448
      %v6340 = vmul.f32 %v6338, %v448
      %v6341 = vmul.f32 %v6302, %v1185
      %v6342 = vmul.f32 %v6304, %v1185
      %v6343 = vadd.f32 %v6339, %v6341
      %v6344 = vadd.f32 %v6340, %v6342
      %v6345 = vmul.f32 %v6343, %v469
      %v6346 = vmul.f32 %v6344, %v467
      %v6347 = vmul.f32 %v6343, %v490
      %v6348 = vmul.f32 %v6344, %v488
      %v6349 = vmul.f32 %v6343, %v502
      %v6350 = vmul.f32 %v6344, %v500
      %v6351 = vmul.f32 %v6343, %v510
      %v6352 = vmul.f32 %v6344, %v514
      %v6353 = vmul.f32 %v6343, %v522
      %v6354 = vmul.f32 %v6344, %v526
      %v6355 = vmul.f32 %v6343, %v534
      %v6356 = vmul.f32 %v6344, %v538
      %6359 = vrot.lane.b32.xlu0 %v6343, 127
      %v6360 = vpop.permute.xlu0 %6359
      %6361 = vrot.lane.b32.xlu0 %v6344, 127
      %v6362 = vpop.permute.xlu0 %6361
      %v6363 = vsel %vm501, %v549, %v6360
      %v6364 = vsel %vm501, %v6360, %v6362
      %6367 = vrot.lane.b32.xlu0 %v6347, 126
      %v6368 = vpop.permute.xlu0 %6367
      %6369 = vrot.lane.b32.xlu0 %v6348, 126
      %v6370 = vpop.permute.xlu0 %6369
      %v6371 = vsel %vm565, %v560, %v6368
      %v6372 = vsel %vm565, %v6368, %v6370
      %6375 = vrot.lane.b32.xlu0 %v6349, 112
      %v6376 = vpop.permute.xlu0 %6375
      %6377 = vrot.lane.b32.xlu0 %v6350, 112
      %v6378 = vpop.permute.xlu0 %6377
      %v6379 = vsel %vm577, %v572, %v6376
      %v6380 = vsel %vm577, %v6376, %v6378
      %6381 = vrot.lane.b32.xlu0 %v6343, 111
      %v6382 = vpop.permute.xlu0 %6381
      %6383 = vrot.lane.b32.xlu0 %v6344, 111
      %v6384 = vpop.permute.xlu0 %6383
      %v6385 = vsel %vm468, %v6382, %v6384
      %6388 = vrot.lane.b32.xlu0 %v6351, 110
      %v6389 = vpop.permute.xlu0 %6388
      %6390 = vrot.lane.b32.xlu0 %v6352, 110
      %v6391 = vpop.permute.xlu0 %6390
      %v6392 = vsel %vm594, %v6389, %v6391
      %v6393 = vsel %vm594, %v6391, %v593
      %6396 = vrot.lane.b32.xlu0 %v6353, 96
      %v6397 = vpop.permute.xlu0 %6396
      %6398 = vrot.lane.b32.xlu0 %v6354, 96
      %v6399 = vpop.permute.xlu0 %6398
      %v6400 = vsel %vm606, %v6397, %v6399
      %v6401 = vsel %vm606, %v6399, %v605
      %6402 = vrot.lane.b32.xlu0 %v6343, 95
      %v6403 = vpop.permute.xlu0 %6402
      %6404 = vrot.lane.b32.xlu0 %v6344, 95
      %v6405 = vpop.permute.xlu0 %6404
      %v6406 = vsel %vm615, %v6403, %v6405
      %v6407 = vsel %vm615, %v6405, %v614
      %6410 = vrot.lane.b32.xlu0 %v6355, 94
      %v6411 = vpop.permute.xlu0 %6410
      %6412 = vrot.lane.b32.xlu0 %v6356, 94
      %v6413 = vpop.permute.xlu0 %6412
      %v6414 = vsel %vm627, %v6411, %v6413
      %v6415 = vsel %vm627, %v6413, %v626
      %6417 = vset.pattern.permute.xlu0 0
      %6418 = vperm.xlu0 %6417, %v6065
      %v6419 = vpop.permute.xlu0 %6418
      %6423 = vrot.lane.b32.xlu0 %v6345, 17
      %v6424 = vpop.permute.xlu0 %6423
      %6425 = vrot.lane.b32.xlu0 %v6346, 17
      %v6426 = vpop.permute.xlu0 %6425
      %6427 = vrot.lane.b32.xlu0 %v6363, 17
      %v6428 = vpop.permute.xlu0 %6427
      %6429 = vrot.lane.b32.xlu0 %v6364, 17
      %v6430 = vpop.permute.xlu0 %6429
      %6431 = vrot.lane.b32.xlu0 %v6362, 17
      %v6432 = vpop.permute.xlu0 %6431
      %6433 = vrot.lane.b32.xlu0 %v6371, 17
      %v6434 = vpop.permute.xlu0 %6433
      %6435 = vrot.lane.b32.xlu0 %v6372, 17
      %v6436 = vpop.permute.xlu0 %6435
      %6437 = vrot.lane.b32.xlu0 %v6370, 17
      %v6438 = vpop.permute.xlu0 %6437
      %6439 = vrot.lane.b32.xlu0 %v6379, 17
      %v6440 = vpop.permute.xlu0 %6439
      %6441 = vrot.lane.b32.xlu0 %v6380, 17
      %v6442 = vpop.permute.xlu0 %6441
      %6443 = vrot.lane.b32.xlu0 %v6378, 17
      %v6444 = vpop.permute.xlu0 %6443
      %6445 = vrot.lane.b32.xlu0 %v6382, 17
      %v6446 = vpop.permute.xlu0 %6445
      %6447 = vrot.lane.b32.xlu0 %v6385, 17
      %v6448 = vpop.permute.xlu0 %6447
      %6449 = vrot.lane.b32.xlu0 %v6384, 17
      %v6450 = vpop.permute.xlu0 %6449
      %6451 = vrot.lane.b32.xlu0 %v6389, 17
      %v6452 = vpop.permute.xlu0 %6451
      %6453 = vrot.lane.b32.xlu0 %v6392, 17
      %v6454 = vpop.permute.xlu0 %6453
      %6455 = vrot.lane.b32.xlu0 %v6393, 17
      %v6456 = vpop.permute.xlu0 %6455
      %6457 = vrot.lane.b32.xlu0 %v6397, 17
      %v6458 = vpop.permute.xlu0 %6457
      %6459 = vrot.lane.b32.xlu0 %v6400, 17
      %v6460 = vpop.permute.xlu0 %6459
      %6461 = vrot.lane.b32.xlu0 %v6401, 17
      %v6462 = vpop.permute.xlu0 %6461
      %6463 = vrot.lane.b32.xlu0 %v6403, 17
      %v6464 = vpop.permute.xlu0 %6463
      %6465 = vrot.lane.b32.xlu0 %v6406, 17
      %v6466 = vpop.permute.xlu0 %6465
      %6467 = vrot.lane.b32.xlu0 %v6407, 17
      %v6468 = vpop.permute.xlu0 %6467
      %6469 = vrot.lane.b32.xlu0 %v6411, 17
      %v6470 = vpop.permute.xlu0 %6469
      %6471 = vrot.lane.b32.xlu0 %v6414, 17
      %v6472 = vpop.permute.xlu0 %6471
      %6473 = vrot.lane.b32.xlu0 %v6415, 17
      %v6474 = vpop.permute.xlu0 %6473
      %v6475 = vsel %vm537, %v644, %v6424
      %v6476 = vsel %vm537, %v6424, %v6426
      %v6477 = vsel %vm537, %v6428, %v6430
      %v6478 = vsel %vm537, %v6430, %v6432
      %v6479 = vsel %vm537, %v6434, %v6436
      %v6480 = vsel %vm537, %v6436, %v6438
      %v6481 = vsel %vm537, %v6440, %v6442
      %v6482 = vsel %vm537, %v6442, %v6444
      %v6483 = vsel %vm537, %v6446, %v6448
      %v6484 = vsel %vm537, %v6448, %v6450
      %v6485 = vsel %vm537, %v6452, %v6454
      %v6486 = vsel %vm537, %v6454, %v6456
      %v6487 = vsel %vm537, %v6458, %v6460
      %v6488 = vsel %vm537, %v6460, %v6462
      %v6489 = vsel %vm537, %v6464, %v6466
      %v6490 = vsel %vm537, %v6466, %v6468
      %v6491 = vsel %vm537, %v6470, %v6472
      %v6492 = vsel %vm537, %v6472, %v6474
      %v6512 = vsel %vm733, %v6063, 0
      %6514 = vmatprep.subr.mxu0 %v6476
      %6515 = vmatpush1.msra.mxu0 %v6475
      %6516 = vmatprep.subr.mxu0 %v6478
      %6517 = vmatpush1.msra.mxu0 %v6477
      %6518 = vmatprep.subr.mxu0 %v6480
      %6519 = vmatpush1.msra.mxu0 %v6479
      %6520 = vmatprep.subr.mxu0 %v6482
      %6521 = vmatpush1.msra.mxu0 %v6481
      %6522 = vmatprep.subr.mxu0 %v6484
      %6523 = vmatpush1.msra.mxu0 %v6483
      %6524 = vmatprep.subr.mxu0 %v6486
      %6525 = vmatpush1.msra.mxu0 %v6485
      %6526 = vmatprep.subr.mxu0 %v6488
      %6527 = vmatpush1.msra.mxu0 %v6487
      %6528 = vmatprep.subr.mxu0 %v6490
      %6529 = vmatpush1.msra.mxu0 %v6489
      %6530 = vmatprep.subr.mxu0 %v6492
      %6531 = vmatpush1.msra.mxu0 %v6491
      %6532 = vmatprep.subr.mxu0 0.0
      %6533 = vmatpush1.msra.mxu0 0.0
      %6534 = vmatprep.subr.mxu0 0.0
      %6535 = vmatpush1.msra.mxu0 0.0
      %6536 = vmatprep.subr.mxu0 0.0
      %6537 = vmatpush1.msra.mxu0 0.0
      %6538 = vmatprep.subr.mxu0 0.0
      %6539 = vmatpush1.msra.mxu0 0.0
      %6540 = vmatprep.subr.mxu0 0.0
      %6541 = vmatpush1.msra.mxu0 0.0
      %6542 = vmatprep.subr.mxu0 0.0
      %6543 = vmatpush1.msra.mxu0 0.0
      %6544 = vmatprep.subr.mxu0 0.0
      %6545 = vmatpush1.msra.mxu0 0.0
      %6546 = vmatprep.subr.mxu0 0.0
      %6547 = vmatpush1.msra.mxu0 0.0
      %6548 = vmatprep.subr.mxu0 0.0
      %6549 = vmatpush1.msra.mxu0 0.0
      %6550 = vmatprep.subr.mxu0 0.0
      %6551 = vmatpush1.msra.mxu0 0.0
      %6552 = vmatprep.subr.mxu0 0.0
      %6553 = vmatpush1.msra.mxu0 0.0
      %6554 = vmatprep.subr.mxu0 0.0
      %6555 = vmatpush1.msra.mxu0 0.0
      %6556 = vmatprep.subr.mxu0 0.0
      %6557 = vmatpush1.msra.mxu0 0.0
      %6558 = vmatprep.subr.mxu0 0.0
      %6559 = vmatpush1.msra.mxu0 0.0
      %6560 = vmatprep.subr.mxu0 0.0
      %6561 = vmatpush1.msra.mxu0 0.0
      %6562 = vmatprep.subr.mxu0 0.0
      %6563 = vmatpush1.msra.mxu0 0.0
      %6564 = vmatprep.subr.mxu0 0.0
      %6565 = vmatpush1.msra.mxu0 0.0
      %6566 = vmatprep.subr.mxu0 0.0
      %6567 = vmatpush1.msra.mxu0 0.0
      %6568 = vmatprep.subr.mxu0 0.0
      %6569 = vmatpush1.msra.mxu0 0.0
      %6570 = vmatprep.subr.mxu0 0.0
      %6571 = vmatpush1.msra.mxu0 0.0
      %6572 = vmatprep.subr.mxu0 0.0
      %6573 = vmatpush1.msra.mxu0 0.0
      %6574 = vmatprep.subr.mxu0 0.0
      %6575 = vmatpush1.msra.mxu0 0.0
      %6576 = vmatprep.subr.mxu0 0.0
      %6577 = vmatpush1.msra.mxu0 0.0
      %6578 = vmatprep.mubr.f32.mxu0 0.0
      %6579 = vmatmul.mubr.f32.gmra.mrb[0].mxu0 %v6512
      %v6580 = vpop.f32.mrb[0].mxu0
      %v6581 = vadd.f32 %v6419, %v6580
      %v6582 = vpop.f32.mrb[0].mxu0
      %v6583 = vadd.f32 %v6419, %v6582
      %6584 = vdwg.mxu0
      %v6585 = vadd.f32 %v6052, %v6581
      %v6586 = vadd.f32 %v6053, %v6583
      %s6587 = scalar_lea.vmem %s5, 88
      %v6588 = vld [vmem:[%s6587] sm:$0xff]
      %s6589 = scalar_lea.vmem %s6, 88
      %v6590 = vld [vmem:[%s6589] sm:$0xff]
      %s6591 = scalar_lea.vmem %s7, 88
      %v6592 = vld [vmem:[%s6591] sm:$0xff]
      %s6593 = scalar_lea.vmem %s8, 88
      %v6594 = vld [vmem:[%s6593] sm:$0xff]
      %s6595 = scalar_lea.vmem %s9, 88
      %v6596 = vld [vmem:[%s6595] sm:$0xff]
      %s6597 = scalar_lea.vmem %s10, 88
      %v6598 = vld [vmem:[%s6597] sm:$0xff]
      %6600 = vset.pattern.permute.xlu0 0
      %6601 = vperm.xlu0 %6600, %v6590
      %v6602 = vpop.permute.xlu0 %6601
      %v6605 = vsel %vm733, %v6588, 0
      %6607 = vmatprep.subr.mxu0 %v6197
      %6608 = vmatpush1.msra.mxu0 %v6196
      %6609 = vmatprep.subr.mxu0 %v6199
      %6610 = vmatpush1.msra.mxu0 %v6198
      %6611 = vmatprep.subr.mxu0 %v6201
      %6612 = vmatpush1.msra.mxu0 %v6200
      %6613 = vmatprep.subr.mxu0 %v6203
      %6614 = vmatpush1.msra.mxu0 %v6202
      %6615 = vmatprep.subr.mxu0 %v6205
      %6616 = vmatpush1.msra.mxu0 %v6204
      %6617 = vmatprep.subr.mxu0 %v6207
      %6618 = vmatpush1.msra.mxu0 %v6206
      %6619 = vmatprep.subr.mxu0 %v6209
      %6620 = vmatpush1.msra.mxu0 %v6208
      %6621 = vmatprep.subr.mxu0 %v6211
      %6622 = vmatpush1.msra.mxu0 %v6210
      %6623 = vmatprep.subr.mxu0 %v6213
      %6624 = vmatpush1.msra.mxu0 %v6212
      %6625 = vmatprep.subr.mxu0 0.0
      %6626 = vmatpush1.msra.mxu0 0.0
      %6627 = vmatprep.subr.mxu0 0.0
      %6628 = vmatpush1.msra.mxu0 0.0
      %6629 = vmatprep.subr.mxu0 0.0
      %6630 = vmatpush1.msra.mxu0 0.0
      %6631 = vmatprep.subr.mxu0 0.0
      %6632 = vmatpush1.msra.mxu0 0.0
      %6633 = vmatprep.subr.mxu0 0.0
      %6634 = vmatpush1.msra.mxu0 0.0
      %6635 = vmatprep.subr.mxu0 0.0
      %6636 = vmatpush1.msra.mxu0 0.0
      %6637 = vmatprep.subr.mxu0 0.0
      %6638 = vmatpush1.msra.mxu0 0.0
      %6639 = vmatprep.subr.mxu0 0.0
      %6640 = vmatpush1.msra.mxu0 0.0
      %6641 = vmatprep.subr.mxu0 0.0
      %6642 = vmatpush1.msra.mxu0 0.0
      %6643 = vmatprep.subr.mxu0 0.0
      %6644 = vmatpush1.msra.mxu0 0.0
      %6645 = vmatprep.subr.mxu0 0.0
      %6646 = vmatpush1.msra.mxu0 0.0
      %6647 = vmatprep.subr.mxu0 0.0
      %6648 = vmatpush1.msra.mxu0 0.0
      %6649 = vmatprep.subr.mxu0 0.0
      %6650 = vmatpush1.msra.mxu0 0.0
      %6651 = vmatprep.subr.mxu0 0.0
      %6652 = vmatpush1.msra.mxu0 0.0
      %6653 = vmatprep.subr.mxu0 0.0
      %6654 = vmatpush1.msra.mxu0 0.0
      %6655 = vmatprep.subr.mxu0 0.0
      %6656 = vmatpush1.msra.mxu0 0.0
      %6657 = vmatprep.subr.mxu0 0.0
      %6658 = vmatpush1.msra.mxu0 0.0
      %6659 = vmatprep.subr.mxu0 0.0
      %6660 = vmatpush1.msra.mxu0 0.0
      %6661 = vmatprep.subr.mxu0 0.0
      %6662 = vmatpush1.msra.mxu0 0.0
      %6663 = vmatprep.subr.mxu0 0.0
      %6664 = vmatpush1.msra.mxu0 0.0
      %6665 = vmatprep.subr.mxu0 0.0
      %6666 = vmatpush1.msra.mxu0 0.0
      %6667 = vmatprep.subr.mxu0 0.0
      %6668 = vmatpush1.msra.mxu0 0.0
      %6669 = vmatprep.subr.mxu0 0.0
      %6670 = vmatpush1.msra.mxu0 0.0
      %6671 = vmatprep.mubr.f32.mxu0 0.0
      %6672 = vmatmul.mubr.f32.gmra.mrb[0].mxu0 %v6605
      %v6673 = vpop.f32.mrb[0].mxu0
      %v6674 = vadd.f32 %v6602, %v6673
      %v6675 = vpop.f32.mrb[0].mxu0
      %v6676 = vadd.f32 %v6602, %v6675
      %6677 = vdwg.mxu0
      %v6678 = vadd.f32 %v6674, %v6676
      %6679 = vadd.xlane.f32.xlu0 %v6678
      %v6680 = vpop.xlane.xlu0 %6679
      %v6681 = vmul.f32 %v6680, %v1152
      %v6682 = vmul.f32 %v6674, %v6674
      %v6683 = vmul.f32 %v6676, %v6676
      %v6684 = vadd.f32 %v6682, %v6683
      %6685 = vadd.xlane.f32.xlu0 %v6684
      %v6686 = vpop.xlane.xlu0 %6685
      %v6687 = vmul.f32 %v6686, %v1152
      %v6688 = vmul.f32 %v6681, %v6681
      %v6689 = vsub.f32 %v6687, %v6688
      %v6690 = vmax.f32 %v6689, 0.0
      %v6691 = vsub.f32 %v6674, %v6681
      %v6692 = vsub.f32 %v6676, %v6681
      %v6693 = vadd.f32 %v6690, 1e-05
      %v6694 = vrsqrt.pop %v6693
      %v6695 = vmul.f32 %v6691, %v6694
      %v6696 = vmul.f32 %v6692, %v6694
      %6698 = vset.pattern.permute.xlu0 0
      %6699 = vperm.xlu0 %6698, %v6592
      %v6700 = vpop.permute.xlu0 %6699
      %v6702 = vmul.f32 %v6695, %v6700
      %v6703 = vmul.f32 %v6696, %v6700
      %6705 = vset.pattern.permute.xlu0 0
      %6706 = vperm.xlu0 %6705, %v6594
      %v6707 = vpop.permute.xlu0 %6706
      %v6709 = vadd.f32 %v6702, %v6707
      %v6710 = vadd.f32 %v6703, %v6707
      %v6711 = vmul.f32 %v6709, %v448
      %v6712 = vmul.f32 %v6710, %v448
      %v6713 = vmul.f32 %v6674, %v1185
      %v6714 = vmul.f32 %v6676, %v1185
      %v6715 = vadd.f32 %v6711, %v6713
      %v6716 = vadd.f32 %v6712, %v6714
      %v6717 = vmul.f32 %v6715, %v469
      %v6718 = vmul.f32 %v6716, %v467
      %v6719 = vmul.f32 %v6715, %v490
      %v6720 = vmul.f32 %v6716, %v488
      %v6721 = vmul.f32 %v6715, %v502
      %v6722 = vmul.f32 %v6716, %v500
      %v6723 = vmul.f32 %v6715, %v510
      %v6724 = vmul.f32 %v6716, %v514
      %v6725 = vmul.f32 %v6715, %v522
      %v6726 = vmul.f32 %v6716, %v526
      %v6727 = vmul.f32 %v6715, %v534
      %v6728 = vmul.f32 %v6716, %v538
      %6731 = vrot.lane.b32.xlu0 %v6715, 127
      %v6732 = vpop.permute.xlu0 %6731
      %6733 = vrot.lane.b32.xlu0 %v6716, 127
      %v6734 = vpop.permute.xlu0 %6733
      %v6735 = vsel %vm501, %v549, %v6732
      %v6736 = vsel %vm501, %v6732, %v6734
      %6739 = vrot.lane.b32.xlu0 %v6719, 126
      %v6740 = vpop.permute.xlu0 %6739
      %6741 = vrot.lane.b32.xlu0 %v6720, 126
      %v6742 = vpop.permute.xlu0 %6741
      %v6743 = vsel %vm565, %v560, %v6740
      %v6744 = vsel %vm565, %v6740, %v6742
      %6747 = vrot.lane.b32.xlu0 %v6721, 112
      %v6748 = vpop.permute.xlu0 %6747
      %6749 = vrot.lane.b32.xlu0 %v6722, 112
      %v6750 = vpop.permute.xlu0 %6749
      %v6751 = vsel %vm577, %v572, %v6748
      %v6752 = vsel %vm577, %v6748, %v6750
      %6753 = vrot.lane.b32.xlu0 %v6715, 111
      %v6754 = vpop.permute.xlu0 %6753
      %6755 = vrot.lane.b32.xlu0 %v6716, 111
      %v6756 = vpop.permute.xlu0 %6755
      %v6757 = vsel %vm468, %v6754, %v6756
      %6760 = vrot.lane.b32.xlu0 %v6723, 110
      %v6761 = vpop.permute.xlu0 %6760
      %6762 = vrot.lane.b32.xlu0 %v6724, 110
      %v6763 = vpop.permute.xlu0 %6762
      %v6764 = vsel %vm594, %v6761, %v6763
      %v6765 = vsel %vm594, %v6763, %v593
      %6768 = vrot.lane.b32.xlu0 %v6725, 96
      %v6769 = vpop.permute.xlu0 %6768
      %6770 = vrot.lane.b32.xlu0 %v6726, 96
      %v6771 = vpop.permute.xlu0 %6770
      %v6772 = vsel %vm606, %v6769, %v6771
      %v6773 = vsel %vm606, %v6771, %v605
      %6774 = vrot.lane.b32.xlu0 %v6715, 95
      %v6775 = vpop.permute.xlu0 %6774
      %6776 = vrot.lane.b32.xlu0 %v6716, 95
      %v6777 = vpop.permute.xlu0 %6776
      %v6778 = vsel %vm615, %v6775, %v6777
      %v6779 = vsel %vm615, %v6777, %v614
      %6782 = vrot.lane.b32.xlu0 %v6727, 94
      %v6783 = vpop.permute.xlu0 %6782
      %6784 = vrot.lane.b32.xlu0 %v6728, 94
      %v6785 = vpop.permute.xlu0 %6784
      %v6786 = vsel %vm627, %v6783, %v6785
      %v6787 = vsel %vm627, %v6785, %v626
      %6789 = vset.pattern.permute.xlu0 0
      %6790 = vperm.xlu0 %6789, %v6598
      %v6791 = vpop.permute.xlu0 %6790
      %6795 = vrot.lane.b32.xlu0 %v6717, 17
      %v6796 = vpop.permute.xlu0 %6795
      %6797 = vrot.lane.b32.xlu0 %v6718, 17
      %v6798 = vpop.permute.xlu0 %6797
      %6799 = vrot.lane.b32.xlu0 %v6735, 17
      %v6800 = vpop.permute.xlu0 %6799
      %6801 = vrot.lane.b32.xlu0 %v6736, 17
      %v6802 = vpop.permute.xlu0 %6801
      %6803 = vrot.lane.b32.xlu0 %v6734, 17
      %v6804 = vpop.permute.xlu0 %6803
      %6805 = vrot.lane.b32.xlu0 %v6743, 17
      %v6806 = vpop.permute.xlu0 %6805
      %6807 = vrot.lane.b32.xlu0 %v6744, 17
      %v6808 = vpop.permute.xlu0 %6807
      %6809 = vrot.lane.b32.xlu0 %v6742, 17
      %v6810 = vpop.permute.xlu0 %6809
      %6811 = vrot.lane.b32.xlu0 %v6751, 17
      %v6812 = vpop.permute.xlu0 %6811
      %6813 = vrot.lane.b32.xlu0 %v6752, 17
      %v6814 = vpop.permute.xlu0 %6813
      %6815 = vrot.lane.b32.xlu0 %v6750, 17
      %v6816 = vpop.permute.xlu0 %6815
      %6817 = vrot.lane.b32.xlu0 %v6754, 17
      %v6818 = vpop.permute.xlu0 %6817
      %6819 = vrot.lane.b32.xlu0 %v6757, 17
      %v6820 = vpop.permute.xlu0 %6819
      %6821 = vrot.lane.b32.xlu0 %v6756, 17
      %v6822 = vpop.permute.xlu0 %6821
      %6823 = vrot.lane.b32.xlu0 %v6761, 17
      %v6824 = vpop.permute.xlu0 %6823
      %6825 = vrot.lane.b32.xlu0 %v6764, 17
      %v6826 = vpop.permute.xlu0 %6825
      %6827 = vrot.lane.b32.xlu0 %v6765, 17
      %v6828 = vpop.permute.xlu0 %6827
      %6829 = vrot.lane.b32.xlu0 %v6769, 17
      %v6830 = vpop.permute.xlu0 %6829
      %6831 = vrot.lane.b32.xlu0 %v6772, 17
      %v6832 = vpop.permute.xlu0 %6831
      %6833 = vrot.lane.b32.xlu0 %v6773, 17
      %v6834 = vpop.permute.xlu0 %6833
      %6835 = vrot.lane.b32.xlu0 %v6775, 17
      %v6836 = vpop.permute.xlu0 %6835
      %6837 = vrot.lane.b32.xlu0 %v6778, 17
      %v6838 = vpop.permute.xlu0 %6837
      %6839 = vrot.lane.b32.xlu0 %v6779, 17
      %v6840 = vpop.permute.xlu0 %6839
      %6841 = vrot.lane.b32.xlu0 %v6783, 17
      %v6842 = vpop.permute.xlu0 %6841
      %6843 = vrot.lane.b32.xlu0 %v6786, 17
      %v6844 = vpop.permute.xlu0 %6843
      %6845 = vrot.lane.b32.xlu0 %v6787, 17
      %v6846 = vpop.permute.xlu0 %6845
      %v6847 = vsel %vm537, %v644, %v6796
      %v6848 = vsel %vm537, %v6796, %v6798
      %v6849 = vsel %vm537, %v6800, %v6802
      %v6850 = vsel %vm537, %v6802, %v6804
      %v6851 = vsel %vm537, %v6806, %v6808
      %v6852 = vsel %vm537, %v6808, %v6810
      %v6853 = vsel %vm537, %v6812, %v6814
      %v6854 = vsel %vm537, %v6814, %v6816
      %v6855 = vsel %vm537, %v6818, %v6820
      %v6856 = vsel %vm537, %v6820, %v6822
      %v6857 = vsel %vm537, %v6824, %v6826
      %v6858 = vsel %vm537, %v6826, %v6828
      %v6859 = vsel %vm537, %v6830, %v6832
      %v6860 = vsel %vm537, %v6832, %v6834
      %v6861 = vsel %vm537, %v6836, %v6838
      %v6862 = vsel %vm537, %v6838, %v6840
      %v6863 = vsel %vm537, %v6842, %v6844
      %v6864 = vsel %vm537, %v6844, %v6846
      %v6884 = vsel %vm733, %v6596, 0
      %6886 = vmatprep.subr.mxu0 %v6848
      %6887 = vmatpush1.msra.mxu0 %v6847
      %6888 = vmatprep.subr.mxu0 %v6850
      %6889 = vmatpush1.msra.mxu0 %v6849
      %6890 = vmatprep.subr.mxu0 %v6852
      %6891 = vmatpush1.msra.mxu0 %v6851
      %6892 = vmatprep.subr.mxu0 %v6854
      %6893 = vmatpush1.msra.mxu0 %v6853
      %6894 = vmatprep.subr.mxu0 %v6856
      %6895 = vmatpush1.msra.mxu0 %v6855
      %6896 = vmatprep.subr.mxu0 %v6858
      %6897 = vmatpush1.msra.mxu0 %v6857
      %6898 = vmatprep.subr.mxu0 %v6860
      %6899 = vmatpush1.msra.mxu0 %v6859
      %6900 = vmatprep.subr.mxu0 %v6862
      %6901 = vmatpush1.msra.mxu0 %v6861
      %6902 = vmatprep.subr.mxu0 %v6864
      %6903 = vmatpush1.msra.mxu0 %v6863
      %6904 = vmatprep.subr.mxu0 0.0
      %6905 = vmatpush1.msra.mxu0 0.0
      %6906 = vmatprep.subr.mxu0 0.0
      %6907 = vmatpush1.msra.mxu0 0.0
      %6908 = vmatprep.subr.mxu0 0.0
      %6909 = vmatpush1.msra.mxu0 0.0
      %6910 = vmatprep.subr.mxu0 0.0
      %6911 = vmatpush1.msra.mxu0 0.0
      %6912 = vmatprep.subr.mxu0 0.0
      %6913 = vmatpush1.msra.mxu0 0.0
      %6914 = vmatprep.subr.mxu0 0.0
      %6915 = vmatpush1.msra.mxu0 0.0
      %6916 = vmatprep.subr.mxu0 0.0
      %6917 = vmatpush1.msra.mxu0 0.0
      %6918 = vmatprep.subr.mxu0 0.0
      %6919 = vmatpush1.msra.mxu0 0.0
      %6920 = vmatprep.subr.mxu0 0.0
      %6921 = vmatpush1.msra.mxu0 0.0
      %6922 = vmatprep.subr.mxu0 0.0
      %6923 = vmatpush1.msra.mxu0 0.0
      %6924 = vmatprep.subr.mxu0 0.0
      %6925 = vmatpush1.msra.mxu0 0.0
      %6926 = vmatprep.subr.mxu0 0.0
      %6927 = vmatpush1.msra.mxu0 0.0
      %6928 = vmatprep.subr.mxu0 0.0
      %6929 = vmatpush1.msra.mxu0 0.0
      %6930 = vmatprep.subr.mxu0 0.0
      %6931 = vmatpush1.msra.mxu0 0.0
      %6932 = vmatprep.subr.mxu0 0.0
      %6933 = vmatpush1.msra.mxu0 0.0
      %6934 = vmatprep.subr.mxu0 0.0
      %6935 = vmatpush1.msra.mxu0 0.0
      %6936 = vmatprep.subr.mxu0 0.0
      %6937 = vmatpush1.msra.mxu0 0.0
      %6938 = vmatprep.subr.mxu0 0.0
      %6939 = vmatpush1.msra.mxu0 0.0
      %6940 = vmatprep.subr.mxu0 0.0
      %6941 = vmatpush1.msra.mxu0 0.0
      %6942 = vmatprep.subr.mxu0 0.0
      %6943 = vmatpush1.msra.mxu0 0.0
      %6944 = vmatprep.subr.mxu0 0.0
      %6945 = vmatpush1.msra.mxu0 0.0
      %6946 = vmatprep.subr.mxu0 0.0
      %6947 = vmatpush1.msra.mxu0 0.0
      %6948 = vmatprep.subr.mxu0 0.0
      %6949 = vmatpush1.msra.mxu0 0.0
      %6950 = vmatprep.mubr.f32.mxu0 0.0
      %6951 = vmatmul.mubr.f32.gmra.mrb[0].mxu0 %v6884
      %v6952 = vpop.f32.mrb[0].mxu0
      %v6953 = vadd.f32 %v6791, %v6952
      %v6954 = vpop.f32.mrb[0].mxu0
      %v6955 = vadd.f32 %v6791, %v6954
      %6956 = vdwg.mxu0
      %v6957 = vadd.f32 %v6052, %v6953
      %v6958 = vadd.f32 %v6053, %v6955
      %v6959 = vmul.f32 %v6585, 0.5
      %v6960 = vmul.f32 %v6586, 0.5
      %v6961 = vtanh.pop %v6959
      %v6962 = vtanh.pop %v6960
      %v6963 = vmul.f32 %v6961, 0.8
      %v6964 = vmul.f32 %v6962, 0.8
      %v6965 = vmul.f32 %v6963, 1.442695
      %v6966 = vpow.pop %v6965
      %v6967 = vmul.f32 %v6964, 1.442695
      %v6968 = vpow.pop %v6967
      %v6969 = vmul.f32 %v5515, %v6966
      %v6970 = vmul.f32 %v5517, %v6968
      %v6971 = vadd.f32 %v6969, %v6957
      %v6972 = vadd.f32 %v6970, %v6958
      %s6973 = scalar_lea.vmem %s4, 64
      %v6974 = vld [vmem:[%s6973] sm:$0xff]
      %v6975 = vld [vmem:[%s6973 + $0x8] sm:$0xff]
      %v6977 = vsel %vm819, %v6974, 0
      %v6980 = vsel %vm819, %v6975, 0
      %6982 = vmatprep.subr.mxu0 %v6053
      %6983 = vmatpush1.msra.mxu0 %v6052
      %6984 = vmatprep.subr.mxu0 %v6972
      %6985 = vmatpush1.msra.mxu0 %v6971
      %6986 = vmatprep.subr.mxu0 0.0
      %6987 = vmatpush1.msra.mxu0 0.0
      %6988 = vmatprep.subr.mxu0 0.0
      %6989 = vmatpush1.msra.mxu0 0.0
      %6990 = vmatprep.subr.mxu0 0.0
      %6991 = vmatpush1.msra.mxu0 0.0
      %6992 = vmatprep.subr.mxu0 0.0
      %6993 = vmatpush1.msra.mxu0 0.0
      %6994 = vmatprep.subr.mxu0 0.0
      %6995 = vmatpush1.msra.mxu0 0.0
      %6996 = vmatprep.subr.mxu0 0.0
      %6997 = vmatpush1.msra.mxu0 0.0
      %6998 = vmatprep.subr.mxu0 0.0
      %6999 = vmatpush1.msra.mxu0 0.0
      %7000 = vmatprep.subr.mxu0 0.0
      %7001 = vmatpush1.msra.mxu0 0.0
      %7002 = vmatprep.subr.mxu0 0.0
      %7003 = vmatpush1.msra.mxu0 0.0
      %7004 = vmatprep.subr.mxu0 0.0
      %7005 = vmatpush1.msra.mxu0 0.0
      %7006 = vmatprep.subr.mxu0 0.0
      %7007 = vmatpush1.msra.mxu0 0.0
      %7008 = vmatprep.subr.mxu0 0.0
      %7009 = vmatpush1.msra.mxu0 0.0
      %7010 = vmatprep.subr.mxu0 0.0
      %7011 = vmatpush1.msra.mxu0 0.0
      %7012 = vmatprep.subr.mxu0 0.0
      %7013 = vmatpush1.msra.mxu0 0.0
      %7014 = vmatprep.subr.mxu0 0.0
      %7015 = vmatpush1.msra.mxu0 0.0
      %7016 = vmatprep.subr.mxu0 0.0
      %7017 = vmatpush1.msra.mxu0 0.0
      %7018 = vmatprep.subr.mxu0 0.0
      %7019 = vmatpush1.msra.mxu0 0.0
      %7020 = vmatprep.subr.mxu0 0.0
      %7021 = vmatpush1.msra.mxu0 0.0
      %7022 = vmatprep.subr.mxu0 0.0
      %7023 = vmatpush1.msra.mxu0 0.0
      %7024 = vmatprep.subr.mxu0 0.0
      %7025 = vmatpush1.msra.mxu0 0.0
      %7026 = vmatprep.subr.mxu0 0.0
      %7027 = vmatpush1.msra.mxu0 0.0
      %7028 = vmatprep.subr.mxu0 0.0
      %7029 = vmatpush1.msra.mxu0 0.0
      %7030 = vmatprep.subr.mxu0 0.0
      %7031 = vmatpush1.msra.mxu0 0.0
      %7032 = vmatprep.subr.mxu0 0.0
      %7033 = vmatpush1.msra.mxu0 0.0
      %7034 = vmatprep.subr.mxu0 0.0
      %7035 = vmatpush1.msra.mxu0 0.0
      %7036 = vmatprep.subr.mxu0 0.0
      %7037 = vmatpush1.msra.mxu0 0.0
      %7038 = vmatprep.subr.mxu0 0.0
      %7039 = vmatpush1.msra.mxu0 0.0
      %7040 = vmatprep.subr.mxu0 0.0
      %7041 = vmatpush1.msra.mxu0 0.0
      %7042 = vmatprep.subr.mxu0 0.0
      %7043 = vmatpush1.msra.mxu0 0.0
      %7044 = vmatprep.subr.mxu0 0.0
      %7045 = vmatpush1.msra.mxu0 0.0
      %7046 = vmatprep.mubr.f32.mxu0 0.0
      %7047 = vmatmul.mubr.f32.gmra.mrb[0].mxu0 %v6977
      %v7048 = vpop.f32.mrb[0].mxu0
      %v7049 = vadd.f32 0.0, %v7048
      %v7050 = vpop.f32.mrb[0].mxu0
      %v7051 = vadd.f32 0.0, %v7050
      %7052 = vmatprep.mubr.f32.mxu0 0.0
      %7053 = vmatmul.mubr.f32.gmra.mrb[0].mxu0 %v6980
      %v7054 = vpop.f32.mrb[0].mxu0
      %v7055 = vadd.f32 0.0, %v7054
      %v7056 = vpop.f32.mrb[0].mxu0
      %v7057 = vadd.f32 0.0, %v7056
      %7058 = vdwg.mxu0
      %s7059 = scalar_lea.vmem %s5, 96
      %v7060 = vld [vmem:[%s7059] sm:$0xff]
      %s7061 = scalar_lea.vmem %s6, 96
      %v7062 = vld [vmem:[%s7061] sm:$0xff]
      %s7063 = scalar_lea.vmem %s7, 96
      %v7064 = vld [vmem:[%s7063] sm:$0xff]
      %s7065 = scalar_lea.vmem %s8, 96
      %v7066 = vld [vmem:[%s7065] sm:$0xff]
      %s7067 = scalar_lea.vmem %s9, 96
      %v7068 = vld [vmem:[%s7067] sm:$0xff]
      %s7069 = scalar_lea.vmem %s10, 96
      %v7070 = vld [vmem:[%s7069] sm:$0xff]
      %v7071 = vmul.f32 %v7055, %v469
      %v7072 = vmul.f32 %v7057, %v467
      %v7073 = vmul.f32 %v7055, %v490
      %v7074 = vmul.f32 %v7057, %v488
      %v7075 = vmul.f32 %v7055, %v502
      %v7076 = vmul.f32 %v7057, %v500
      %v7077 = vmul.f32 %v7055, %v510
      %v7078 = vmul.f32 %v7057, %v514
      %v7079 = vmul.f32 %v7055, %v522
      %v7080 = vmul.f32 %v7057, %v526
      %v7081 = vmul.f32 %v7055, %v534
      %v7082 = vmul.f32 %v7057, %v538
      %7085 = vrot.lane.b32.xlu0 %v7055, 127
      %v7086 = vpop.permute.xlu0 %7085
      %7087 = vrot.lane.b32.xlu0 %v7057, 127
      %v7088 = vpop.permute.xlu0 %7087
      %v7089 = vsel %vm501, %v549, %v7086
      %v7090 = vsel %vm501, %v7086, %v7088
      %7093 = vrot.lane.b32.xlu0 %v7073, 126
      %v7094 = vpop.permute.xlu0 %7093
      %7095 = vrot.lane.b32.xlu0 %v7074, 126
      %v7096 = vpop.permute.xlu0 %7095
      %v7097 = vsel %vm565, %v560, %v7094
      %v7098 = vsel %vm565, %v7094, %v7096
      %7101 = vrot.lane.b32.xlu0 %v7075, 112
      %v7102 = vpop.permute.xlu0 %7101
      %7103 = vrot.lane.b32.xlu0 %v7076, 112
      %v7104 = vpop.permute.xlu0 %7103
      %v7105 = vsel %vm577, %v572, %v7102
      %v7106 = vsel %vm577, %v7102, %v7104
      %7107 = vrot.lane.b32.xlu0 %v7055, 111
      %v7108 = vpop.permute.xlu0 %7107
      %7109 = vrot.lane.b32.xlu0 %v7057, 111
      %v7110 = vpop.permute.xlu0 %7109
      %v7111 = vsel %vm468, %v7108, %v7110
      %7114 = vrot.lane.b32.xlu0 %v7077, 110
      %v7115 = vpop.permute.xlu0 %7114
      %7116 = vrot.lane.b32.xlu0 %v7078, 110
      %v7117 = vpop.permute.xlu0 %7116
      %v7118 = vsel %vm594, %v7115, %v7117
      %v7119 = vsel %vm594, %v7117, %v593
      %7122 = vrot.lane.b32.xlu0 %v7079, 96
      %v7123 = vpop.permute.xlu0 %7122
      %7124 = vrot.lane.b32.xlu0 %v7080, 96
      %v7125 = vpop.permute.xlu0 %7124
      %v7126 = vsel %vm606, %v7123, %v7125
      %v7127 = vsel %vm606, %v7125, %v605
      %7128 = vrot.lane.b32.xlu0 %v7055, 95
      %v7129 = vpop.permute.xlu0 %7128
      %7130 = vrot.lane.b32.xlu0 %v7057, 95
      %v7131 = vpop.permute.xlu0 %7130
      %v7132 = vsel %vm615, %v7129, %v7131
      %v7133 = vsel %vm615, %v7131, %v614
      %7136 = vrot.lane.b32.xlu0 %v7081, 94
      %v7137 = vpop.permute.xlu0 %7136
      %7138 = vrot.lane.b32.xlu0 %v7082, 94
      %v7139 = vpop.permute.xlu0 %7138
      %v7140 = vsel %vm627, %v7137, %v7139
      %v7141 = vsel %vm627, %v7139, %v626
      %7143 = vset.pattern.permute.xlu0 0
      %7144 = vperm.xlu0 %7143, %v7062
      %v7145 = vpop.permute.xlu0 %7144
      %7149 = vrot.lane.b32.xlu0 %v7071, 17
      %v7150 = vpop.permute.xlu0 %7149
      %7151 = vrot.lane.b32.xlu0 %v7072, 17
      %v7152 = vpop.permute.xlu0 %7151
      %7153 = vrot.lane.b32.xlu0 %v7089, 17
      %v7154 = vpop.permute.xlu0 %7153
      %7155 = vrot.lane.b32.xlu0 %v7090, 17
      %v7156 = vpop.permute.xlu0 %7155
      %7157 = vrot.lane.b32.xlu0 %v7088, 17
      %v7158 = vpop.permute.xlu0 %7157
      %7159 = vrot.lane.b32.xlu0 %v7097, 17
      %v7160 = vpop.permute.xlu0 %7159
      %7161 = vrot.lane.b32.xlu0 %v7098, 17
      %v7162 = vpop.permute.xlu0 %7161
      %7163 = vrot.lane.b32.xlu0 %v7096, 17
      %v7164 = vpop.permute.xlu0 %7163
      %7165 = vrot.lane.b32.xlu0 %v7105, 17
      %v7166 = vpop.permute.xlu0 %7165
      %7167 = vrot.lane.b32.xlu0 %v7106, 17
      %v7168 = vpop.permute.xlu0 %7167
      %7169 = vrot.lane.b32.xlu0 %v7104, 17
      %v7170 = vpop.permute.xlu0 %7169
      %7171 = vrot.lane.b32.xlu0 %v7108, 17
      %v7172 = vpop.permute.xlu0 %7171
      %7173 = vrot.lane.b32.xlu0 %v7111, 17
      %v7174 = vpop.permute.xlu0 %7173
      %7175 = vrot.lane.b32.xlu0 %v7110, 17
      %v7176 = vpop.permute.xlu0 %7175
      %7177 = vrot.lane.b32.xlu0 %v7115, 17
      %v7178 = vpop.permute.xlu0 %7177
      %7179 = vrot.lane.b32.xlu0 %v7118, 17
      %v7180 = vpop.permute.xlu0 %7179
      %7181 = vrot.lane.b32.xlu0 %v7119, 17
      %v7182 = vpop.permute.xlu0 %7181
      %7183 = vrot.lane.b32.xlu0 %v7123, 17
      %v7184 = vpop.permute.xlu0 %7183
      %7185 = vrot.lane.b32.xlu0 %v7126, 17
      %v7186 = vpop.permute.xlu0 %7185
      %7187 = vrot.lane.b32.xlu0 %v7127, 17
      %v7188 = vpop.permute.xlu0 %7187
      %7189 = vrot.lane.b32.xlu0 %v7129, 17
      %v7190 = vpop.permute.xlu0 %7189
      %7191 = vrot.lane.b32.xlu0 %v7132, 17
      %v7192 = vpop.permute.xlu0 %7191
      %7193 = vrot.lane.b32.xlu0 %v7133, 17
      %v7194 = vpop.permute.xlu0 %7193
      %7195 = vrot.lane.b32.xlu0 %v7137, 17
      %v7196 = vpop.permute.xlu0 %7195
      %7197 = vrot.lane.b32.xlu0 %v7140, 17
      %v7198 = vpop.permute.xlu0 %7197
      %7199 = vrot.lane.b32.xlu0 %v7141, 17
      %v7200 = vpop.permute.xlu0 %7199
      %v7201 = vsel %vm537, %v644, %v7150
      %v7202 = vsel %vm537, %v7150, %v7152
      %v7203 = vsel %vm537, %v7154, %v7156
      %v7204 = vsel %vm537, %v7156, %v7158
      %v7205 = vsel %vm537, %v7160, %v7162
      %v7206 = vsel %vm537, %v7162, %v7164
      %v7207 = vsel %vm537, %v7166, %v7168
      %v7208 = vsel %vm537, %v7168, %v7170
      %v7209 = vsel %vm537, %v7172, %v7174
      %v7210 = vsel %vm537, %v7174, %v7176
      %v7211 = vsel %vm537, %v7178, %v7180
      %v7212 = vsel %vm537, %v7180, %v7182
      %v7213 = vsel %vm537, %v7184, %v7186
      %v7214 = vsel %vm537, %v7186, %v7188
      %v7215 = vsel %vm537, %v7190, %v7192
      %v7216 = vsel %vm537, %v7192, %v7194
      %v7217 = vsel %vm537, %v7196, %v7198
      %v7218 = vsel %vm537, %v7198, %v7200
      %v7238 = vsel %vm733, %v7060, 0
      %7240 = vmatprep.subr.mxu0 %v7202
      %7241 = vmatpush1.msra.mxu0 %v7201
      %7242 = vmatprep.subr.mxu0 %v7204
      %7243 = vmatpush1.msra.mxu0 %v7203
      %7244 = vmatprep.subr.mxu0 %v7206
      %7245 = vmatpush1.msra.mxu0 %v7205
      %7246 = vmatprep.subr.mxu0 %v7208
      %7247 = vmatpush1.msra.mxu0 %v7207
      %7248 = vmatprep.subr.mxu0 %v7210
      %7249 = vmatpush1.msra.mxu0 %v7209
      %7250 = vmatprep.subr.mxu0 %v7212
      %7251 = vmatpush1.msra.mxu0 %v7211
      %7252 = vmatprep.subr.mxu0 %v7214
      %7253 = vmatpush1.msra.mxu0 %v7213
      %7254 = vmatprep.subr.mxu0 %v7216
      %7255 = vmatpush1.msra.mxu0 %v7215
      %7256 = vmatprep.subr.mxu0 %v7218
      %7257 = vmatpush1.msra.mxu0 %v7217
      %7258 = vmatprep.subr.mxu0 0.0
      %7259 = vmatpush1.msra.mxu0 0.0
      %7260 = vmatprep.subr.mxu0 0.0
      %7261 = vmatpush1.msra.mxu0 0.0
      %7262 = vmatprep.subr.mxu0 0.0
      %7263 = vmatpush1.msra.mxu0 0.0
      %7264 = vmatprep.subr.mxu0 0.0
      %7265 = vmatpush1.msra.mxu0 0.0
      %7266 = vmatprep.subr.mxu0 0.0
      %7267 = vmatpush1.msra.mxu0 0.0
      %7268 = vmatprep.subr.mxu0 0.0
      %7269 = vmatpush1.msra.mxu0 0.0
      %7270 = vmatprep.subr.mxu0 0.0
      %7271 = vmatpush1.msra.mxu0 0.0
      %7272 = vmatprep.subr.mxu0 0.0
      %7273 = vmatpush1.msra.mxu0 0.0
      %7274 = vmatprep.subr.mxu0 0.0
      %7275 = vmatpush1.msra.mxu0 0.0
      %7276 = vmatprep.subr.mxu0 0.0
      %7277 = vmatpush1.msra.mxu0 0.0
      %7278 = vmatprep.subr.mxu0 0.0
      %7279 = vmatpush1.msra.mxu0 0.0
      %7280 = vmatprep.subr.mxu0 0.0
      %7281 = vmatpush1.msra.mxu0 0.0
      %7282 = vmatprep.subr.mxu0 0.0
      %7283 = vmatpush1.msra.mxu0 0.0
      %7284 = vmatprep.subr.mxu0 0.0
      %7285 = vmatpush1.msra.mxu0 0.0
      %7286 = vmatprep.subr.mxu0 0.0
      %7287 = vmatpush1.msra.mxu0 0.0
      %7288 = vmatprep.subr.mxu0 0.0
      %7289 = vmatpush1.msra.mxu0 0.0
      %7290 = vmatprep.subr.mxu0 0.0
      %7291 = vmatpush1.msra.mxu0 0.0
      %7292 = vmatprep.subr.mxu0 0.0
      %7293 = vmatpush1.msra.mxu0 0.0
      %7294 = vmatprep.subr.mxu0 0.0
      %7295 = vmatpush1.msra.mxu0 0.0
      %7296 = vmatprep.subr.mxu0 0.0
      %7297 = vmatpush1.msra.mxu0 0.0
      %7298 = vmatprep.subr.mxu0 0.0
      %7299 = vmatpush1.msra.mxu0 0.0
      %7300 = vmatprep.subr.mxu0 0.0
      %7301 = vmatpush1.msra.mxu0 0.0
      %7302 = vmatprep.subr.mxu0 0.0
      %7303 = vmatpush1.msra.mxu0 0.0
      %7304 = vmatprep.mubr.f32.mxu0 0.0
      %7305 = vmatmul.mubr.f32.gmra.mrb[0].mxu0 %v7238
      %v7306 = vpop.f32.mrb[0].mxu0
      %v7307 = vadd.f32 %v7145, %v7306
      %v7308 = vpop.f32.mrb[0].mxu0
      %v7309 = vadd.f32 %v7145, %v7308
      %7310 = vdwg.mxu0
      %v7311 = vadd.f32 %v7307, %v7309
      %7312 = vadd.xlane.f32.xlu0 %v7311
      %v7313 = vpop.xlane.xlu0 %7312
      %v7314 = vmul.f32 %v7313, %v1152
      %v7315 = vmul.f32 %v7307, %v7307
      %v7316 = vmul.f32 %v7309, %v7309
      %v7317 = vadd.f32 %v7315, %v7316
      %7318 = vadd.xlane.f32.xlu0 %v7317
      %v7319 = vpop.xlane.xlu0 %7318
      %v7320 = vmul.f32 %v7319, %v1152
      %v7321 = vmul.f32 %v7314, %v7314
      %v7322 = vsub.f32 %v7320, %v7321
      %v7323 = vmax.f32 %v7322, 0.0
      %v7324 = vsub.f32 %v7307, %v7314
      %v7325 = vsub.f32 %v7309, %v7314
      %v7326 = vadd.f32 %v7323, 1e-05
      %v7327 = vrsqrt.pop %v7326
      %v7328 = vmul.f32 %v7324, %v7327
      %v7329 = vmul.f32 %v7325, %v7327
      %7331 = vset.pattern.permute.xlu0 0
      %7332 = vperm.xlu0 %7331, %v7064
      %v7333 = vpop.permute.xlu0 %7332
      %v7335 = vmul.f32 %v7328, %v7333
      %v7336 = vmul.f32 %v7329, %v7333
      %7338 = vset.pattern.permute.xlu0 0
      %7339 = vperm.xlu0 %7338, %v7066
      %v7340 = vpop.permute.xlu0 %7339
      %v7342 = vadd.f32 %v7335, %v7340
      %v7343 = vadd.f32 %v7336, %v7340
      %v7344 = vmul.f32 %v7342, %v448
      %v7345 = vmul.f32 %v7343, %v448
      %v7346 = vmul.f32 %v7307, %v1185
      %v7347 = vmul.f32 %v7309, %v1185
      %v7348 = vadd.f32 %v7344, %v7346
      %v7349 = vadd.f32 %v7345, %v7347
      %v7350 = vmul.f32 %v7348, %v469
      %v7351 = vmul.f32 %v7349, %v467
      %v7352 = vmul.f32 %v7348, %v490
      %v7353 = vmul.f32 %v7349, %v488
      %v7354 = vmul.f32 %v7348, %v502
      %v7355 = vmul.f32 %v7349, %v500
      %v7356 = vmul.f32 %v7348, %v510
      %v7357 = vmul.f32 %v7349, %v514
      %v7358 = vmul.f32 %v7348, %v522
      %v7359 = vmul.f32 %v7349, %v526
      %v7360 = vmul.f32 %v7348, %v534
      %v7361 = vmul.f32 %v7349, %v538
      %7364 = vrot.lane.b32.xlu0 %v7348, 127
      %v7365 = vpop.permute.xlu0 %7364
      %7366 = vrot.lane.b32.xlu0 %v7349, 127
      %v7367 = vpop.permute.xlu0 %7366
      %v7368 = vsel %vm501, %v549, %v7365
      %v7369 = vsel %vm501, %v7365, %v7367
      %7372 = vrot.lane.b32.xlu0 %v7352, 126
      %v7373 = vpop.permute.xlu0 %7372
      %7374 = vrot.lane.b32.xlu0 %v7353, 126
      %v7375 = vpop.permute.xlu0 %7374
      %v7376 = vsel %vm565, %v560, %v7373
      %v7377 = vsel %vm565, %v7373, %v7375
      %7380 = vrot.lane.b32.xlu0 %v7354, 112
      %v7381 = vpop.permute.xlu0 %7380
      %7382 = vrot.lane.b32.xlu0 %v7355, 112
      %v7383 = vpop.permute.xlu0 %7382
      %v7384 = vsel %vm577, %v572, %v7381
      %v7385 = vsel %vm577, %v7381, %v7383
      %7386 = vrot.lane.b32.xlu0 %v7348, 111
      %v7387 = vpop.permute.xlu0 %7386
      %7388 = vrot.lane.b32.xlu0 %v7349, 111
      %v7389 = vpop.permute.xlu0 %7388
      %v7390 = vsel %vm468, %v7387, %v7389
      %7393 = vrot.lane.b32.xlu0 %v7356, 110
      %v7394 = vpop.permute.xlu0 %7393
      %7395 = vrot.lane.b32.xlu0 %v7357, 110
      %v7396 = vpop.permute.xlu0 %7395
      %v7397 = vsel %vm594, %v7394, %v7396
      %v7398 = vsel %vm594, %v7396, %v593
      %7401 = vrot.lane.b32.xlu0 %v7358, 96
      %v7402 = vpop.permute.xlu0 %7401
      %7403 = vrot.lane.b32.xlu0 %v7359, 96
      %v7404 = vpop.permute.xlu0 %7403
      %v7405 = vsel %vm606, %v7402, %v7404
      %v7406 = vsel %vm606, %v7404, %v605
      %7407 = vrot.lane.b32.xlu0 %v7348, 95
      %v7408 = vpop.permute.xlu0 %7407
      %7409 = vrot.lane.b32.xlu0 %v7349, 95
      %v7410 = vpop.permute.xlu0 %7409
      %v7411 = vsel %vm615, %v7408, %v7410
      %v7412 = vsel %vm615, %v7410, %v614
      %7415 = vrot.lane.b32.xlu0 %v7360, 94
      %v7416 = vpop.permute.xlu0 %7415
      %7417 = vrot.lane.b32.xlu0 %v7361, 94
      %v7418 = vpop.permute.xlu0 %7417
      %v7419 = vsel %vm627, %v7416, %v7418
      %v7420 = vsel %vm627, %v7418, %v626
      %7422 = vset.pattern.permute.xlu0 0
      %7423 = vperm.xlu0 %7422, %v7070
      %v7424 = vpop.permute.xlu0 %7423
      %7428 = vrot.lane.b32.xlu0 %v7350, 17
      %v7429 = vpop.permute.xlu0 %7428
      %7430 = vrot.lane.b32.xlu0 %v7351, 17
      %v7431 = vpop.permute.xlu0 %7430
      %7432 = vrot.lane.b32.xlu0 %v7368, 17
      %v7433 = vpop.permute.xlu0 %7432
      %7434 = vrot.lane.b32.xlu0 %v7369, 17
      %v7435 = vpop.permute.xlu0 %7434
      %7436 = vrot.lane.b32.xlu0 %v7367, 17
      %v7437 = vpop.permute.xlu0 %7436
      %7438 = vrot.lane.b32.xlu0 %v7376, 17
      %v7439 = vpop.permute.xlu0 %7438
      %7440 = vrot.lane.b32.xlu0 %v7377, 17
      %v7441 = vpop.permute.xlu0 %7440
      %7442 = vrot.lane.b32.xlu0 %v7375, 17
      %v7443 = vpop.permute.xlu0 %7442
      %7444 = vrot.lane.b32.xlu0 %v7384, 17
      %v7445 = vpop.permute.xlu0 %7444
      %7446 = vrot.lane.b32.xlu0 %v7385, 17
      %v7447 = vpop.permute.xlu0 %7446
      %7448 = vrot.lane.b32.xlu0 %v7383, 17
      %v7449 = vpop.permute.xlu0 %7448
      %7450 = vrot.lane.b32.xlu0 %v7387, 17
      %v7451 = vpop.permute.xlu0 %7450
      %7452 = vrot.lane.b32.xlu0 %v7390, 17
      %v7453 = vpop.permute.xlu0 %7452
      %7454 = vrot.lane.b32.xlu0 %v7389, 17
      %v7455 = vpop.permute.xlu0 %7454
      %7456 = vrot.lane.b32.xlu0 %v7394, 17
      %v7457 = vpop.permute.xlu0 %7456
      %7458 = vrot.lane.b32.xlu0 %v7397, 17
      %v7459 = vpop.permute.xlu0 %7458
      %7460 = vrot.lane.b32.xlu0 %v7398, 17
      %v7461 = vpop.permute.xlu0 %7460
      %7462 = vrot.lane.b32.xlu0 %v7402, 17
      %v7463 = vpop.permute.xlu0 %7462
      %7464 = vrot.lane.b32.xlu0 %v7405, 17
      %v7465 = vpop.permute.xlu0 %7464
      %7466 = vrot.lane.b32.xlu0 %v7406, 17
      %v7467 = vpop.permute.xlu0 %7466
      %7468 = vrot.lane.b32.xlu0 %v7408, 17
      %v7469 = vpop.permute.xlu0 %7468
      %7470 = vrot.lane.b32.xlu0 %v7411, 17
      %v7471 = vpop.permute.xlu0 %7470
      %7472 = vrot.lane.b32.xlu0 %v7412, 17
      %v7473 = vpop.permute.xlu0 %7472
      %7474 = vrot.lane.b32.xlu0 %v7416, 17
      %v7475 = vpop.permute.xlu0 %7474
      %7476 = vrot.lane.b32.xlu0 %v7419, 17
      %v7477 = vpop.permute.xlu0 %7476
      %7478 = vrot.lane.b32.xlu0 %v7420, 17
      %v7479 = vpop.permute.xlu0 %7478
      %v7480 = vsel %vm537, %v644, %v7429
      %v7481 = vsel %vm537, %v7429, %v7431
      %v7482 = vsel %vm537, %v7433, %v7435
      %v7483 = vsel %vm537, %v7435, %v7437
      %v7484 = vsel %vm537, %v7439, %v7441
      %v7485 = vsel %vm537, %v7441, %v7443
      %v7486 = vsel %vm537, %v7445, %v7447
      %v7487 = vsel %vm537, %v7447, %v7449
      %v7488 = vsel %vm537, %v7451, %v7453
      %v7489 = vsel %vm537, %v7453, %v7455
      %v7490 = vsel %vm537, %v7457, %v7459
      %v7491 = vsel %vm537, %v7459, %v7461
      %v7492 = vsel %vm537, %v7463, %v7465
      %v7493 = vsel %vm537, %v7465, %v7467
      %v7494 = vsel %vm537, %v7469, %v7471
      %v7495 = vsel %vm537, %v7471, %v7473
      %v7496 = vsel %vm537, %v7475, %v7477
      %v7497 = vsel %vm537, %v7477, %v7479
      %v7517 = vsel %vm733, %v7068, 0
      %7519 = vmatprep.subr.mxu0 %v7481
      %7520 = vmatpush1.msra.mxu0 %v7480
      %7521 = vmatprep.subr.mxu0 %v7483
      %7522 = vmatpush1.msra.mxu0 %v7482
      %7523 = vmatprep.subr.mxu0 %v7485
      %7524 = vmatpush1.msra.mxu0 %v7484
      %7525 = vmatprep.subr.mxu0 %v7487
      %7526 = vmatpush1.msra.mxu0 %v7486
      %7527 = vmatprep.subr.mxu0 %v7489
      %7528 = vmatpush1.msra.mxu0 %v7488
      %7529 = vmatprep.subr.mxu0 %v7491
      %7530 = vmatpush1.msra.mxu0 %v7490
      %7531 = vmatprep.subr.mxu0 %v7493
      %7532 = vmatpush1.msra.mxu0 %v7492
      %7533 = vmatprep.subr.mxu0 %v7495
      %7534 = vmatpush1.msra.mxu0 %v7494
      %7535 = vmatprep.subr.mxu0 %v7497
      %7536 = vmatpush1.msra.mxu0 %v7496
      %7537 = vmatprep.subr.mxu0 0.0
      %7538 = vmatpush1.msra.mxu0 0.0
      %7539 = vmatprep.subr.mxu0 0.0
      %7540 = vmatpush1.msra.mxu0 0.0
      %7541 = vmatprep.subr.mxu0 0.0
      %7542 = vmatpush1.msra.mxu0 0.0
      %7543 = vmatprep.subr.mxu0 0.0
      %7544 = vmatpush1.msra.mxu0 0.0
      %7545 = vmatprep.subr.mxu0 0.0
      %7546 = vmatpush1.msra.mxu0 0.0
      %7547 = vmatprep.subr.mxu0 0.0
      %7548 = vmatpush1.msra.mxu0 0.0
      %7549 = vmatprep.subr.mxu0 0.0
      %7550 = vmatpush1.msra.mxu0 0.0
      %7551 = vmatprep.subr.mxu0 0.0
      %7552 = vmatpush1.msra.mxu0 0.0
      %7553 = vmatprep.subr.mxu0 0.0
      %7554 = vmatpush1.msra.mxu0 0.0
      %7555 = vmatprep.subr.mxu0 0.0
      %7556 = vmatpush1.msra.mxu0 0.0
      %7557 = vmatprep.subr.mxu0 0.0
      %7558 = vmatpush1.msra.mxu0 0.0
      %7559 = vmatprep.subr.mxu0 0.0
      %7560 = vmatpush1.msra.mxu0 0.0
      %7561 = vmatprep.subr.mxu0 0.0
      %7562 = vmatpush1.msra.mxu0 0.0
      %7563 = vmatprep.subr.mxu0 0.0
      %7564 = vmatpush1.msra.mxu0 0.0
      %7565 = vmatprep.subr.mxu0 0.0
      %7566 = vmatpush1.msra.mxu0 0.0
      %7567 = vmatprep.subr.mxu0 0.0
      %7568 = vmatpush1.msra.mxu0 0.0
      %7569 = vmatprep.subr.mxu0 0.0
      %7570 = vmatpush1.msra.mxu0 0.0
      %7571 = vmatprep.subr.mxu0 0.0
      %7572 = vmatpush1.msra.mxu0 0.0
      %7573 = vmatprep.subr.mxu0 0.0
      %7574 = vmatpush1.msra.mxu0 0.0
      %7575 = vmatprep.subr.mxu0 0.0
      %7576 = vmatpush1.msra.mxu0 0.0
      %7577 = vmatprep.subr.mxu0 0.0
      %7578 = vmatpush1.msra.mxu0 0.0
      %7579 = vmatprep.subr.mxu0 0.0
      %7580 = vmatpush1.msra.mxu0 0.0
      %7581 = vmatprep.subr.mxu0 0.0
      %7582 = vmatpush1.msra.mxu0 0.0
      %7583 = vmatprep.mubr.f32.mxu0 0.0
      %7584 = vmatmul.mubr.f32.gmra.mrb[0].mxu0 %v7517
      %v7585 = vpop.f32.mrb[0].mxu0
      %v7586 = vadd.f32 %v7424, %v7585
      %v7587 = vpop.f32.mrb[0].mxu0
      %v7588 = vadd.f32 %v7424, %v7587
      %7589 = vdwg.mxu0
      %v7590 = vadd.f32 %v7055, %v7586
      %v7591 = vadd.f32 %v7057, %v7588
      %v7592 = vadd.f32 %v7049, %v7590
      %v7593 = vadd.f32 %v7051, %v7591
      %s7594 = scalar_lea.vmem %s5, 104
      %v7595 = vld [vmem:[%s7594] sm:$0xff]
      %s7596 = scalar_lea.vmem %s6, 104
      %v7597 = vld [vmem:[%s7596] sm:$0xff]
      %s7598 = scalar_lea.vmem %s7, 104
      %v7599 = vld [vmem:[%s7598] sm:$0xff]
      %s7600 = scalar_lea.vmem %s8, 104
      %v7601 = vld [vmem:[%s7600] sm:$0xff]
      %s7602 = scalar_lea.vmem %s9, 104
      %v7603 = vld [vmem:[%s7602] sm:$0xff]
      %s7604 = scalar_lea.vmem %s10, 104
      %v7605 = vld [vmem:[%s7604] sm:$0xff]
      %v7606 = vmul.f32 %v7592, %v469
      %v7607 = vmul.f32 %v7593, %v467
      %v7608 = vmul.f32 %v7592, %v490
      %v7609 = vmul.f32 %v7593, %v488
      %v7610 = vmul.f32 %v7592, %v502
      %v7611 = vmul.f32 %v7593, %v500
      %v7612 = vmul.f32 %v7592, %v510
      %v7613 = vmul.f32 %v7593, %v514
      %v7614 = vmul.f32 %v7592, %v522
      %v7615 = vmul.f32 %v7593, %v526
      %v7616 = vmul.f32 %v7592, %v534
      %v7617 = vmul.f32 %v7593, %v538
      %7620 = vrot.lane.b32.xlu0 %v7592, 127
      %v7621 = vpop.permute.xlu0 %7620
      %7622 = vrot.lane.b32.xlu0 %v7593, 127
      %v7623 = vpop.permute.xlu0 %7622
      %v7624 = vsel %vm501, %v549, %v7621
      %v7625 = vsel %vm501, %v7621, %v7623
      %7628 = vrot.lane.b32.xlu0 %v7608, 126
      %v7629 = vpop.permute.xlu0 %7628
      %7630 = vrot.lane.b32.xlu0 %v7609, 126
      %v7631 = vpop.permute.xlu0 %7630
      %v7632 = vsel %vm565, %v560, %v7629
      %v7633 = vsel %vm565, %v7629, %v7631
      %7636 = vrot.lane.b32.xlu0 %v7610, 112
      %v7637 = vpop.permute.xlu0 %7636
      %7638 = vrot.lane.b32.xlu0 %v7611, 112
      %v7639 = vpop.permute.xlu0 %7638
      %v7640 = vsel %vm577, %v572, %v7637
      %v7641 = vsel %vm577, %v7637, %v7639
      %7642 = vrot.lane.b32.xlu0 %v7592, 111
      %v7643 = vpop.permute.xlu0 %7642
      %7644 = vrot.lane.b32.xlu0 %v7593, 111
      %v7645 = vpop.permute.xlu0 %7644
      %v7646 = vsel %vm468, %v7643, %v7645
      %7649 = vrot.lane.b32.xlu0 %v7612, 110
      %v7650 = vpop.permute.xlu0 %7649
      %7651 = vrot.lane.b32.xlu0 %v7613, 110
      %v7652 = vpop.permute.xlu0 %7651
      %v7653 = vsel %vm594, %v7650, %v7652
      %v7654 = vsel %vm594, %v7652, %v593
      %7657 = vrot.lane.b32.xlu0 %v7614, 96
      %v7658 = vpop.permute.xlu0 %7657
      %7659 = vrot.lane.b32.xlu0 %v7615, 96
      %v7660 = vpop.permute.xlu0 %7659
      %v7661 = vsel %vm606, %v7658, %v7660
      %v7662 = vsel %vm606, %v7660, %v605
      %7663 = vrot.lane.b32.xlu0 %v7592, 95
      %v7664 = vpop.permute.xlu0 %7663
      %7665 = vrot.lane.b32.xlu0 %v7593, 95
      %v7666 = vpop.permute.xlu0 %7665
      %v7667 = vsel %vm615, %v7664, %v7666
      %v7668 = vsel %vm615, %v7666, %v614
      %7671 = vrot.lane.b32.xlu0 %v7616, 94
      %v7672 = vpop.permute.xlu0 %7671
      %7673 = vrot.lane.b32.xlu0 %v7617, 94
      %v7674 = vpop.permute.xlu0 %7673
      %v7675 = vsel %vm627, %v7672, %v7674
      %v7676 = vsel %vm627, %v7674, %v626
      %7678 = vset.pattern.permute.xlu0 0
      %7679 = vperm.xlu0 %7678, %v7597
      %v7680 = vpop.permute.xlu0 %7679
      %7684 = vrot.lane.b32.xlu0 %v7606, 17
      %v7685 = vpop.permute.xlu0 %7684
      %7686 = vrot.lane.b32.xlu0 %v7607, 17
      %v7687 = vpop.permute.xlu0 %7686
      %7688 = vrot.lane.b32.xlu0 %v7624, 17
      %v7689 = vpop.permute.xlu0 %7688
      %7690 = vrot.lane.b32.xlu0 %v7625, 17
      %v7691 = vpop.permute.xlu0 %7690
      %7692 = vrot.lane.b32.xlu0 %v7623, 17
      %v7693 = vpop.permute.xlu0 %7692
      %7694 = vrot.lane.b32.xlu0 %v7632, 17
      %v7695 = vpop.permute.xlu0 %7694
      %7696 = vrot.lane.b32.xlu0 %v7633, 17
      %v7697 = vpop.permute.xlu0 %7696
      %7698 = vrot.lane.b32.xlu0 %v7631, 17
      %v7699 = vpop.permute.xlu0 %7698
      %7700 = vrot.lane.b32.xlu0 %v7640, 17
      %v7701 = vpop.permute.xlu0 %7700
      %7702 = vrot.lane.b32.xlu0 %v7641, 17
      %v7703 = vpop.permute.xlu0 %7702
      %7704 = vrot.lane.b32.xlu0 %v7639, 17
      %v7705 = vpop.permute.xlu0 %7704
      %7706 = vrot.lane.b32.xlu0 %v7643, 17
      %v7707 = vpop.permute.xlu0 %7706
      %7708 = vrot.lane.b32.xlu0 %v7646, 17
      %v7709 = vpop.permute.xlu0 %7708
      %7710 = vrot.lane.b32.xlu0 %v7645, 17
      %v7711 = vpop.permute.xlu0 %7710
      %7712 = vrot.lane.b32.xlu0 %v7650, 17
      %v7713 = vpop.permute.xlu0 %7712
      %7714 = vrot.lane.b32.xlu0 %v7653, 17
      %v7715 = vpop.permute.xlu0 %7714
      %7716 = vrot.lane.b32.xlu0 %v7654, 17
      %v7717 = vpop.permute.xlu0 %7716
      %7718 = vrot.lane.b32.xlu0 %v7658, 17
      %v7719 = vpop.permute.xlu0 %7718
      %7720 = vrot.lane.b32.xlu0 %v7661, 17
      %v7721 = vpop.permute.xlu0 %7720
      %7722 = vrot.lane.b32.xlu0 %v7662, 17
      %v7723 = vpop.permute.xlu0 %7722
      %7724 = vrot.lane.b32.xlu0 %v7664, 17
      %v7725 = vpop.permute.xlu0 %7724
      %7726 = vrot.lane.b32.xlu0 %v7667, 17
      %v7727 = vpop.permute.xlu0 %7726
      %7728 = vrot.lane.b32.xlu0 %v7668, 17
      %v7729 = vpop.permute.xlu0 %7728
      %7730 = vrot.lane.b32.xlu0 %v7672, 17
      %v7731 = vpop.permute.xlu0 %7730
      %7732 = vrot.lane.b32.xlu0 %v7675, 17
      %v7733 = vpop.permute.xlu0 %7732
      %7734 = vrot.lane.b32.xlu0 %v7676, 17
      %v7735 = vpop.permute.xlu0 %7734
      %v7736 = vsel %vm537, %v644, %v7685
      %v7737 = vsel %vm537, %v7685, %v7687
      %v7738 = vsel %vm537, %v7689, %v7691
      %v7739 = vsel %vm537, %v7691, %v7693
      %v7740 = vsel %vm537, %v7695, %v7697
      %v7741 = vsel %vm537, %v7697, %v7699
      %v7742 = vsel %vm537, %v7701, %v7703
      %v7743 = vsel %vm537, %v7703, %v7705
      %v7744 = vsel %vm537, %v7707, %v7709
      %v7745 = vsel %vm537, %v7709, %v7711
      %v7746 = vsel %vm537, %v7713, %v7715
      %v7747 = vsel %vm537, %v7715, %v7717
      %v7748 = vsel %vm537, %v7719, %v7721
      %v7749 = vsel %vm537, %v7721, %v7723
      %v7750 = vsel %vm537, %v7725, %v7727
      %v7751 = vsel %vm537, %v7727, %v7729
      %v7752 = vsel %vm537, %v7731, %v7733
      %v7753 = vsel %vm537, %v7733, %v7735
      %v7773 = vsel %vm733, %v7595, 0
      %7775 = vmatprep.subr.mxu0 %v7737
      %7776 = vmatpush1.msra.mxu0 %v7736
      %7777 = vmatprep.subr.mxu0 %v7739
      %7778 = vmatpush1.msra.mxu0 %v7738
      %7779 = vmatprep.subr.mxu0 %v7741
      %7780 = vmatpush1.msra.mxu0 %v7740
      %7781 = vmatprep.subr.mxu0 %v7743
      %7782 = vmatpush1.msra.mxu0 %v7742
      %7783 = vmatprep.subr.mxu0 %v7745
      %7784 = vmatpush1.msra.mxu0 %v7744
      %7785 = vmatprep.subr.mxu0 %v7747
      %7786 = vmatpush1.msra.mxu0 %v7746
      %7787 = vmatprep.subr.mxu0 %v7749
      %7788 = vmatpush1.msra.mxu0 %v7748
      %7789 = vmatprep.subr.mxu0 %v7751
      %7790 = vmatpush1.msra.mxu0 %v7750
      %7791 = vmatprep.subr.mxu0 %v7753
      %7792 = vmatpush1.msra.mxu0 %v7752
      %7793 = vmatprep.subr.mxu0 0.0
      %7794 = vmatpush1.msra.mxu0 0.0
      %7795 = vmatprep.subr.mxu0 0.0
      %7796 = vmatpush1.msra.mxu0 0.0
      %7797 = vmatprep.subr.mxu0 0.0
      %7798 = vmatpush1.msra.mxu0 0.0
      %7799 = vmatprep.subr.mxu0 0.0
      %7800 = vmatpush1.msra.mxu0 0.0
      %7801 = vmatprep.subr.mxu0 0.0
      %7802 = vmatpush1.msra.mxu0 0.0
      %7803 = vmatprep.subr.mxu0 0.0
      %7804 = vmatpush1.msra.mxu0 0.0
      %7805 = vmatprep.subr.mxu0 0.0
      %7806 = vmatpush1.msra.mxu0 0.0
      %7807 = vmatprep.subr.mxu0 0.0
      %7808 = vmatpush1.msra.mxu0 0.0
      %7809 = vmatprep.subr.mxu0 0.0
      %7810 = vmatpush1.msra.mxu0 0.0
      %7811 = vmatprep.subr.mxu0 0.0
      %7812 = vmatpush1.msra.mxu0 0.0
      %7813 = vmatprep.subr.mxu0 0.0
      %7814 = vmatpush1.msra.mxu0 0.0
      %7815 = vmatprep.subr.mxu0 0.0
      %7816 = vmatpush1.msra.mxu0 0.0
      %7817 = vmatprep.subr.mxu0 0.0
      %7818 = vmatpush1.msra.mxu0 0.0
      %7819 = vmatprep.subr.mxu0 0.0
      %7820 = vmatpush1.msra.mxu0 0.0
      %7821 = vmatprep.subr.mxu0 0.0
      %7822 = vmatpush1.msra.mxu0 0.0
      %7823 = vmatprep.subr.mxu0 0.0
      %7824 = vmatpush1.msra.mxu0 0.0
      %7825 = vmatprep.subr.mxu0 0.0
      %7826 = vmatpush1.msra.mxu0 0.0
      %7827 = vmatprep.subr.mxu0 0.0
      %7828 = vmatpush1.msra.mxu0 0.0
      %7829 = vmatprep.subr.mxu0 0.0
      %7830 = vmatpush1.msra.mxu0 0.0
      %7831 = vmatprep.subr.mxu0 0.0
      %7832 = vmatpush1.msra.mxu0 0.0
      %7833 = vmatprep.subr.mxu0 0.0
      %7834 = vmatpush1.msra.mxu0 0.0
      %7835 = vmatprep.subr.mxu0 0.0
      %7836 = vmatpush1.msra.mxu0 0.0
      %7837 = vmatprep.subr.mxu0 0.0
      %7838 = vmatpush1.msra.mxu0 0.0
      %7839 = vmatprep.mubr.f32.mxu0 0.0
      %7840 = vmatmul.mubr.f32.gmra.mrb[0].mxu0 %v7773
      %v7841 = vpop.f32.mrb[0].mxu0
      %v7842 = vadd.f32 %v7680, %v7841
      %v7843 = vpop.f32.mrb[0].mxu0
      %v7844 = vadd.f32 %v7680, %v7843
      %7845 = vdwg.mxu0
      %v7846 = vadd.f32 %v7842, %v7844
      %7847 = vadd.xlane.f32.xlu0 %v7846
      %v7848 = vpop.xlane.xlu0 %7847
      %v7849 = vmul.f32 %v7848, %v1152
      %v7850 = vmul.f32 %v7842, %v7842
      %v7851 = vmul.f32 %v7844, %v7844
      %v7852 = vadd.f32 %v7850, %v7851
      %7853 = vadd.xlane.f32.xlu0 %v7852
      %v7854 = vpop.xlane.xlu0 %7853
      %v7855 = vmul.f32 %v7854, %v1152
      %v7856 = vmul.f32 %v7849, %v7849
      %v7857 = vsub.f32 %v7855, %v7856
      %v7858 = vmax.f32 %v7857, 0.0
      %v7859 = vsub.f32 %v7842, %v7849
      %v7860 = vsub.f32 %v7844, %v7849
      %v7861 = vadd.f32 %v7858, 1e-05
      %v7862 = vrsqrt.pop %v7861
      %v7863 = vmul.f32 %v7859, %v7862
      %v7864 = vmul.f32 %v7860, %v7862
      %7866 = vset.pattern.permute.xlu0 0
      %7867 = vperm.xlu0 %7866, %v7599
      %v7868 = vpop.permute.xlu0 %7867
      %v7870 = vmul.f32 %v7863, %v7868
      %v7871 = vmul.f32 %v7864, %v7868
      %7873 = vset.pattern.permute.xlu0 0
      %7874 = vperm.xlu0 %7873, %v7601
      %v7875 = vpop.permute.xlu0 %7874
      %v7877 = vadd.f32 %v7870, %v7875
      %v7878 = vadd.f32 %v7871, %v7875
      %v7879 = vmul.f32 %v7877, %v448
      %v7880 = vmul.f32 %v7878, %v448
      %v7881 = vmul.f32 %v7842, %v1185
      %v7882 = vmul.f32 %v7844, %v1185
      %v7883 = vadd.f32 %v7879, %v7881
      %v7884 = vadd.f32 %v7880, %v7882
      %v7885 = vmul.f32 %v7883, %v469
      %v7886 = vmul.f32 %v7884, %v467
      %v7887 = vmul.f32 %v7883, %v490
      %v7888 = vmul.f32 %v7884, %v488
      %v7889 = vmul.f32 %v7883, %v502
      %v7890 = vmul.f32 %v7884, %v500
      %v7891 = vmul.f32 %v7883, %v510
      %v7892 = vmul.f32 %v7884, %v514
      %v7893 = vmul.f32 %v7883, %v522
      %v7894 = vmul.f32 %v7884, %v526
      %v7895 = vmul.f32 %v7883, %v534
      %v7896 = vmul.f32 %v7884, %v538
      %7899 = vrot.lane.b32.xlu0 %v7883, 127
      %v7900 = vpop.permute.xlu0 %7899
      %7901 = vrot.lane.b32.xlu0 %v7884, 127
      %v7902 = vpop.permute.xlu0 %7901
      %v7903 = vsel %vm501, %v549, %v7900
      %v7904 = vsel %vm501, %v7900, %v7902
      %7907 = vrot.lane.b32.xlu0 %v7887, 126
      %v7908 = vpop.permute.xlu0 %7907
      %7909 = vrot.lane.b32.xlu0 %v7888, 126
      %v7910 = vpop.permute.xlu0 %7909
      %v7911 = vsel %vm565, %v560, %v7908
      %v7912 = vsel %vm565, %v7908, %v7910
      %7915 = vrot.lane.b32.xlu0 %v7889, 112
      %v7916 = vpop.permute.xlu0 %7915
      %7917 = vrot.lane.b32.xlu0 %v7890, 112
      %v7918 = vpop.permute.xlu0 %7917
      %v7919 = vsel %vm577, %v572, %v7916
      %v7920 = vsel %vm577, %v7916, %v7918
      %7921 = vrot.lane.b32.xlu0 %v7883, 111
      %v7922 = vpop.permute.xlu0 %7921
      %7923 = vrot.lane.b32.xlu0 %v7884, 111
      %v7924 = vpop.permute.xlu0 %7923
      %v7925 = vsel %vm468, %v7922, %v7924
      %7928 = vrot.lane.b32.xlu0 %v7891, 110
      %v7929 = vpop.permute.xlu0 %7928
      %7930 = vrot.lane.b32.xlu0 %v7892, 110
      %v7931 = vpop.permute.xlu0 %7930
      %v7932 = vsel %vm594, %v7929, %v7931
      %v7933 = vsel %vm594, %v7931, %v593
      %7936 = vrot.lane.b32.xlu0 %v7893, 96
      %v7937 = vpop.permute.xlu0 %7936
      %7938 = vrot.lane.b32.xlu0 %v7894, 96
      %v7939 = vpop.permute.xlu0 %7938
      %v7940 = vsel %vm606, %v7937, %v7939
      %v7941 = vsel %vm606, %v7939, %v605
      %7942 = vrot.lane.b32.xlu0 %v7883, 95
      %v7943 = vpop.permute.xlu0 %7942
      %7944 = vrot.lane.b32.xlu0 %v7884, 95
      %v7945 = vpop.permute.xlu0 %7944
      %v7946 = vsel %vm615, %v7943, %v7945
      %v7947 = vsel %vm615, %v7945, %v614
      %7950 = vrot.lane.b32.xlu0 %v7895, 94
      %v7951 = vpop.permute.xlu0 %7950
      %7952 = vrot.lane.b32.xlu0 %v7896, 94
      %v7953 = vpop.permute.xlu0 %7952
      %v7954 = vsel %vm627, %v7951, %v7953
      %v7955 = vsel %vm627, %v7953, %v626
      %7957 = vset.pattern.permute.xlu0 0
      %7958 = vperm.xlu0 %7957, %v7605
      %v7959 = vpop.permute.xlu0 %7958
      %7963 = vrot.lane.b32.xlu0 %v7885, 17
      %v7964 = vpop.permute.xlu0 %7963
      %7965 = vrot.lane.b32.xlu0 %v7886, 17
      %v7966 = vpop.permute.xlu0 %7965
      %7967 = vrot.lane.b32.xlu0 %v7903, 17
      %v7968 = vpop.permute.xlu0 %7967
      %7969 = vrot.lane.b32.xlu0 %v7904, 17
      %v7970 = vpop.permute.xlu0 %7969
      %7971 = vrot.lane.b32.xlu0 %v7902, 17
      %v7972 = vpop.permute.xlu0 %7971
      %7973 = vrot.lane.b32.xlu0 %v7911, 17
      %v7974 = vpop.permute.xlu0 %7973
      %7975 = vrot.lane.b32.xlu0 %v7912, 17
      %v7976 = vpop.permute.xlu0 %7975
      %7977 = vrot.lane.b32.xlu0 %v7910, 17
      %v7978 = vpop.permute.xlu0 %7977
      %7979 = vrot.lane.b32.xlu0 %v7919, 17
      %v7980 = vpop.permute.xlu0 %7979
      %7981 = vrot.lane.b32.xlu0 %v7920, 17
      %v7982 = vpop.permute.xlu0 %7981
      %7983 = vrot.lane.b32.xlu0 %v7918, 17
      %v7984 = vpop.permute.xlu0 %7983
      %7985 = vrot.lane.b32.xlu0 %v7922, 17
      %v7986 = vpop.permute.xlu0 %7985
      %7987 = vrot.lane.b32.xlu0 %v7925, 17
      %v7988 = vpop.permute.xlu0 %7987
      %7989 = vrot.lane.b32.xlu0 %v7924, 17
      %v7990 = vpop.permute.xlu0 %7989
      %7991 = vrot.lane.b32.xlu0 %v7929, 17
      %v7992 = vpop.permute.xlu0 %7991
      %7993 = vrot.lane.b32.xlu0 %v7932, 17
      %v7994 = vpop.permute.xlu0 %7993
      %7995 = vrot.lane.b32.xlu0 %v7933, 17
      %v7996 = vpop.permute.xlu0 %7995
      %7997 = vrot.lane.b32.xlu0 %v7937, 17
      %v7998 = vpop.permute.xlu0 %7997
      %7999 = vrot.lane.b32.xlu0 %v7940, 17
      %v8000 = vpop.permute.xlu0 %7999
      %8001 = vrot.lane.b32.xlu0 %v7941, 17
      %v8002 = vpop.permute.xlu0 %8001
      %8003 = vrot.lane.b32.xlu0 %v7943, 17
      %v8004 = vpop.permute.xlu0 %8003
      %8005 = vrot.lane.b32.xlu0 %v7946, 17
      %v8006 = vpop.permute.xlu0 %8005
      %8007 = vrot.lane.b32.xlu0 %v7947, 17
      %v8008 = vpop.permute.xlu0 %8007
      %8009 = vrot.lane.b32.xlu0 %v7951, 17
      %v8010 = vpop.permute.xlu0 %8009
      %8011 = vrot.lane.b32.xlu0 %v7954, 17
      %v8012 = vpop.permute.xlu0 %8011
      %8013 = vrot.lane.b32.xlu0 %v7955, 17
      %v8014 = vpop.permute.xlu0 %8013
      %v8015 = vsel %vm537, %v644, %v7964
      %v8016 = vsel %vm537, %v7964, %v7966
      %v8017 = vsel %vm537, %v7968, %v7970
      %v8018 = vsel %vm537, %v7970, %v7972
      %v8019 = vsel %vm537, %v7974, %v7976
      %v8020 = vsel %vm537, %v7976, %v7978
      %v8021 = vsel %vm537, %v7980, %v7982
      %v8022 = vsel %vm537, %v7982, %v7984
      %v8023 = vsel %vm537, %v7986, %v7988
      %v8024 = vsel %vm537, %v7988, %v7990
      %v8025 = vsel %vm537, %v7992, %v7994
      %v8026 = vsel %vm537, %v7994, %v7996
      %v8027 = vsel %vm537, %v7998, %v8000
      %v8028 = vsel %vm537, %v8000, %v8002
      %v8029 = vsel %vm537, %v8004, %v8006
      %v8030 = vsel %vm537, %v8006, %v8008
      %v8031 = vsel %vm537, %v8010, %v8012
      %v8032 = vsel %vm537, %v8012, %v8014
      %v8052 = vsel %vm733, %v7603, 0
      %8054 = vmatprep.subr.mxu0 %v8016
      %8055 = vmatpush1.msra.mxu0 %v8015
      %8056 = vmatprep.subr.mxu0 %v8018
      %8057 = vmatpush1.msra.mxu0 %v8017
      %8058 = vmatprep.subr.mxu0 %v8020
      %8059 = vmatpush1.msra.mxu0 %v8019
      %8060 = vmatprep.subr.mxu0 %v8022
      %8061 = vmatpush1.msra.mxu0 %v8021
      %8062 = vmatprep.subr.mxu0 %v8024
      %8063 = vmatpush1.msra.mxu0 %v8023
      %8064 = vmatprep.subr.mxu0 %v8026
      %8065 = vmatpush1.msra.mxu0 %v8025
      %8066 = vmatprep.subr.mxu0 %v8028
      %8067 = vmatpush1.msra.mxu0 %v8027
      %8068 = vmatprep.subr.mxu0 %v8030
      %8069 = vmatpush1.msra.mxu0 %v8029
      %8070 = vmatprep.subr.mxu0 %v8032
      %8071 = vmatpush1.msra.mxu0 %v8031
      %8072 = vmatprep.subr.mxu0 0.0
      %8073 = vmatpush1.msra.mxu0 0.0
      %8074 = vmatprep.subr.mxu0 0.0
      %8075 = vmatpush1.msra.mxu0 0.0
      %8076 = vmatprep.subr.mxu0 0.0
      %8077 = vmatpush1.msra.mxu0 0.0
      %8078 = vmatprep.subr.mxu0 0.0
      %8079 = vmatpush1.msra.mxu0 0.0
      %8080 = vmatprep.subr.mxu0 0.0
      %8081 = vmatpush1.msra.mxu0 0.0
      %8082 = vmatprep.subr.mxu0 0.0
      %8083 = vmatpush1.msra.mxu0 0.0
      %8084 = vmatprep.subr.mxu0 0.0
      %8085 = vmatpush1.msra.mxu0 0.0
      %8086 = vmatprep.subr.mxu0 0.0
      %8087 = vmatpush1.msra.mxu0 0.0
      %8088 = vmatprep.subr.mxu0 0.0
      %8089 = vmatpush1.msra.mxu0 0.0
      %8090 = vmatprep.subr.mxu0 0.0
      %8091 = vmatpush1.msra.mxu0 0.0
      %8092 = vmatprep.subr.mxu0 0.0
      %8093 = vmatpush1.msra.mxu0 0.0
      %8094 = vmatprep.subr.mxu0 0.0
      %8095 = vmatpush1.msra.mxu0 0.0
      %8096 = vmatprep.subr.mxu0 0.0
      %8097 = vmatpush1.msra.mxu0 0.0
      %8098 = vmatprep.subr.mxu0 0.0
      %8099 = vmatpush1.msra.mxu0 0.0
      %8100 = vmatprep.subr.mxu0 0.0
      %8101 = vmatpush1.msra.mxu0 0.0
      %8102 = vmatprep.subr.mxu0 0.0
      %8103 = vmatpush1.msra.mxu0 0.0
      %8104 = vmatprep.subr.mxu0 0.0
      %8105 = vmatpush1.msra.mxu0 0.0
      %8106 = vmatprep.subr.mxu0 0.0
      %8107 = vmatpush1.msra.mxu0 0.0
      %8108 = vmatprep.subr.mxu0 0.0
      %8109 = vmatpush1.msra.mxu0 0.0
      %8110 = vmatprep.subr.mxu0 0.0
      %8111 = vmatpush1.msra.mxu0 0.0
      %8112 = vmatprep.subr.mxu0 0.0
      %8113 = vmatpush1.msra.mxu0 0.0
      %8114 = vmatprep.subr.mxu0 0.0
      %8115 = vmatpush1.msra.mxu0 0.0
      %8116 = vmatprep.subr.mxu0 0.0
      %8117 = vmatpush1.msra.mxu0 0.0
      %8118 = vmatprep.mubr.f32.mxu0 0.0
      %8119 = vmatmul.mubr.f32.gmra.mrb[0].mxu0 %v8052
      %v8120 = vpop.f32.mrb[0].mxu0
      %v8121 = vadd.f32 %v7959, %v8120
      %v8122 = vpop.f32.mrb[0].mxu0
      %v8123 = vadd.f32 %v7959, %v8122
      %8124 = vdwg.mxu0
      %v8125 = vadd.f32 %v7592, %v8121
      %v8126 = vadd.f32 %v7593, %v8123
      %s8127 = scalar_lea.vmem %s5, 112
      %v8128 = vld [vmem:[%s8127] sm:$0xff]
      %s8129 = scalar_lea.vmem %s6, 112
      %v8130 = vld [vmem:[%s8129] sm:$0xff]
      %s8131 = scalar_lea.vmem %s7, 112
      %v8132 = vld [vmem:[%s8131] sm:$0xff]
      %s8133 = scalar_lea.vmem %s8, 112
      %v8134 = vld [vmem:[%s8133] sm:$0xff]
      %s8135 = scalar_lea.vmem %s9, 112
      %v8136 = vld [vmem:[%s8135] sm:$0xff]
      %s8137 = scalar_lea.vmem %s10, 112
      %v8138 = vld [vmem:[%s8137] sm:$0xff]
      %8140 = vset.pattern.permute.xlu0 0
      %8141 = vperm.xlu0 %8140, %v8130
      %v8142 = vpop.permute.xlu0 %8141
      %v8145 = vsel %vm733, %v8128, 0
      %8147 = vmatprep.subr.mxu0 %v7737
      %8148 = vmatpush1.msra.mxu0 %v7736
      %8149 = vmatprep.subr.mxu0 %v7739
      %8150 = vmatpush1.msra.mxu0 %v7738
      %8151 = vmatprep.subr.mxu0 %v7741
      %8152 = vmatpush1.msra.mxu0 %v7740
      %8153 = vmatprep.subr.mxu0 %v7743
      %8154 = vmatpush1.msra.mxu0 %v7742
      %8155 = vmatprep.subr.mxu0 %v7745
      %8156 = vmatpush1.msra.mxu0 %v7744
      %8157 = vmatprep.subr.mxu0 %v7747
      %8158 = vmatpush1.msra.mxu0 %v7746
      %8159 = vmatprep.subr.mxu0 %v7749
      %8160 = vmatpush1.msra.mxu0 %v7748
      %8161 = vmatprep.subr.mxu0 %v7751
      %8162 = vmatpush1.msra.mxu0 %v7750
      %8163 = vmatprep.subr.mxu0 %v7753
      %8164 = vmatpush1.msra.mxu0 %v7752
      %8165 = vmatprep.subr.mxu0 0.0
      %8166 = vmatpush1.msra.mxu0 0.0
      %8167 = vmatprep.subr.mxu0 0.0
      %8168 = vmatpush1.msra.mxu0 0.0
      %8169 = vmatprep.subr.mxu0 0.0
      %8170 = vmatpush1.msra.mxu0 0.0
      %8171 = vmatprep.subr.mxu0 0.0
      %8172 = vmatpush1.msra.mxu0 0.0
      %8173 = vmatprep.subr.mxu0 0.0
      %8174 = vmatpush1.msra.mxu0 0.0
      %8175 = vmatprep.subr.mxu0 0.0
      %8176 = vmatpush1.msra.mxu0 0.0
      %8177 = vmatprep.subr.mxu0 0.0
      %8178 = vmatpush1.msra.mxu0 0.0
      %8179 = vmatprep.subr.mxu0 0.0
      %8180 = vmatpush1.msra.mxu0 0.0
      %8181 = vmatprep.subr.mxu0 0.0
      %8182 = vmatpush1.msra.mxu0 0.0
      %8183 = vmatprep.subr.mxu0 0.0
      %8184 = vmatpush1.msra.mxu0 0.0
      %8185 = vmatprep.subr.mxu0 0.0
      %8186 = vmatpush1.msra.mxu0 0.0
      %8187 = vmatprep.subr.mxu0 0.0
      %8188 = vmatpush1.msra.mxu0 0.0
      %8189 = vmatprep.subr.mxu0 0.0
      %8190 = vmatpush1.msra.mxu0 0.0
      %8191 = vmatprep.subr.mxu0 0.0
      %8192 = vmatpush1.msra.mxu0 0.0
      %8193 = vmatprep.subr.mxu0 0.0
      %8194 = vmatpush1.msra.mxu0 0.0
      %8195 = vmatprep.subr.mxu0 0.0
      %8196 = vmatpush1.msra.mxu0 0.0
      %8197 = vmatprep.subr.mxu0 0.0
      %8198 = vmatpush1.msra.mxu0 0.0
      %8199 = vmatprep.subr.mxu0 0.0
      %8200 = vmatpush1.msra.mxu0 0.0
      %8201 = vmatprep.subr.mxu0 0.0
      %8202 = vmatpush1.msra.mxu0 0.0
      %8203 = vmatprep.subr.mxu0 0.0
      %8204 = vmatpush1.msra.mxu0 0.0
      %8205 = vmatprep.subr.mxu0 0.0
      %8206 = vmatpush1.msra.mxu0 0.0
      %8207 = vmatprep.subr.mxu0 0.0
      %8208 = vmatpush1.msra.mxu0 0.0
      %8209 = vmatprep.subr.mxu0 0.0
      %8210 = vmatpush1.msra.mxu0 0.0
      %8211 = vmatprep.mubr.f32.mxu0 0.0
      %8212 = vmatmul.mubr.f32.gmra.mrb[0].mxu0 %v8145
      %v8213 = vpop.f32.mrb[0].mxu0
      %v8214 = vadd.f32 %v8142, %v8213
      %v8215 = vpop.f32.mrb[0].mxu0
      %v8216 = vadd.f32 %v8142, %v8215
      %8217 = vdwg.mxu0
      %v8218 = vadd.f32 %v8214, %v8216
      %8219 = vadd.xlane.f32.xlu0 %v8218
      %v8220 = vpop.xlane.xlu0 %8219
      %v8221 = vmul.f32 %v8220, %v1152
      %v8222 = vmul.f32 %v8214, %v8214
      %v8223 = vmul.f32 %v8216, %v8216
      %v8224 = vadd.f32 %v8222, %v8223
      %8225 = vadd.xlane.f32.xlu0 %v8224
      %v8226 = vpop.xlane.xlu0 %8225
      %v8227 = vmul.f32 %v8226, %v1152
      %v8228 = vmul.f32 %v8221, %v8221
      %v8229 = vsub.f32 %v8227, %v8228
      %v8230 = vmax.f32 %v8229, 0.0
      %v8231 = vsub.f32 %v8214, %v8221
      %v8232 = vsub.f32 %v8216, %v8221
      %v8233 = vadd.f32 %v8230, 1e-05
      %v8234 = vrsqrt.pop %v8233
      %v8235 = vmul.f32 %v8231, %v8234
      %v8236 = vmul.f32 %v8232, %v8234
      %8238 = vset.pattern.permute.xlu0 0
      %8239 = vperm.xlu0 %8238, %v8132
      %v8240 = vpop.permute.xlu0 %8239
      %v8242 = vmul.f32 %v8235, %v8240
      %v8243 = vmul.f32 %v8236, %v8240
      %8245 = vset.pattern.permute.xlu0 0
      %8246 = vperm.xlu0 %8245, %v8134
      %v8247 = vpop.permute.xlu0 %8246
      %v8249 = vadd.f32 %v8242, %v8247
      %v8250 = vadd.f32 %v8243, %v8247
      %v8251 = vmul.f32 %v8249, %v448
      %v8252 = vmul.f32 %v8250, %v448
      %v8253 = vmul.f32 %v8214, %v1185
      %v8254 = vmul.f32 %v8216, %v1185
      %v8255 = vadd.f32 %v8251, %v8253
      %v8256 = vadd.f32 %v8252, %v8254
      %v8257 = vmul.f32 %v8255, %v469
      %v8258 = vmul.f32 %v8256, %v467
      %v8259 = vmul.f32 %v8255, %v490
      %v8260 = vmul.f32 %v8256, %v488
      %v8261 = vmul.f32 %v8255, %v502
      %v8262 = vmul.f32 %v8256, %v500
      %v8263 = vmul.f32 %v8255, %v510
      %v8264 = vmul.f32 %v8256, %v514
      %v8265 = vmul.f32 %v8255, %v522
      %v8266 = vmul.f32 %v8256, %v526
      %v8267 = vmul.f32 %v8255, %v534
      %v8268 = vmul.f32 %v8256, %v538
      %8271 = vrot.lane.b32.xlu0 %v8255, 127
      %v8272 = vpop.permute.xlu0 %8271
      %8273 = vrot.lane.b32.xlu0 %v8256, 127
      %v8274 = vpop.permute.xlu0 %8273
      %v8275 = vsel %vm501, %v549, %v8272
      %v8276 = vsel %vm501, %v8272, %v8274
      %8279 = vrot.lane.b32.xlu0 %v8259, 126
      %v8280 = vpop.permute.xlu0 %8279
      %8281 = vrot.lane.b32.xlu0 %v8260, 126
      %v8282 = vpop.permute.xlu0 %8281
      %v8283 = vsel %vm565, %v560, %v8280
      %v8284 = vsel %vm565, %v8280, %v8282
      %8287 = vrot.lane.b32.xlu0 %v8261, 112
      %v8288 = vpop.permute.xlu0 %8287
      %8289 = vrot.lane.b32.xlu0 %v8262, 112
      %v8290 = vpop.permute.xlu0 %8289
      %v8291 = vsel %vm577, %v572, %v8288
      %v8292 = vsel %vm577, %v8288, %v8290
      %8293 = vrot.lane.b32.xlu0 %v8255, 111
      %v8294 = vpop.permute.xlu0 %8293
      %8295 = vrot.lane.b32.xlu0 %v8256, 111
      %v8296 = vpop.permute.xlu0 %8295
      %v8297 = vsel %vm468, %v8294, %v8296
      %8300 = vrot.lane.b32.xlu0 %v8263, 110
      %v8301 = vpop.permute.xlu0 %8300
      %8302 = vrot.lane.b32.xlu0 %v8264, 110
      %v8303 = vpop.permute.xlu0 %8302
      %v8304 = vsel %vm594, %v8301, %v8303
      %v8305 = vsel %vm594, %v8303, %v593
      %8308 = vrot.lane.b32.xlu0 %v8265, 96
      %v8309 = vpop.permute.xlu0 %8308
      %8310 = vrot.lane.b32.xlu0 %v8266, 96
      %v8311 = vpop.permute.xlu0 %8310
      %v8312 = vsel %vm606, %v8309, %v8311
      %v8313 = vsel %vm606, %v8311, %v605
      %8314 = vrot.lane.b32.xlu0 %v8255, 95
      %v8315 = vpop.permute.xlu0 %8314
      %8316 = vrot.lane.b32.xlu0 %v8256, 95
      %v8317 = vpop.permute.xlu0 %8316
      %v8318 = vsel %vm615, %v8315, %v8317
      %v8319 = vsel %vm615, %v8317, %v614
      %8322 = vrot.lane.b32.xlu0 %v8267, 94
      %v8323 = vpop.permute.xlu0 %8322
      %8324 = vrot.lane.b32.xlu0 %v8268, 94
      %v8325 = vpop.permute.xlu0 %8324
      %v8326 = vsel %vm627, %v8323, %v8325
      %v8327 = vsel %vm627, %v8325, %v626
      %8329 = vset.pattern.permute.xlu0 0
      %8330 = vperm.xlu0 %8329, %v8138
      %v8331 = vpop.permute.xlu0 %8330
      %8335 = vrot.lane.b32.xlu0 %v8257, 17
      %v8336 = vpop.permute.xlu0 %8335
      %8337 = vrot.lane.b32.xlu0 %v8258, 17
      %v8338 = vpop.permute.xlu0 %8337
      %8339 = vrot.lane.b32.xlu0 %v8275, 17
      %v8340 = vpop.permute.xlu0 %8339
      %8341 = vrot.lane.b32.xlu0 %v8276, 17
      %v8342 = vpop.permute.xlu0 %8341
      %8343 = vrot.lane.b32.xlu0 %v8274, 17
      %v8344 = vpop.permute.xlu0 %8343
      %8345 = vrot.lane.b32.xlu0 %v8283, 17
      %v8346 = vpop.permute.xlu0 %8345
      %8347 = vrot.lane.b32.xlu0 %v8284, 17
      %v8348 = vpop.permute.xlu0 %8347
      %8349 = vrot.lane.b32.xlu0 %v8282, 17
      %v8350 = vpop.permute.xlu0 %8349
      %8351 = vrot.lane.b32.xlu0 %v8291, 17
      %v8352 = vpop.permute.xlu0 %8351
      %8353 = vrot.lane.b32.xlu0 %v8292, 17
      %v8354 = vpop.permute.xlu0 %8353
      %8355 = vrot.lane.b32.xlu0 %v8290, 17
      %v8356 = vpop.permute.xlu0 %8355
      %8357 = vrot.lane.b32.xlu0 %v8294, 17
      %v8358 = vpop.permute.xlu0 %8357
      %8359 = vrot.lane.b32.xlu0 %v8297, 17
      %v8360 = vpop.permute.xlu0 %8359
      %8361 = vrot.lane.b32.xlu0 %v8296, 17
      %v8362 = vpop.permute.xlu0 %8361
      %8363 = vrot.lane.b32.xlu0 %v8301, 17
      %v8364 = vpop.permute.xlu0 %8363
      %8365 = vrot.lane.b32.xlu0 %v8304, 17
      %v8366 = vpop.permute.xlu0 %8365
      %8367 = vrot.lane.b32.xlu0 %v8305, 17
      %v8368 = vpop.permute.xlu0 %8367
      %8369 = vrot.lane.b32.xlu0 %v8309, 17
      %v8370 = vpop.permute.xlu0 %8369
      %8371 = vrot.lane.b32.xlu0 %v8312, 17
      %v8372 = vpop.permute.xlu0 %8371
      %8373 = vrot.lane.b32.xlu0 %v8313, 17
      %v8374 = vpop.permute.xlu0 %8373
      %8375 = vrot.lane.b32.xlu0 %v8315, 17
      %v8376 = vpop.permute.xlu0 %8375
      %8377 = vrot.lane.b32.xlu0 %v8318, 17
      %v8378 = vpop.permute.xlu0 %8377
      %8379 = vrot.lane.b32.xlu0 %v8319, 17
      %v8380 = vpop.permute.xlu0 %8379
      %8381 = vrot.lane.b32.xlu0 %v8323, 17
      %v8382 = vpop.permute.xlu0 %8381
      %8383 = vrot.lane.b32.xlu0 %v8326, 17
      %v8384 = vpop.permute.xlu0 %8383
      %8385 = vrot.lane.b32.xlu0 %v8327, 17
      %v8386 = vpop.permute.xlu0 %8385
      %v8387 = vsel %vm537, %v644, %v8336
      %v8388 = vsel %vm537, %v8336, %v8338
      %v8389 = vsel %vm537, %v8340, %v8342
      %v8390 = vsel %vm537, %v8342, %v8344
      %v8391 = vsel %vm537, %v8346, %v8348
      %v8392 = vsel %vm537, %v8348, %v8350
      %v8393 = vsel %vm537, %v8352, %v8354
      %v8394 = vsel %vm537, %v8354, %v8356
      %v8395 = vsel %vm537, %v8358, %v8360
      %v8396 = vsel %vm537, %v8360, %v8362
      %v8397 = vsel %vm537, %v8364, %v8366
      %v8398 = vsel %vm537, %v8366, %v8368
      %v8399 = vsel %vm537, %v8370, %v8372
      %v8400 = vsel %vm537, %v8372, %v8374
      %v8401 = vsel %vm537, %v8376, %v8378
      %v8402 = vsel %vm537, %v8378, %v8380
      %v8403 = vsel %vm537, %v8382, %v8384
      %v8404 = vsel %vm537, %v8384, %v8386
      %v8424 = vsel %vm733, %v8136, 0
      %8426 = vmatprep.subr.mxu0 %v8388
      %8427 = vmatpush1.msra.mxu0 %v8387
      %8428 = vmatprep.subr.mxu0 %v8390
      %8429 = vmatpush1.msra.mxu0 %v8389
      %8430 = vmatprep.subr.mxu0 %v8392
      %8431 = vmatpush1.msra.mxu0 %v8391
      %8432 = vmatprep.subr.mxu0 %v8394
      %8433 = vmatpush1.msra.mxu0 %v8393
      %8434 = vmatprep.subr.mxu0 %v8396
      %8435 = vmatpush1.msra.mxu0 %v8395
      %8436 = vmatprep.subr.mxu0 %v8398
      %8437 = vmatpush1.msra.mxu0 %v8397
      %8438 = vmatprep.subr.mxu0 %v8400
      %8439 = vmatpush1.msra.mxu0 %v8399
      %8440 = vmatprep.subr.mxu0 %v8402
      %8441 = vmatpush1.msra.mxu0 %v8401
      %8442 = vmatprep.subr.mxu0 %v8404
      %8443 = vmatpush1.msra.mxu0 %v8403
      %8444 = vmatprep.subr.mxu0 0.0
      %8445 = vmatpush1.msra.mxu0 0.0
      %8446 = vmatprep.subr.mxu0 0.0
      %8447 = vmatpush1.msra.mxu0 0.0
      %8448 = vmatprep.subr.mxu0 0.0
      %8449 = vmatpush1.msra.mxu0 0.0
      %8450 = vmatprep.subr.mxu0 0.0
      %8451 = vmatpush1.msra.mxu0 0.0
      %8452 = vmatprep.subr.mxu0 0.0
      %8453 = vmatpush1.msra.mxu0 0.0
      %8454 = vmatprep.subr.mxu0 0.0
      %8455 = vmatpush1.msra.mxu0 0.0
      %8456 = vmatprep.subr.mxu0 0.0
      %8457 = vmatpush1.msra.mxu0 0.0
      %8458 = vmatprep.subr.mxu0 0.0
      %8459 = vmatpush1.msra.mxu0 0.0
      %8460 = vmatprep.subr.mxu0 0.0
      %8461 = vmatpush1.msra.mxu0 0.0
      %8462 = vmatprep.subr.mxu0 0.0
      %8463 = vmatpush1.msra.mxu0 0.0
      %8464 = vmatprep.subr.mxu0 0.0
      %8465 = vmatpush1.msra.mxu0 0.0
      %8466 = vmatprep.subr.mxu0 0.0
      %8467 = vmatpush1.msra.mxu0 0.0
      %8468 = vmatprep.subr.mxu0 0.0
      %8469 = vmatpush1.msra.mxu0 0.0
      %8470 = vmatprep.subr.mxu0 0.0
      %8471 = vmatpush1.msra.mxu0 0.0
      %8472 = vmatprep.subr.mxu0 0.0
      %8473 = vmatpush1.msra.mxu0 0.0
      %8474 = vmatprep.subr.mxu0 0.0
      %8475 = vmatpush1.msra.mxu0 0.0
      %8476 = vmatprep.subr.mxu0 0.0
      %8477 = vmatpush1.msra.mxu0 0.0
      %8478 = vmatprep.subr.mxu0 0.0
      %8479 = vmatpush1.msra.mxu0 0.0
      %8480 = vmatprep.subr.mxu0 0.0
      %8481 = vmatpush1.msra.mxu0 0.0
      %8482 = vmatprep.subr.mxu0 0.0
      %8483 = vmatpush1.msra.mxu0 0.0
      %8484 = vmatprep.subr.mxu0 0.0
      %8485 = vmatpush1.msra.mxu0 0.0
      %8486 = vmatprep.subr.mxu0 0.0
      %8487 = vmatpush1.msra.mxu0 0.0
      %8488 = vmatprep.subr.mxu0 0.0
      %8489 = vmatpush1.msra.mxu0 0.0
      %8490 = vmatprep.mubr.f32.mxu0 0.0
      %8491 = vmatmul.mubr.f32.gmra.mrb[0].mxu0 %v8424
      %v8492 = vpop.f32.mrb[0].mxu0
      %v8493 = vadd.f32 %v8331, %v8492
      %v8494 = vpop.f32.mrb[0].mxu0
      %v8495 = vadd.f32 %v8331, %v8494
      %8496 = vdwg.mxu0
      %v8497 = vadd.f32 %v7592, %v8493
      %v8498 = vadd.f32 %v7593, %v8495
      %v8499 = vmul.f32 %v8125, 0.5
      %v8500 = vmul.f32 %v8126, 0.5
      %v8501 = vtanh.pop %v8499
      %v8502 = vtanh.pop %v8500
      %v8503 = vmul.f32 %v8501, 0.8
      %v8504 = vmul.f32 %v8502, 0.8
      %v8505 = vmul.f32 %v8503, 1.442695
      %v8506 = vpow.pop %v8505
      %v8507 = vmul.f32 %v8504, 1.442695
      %v8508 = vpow.pop %v8507
      %v8509 = vmul.f32 %v7055, %v8506
      %v8510 = vmul.f32 %v7057, %v8508
      %v8511 = vadd.f32 %v8509, %v8497
      %v8512 = vadd.f32 %v8510, %v8498
      %v8513 = vld [vmem:[%s11] sm:$0xff]
      %v8514 = vld [vmem:[%s12] sm:$0xff]
      %8516 = vset.pattern.permute.xlu0 0
      %8517 = vperm.xlu0 %8516, %v8514
      %v8518 = vpop.permute.xlu0 %8517
      %v8521 = vsel %vm819, %v8513, 0
      %8523 = vmatprep.subr.mxu0 %v7593
      %8524 = vmatpush1.msra.mxu0 %v7592
      %8525 = vmatprep.subr.mxu0 %v8512
      %8526 = vmatpush1.msra.mxu0 %v8511
      %8527 = vmatprep.subr.mxu0 0.0
      %8528 = vmatpush1.msra.mxu0 0.0
      %8529 = vmatprep.subr.mxu0 0.0
      %8530 = vmatpush1.msra.mxu0 0.0
      %8531 = vmatprep.subr.mxu0 0.0
      %8532 = vmatpush1.msra.mxu0 0.0
      %8533 = vmatprep.subr.mxu0 0.0
      %8534 = vmatpush1.msra.mxu0 0.0
      %8535 = vmatprep.subr.mxu0 0.0
      %8536 = vmatpush1.msra.mxu0 0.0
      %8537 = vmatprep.subr.mxu0 0.0
      %8538 = vmatpush1.msra.mxu0 0.0
      %8539 = vmatprep.subr.mxu0 0.0
      %8540 = vmatpush1.msra.mxu0 0.0
      %8541 = vmatprep.subr.mxu0 0.0
      %8542 = vmatpush1.msra.mxu0 0.0
      %8543 = vmatprep.subr.mxu0 0.0
      %8544 = vmatpush1.msra.mxu0 0.0
      %8545 = vmatprep.subr.mxu0 0.0
      %8546 = vmatpush1.msra.mxu0 0.0
      %8547 = vmatprep.subr.mxu0 0.0
      %8548 = vmatpush1.msra.mxu0 0.0
      %8549 = vmatprep.subr.mxu0 0.0
      %8550 = vmatpush1.msra.mxu0 0.0
      %8551 = vmatprep.subr.mxu0 0.0
      %8552 = vmatpush1.msra.mxu0 0.0
      %8553 = vmatprep.subr.mxu0 0.0
      %8554 = vmatpush1.msra.mxu0 0.0
      %8555 = vmatprep.subr.mxu0 0.0
      %8556 = vmatpush1.msra.mxu0 0.0
      %8557 = vmatprep.subr.mxu0 0.0
      %8558 = vmatpush1.msra.mxu0 0.0
      %8559 = vmatprep.subr.mxu0 0.0
      %8560 = vmatpush1.msra.mxu0 0.0
      %8561 = vmatprep.subr.mxu0 0.0
      %8562 = vmatpush1.msra.mxu0 0.0
      %8563 = vmatprep.subr.mxu0 0.0
      %8564 = vmatpush1.msra.mxu0 0.0
      %8565 = vmatprep.subr.mxu0 0.0
      %8566 = vmatpush1.msra.mxu0 0.0
      %8567 = vmatprep.subr.mxu0 0.0
      %8568 = vmatpush1.msra.mxu0 0.0
      %8569 = vmatprep.subr.mxu0 0.0
      %8570 = vmatpush1.msra.mxu0 0.0
      %8571 = vmatprep.subr.mxu0 0.0
      %8572 = vmatpush1.msra.mxu0 0.0
      %8573 = vmatprep.subr.mxu0 0.0
      %8574 = vmatpush1.msra.mxu0 0.0
      %8575 = vmatprep.subr.mxu0 0.0
      %8576 = vmatpush1.msra.mxu0 0.0
      %8577 = vmatprep.subr.mxu0 0.0
      %8578 = vmatpush1.msra.mxu0 0.0
      %8579 = vmatprep.subr.mxu0 0.0
      %8580 = vmatpush1.msra.mxu0 0.0
      %8581 = vmatprep.subr.mxu0 0.0
      %8582 = vmatpush1.msra.mxu0 0.0
      %8583 = vmatprep.subr.mxu0 0.0
      %8584 = vmatpush1.msra.mxu0 0.0
      %8585 = vmatprep.subr.mxu0 0.0
      %8586 = vmatpush1.msra.mxu0 0.0
      %8587 = vmatprep.mubr.f32.mxu0 0.0
      %8588 = vmatmul.mubr.f32.gmra.mrb[0].mxu0 %v8521
      %v8589 = vpop.f32.mrb[0].mxu0
      %v8590 = vadd.f32 %v8518, %v8589
      %v8591 = vpop.f32.mrb[0].mxu0
      %v8592 = vadd.f32 %v8518, %v8591
      %8593 = vdwg.mxu0
      %8594 = vst [vmem:[%s440] sm:$0xff] %v8590
      %8595 = vst [vmem:[%s440 + $0x8] sm:$0xff] %v8592
      %p8596 = scmp.lt.s32.totalorder %s24, 1
      %s8597 = scalar_select %p8596, %s24, 1
      %s8598 = smul.addr %s8597, 2
      %s8599 = smul.addr %s8598, 8
      %s8600 = scalar_lea.vmem %s13, %s8599
      // Predicated region
      $region73: #{h_feature_process.1} parent=71 // pred_check
        %p8601 = pneg %p320
      $region74: #{h_feature_process.1} parent=71 // pred_check_branch
        %8603 = sbr.rel (%p8601) target = $region76
      $region75: #{h_feature_process.1} parent=71 // pred_region
        _
      $region76: #{h_feature_process.1} parent=71 // pred_fallthru
        _
    $region72: #{h_feature_process.1} parent=5 // pred_fallthru
      _
    %p8604 = scmp.le.s32.totalorder 2, %s19
    // Predicated region
    $region77: #{h_feature_process.1} parent=5 // pred_check
      %p8605 = pneg %p8604
    $region78: #{h_feature_process.1} parent=5 // pred_check_branch
      %8607 = sbr.rel (%p8605) target = $region80
    $region79: #{h_feature_process.1} parent=5 // pred_region
      %s8608 = ssub.s32 %s19, 2
      // Predicated region
      $region81: #{h_feature_process.1} parent=79 // pred_check
        %p8609 = pneg %p326
      $region82: #{h_feature_process.1} parent=79 // pred_check_branch
        %8611 = sbr.rel (%p8609) target = $region84
      $region83: #{h_feature_process.1} parent=79 // pred_region
        %p8612 = scmp.lt.s32.totalorder %s25, 1
        %s8613 = scalar_select %p8612, %s25, 1
        %s8614 = smul.addr %s8613, 2
        %s8615 = smul.addr %s8614, 8
        %s8616 = scalar_lea.vmem %s13, %s8615
      $region84: #{h_feature_process.1} parent=79 // pred_fallthru
        _
    $region80: #{h_feature_process.1} parent=5 // pred_fallthru
      _
  $region6: #{h_feature_process.1} parent=0 // loop_footer
    %s23 = sadd.s32 1, %s19
  $region7: #{h_feature_process.1} parent=0 // loop_footer_branch
    %18 = sbr.rel target = $region3
  $region8: #{h_feature_process.1} parent=0 // loop_exit
    _

</llo_original>
